<compile_context>
chip_gen: v6e
topology: v6e:2x2x1
jax: 0.10.0
libtpu: 0.0.40
codegen_flags: <defaults>
</compile_context>

<pallas_src>
import math

import jax
import jax.numpy as jnp
import numpy as np
from jax.experimental import pallas as pl
from jax.experimental.pallas import tpu as pltpu


# --------------------------------------------------------------------------- #
# Static length bookkeeping (matches PyTorch's shape rules).                   #
# --------------------------------------------------------------------------- #
def _round_up(a, m):
    return -(-a // m) * m


def _lengths(H):
    L0 = H - 5                       # Conv2d(1,64,(6,4)): width 4 collapses to 1
    L1 = L0 // 3                     # MaxPool1d(3), floor mode
    L0u = 3 * L1                     # conv2d rows actually consumed by the pool
    L2 = L1 - 2                      # Conv1d(64,128,3)
    L3 = -(-(L2 - 3) // 3) + 1       # MaxPool1d(3, ceil_mode=True)
    if (L3 - 1) * 3 >= L2:           # PyTorch: last window must start inside input
        L3 -= 1
    L2p = 3 * L3                     # (only used by the pure-JAX reference)
    L4 = L3 - 2                      # Conv1d(128,256,3)
    return L0, L0u, L1, L2, L2p, L3, L4


# --------------------------------------------------------------------------- #
# Kernel                                                                       #
# --------------------------------------------------------------------------- #
def _make_kernel(TB, H, L1, L2, L3, L4, dense_conv2d):
    K4 = 4 * H
    C1, C2, C3 = 64, 128, 256

    def mm(a, w):
        # Cast lhs to the weight dtype (bf16 by default) and accumulate in f32.
        return jnp.dot(a.astype(w.dtype), w, preferred_element_type=jnp.float32)

    def conv_taps(h3, w_ref, Lout, Cin):
        # Tap-accumulated Conv1d(kernel=3): three lane-aligned matmuls, no
        # lane-axis concat im2col.  h3: (TB, Lin, Cin), w_ref: (3*Cin, Cout).
        acc = None
        for r in range(3):
            lhs = h3[:, r:r + Lout, :].reshape(TB * Lout, Cin)
            part = mm(lhs, w_ref[pl.ds(r * Cin, Cin), :])
            acc = part if acc is None else acc + part
        return acc                                               # (TB*Lout, Cout)

    def first_stage_dense(x_ref, w_ref, b_ref, s_ref, t_ref):
        # Conv2d(1,64,(6,4)) + ReLU + MaxPool1d(3) + folded BN1, all in
        # lane-packed (m, c) space: 3 phase matmuls + elementwise max.
        x = x_ref[...]                                           # (TB, 4H)
        y = None
        for p in range(3):
            yp = mm(x, w_ref[pl.ds(p * K4, K4), :])              # (TB, L1*64) f32
            y = yp if y is None else jnp.maximum(y, yp)
        y = jnp.maximum(y + b_ref[...], 0.0)                     # bias+ReLU (commute w/ max)
        y = y * s_ref[...] + t_ref[...]                          # folded BN1
        # lane -> sublane unpack via aligned 64-lane slices: (TB, L1*64) -> (TB, L1, 64)
        pieces = [y[:, m * C1:(m + 1) * C1].reshape(TB, 1, C1) for m in range(L1)]
        return jnp.concatenate(pieces, axis=1)

    def first_stage_im2col(x_ref, w_ref, b_ref, s_ref, t_ref):
        # Large-H fallback: wrapper-side im2col, single (TB*L0u,24)x(24,64) matmul.
        h = mm(x_ref[...], w_ref[...])                           # (TB*L0u, 64)
        h = jnp.maximum(h + b_ref[...], 0.0)
        h = jnp.max(h.reshape(TB * L1, 3, C1), axis=1)           # MaxPool1d(3)
        h = h * s_ref[...] + t_ref[...]                          # folded BN1
        return h.reshape(TB, L1, C1)

    def kernel(x_ref, wc0_ref, bc0_ref, bn1s_ref, bn1b_ref,
               w1_ref, b1_ref, bn2s_ref, bn2b_ref,
               w2_ref, b2_ref, bn3s_ref, bn3b_ref,
               fw1_ref, fb1_ref, fw2_ref, fb2_ref, fw3_ref, fb3_ref,
               out_ref):
        if dense_conv2d:
            h3 = first_stage_dense(x_ref, wc0_ref, bc0_ref, bn1s_ref, bn1b_ref)
        else:
            h3 = first_stage_im2col(x_ref, wc0_ref, bc0_ref, bn1s_ref, bn1b_ref)
        # h3: (TB, L1, 64) f32

        # --- Conv1d(64,128,3) + ReLU: 3 tap matmuls ----------------------------
        h = jnp.maximum(conv_taps(h3, w1_ref, L2, C1) + b1_ref[...], 0.0)  # (TB*L2,128)

        # --- MaxPool1d(3, ceil_mode=True): full windows + partial tail ---------
        h = h.reshape(TB, L2, C2)
        full = 3 * (L3 - 1)
        main = jnp.max(h[:, :full, :].reshape(TB * (L3 - 1), 3, C2), axis=1)
        tail = jnp.max(h[:, full:, :], axis=1).reshape(TB, 1, C2)
        hp = jnp.concatenate([main.reshape(TB, L3 - 1, C2), tail], axis=1)  # (TB,L3,128)

        # --- BatchNorm1d(128), folded ------------------------------------------
        hp = hp * bn2s_ref[...] + bn2b_ref[...]

        # --- Conv1d(128,256,3) + ReLU + BatchNorm1d(256) ------------------------
        h = jnp.maximum(conv_taps(hp, w2_ref, L4, C2) + b2_ref[...], 0.0)   # (TB*L4,256)
        h = h * bn3s_ref[...] + bn3b_ref[...]

        # --- AdaptiveAvgPool1d(1) + Flatten --------------------------------------
        h = jnp.mean(h.reshape(TB, L4, C3), axis=1)                         # (TB, 256)

        # --- fc: 256->128->64->2 (Dropout is identity in eval) -------------------
        # The final layer is lane-padded to 128 columns for a lane-dense store.
        h = jnp.maximum(mm(h, fw1_ref[...]) + fb1_ref[...], 0.0)            # (TB, 128)
        h = jnp.maximum(mm(h, fw2_ref[...]) + fb2_ref[...], 0.0)            # (TB, 64)
        out_ref[...] = mm(h, fw3_ref[...]) + fb3_ref[...]                   # (TB, 128)

    return kernel


# --------------------------------------------------------------------------- #
# Wrapper                                                                      #
# --------------------------------------------------------------------------- #
def _fold_bn(bn, eps=1e-5):
    s = bn["gamma"] / jnp.sqrt(bn["var"] + eps)
    return s, bn["beta"] - bn["mean"] * s


def _expanded_conv2d_weight(w2d, H, L1):
    """Phase-expanded Conv2d(1,64,(6,4)) weight.

    Returns (3*4H, L1*64): for pool phase p (row block p), column (m*64 + c)
    is the conv output at spatial row l = 3m + p, channel c, expressed as a
    linear map of the flattened (H*4,) input.
    """
    w_crk = w2d.reshape(64, 6, 4)                                # (c, r, k)
    wexp = jnp.zeros((3, 4 * H, L1, 64), jnp.float32)
    m = np.arange(L1)
    for p in range(3):
        for r in range(6):
            rows = (12 * m)[:, None] + 4 * (p + r) + np.arange(4)[None, :]   # (L1, 4)
            vals = jnp.broadcast_to(w_crk[:, r, :].T, (L1, 4, 64))           # (L1, 4, 64)
            wexp = wexp.at[p, rows, m[:, None], :].set(vals)
    return wexp.reshape(3 * 4 * H, L1 * 64)


def cnn_v2_forward(x_nchw, params, *, block_batch=128, matmul_dtype=jnp.bfloat16,
                   conv2d_mode="auto"):
    """x_nchw: (B, 1, H, 4) float32, matching the PyTorch module's NCHW input.

    matmul_dtype=jnp.bfloat16 (default) halves matmul-operand DMA / VMEM on
    v5e, v6e and v7x alike (the MXU takes bf16 operands with f32 accumulation
    on all three generations); pass jnp.float32 for exact-f32 semantics.
    conv2d_mode: "auto" | "dense" (phase-expanded conv2d weight, lane-dense
    input) | "im2col" (wrapper-side im2col fallback for large H).
    """
    B, C, H, W = x_nchw.shape
    assert C == 1 and W == 4
    L0, L0u, L1, L2, L2p, L3, L4 = _lengths(H)
    assert L4 >= 1, "input height too small for this architecture"
    assert conv2d_mode in ("auto", "dense", "im2col")

    itemsize = jnp.dtype(matmul_dtype).itemsize
    wexp_bytes = 3 * 4 * H * L1 * 64 * itemsize
    dense = (wexp_bytes <= 5 * 1024 * 1024) if conv2d_mode == "auto" \
        else conv2d_mode == "dense"

    # --- batch blocking -------------------------------------------------------
    # >= 2 grid steps whenever the 8-padded batch allows it, so v7x's two
    # TensorCores share the "parallel" batch axis (on v5e/v6e the extra grid
    # step costs ~0.35 us - negligible).  TB is also capped so the largest
    # per-block f32 intermediate stays a few MiB (safe under v7x's 64 MiB VMEM).
    tb_vmem_cap = max(8, (12288 // max(L0u, 1)) // 8 * 8)
    tb_cap = max(8, min(block_batch, tb_vmem_cap) // 8 * 8)
    Bp8 = _round_up(B, 8)
    n_steps = 1 if Bp8 <= 8 else max(2, -(-Bp8 // tb_cap))
    TB = _round_up(-(-Bp8 // n_steps), 8)
    Bp = TB * n_steps

    x = x_nchw[:, 0, :, :].astype(jnp.float32).reshape(B, 4 * H)
    if Bp > B:
        x = jnp.concatenate([x, jnp.zeros((Bp - B, 4 * H), jnp.float32)], axis=0)

    # --- fold BatchNorm running stats to scale/shift ---------------------------
    s1, t1 = _fold_bn(params["bn1"])
    s2, t2 = _fold_bn(params["bn2"])
    s3, t3 = _fold_bn(params["bn3"])

    cast = lambda a: a.astype(matmul_dtype)

    # --- first-stage operands --------------------------------------------------
    if dense:
        # Lane-dense raw input + phase-expanded conv2d weight (bias / BN1 tiled
        # over the L1 positions so they apply directly in lane-packed space).
        x_op = cast(x)                                           # (Bp, 4H)
        conv0_w = cast(_expanded_conv2d_weight(params["w2d"], H, L1))
        conv0_b = jnp.tile(params["b2d"], L1).reshape(1, L1 * 64)
        conv0_s = jnp.tile(s1, L1).reshape(1, L1 * 64)
        conv0_t = jnp.tile(t1, L1).reshape(1, L1 * 64)
        x_block = (TB, 4 * H)
    else:
        # Fallback for large H: wrapper-side im2col (lane-sparse input block).
        x3 = x.reshape(Bp, H, 4)
        xcol = jnp.concatenate([x3[:, r:r + L0u, :] for r in range(6)], axis=-1)
        x_op = cast(xcol.reshape(Bp * L0u, 24))
        conv0_w = cast(params["w2d"].reshape(64, 24).T)          # (24, 64)
        conv0_b = params["b2d"].reshape(1, 64)
        conv0_s = s1.reshape(1, 64)
        conv0_t = t1.reshape(1, 64)
        x_block = (TB * L0u, 24)

    # --- remaining weights (per-tap stacked, K-major) ---------------------------
    w1 = jnp.transpose(params["w1"], (2, 1, 0)).reshape(3 * 64, 128)   # taps stacked
    w2 = jnp.transpose(params["w2"], (2, 1, 0)).reshape(3 * 128, 256)
    fw1 = params["fw1"].T                                              # (256, 128)
    fw2 = params["fw2"].T                                              # (128, 64)
    OUTP = 128                                                         # lane-padded head
    fw3 = jnp.zeros((64, OUTP), jnp.float32).at[:, :2].set(params["fw3"].T)
    fb3 = jnp.zeros((1, OUTP), jnp.float32).at[:, :2].set(params["fb3"].reshape(1, 2))

    operands = [
        x_op,
        conv0_w, conv0_b, conv0_s, conv0_t,
        cast(w1), params["b1"].reshape(1, 128), s2.reshape(1, 128), t2.reshape(1, 128),
        cast(w2), params["b2"].reshape(1, 256), s3.reshape(1, 256), t3.reshape(1, 256),
        cast(fw1), params["fb1"].reshape(1, 128),
        cast(fw2), params["fb2"].reshape(1, 64),
        cast(fw3), fb3,
    ]

    # x is blocked over batch; every weight / folded-BN operand returns block
    # (0, 0) so it stays VMEM-resident across grid steps (no re-DMA).
    in_specs = [pl.BlockSpec(x_block, lambda i: (i, 0))]
    in_specs += [pl.BlockSpec(op.shape, lambda i: (0, 0)) for op in operands[1:]]

    out = pl.pallas_call(
        _make_kernel(TB, H, L1, L2, L3, L4, dense),
        out_shape=jax.ShapeDtypeStruct((Bp, OUTP), jnp.float32),
        grid=(Bp // TB,),
        in_specs=in_specs,
        out_specs=pl.BlockSpec((TB, OUTP), lambda i: (i, 0)),
        compiler_params=pltpu.CompilerParams(
            dimension_semantics=("parallel",),
            vmem_limit_bytes=32 * 1024 * 1024),
    )(*operands)

    return out[:B, :2]


# --------------------------------------------------------------------------- #
# Pure-JAX reference (same eval semantics) for a sanity check.                 #
# --------------------------------------------------------------------------- #
def cnn_v2_reference(x_nchw, params):
    B, _, H, _ = x_nchw.shape
    L0, L0u, L1, L2, L2p, L3, L4 = _lengths(H)
    eps = 1e-5
    x = x_nchw[:, 0].astype(jnp.float32)                            # (B, H, 4)

    def bn(h, p):
        s = p["gamma"] / jnp.sqrt(p["var"] + eps)
        return h * s + (p["beta"] - p["mean"] * s)

    cols = jnp.concatenate([x[:, r:r + L0, :] for r in range(6)], axis=-1)
    h = jax.nn.relu(jnp.einsum("blk,ok->blo", cols, params["w2d"].reshape(64, 24))
                    + params["b2d"])
    h = jnp.max(h[:, :L0u].reshape(B, L1, 3, 64), axis=2)
    h = bn(h, params["bn1"])

    w1 = jnp.transpose(params["w1"], (2, 1, 0)).reshape(192, 128)
    cols = jnp.concatenate([h[:, r:r + L2, :] for r in range(3)], axis=-1)
    h = jax.nn.relu(jnp.einsum("blk,ko->blo", cols, w1) + params["b1"])
    if L2p > L2:
        h = jnp.concatenate([h, jnp.full((B, L2p - L2, 128), -jnp.inf)], axis=1)
    h = jnp.max(h.reshape(B, L3, 3, 128), axis=2)
    h = bn(h, params["bn2"])

    w2 = jnp.transpose(params["w2"], (2, 1, 0)).reshape(384, 256)
    cols = jnp.concatenate([h[:, r:r + L4, :] for r in range(3)], axis=-1)
    h = jax.nn.relu(jnp.einsum("blk,ko->blo", cols, w2) + params["b2"])
    h = bn(h, params["bn3"])
    h = jnp.mean(h, axis=1)

    h = jax.nn.relu(h @ params["fw1"].T + params["fb1"])
    h = jax.nn.relu(h @ params["fw2"].T + params["fb2"])
    return h @ params["fw3"].T + params["fb3"]


# --------------------------------------------------------------------------- #
# Deterministic synthetic parameters (PyTorch-default-style shapes/ranges).    #
# --------------------------------------------------------------------------- #
def init_params(key):
    ks = jax.random.split(key, 12)

    def u(k, shape, fan_in):
        bound = 1.0 / math.sqrt(fan_in)
        return jax.random.uniform(k, shape, jnp.float32, -bound, bound)

    p = {
        # Conv2d(1, 64, (6, 4))
        "w2d": u(ks[0], (64, 1, 6, 4), 24), "b2d": u(ks[1], (64,), 24),
        # Conv1d(64, 128, 3)
        "w1": u(ks[2], (128, 64, 3), 192), "b1": u(ks[3], (128,), 192),
        # Conv1d(128, 256, 3)
        "w2": u(ks[4], (256, 128, 3), 384), "b2": u(ks[5], (256,), 384),
        # fc: Linear(256,128), Linear(128,64), Linear(64,2)
        "fw1": u(ks[6], (128, 256), 256), "fb1": u(ks[7], (128,), 256),
        "fw2": u(ks[8], (64, 128), 128), "fb2": u(ks[9], (64,), 128),
        "fw3": u(ks[10], (2, 64), 64), "fb3": u(ks[11], (2,), 64),
    }
    # BatchNorm1d defaults: gamma=1, beta=0, running_mean=0, running_var=1
    for name, c in (("bn1", 64), ("bn2", 128), ("bn3", 256)):
        p[name] = dict(gamma=jnp.ones((c,), jnp.float32),
                       beta=jnp.zeros((c,), jnp.float32),
                       mean=jnp.zeros((c,), jnp.float32),
                       var=jnp.ones((c,), jnp.float32))
    return p


if __name__ == "__main__":
    key = jax.random.PRNGKey(0)
    k_x, k_p = jax.random.split(key)

    B, H = 16, 64                       # input: (B, 1, H, 4) one-hot-DNA-style tensor
    x = jax.random.normal(k_x, (B, 1, H, 4), jnp.float32)
    params = init_params(k_p)

    ref = cnn_v2_reference(x, params)

    # Default path: lane-dense input, phase-expanded conv2d, bf16 MXU operands,
    # 2 grid steps (exercises the parallel batch axis / both v7x TensorCores).
    out = jax.block_until_ready(jax.jit(cnn_v2_forward)(x, params))
    assert out.shape == (B, 2), out.shape
    assert bool(jnp.all(jnp.isfinite(out)))
    assert bool(jnp.allclose(out, ref, rtol=2e-2, atol=2e-2)), (out, ref)

    # Exact-f32 operands, same dense path, tight tolerance.
    out32 = jax.block_until_ready(
        jax.jit(lambda a, p: cnn_v2_forward(a, p, matmul_dtype=jnp.float32))(x, params))
    assert bool(jnp.allclose(out32, ref, rtol=5e-3, atol=5e-3)), (out32, ref)

    # Large-H fallback path (wrapper-side im2col), exercised here at small H.
    out_fb = jax.block_until_ready(
        jax.jit(lambda a, p: cnn_v2_forward(a, p, conv2d_mode="im2col",
                                            matmul_dtype=jnp.float32))(x, params))
    assert bool(jnp.allclose(out_fb, ref, rtol=5e-3, atol=5e-3)), (out_fb, ref)

    print("KERNEL_OK")
</pallas_src>

<mosaic_0001>
module attributes {stable_mosaic.version = 11 : i64} {
  func.func @kernel(%arg0: i32, %arg1: memref<8x256xbf16, #tpu.memory_space<vmem>>, %arg2: memref<768x1216xbf16, #tpu.memory_space<vmem>>, %arg3: memref<1x1216xf32, #tpu.memory_space<vmem>>, %arg4: memref<1x1216xf32, #tpu.memory_space<vmem>>, %arg5: memref<1x1216xf32, #tpu.memory_space<vmem>>, %arg6: memref<192x128xbf16, #tpu.memory_space<vmem>>, %arg7: memref<1x128xf32, #tpu.memory_space<vmem>>, %arg8: memref<1x128xf32, #tpu.memory_space<vmem>>, %arg9: memref<1x128xf32, #tpu.memory_space<vmem>>, %arg10: memref<384x256xbf16, #tpu.memory_space<vmem>>, %arg11: memref<1x256xf32, #tpu.memory_space<vmem>>, %arg12: memref<1x256xf32, #tpu.memory_space<vmem>>, %arg13: memref<1x256xf32, #tpu.memory_space<vmem>>, %arg14: memref<256x128xbf16, #tpu.memory_space<vmem>>, %arg15: memref<1x128xf32, #tpu.memory_space<vmem>>, %arg16: memref<128x64xbf16, #tpu.memory_space<vmem>>, %arg17: memref<1x64xf32, #tpu.memory_space<vmem>>, %arg18: memref<64x128xbf16, #tpu.memory_space<vmem>>, %arg19: memref<1x128xf32, #tpu.memory_space<vmem>>, %arg20: memref<8x128xf32, #tpu.memory_space<vmem>>) attributes {dimension_semantics = [#tpu.dimension_semantics<parallel>], iteration_bounds = array<i64: 2>, scalar_prefetch = 0 : i64, scratch_operands = 0 : i64, tpu.core_type = #tpu.core_type<tc>, window_params = [{transform_indices = @transform_0, window_bounds = array<i64: 8, 256>}, {pipeline_mode = #tpu.pipeline_mode<synchronous>, transform_indices = @transform_1, window_bounds = array<i64: 768, 1216>}, {pipeline_mode = #tpu.pipeline_mode<synchronous>, transform_indices = @transform_2, window_bounds = array<i64: 1, 1216>}, {pipeline_mode = #tpu.pipeline_mode<synchronous>, transform_indices = @transform_3, window_bounds = array<i64: 1, 1216>}, {pipeline_mode = #tpu.pipeline_mode<synchronous>, transform_indices = @transform_4, window_bounds = array<i64: 1, 1216>}, {pipeline_mode = #tpu.pipeline_mode<synchronous>, transform_indices = @transform_5, window_bounds = array<i64: 192, 128>}, {pipeline_mode = #tpu.pipeline_mode<synchronous>, transform_indices = @transform_6, window_bounds = array<i64: 1, 128>}, {pipeline_mode = #tpu.pipeline_mode<synchronous>, transform_indices = @transform_7, window_bounds = array<i64: 1, 128>}, {pipeline_mode = #tpu.pipeline_mode<synchronous>, transform_indices = @transform_8, window_bounds = array<i64: 1, 128>}, {pipeline_mode = #tpu.pipeline_mode<synchronous>, transform_indices = @transform_9, window_bounds = array<i64: 384, 256>}, {pipeline_mode = #tpu.pipeline_mode<synchronous>, transform_indices = @transform_10, window_bounds = array<i64: 1, 256>}, {pipeline_mode = #tpu.pipeline_mode<synchronous>, transform_indices = @transform_11, window_bounds = array<i64: 1, 256>}, {pipeline_mode = #tpu.pipeline_mode<synchronous>, transform_indices = @transform_12, window_bounds = array<i64: 1, 256>}, {pipeline_mode = #tpu.pipeline_mode<synchronous>, transform_indices = @transform_13, window_bounds = array<i64: 256, 128>}, {pipeline_mode = #tpu.pipeline_mode<synchronous>, transform_indices = @transform_14, window_bounds = array<i64: 1, 128>}, {pipeline_mode = #tpu.pipeline_mode<synchronous>, transform_indices = @transform_15, window_bounds = array<i64: 128, 64>}, {pipeline_mode = #tpu.pipeline_mode<synchronous>, transform_indices = @transform_16, window_bounds = array<i64: 1, 64>}, {pipeline_mode = #tpu.pipeline_mode<synchronous>, transform_indices = @transform_17, window_bounds = array<i64: 64, 128>}, {pipeline_mode = #tpu.pipeline_mode<synchronous>, transform_indices = @transform_18, window_bounds = array<i64: 1, 128>}, {transform_indices = @transform_19, window_bounds = array<i64: 8, 128>}]} {
    %c0 = arith.constant 0 : index
    %c0_0 = arith.constant 0 : index
    %0 = vector.load %arg1[%c0, %c0_0] : memref<8x256xbf16, #tpu.memory_space<vmem>>, vector<8x256xbf16>
    %c0_1 = arith.constant 0 : index
    %c0_2 = arith.constant 0 : index
    %1 = vector.load %arg2[%c0_1, %c0_2] : memref<768x1216xbf16, #tpu.memory_space<vmem>>, vector<256x1216xbf16>
    %cst = arith.constant dense<0.000000e+00> : vector<8x1216xf32>
    %2 = tpu.matmul %0, %1, %cst {dimension_numbers = #tpu.dot_dimension_numbers<[1], [0], [0], [1], [0, 0, 1, 1], [], []>} : vector<8x256xbf16>, vector<256x1216xbf16>, vector<8x1216xf32> -> vector<8x1216xf32>
    %c256 = arith.constant 256 : index
    %c0_3 = arith.constant 0 : index
    %3 = vector.load %arg2[%c256, %c0_3] : memref<768x1216xbf16, #tpu.memory_space<vmem>>, vector<256x1216xbf16>
    %cst_4 = arith.constant dense<0.000000e+00> : vector<8x1216xf32>
    %4 = tpu.matmul %0, %3, %cst_4 {dimension_numbers = #tpu.dot_dimension_numbers<[1], [0], [0], [1], [0, 0, 1, 1], [], []>} : vector<8x256xbf16>, vector<256x1216xbf16>, vector<8x1216xf32> -> vector<8x1216xf32>
    %5 = arith.maximumf %2, %4 : vector<8x1216xf32>
    %c512 = arith.constant 512 : index
    %c0_5 = arith.constant 0 : index
    %6 = vector.load %arg2[%c512, %c0_5] : memref<768x1216xbf16, #tpu.memory_space<vmem>>, vector<256x1216xbf16>
    %cst_6 = arith.constant dense<0.000000e+00> : vector<8x1216xf32>
    %7 = tpu.matmul %0, %6, %cst_6 {dimension_numbers = #tpu.dot_dimension_numbers<[1], [0], [0], [1], [0, 0, 1, 1], [], []>} : vector<8x256xbf16>, vector<256x1216xbf16>, vector<8x1216xf32> -> vector<8x1216xf32>
    %8 = arith.maximumf %5, %7 : vector<8x1216xf32>
    %c0_7 = arith.constant 0 : index
    %c0_8 = arith.constant 0 : index
    %9 = vector.load %arg3[%c0_7, %c0_8] : memref<1x1216xf32, #tpu.memory_space<vmem>>, vector<1x1216xf32>
    %10 = vector.broadcast %9 : vector<1x1216xf32> to vector<8x1216xf32>
    %11 = arith.addf %8, %10 : vector<8x1216xf32>
    %cst_9 = arith.constant 0.000000e+00 : f32
    %12 = vector.broadcast %cst_9 : f32 to vector<8x1216xf32>
    %13 = arith.maximumf %11, %12 : vector<8x1216xf32>
    %c0_10 = arith.constant 0 : index
    %c0_11 = arith.constant 0 : index
    %14 = vector.load %arg4[%c0_10, %c0_11] : memref<1x1216xf32, #tpu.memory_space<vmem>>, vector<1x1216xf32>
    %15 = vector.broadcast %14 : vector<1x1216xf32> to vector<8x1216xf32>
    %16 = arith.mulf %13, %15 : vector<8x1216xf32>
    %c0_12 = arith.constant 0 : index
    %c0_13 = arith.constant 0 : index
    %17 = vector.load %arg5[%c0_12, %c0_13] : memref<1x1216xf32, #tpu.memory_space<vmem>>, vector<1x1216xf32>
    %18 = vector.broadcast %17 : vector<1x1216xf32> to vector<8x1216xf32>
    %19 = arith.addf %16, %18 : vector<8x1216xf32>
    %20 = vector.extract_strided_slice %19 {offsets = [0, 0], sizes = [8, 64], strides = [1, 1]} : vector<8x1216xf32> to vector<8x64xf32>
    %21 = vector.shape_cast %20 : vector<8x64xf32> to vector<8x1x64xf32>
    %22 = vector.extract_strided_slice %19 {offsets = [0, 64], sizes = [8, 64], strides = [1, 1]} : vector<8x1216xf32> to vector<8x64xf32>
    %23 = vector.shape_cast %22 : vector<8x64xf32> to vector<8x1x64xf32>
    %24 = vector.extract_strided_slice %19 {offsets = [0, 128], sizes = [8, 64], strides = [1, 1]} : vector<8x1216xf32> to vector<8x64xf32>
    %25 = vector.shape_cast %24 : vector<8x64xf32> to vector<8x1x64xf32>
    %26 = vector.extract_strided_slice %19 {offsets = [0, 192], sizes = [8, 64], strides = [1, 1]} : vector<8x1216xf32> to vector<8x64xf32>
    %27 = vector.shape_cast %26 : vector<8x64xf32> to vector<8x1x64xf32>
    %28 = vector.extract_strided_slice %19 {offsets = [0, 256], sizes = [8, 64], strides = [1, 1]} : vector<8x1216xf32> to vector<8x64xf32>
    %29 = vector.shape_cast %28 : vector<8x64xf32> to vector<8x1x64xf32>
    %30 = vector.extract_strided_slice %19 {offsets = [0, 320], sizes = [8, 64], strides = [1, 1]} : vector<8x1216xf32> to vector<8x64xf32>
    %31 = vector.shape_cast %30 : vector<8x64xf32> to vector<8x1x64xf32>
    %32 = vector.extract_strided_slice %19 {offsets = [0, 384], sizes = [8, 64], strides = [1, 1]} : vector<8x1216xf32> to vector<8x64xf32>
    %33 = vector.shape_cast %32 : vector<8x64xf32> to vector<8x1x64xf32>
    %34 = vector.extract_strided_slice %19 {offsets = [0, 448], sizes = [8, 64], strides = [1, 1]} : vector<8x1216xf32> to vector<8x64xf32>
    %35 = vector.shape_cast %34 : vector<8x64xf32> to vector<8x1x64xf32>
    %36 = vector.extract_strided_slice %19 {offsets = [0, 512], sizes = [8, 64], strides = [1, 1]} : vector<8x1216xf32> to vector<8x64xf32>
    %37 = vector.shape_cast %36 : vector<8x64xf32> to vector<8x1x64xf32>
    %38 = vector.extract_strided_slice %19 {offsets = [0, 576], sizes = [8, 64], strides = [1, 1]} : vector<8x1216xf32> to vector<8x64xf32>
    %39 = vector.shape_cast %38 : vector<8x64xf32> to vector<8x1x64xf32>
    %40 = vector.extract_strided_slice %19 {offsets = [0, 640], sizes = [8, 64], strides = [1, 1]} : vector<8x1216xf32> to vector<8x64xf32>
    %41 = vector.shape_cast %40 : vector<8x64xf32> to vector<8x1x64xf32>
    %42 = vector.extract_strided_slice %19 {offsets = [0, 704], sizes = [8, 64], strides = [1, 1]} : vector<8x1216xf32> to vector<8x64xf32>
    %43 = vector.shape_cast %42 : vector<8x64xf32> to vector<8x1x64xf32>
    %44 = vector.extract_strided_slice %19 {offsets = [0, 768], sizes = [8, 64], strides = [1, 1]} : vector<8x1216xf32> to vector<8x64xf32>
    %45 = vector.shape_cast %44 : vector<8x64xf32> to vector<8x1x64xf32>
    %46 = vector.extract_strided_slice %19 {offsets = [0, 832], sizes = [8, 64], strides = [1, 1]} : vector<8x1216xf32> to vector<8x64xf32>
    %47 = vector.shape_cast %46 : vector<8x64xf32> to vector<8x1x64xf32>
    %48 = vector.extract_strided_slice %19 {offsets = [0, 896], sizes = [8, 64], strides = [1, 1]} : vector<8x1216xf32> to vector<8x64xf32>
    %49 = vector.shape_cast %48 : vector<8x64xf32> to vector<8x1x64xf32>
    %50 = vector.extract_strided_slice %19 {offsets = [0, 960], sizes = [8, 64], strides = [1, 1]} : vector<8x1216xf32> to vector<8x64xf32>
    %51 = vector.shape_cast %50 : vector<8x64xf32> to vector<8x1x64xf32>
    %52 = vector.extract_strided_slice %19 {offsets = [0, 1024], sizes = [8, 64], strides = [1, 1]} : vector<8x1216xf32> to vector<8x64xf32>
    %53 = vector.shape_cast %52 : vector<8x64xf32> to vector<8x1x64xf32>
    %54 = vector.extract_strided_slice %19 {offsets = [0, 1088], sizes = [8, 64], strides = [1, 1]} : vector<8x1216xf32> to vector<8x64xf32>
    %55 = vector.shape_cast %54 : vector<8x64xf32> to vector<8x1x64xf32>
    %56 = vector.extract_strided_slice %19 {offsets = [0, 1152], sizes = [8, 64], strides = [1, 1]} : vector<8x1216xf32> to vector<8x64xf32>
    %57 = vector.shape_cast %56 : vector<8x64xf32> to vector<8x1x64xf32>
    %58 = tpu.concatenate %21, %23, %25, %27, %29, %31, %33, %35, %37, %39, %41, %43, %45, %47, %49, %51 in 1 : vector<8x1x64xf32>, vector<8x1x64xf32>, vector<8x1x64xf32>, vector<8x1x64xf32>, vector<8x1x64xf32>, vector<8x1x64xf32>, vector<8x1x64xf32>, vector<8x1x64xf32>, vector<8x1x64xf32>, vector<8x1x64xf32>, vector<8x1x64xf32>, vector<8x1x64xf32>, vector<8x1x64xf32>, vector<8x1x64xf32>, vector<8x1x64xf32>, vector<8x1x64xf32> -> vector<8x16x64xf32>
    %59 = tpu.concatenate %53, %55, %57 in 1 : vector<8x1x64xf32>, vector<8x1x64xf32>, vector<8x1x64xf32> -> vector<8x3x64xf32>
    %60 = tpu.concatenate %58, %59 in 1 : vector<8x16x64xf32>, vector<8x3x64xf32> -> vector<8x19x64xf32>
    %61 = vector.extract_strided_slice %60 {offsets = [0, 0, 0], sizes = [8, 17, 64], strides = [1, 1, 1]} : vector<8x19x64xf32> to vector<8x17x64xf32>
    %62 = vector.shape_cast %61 : vector<8x17x64xf32> to vector<136x64xf32>
    %c0_14 = arith.constant 0 : index
    %c0_15 = arith.constant 0 : index
    %63 = vector.load %arg6[%c0_14, %c0_15] : memref<192x128xbf16, #tpu.memory_space<vmem>>, vector<64x128xbf16>
    %64 = arith.truncf %62 : vector<136x64xf32> to vector<136x64xbf16>
    %cst_16 = arith.constant dense<0.000000e+00> : vector<136x128xf32>
    %65 = tpu.matmul %64, %63, %cst_16 {dimension_numbers = #tpu.dot_dimension_numbers<[1], [0], [0], [1], [0, 0, 1, 1], [], []>} : vector<136x64xbf16>, vector<64x128xbf16>, vector<136x128xf32> -> vector<136x128xf32>
    %66 = vector.extract_strided_slice %60 {offsets = [0, 1, 0], sizes = [8, 17, 64], strides = [1, 1, 1]} : vector<8x19x64xf32> to vector<8x17x64xf32>
    %67 = vector.shape_cast %66 : vector<8x17x64xf32> to vector<136x64xf32>
    %c64 = arith.constant 64 : index
    %c0_17 = arith.constant 0 : index
    %68 = vector.load %arg6[%c64, %c0_17] : memref<192x128xbf16, #tpu.memory_space<vmem>>, vector<64x128xbf16>
    %69 = arith.truncf %67 : vector<136x64xf32> to vector<136x64xbf16>
    %cst_18 = arith.constant dense<0.000000e+00> : vector<136x128xf32>
    %70 = tpu.matmul %69, %68, %cst_18 {dimension_numbers = #tpu.dot_dimension_numbers<[1], [0], [0], [1], [0, 0, 1, 1], [], []>} : vector<136x64xbf16>, vector<64x128xbf16>, vector<136x128xf32> -> vector<136x128xf32>
    %71 = arith.addf %65, %70 : vector<136x128xf32>
    %72 = vector.extract_strided_slice %60 {offsets = [0, 2, 0], sizes = [8, 17, 64], strides = [1, 1, 1]} : vector<8x19x64xf32> to vector<8x17x64xf32>
    %73 = vector.shape_cast %72 : vector<8x17x64xf32> to vector<136x64xf32>
    %c128 = arith.constant 128 : index
    %c0_19 = arith.constant 0 : index
    %74 = vector.load %arg6[%c128, %c0_19] : memref<192x128xbf16, #tpu.memory_space<vmem>>, vector<64x128xbf16>
    %75 = arith.truncf %73 : vector<136x64xf32> to vector<136x64xbf16>
    %cst_20 = arith.constant dense<0.000000e+00> : vector<136x128xf32>
    %76 = tpu.matmul %75, %74, %cst_20 {dimension_numbers = #tpu.dot_dimension_numbers<[1], [0], [0], [1], [0, 0, 1, 1], [], []>} : vector<136x64xbf16>, vector<64x128xbf16>, vector<136x128xf32> -> vector<136x128xf32>
    %77 = arith.addf %71, %76 : vector<136x128xf32>
    %c0_21 = arith.constant 0 : index
    %c0_22 = arith.constant 0 : index
    %78 = vector.load %arg7[%c0_21, %c0_22] : memref<1x128xf32, #tpu.memory_space<vmem>>, vector<1x128xf32>
    %79 = vector.broadcast %78 : vector<1x128xf32> to vector<136x128xf32>
    %80 = arith.addf %77, %79 : vector<136x128xf32>
    %cst_23 = arith.constant 0.000000e+00 : f32
    %81 = vector.broadcast %cst_23 : f32 to vector<136x128xf32>
    %82 = arith.maximumf %80, %81 : vector<136x128xf32>
    %83 = vector.shape_cast %82 : vector<136x128xf32> to vector<8x17x128xf32>
    %84 = vector.extract_strided_slice %83 {offsets = [0, 0, 0], sizes = [8, 15, 128], strides = [1, 1, 1]} : vector<8x17x128xf32> to vector<8x15x128xf32>
    %85 = vector.shape_cast %84 : vector<8x15x128xf32> to vector<40x3x128xf32>
    %cst_24 = arith.constant dense<0xFF800000> : vector<40x128xf32>
    %86 = vector.multi_reduction <maximumf>, %85, %cst_24 [1] : vector<40x3x128xf32> to vector<40x128xf32>
    %87 = vector.extract_strided_slice %83 {offsets = [0, 15, 0], sizes = [8, 2, 128], strides = [1, 1, 1]} : vector<8x17x128xf32> to vector<8x2x128xf32>
    %cst_25 = arith.constant dense<0xFF800000> : vector<8x128xf32>
    %88 = vector.multi_reduction <maximumf>, %87, %cst_25 [1] : vector<8x2x128xf32> to vector<8x128xf32>
    %89 = vector.shape_cast %88 : vector<8x128xf32> to vector<8x1x128xf32>
    %90 = vector.shape_cast %86 : vector<40x128xf32> to vector<8x5x128xf32>
    %91 = tpu.concatenate %90, %89 in 1 : vector<8x5x128xf32>, vector<8x1x128xf32> -> vector<8x6x128xf32>
    %c0_26 = arith.constant 0 : index
    %c0_27 = arith.constant 0 : index
    %92 = vector.load %arg8[%c0_26, %c0_27] : memref<1x128xf32, #tpu.memory_space<vmem>>, vector<1x128xf32>
    %93 = vector.shape_cast %92 : vector<1x128xf32> to vector<1x1x128xf32>
    %94 = vector.broadcast %93 : vector<1x1x128xf32> to vector<8x6x128xf32>
    %95 = arith.mulf %91, %94 : vector<8x6x128xf32>
    %c0_28 = arith.constant 0 : index
    %c0_29 = arith.constant 0 : index
    %96 = vector.load %arg9[%c0_28, %c0_29] : memref<1x128xf32, #tpu.memory_space<vmem>>, vector<1x128xf32>
    %97 = vector.shape_cast %96 : vector<1x128xf32> to vector<1x1x128xf32>
    %98 = vector.broadcast %97 : vector<1x1x128xf32> to vector<8x6x128xf32>
    %99 = arith.addf %95, %98 : vector<8x6x128xf32>
    %100 = vector.extract_strided_slice %99 {offsets = [0, 0, 0], sizes = [8, 4, 128], strides = [1, 1, 1]} : vector<8x6x128xf32> to vector<8x4x128xf32>
    %101 = vector.shape_cast %100 : vector<8x4x128xf32> to vector<32x128xf32>
    %c0_30 = arith.constant 0 : index
    %c0_31 = arith.constant 0 : index
    %102 = vector.load %arg10[%c0_30, %c0_31] : memref<384x256xbf16, #tpu.memory_space<vmem>>, vector<128x256xbf16>
    %103 = arith.truncf %101 : vector<32x128xf32> to vector<32x128xbf16>
    %cst_32 = arith.constant dense<0.000000e+00> : vector<32x256xf32>
    %104 = tpu.matmul %103, %102, %cst_32 {dimension_numbers = #tpu.dot_dimension_numbers<[1], [0], [0], [1], [0, 0, 1, 1], [], []>} : vector<32x128xbf16>, vector<128x256xbf16>, vector<32x256xf32> -> vector<32x256xf32>
    %105 = vector.extract_strided_slice %99 {offsets = [0, 1, 0], sizes = [8, 4, 128], strides = [1, 1, 1]} : vector<8x6x128xf32> to vector<8x4x128xf32>
    %106 = vector.shape_cast %105 : vector<8x4x128xf32> to vector<32x128xf32>
    %c128_33 = arith.constant 128 : index
    %c0_34 = arith.constant 0 : index
    %107 = vector.load %arg10[%c128_33, %c0_34] : memref<384x256xbf16, #tpu.memory_space<vmem>>, vector<128x256xbf16>
    %108 = arith.truncf %106 : vector<32x128xf32> to vector<32x128xbf16>
    %cst_35 = arith.constant dense<0.000000e+00> : vector<32x256xf32>
    %109 = tpu.matmul %108, %107, %cst_35 {dimension_numbers = #tpu.dot_dimension_numbers<[1], [0], [0], [1], [0, 0, 1, 1], [], []>} : vector<32x128xbf16>, vector<128x256xbf16>, vector<32x256xf32> -> vector<32x256xf32>
    %110 = arith.addf %104, %109 : vector<32x256xf32>
    %111 = vector.extract_strided_slice %99 {offsets = [0, 2, 0], sizes = [8, 4, 128], strides = [1, 1, 1]} : vector<8x6x128xf32> to vector<8x4x128xf32>
    %112 = vector.shape_cast %111 : vector<8x4x128xf32> to vector<32x128xf32>
    %c256_36 = arith.constant 256 : index
    %c0_37 = arith.constant 0 : index
    %113 = vector.load %arg10[%c256_36, %c0_37] : memref<384x256xbf16, #tpu.memory_space<vmem>>, vector<128x256xbf16>
    %114 = arith.truncf %112 : vector<32x128xf32> to vector<32x128xbf16>
    %cst_38 = arith.constant dense<0.000000e+00> : vector<32x256xf32>
    %115 = tpu.matmul %114, %113, %cst_38 {dimension_numbers = #tpu.dot_dimension_numbers<[1], [0], [0], [1], [0, 0, 1, 1], [], []>} : vector<32x128xbf16>, vector<128x256xbf16>, vector<32x256xf32> -> vector<32x256xf32>
    %116 = arith.addf %110, %115 : vector<32x256xf32>
    %c0_39 = arith.constant 0 : index
    %c0_40 = arith.constant 0 : index
    %117 = vector.load %arg11[%c0_39, %c0_40] : memref<1x256xf32, #tpu.memory_space<vmem>>, vector<1x256xf32>
    %118 = vector.broadcast %117 : vector<1x256xf32> to vector<32x256xf32>
    %119 = arith.addf %116, %118 : vector<32x256xf32>
    %cst_41 = arith.constant 0.000000e+00 : f32
    %120 = vector.broadcast %cst_41 : f32 to vector<32x256xf32>
    %121 = arith.maximumf %119, %120 : vector<32x256xf32>
    %c0_42 = arith.constant 0 : index
    %c0_43 = arith.constant 0 : index
    %122 = vector.load %arg12[%c0_42, %c0_43] : memref<1x256xf32, #tpu.memory_space<vmem>>, vector<1x256xf32>
    %123 = vector.broadcast %122 : vector<1x256xf32> to vector<32x256xf32>
    %124 = arith.mulf %121, %123 : vector<32x256xf32>
    %c0_44 = arith.constant 0 : index
    %c0_45 = arith.constant 0 : index
    %125 = vector.load %arg13[%c0_44, %c0_45] : memref<1x256xf32, #tpu.memory_space<vmem>>, vector<1x256xf32>
    %126 = vector.broadcast %125 : vector<1x256xf32> to vector<32x256xf32>
    %127 = arith.addf %124, %126 : vector<32x256xf32>
    %128 = vector.shape_cast %127 : vector<32x256xf32> to vector<8x4x256xf32>
    %cst_46 = arith.constant dense<0.000000e+00> : vector<8x256xf32>
    %129 = vector.multi_reduction <add>, %128, %cst_46 [1] : vector<8x4x256xf32> to vector<8x256xf32>
    %cst_47 = arith.constant 4.000000e+00 : f32
    %130 = vector.broadcast %cst_47 : f32 to vector<8x256xf32>
    %131 = arith.divf %129, %130 : vector<8x256xf32>
    %c0_48 = arith.constant 0 : index
    %c0_49 = arith.constant 0 : index
    %132 = vector.load %arg14[%c0_48, %c0_49] : memref<256x128xbf16, #tpu.memory_space<vmem>>, vector<256x128xbf16>
    %133 = arith.truncf %131 : vector<8x256xf32> to vector<8x256xbf16>
    %cst_50 = arith.constant dense<0.000000e+00> : vector<8x128xf32>
    %134 = tpu.matmul %133, %132, %cst_50 {dimension_numbers = #tpu.dot_dimension_numbers<[1], [0], [0], [1], [0, 0, 1, 1], [], []>} : vector<8x256xbf16>, vector<256x128xbf16>, vector<8x128xf32> -> vector<8x128xf32>
    %c0_51 = arith.constant 0 : index
    %c0_52 = arith.constant 0 : index
    %135 = vector.load %arg15[%c0_51, %c0_52] : memref<1x128xf32, #tpu.memory_space<vmem>>, vector<1x128xf32>
    %136 = vector.broadcast %135 : vector<1x128xf32> to vector<8x128xf32>
    %137 = arith.addf %134, %136 : vector<8x128xf32>
    %cst_53 = arith.constant 0.000000e+00 : f32
    %138 = vector.broadcast %cst_53 : f32 to vector<8x128xf32>
    %139 = arith.maximumf %137, %138 : vector<8x128xf32>
    %c0_54 = arith.constant 0 : index
    %c0_55 = arith.constant 0 : index
    %140 = vector.load %arg16[%c0_54, %c0_55] : memref<128x64xbf16, #tpu.memory_space<vmem>>, vector<128x64xbf16>
    %141 = arith.truncf %139 : vector<8x128xf32> to vector<8x128xbf16>
    %cst_56 = arith.constant dense<0.000000e+00> : vector<8x64xf32>
    %142 = tpu.matmul %141, %140, %cst_56 {dimension_numbers = #tpu.dot_dimension_numbers<[1], [0], [0], [1], [0, 0, 1, 1], [], []>} : vector<8x128xbf16>, vector<128x64xbf16>, vector<8x64xf32> -> vector<8x64xf32>
    %c0_57 = arith.constant 0 : index
    %c0_58 = arith.constant 0 : index
    %143 = vector.load %arg17[%c0_57, %c0_58] : memref<1x64xf32, #tpu.memory_space<vmem>>, vector<1x64xf32>
    %144 = vector.broadcast %143 : vector<1x64xf32> to vector<8x64xf32>
    %145 = arith.addf %142, %144 : vector<8x64xf32>
    %cst_59 = arith.constant 0.000000e+00 : f32
    %146 = vector.broadcast %cst_59 : f32 to vector<8x64xf32>
    %147 = arith.maximumf %145, %146 : vector<8x64xf32>
    %c0_60 = arith.constant 0 : index
    %c0_61 = arith.constant 0 : index
    %148 = vector.load %arg18[%c0_60, %c0_61] : memref<64x128xbf16, #tpu.memory_space<vmem>>, vector<64x128xbf16>
    %149 = arith.truncf %147 : vector<8x64xf32> to vector<8x64xbf16>
    %cst_62 = arith.constant dense<0.000000e+00> : vector<8x128xf32>
    %150 = tpu.matmul %149, %148, %cst_62 {dimension_numbers = #tpu.dot_dimension_numbers<[1], [0], [0], [1], [0, 0, 1, 1], [], []>} : vector<8x64xbf16>, vector<64x128xbf16>, vector<8x128xf32> -> vector<8x128xf32>
    %c0_63 = arith.constant 0 : index
    %c0_64 = arith.constant 0 : index
    %151 = vector.load %arg19[%c0_63, %c0_64] : memref<1x128xf32, #tpu.memory_space<vmem>>, vector<1x128xf32>
    %152 = vector.broadcast %151 : vector<1x128xf32> to vector<8x128xf32>
    %153 = arith.addf %150, %152 : vector<8x128xf32>
    %c0_65 = arith.constant 0 : index
    %c0_66 = arith.constant 0 : index
    %154 = vector.load %arg20[%c0_65, %c0_66] : memref<8x128xf32, #tpu.memory_space<vmem>>, vector<8x128xf32>
    tpu.vector_store %arg20[%c0_65, %c0_66], %153 {strides = array<i32>} : memref<8x128xf32, #tpu.memory_space<vmem>>, vector<8x128xf32>,
    return
  }
  func.func @transform_0(%arg0: i32) -> (i32, i32) {
    %c0_i32 = arith.constant 0 : i32
    %c0_i32_0 = arith.constant 0 : i32
    return %arg0, %c0_i32 : i32, i32
  }
  func.func @transform_1(%arg0: i32) -> (i32, i32) {
    %c0_i32 = arith.constant 0 : i32
    %c0_i32_0 = arith.constant 0 : i32
    %c0_i32_1 = arith.constant 0 : i32
    return %c0_i32, %c0_i32_0 : i32, i32
  }
  func.func @transform_2(%arg0: i32) -> (i32, i32) {
    %c0_i32 = arith.constant 0 : i32
    %c0_i32_0 = arith.constant 0 : i32
    %c0_i32_1 = arith.constant 0 : i32
    return %c0_i32, %c0_i32_0 : i32, i32
  }
  func.func @transform_3(%arg0: i32) -> (i32, i32) {
    %c0_i32 = arith.constant 0 : i32
    %c0_i32_0 = arith.constant 0 : i32
    %c0_i32_1 = arith.constant 0 : i32
    return %c0_i32, %c0_i32_0 : i32, i32
  }
  func.func @transform_4(%arg0: i32) -> (i32, i32) {
    %c0_i32 = arith.constant 0 : i32
    %c0_i32_0 = arith.constant 0 : i32
    %c0_i32_1 = arith.constant 0 : i32
    return %c0_i32, %c0_i32_0 : i32, i32
  }
  func.func @transform_5(%arg0: i32) -> (i32, i32) {
    %c0_i32 = arith.constant 0 : i32
    %c0_i32_0 = arith.constant 0 : i32
    %c0_i32_1 = arith.constant 0 : i32
    return %c0_i32, %c0_i32_0 : i32, i32
  }
  func.func @transform_6(%arg0: i32) -> (i32, i32) {
    %c0_i32 = arith.constant 0 : i32
    %c0_i32_0 = arith.constant 0 : i32
    %c0_i32_1 = arith.constant 0 : i32
    return %c0_i32, %c0_i32_0 : i32, i32
  }
  func.func @transform_7(%arg0: i32) -> (i32, i32) {
    %c0_i32 = arith.constant 0 : i32
    %c0_i32_0 = arith.constant 0 : i32
    %c0_i32_1 = arith.constant 0 : i32
    return %c0_i32, %c0_i32_0 : i32, i32
  }
  func.func @transform_8(%arg0: i32) -> (i32, i32) {
    %c0_i32 = arith.constant 0 : i32
    %c0_i32_0 = arith.constant 0 : i32
    %c0_i32_1 = arith.constant 0 : i32
    return %c0_i32, %c0_i32_0 : i32, i32
  }
  func.func @transform_9(%arg0: i32) -> (i32, i32) {
    %c0_i32 = arith.constant 0 : i32
    %c0_i32_0 = arith.constant 0 : i32
    %c0_i32_1 = arith.constant 0 : i32
    return %c0_i32, %c0_i32_0 : i32, i32
  }
  func.func @transform_10(%arg0: i32) -> (i32, i32) {
    %c0_i32 = arith.constant 0 : i32
    %c0_i32_0 = arith.constant 0 : i32
    %c0_i32_1 = arith.constant 0 : i32
    return %c0_i32, %c0_i32_0 : i32, i32
  }
  func.func @transform_11(%arg0: i32) -> (i32, i32) {
    %c0_i32 = arith.constant 0 : i32
    %c0_i32_0 = arith.constant 0 : i32
    %c0_i32_1 = arith.constant 0 : i32
    return %c0_i32, %c0_i32_0 : i32, i32
  }
  func.func @transform_12(%arg0: i32) -> (i32, i32) {
    %c0_i32 = arith.constant 0 : i32
    %c0_i32_0 = arith.constant 0 : i32
    %c0_i32_1 = arith.constant 0 : i32
    return %c0_i32, %c0_i32_0 : i32, i32
  }
  func.func @transform_13(%arg0: i32) -> (i32, i32) {
    %c0_i32 = arith.constant 0 : i32
    %c0_i32_0 = arith.constant 0 : i32
    %c0_i32_1 = arith.constant 0 : i32
    return %c0_i32, %c0_i32_0 : i32, i32
  }
  func.func @transform_14(%arg0: i32) -> (i32, i32) {
    %c0_i32 = arith.constant 0 : i32
    %c0_i32_0 = arith.constant 0 : i32
    %c0_i32_1 = arith.constant 0 : i32
    return %c0_i32, %c0_i32_0 : i32, i32
  }
  func.func @transform_15(%arg0: i32) -> (i32, i32) {
    %c0_i32 = arith.constant 0 : i32
    %c0_i32_0 = arith.constant 0 : i32
    %c0_i32_1 = arith.constant 0 : i32
    return %c0_i32, %c0_i32_0 : i32, i32
  }
  func.func @transform_16(%arg0: i32) -> (i32, i32) {
    %c0_i32 = arith.constant 0 : i32
    %c0_i32_0 = arith.constant 0 : i32
    %c0_i32_1 = arith.constant 0 : i32
    return %c0_i32, %c0_i32_0 : i32, i32
  }
  func.func @transform_17(%arg0: i32) -> (i32, i32) {
    %c0_i32 = arith.constant 0 : i32
    %c0_i32_0 = arith.constant 0 : i32
    %c0_i32_1 = arith.constant 0 : i32
    return %c0_i32, %c0_i32_0 : i32, i32
  }
  func.func @transform_18(%arg0: i32) -> (i32, i32) {
    %c0_i32 = arith.constant 0 : i32
    %c0_i32_0 = arith.constant 0 : i32
    %c0_i32_1 = arith.constant 0 : i32
    return %c0_i32, %c0_i32_0 : i32, i32
  }
  func.func @transform_19(%arg0: i32) -> (i32, i32) {
    %c0_i32 = arith.constant 0 : i32
    %c0_i32_0 = arith.constant 0 : i32
    return %arg0, %c0_i32 : i32, i32
  }
}

</mosaic_0001>

<llo_original>
// kernel: tile.23
$region0: #{tile.23}
  #allocation0 [shape = 's32[1]{0}', space=sflag, size = 0x4, scoped, tag = 'scoped memory for tile.23']
  %s0 = inlined_call_operand.vmem [shape: f32[64], index: 0, kind: input, shape index: {}]
  %s1 = inlined_call_operand.vmem [shape: f32[19,64], index: 1, kind: output, shape index: {}]
  // Predicated region
  $region2: #{tile.23} parent=0 // pred_check
    _
  $region3: #{tile.23} parent=0 // pred_check_branch
    %3 = sbr.rel (0) target = $region5
  $region4: #{tile.23} parent=0 // pred_region
    _
  $region5: #{tile.23} parent=0 // pred_fallthru
    _
  %v4 = vld [vmem:[%s0] ss:$0 sm:$0xff]
  %5 = vst [vmem:[%s1] sm:$0xff] %v4
  %s6 = scalar_lea.vmem %s1, 8
  %7 = vst [vmem:[%s6] sm:$0xff] %v4
  %s8 = scalar_lea.vmem %s1, 16
  %9 = vst [vmem:[%s8] sm:$0xff] %v4

// kernel: tile.24
$region0: #{tile.24}
  %s0 = inlined_call_operand.vmem [shape: f32[19,64], index: 0, kind: input, shape index: {}]
  %s1 = inlined_call_operand.vmem [shape: f32[1,1216], index: 1, kind: output, shape index: {}]
  $region1: #{tile.24} parent=0
    #allocation0 [shape = 'u8[40960]{0}', space=vmem, size = 0xa000, scoped, tag = 'scoped mem for output reshape']
    %v2 = vld [vmem:[%s0] ss:$2 sm:$0xff]
    %vm3 = vcmask 523264
    %4 = vst.msk [vmem:[#allocation0] ss:$8 sm:$0xf] %vm3, %v2
    %5 = vst.msk [vmem:[#allocation0] ss:$8 sm:$0xf0] %vm3, %v2
    %s6 = scalar_lea.vmem %s0, 16
    %s7 = smov 3
    %v8 = vld [vmem:[%s6] ss:$2 sm:%s7]
    %vm9 = vcmask 523264
    %s10 = scalar_lea.vmem [#allocation0], 64
    %11 = vst.msk [vmem:[%s10] ss:$8 sm:$0x3] %vm9, %v8
    %s12 = scalar_lea.vmem %s0, 1
    %v13 = vld [vmem:[%s12] ss:$2 sm:$0xff]
    %14 = vrot.lane.b32.xlu0 %v13, 64
    %v15 = vpop.permute.xlu0 %14
    %vm16 = vcmask 1048064
    %17 = vst.msk [vmem:[#allocation0] ss:$8 sm:$0xf] %vm16, %v15
    %18 = vst.msk [vmem:[#allocation0] ss:$8 sm:$0xf0] %vm16, %v15
    %s19 = scalar_lea.vmem %s0, 17
    %v20 = vld [vmem:[%s19] sm:$0x1]
    %21 = vrot.lane.b32.xlu0 %v20, 64
    %v22 = vpop.permute.xlu0 %21
    %vm23 = vcmask 1048064
    %s24 = scalar_lea.vmem [#allocation0], 64
    %25 = vst.msk [vmem:[%s24] sm:$0x1] %vm23, %v22
    %s27 = sshll.u32 1, 1
    %s28 = ssub.s32 %s27, 1
    %v30 = vld [vmem:[#allocation0] sm:%s28]
    %s31 = sshll.u32 1, 1
    %s32 = ssub.s32 %s31, 1
    %33 = vst [vmem:[%s1] sm:%s32] %v30
    %s34 = scalar_lea.vmem [#allocation0], 8
    %v35 = vld [vmem:[%s34] sm:%s28]
    %s36 = sshll.u32 1, 1
    %s37 = ssub.s32 %s36, 1
    %s38 = scalar_lea.vmem %s1, 1
    %39 = vst [vmem:[%s38] sm:%s37] %v35
    %s40 = scalar_lea.vmem [#allocation0], 16
    %v41 = vld [vmem:[%s40] sm:%s28]
    %s42 = sshll.u32 1, 1
    %s43 = ssub.s32 %s42, 1
    %s44 = smul.addr 1, 2
    %s45 = scalar_lea.vmem %s1, %s44
    %46 = vst [vmem:[%s45] sm:%s43] %v41
    %s47 = scalar_lea.vmem [#allocation0], 24
    %v48 = vld [vmem:[%s47] sm:%s28]
    %s49 = sshll.u32 1, 1
    %s50 = ssub.s32 %s49, 1
    %s51 = smul.addr 1, 3
    %s52 = scalar_lea.vmem %s1, %s51
    %53 = vst [vmem:[%s52] sm:%s50] %v48
    %s54 = scalar_lea.vmem [#allocation0], 32
    %v55 = vld [vmem:[%s54] sm:%s28]
    %s56 = sshll.u32 1, 1
    %s57 = ssub.s32 %s56, 1
    %s58 = smul.addr 1, 4
    %s59 = scalar_lea.vmem %s1, %s58
    %60 = vst [vmem:[%s59] sm:%s57] %v55
    %s61 = scalar_lea.vmem [#allocation0], 40
    %v62 = vld [vmem:[%s61] sm:%s28]
    %s63 = sshll.u32 1, 1
    %s64 = ssub.s32 %s63, 1
    %s65 = smul.addr 1, 5
    %s66 = scalar_lea.vmem %s1, %s65
    %67 = vst [vmem:[%s66] sm:%s64] %v62
    %s68 = scalar_lea.vmem [#allocation0], 48
    %v69 = vld [vmem:[%s68] sm:%s28]
    %s70 = sshll.u32 1, 1
    %s71 = ssub.s32 %s70, 1
    %s72 = smul.addr 1, 6
    %s73 = scalar_lea.vmem %s1, %s72
    %74 = vst [vmem:[%s73] sm:%s71] %v69
    %s75 = scalar_lea.vmem [#allocation0], 56
    %v76 = vld [vmem:[%s75] sm:%s28]
    %s77 = sshll.u32 1, 1
    %s78 = ssub.s32 %s77, 1
    %s79 = smul.addr 1, 7
    %s80 = scalar_lea.vmem %s1, %s79
    %81 = vst [vmem:[%s80] sm:%s78] %v76
    %s82 = scalar_lea.vmem [#allocation0], 64
    %v83 = vld [vmem:[%s82] sm:%s28]
    %s84 = sshll.u32 1, 1
    %s85 = ssub.s32 %s84, 1
    %s86 = smul.addr 1, 8
    %s87 = scalar_lea.vmem %s1, %s86
    %88 = vst [vmem:[%s87] sm:%s85] %v83
    %s89 = scalar_lea.vmem [#allocation0], 72
    %v90 = vld [vmem:[%s89] sm:%s28]
    %s91 = sshll.u32 1, 1
    %s92 = ssub.s32 %s91, 1
    %s93 = smul.addr 1, 9
    %s94 = scalar_lea.vmem %s1, %s93
    %95 = vst [vmem:[%s94] sm:%s92] %v90

// kernel: cnn_v2_forward.1
$region0: #{cnn_v2_forward.1}
  #allocation0 [shape = 'u32[]', space=smem, size = 0x4, offset = 0x4, fixed_abs, tag = 'smem constant byte address 0x4 - core index']
  #allocation1 [shape = 'u32[144,128]{1,0:T(1,128)}', space=vmem, size = 0x12000, scoped, tag = 'internal scratch']
  %s0 = inlined_call_operand.vmem [shape: bf16[16,256], index: 0, kind: input, shape index: {}]
  %s1 = inlined_call_operand.vmem [shape: bf16[768,1216], index: 1, kind: input, shape index: {}]
  %s2 = inlined_call_operand.vmem [shape: f32[1,1216], index: 2, kind: input, shape index: {}]
  %s3 = inlined_call_operand.vmem [shape: f32[1,1216], index: 3, kind: input, shape index: {}]
  %s4 = inlined_call_operand.vmem [shape: f32[1,1216], index: 4, kind: input, shape index: {}]
  %s5 = inlined_call_operand.vmem [shape: bf16[192,128], index: 5, kind: input, shape index: {}]
  %s6 = inlined_call_operand.vmem [shape: f32[1,128], index: 6, kind: input, shape index: {}]
  %s7 = inlined_call_operand.vmem [shape: f32[1,128], index: 7, kind: input, shape index: {}]
  %s8 = inlined_call_operand.vmem [shape: f32[1,128], index: 8, kind: input, shape index: {}]
  %s9 = inlined_call_operand.vmem [shape: bf16[384,256], index: 9, kind: input, shape index: {}]
  %s10 = inlined_call_operand.vmem [shape: f32[1,256], index: 10, kind: input, shape index: {}]
  %s11 = inlined_call_operand.vmem [shape: f32[1,256], index: 11, kind: input, shape index: {}]
  %s12 = inlined_call_operand.vmem [shape: f32[1,256], index: 12, kind: input, shape index: {}]
  %s13 = inlined_call_operand.vmem [shape: bf16[256,128], index: 13, kind: input, shape index: {}]
  %s14 = inlined_call_operand.vmem [shape: f32[1,128], index: 14, kind: input, shape index: {}]
  %s15 = inlined_call_operand.vmem [shape: bf16[128,64], index: 15, kind: input, shape index: {}]
  %s16 = inlined_call_operand.vmem [shape: f32[1,64], index: 16, kind: input, shape index: {}]
  %s17 = inlined_call_operand.vmem [shape: bf16[64,128], index: 17, kind: input, shape index: {}]
  %s18 = inlined_call_operand.vmem [shape: f32[1,128], index: 18, kind: input, shape index: {}]
  %s19 = inlined_call_operand.vmem [shape: f32[16,128], index: 19, kind: output, shape index: {}]
  %s20 = sld [smem:[#allocation0]]
  $region109: #{cnn_v2_forward.1} parent=0
    _
  %s22 = ssub.s32 1, %s20
  %s23 = scalar_select 0, %s22, %s20
  loop: start=0, step=1, limit=4
  $region2: #{cnn_v2_forward.1} parent=0 // loop_pre_header
    _
  $region3: #{cnn_v2_forward.1} parent=0 // loop_header
    %s25 = sphi 0, %s29
    %p26 = scmp.ge.s32.totalorder %s25, 4
    %s35 = sphi 0, %s37
    %s38 = sphi 0, %s35
    %s39 = sphi 0, %s38
    %s55 = sphi 0, %s39
    %s59 = sphi 0, %s59
    %s61 = sphi 0, %s59
    %s62 = sphi 0, %s61
    %s76 = sphi 0, %s62
    %s80 = sphi 0, %s80
    %s82 = sphi 0, %s80
    %s83 = sphi 0, %s82
    %s97 = sphi 0, %s83
    %s101 = sphi 0, %s101
    %s103 = sphi 0, %s101
    %s104 = sphi 0, %s103
    %s118 = sphi 0, %s104
    %s122 = sphi 0, %s122
    %s124 = sphi 0, %s122
    %s125 = sphi 0, %s124
    %s139 = sphi 0, %s125
    %s143 = sphi 0, %s143
    %s145 = sphi 0, %s143
    %s146 = sphi 0, %s145
    %s160 = sphi 0, %s146
    %s164 = sphi 0, %s164
    %s166 = sphi 0, %s164
    %s167 = sphi 0, %s166
    %s181 = sphi 0, %s167
    %s185 = sphi 0, %s185
    %s187 = sphi 0, %s185
    %s188 = sphi 0, %s187
    %s202 = sphi 0, %s188
    %s206 = sphi 0, %s206
    %s208 = sphi 0, %s206
    %s209 = sphi 0, %s208
    %s223 = sphi 0, %s209
    %s227 = sphi 0, %s227
    %s229 = sphi 0, %s227
    %s230 = sphi 0, %s229
    %s244 = sphi 0, %s230
    %s248 = sphi 0, %s248
    %s250 = sphi 0, %s248
    %s251 = sphi 0, %s250
    %s265 = sphi 0, %s251
    %s269 = sphi 0, %s269
    %s271 = sphi 0, %s269
    %s272 = sphi 0, %s271
    %s286 = sphi 0, %s272
    %s290 = sphi 0, %s290
    %s292 = sphi 0, %s290
    %s293 = sphi 0, %s292
    %s307 = sphi 0, %s293
    %s311 = sphi 0, %s311
    %s313 = sphi 0, %s311
    %s314 = sphi 0, %s313
    %s328 = sphi 0, %s314
    %s332 = sphi 0, %s332
    %s334 = sphi 0, %s332
    %s335 = sphi 0, %s334
    %s349 = sphi 0, %s335
    %s353 = sphi 0, %s353
    %s355 = sphi 0, %s353
    %s356 = sphi 0, %s355
    %s370 = sphi 0, %s356
    %s374 = sphi 0, %s374
    %s376 = sphi 0, %s374
    %s377 = sphi 0, %s376
    %s391 = sphi 0, %s377
    %s395 = sphi 0, %s395
    %s397 = sphi 0, %s395
    %s398 = sphi 0, %s397
    %s412 = sphi 0, %s398
    %s416 = sphi 0, %s416
    %s418 = sphi 0, %s416
    %s419 = sphi 0, %s418
    %s433 = sphi 0, %s419
    %s439 = sphi 0, %s441
    %s442 = sphi 0, %s439
    %s443 = sphi 0, %s442
    %s459 = sphi 0, %s443
  $region4: #{cnn_v2_forward.1} parent=0 // loop_header_branch
    %28 = sbr.rel (%p26) target = $region8
  $region5: #{cnn_v2_forward.1} parent=0 // loop_body
    %s30 = ssub.s32 %s25, 1
    %s31 = ssub.s32 %s25, 2
    %s32 = sadd.s32 %s25, 1
    %s33 = ssub.s32 %s25, %s32
    %p34 = scmp.eq.s32.totalorder %s33, 0
    %s36 = sadd.s32 %s35, 1
    %s37 = scalar_select %p34, %s35, %s36
    %p40 = pneg %p34
    %p41 = scmp.eq.s32.totalorder %s25, 1
    %p42 = por %p40, %p41
    %p43 = scmp.ne.s32.totalorder %s35, %s38
    %p44 = scmp.eq.s32.totalorder %s25, 0
    %p45 = por %p43, %p44
    %p46 = scmp.ne.s32.totalorder %s35, %s38
    %p47 = scmp.eq.s32.totalorder %s30, 1
    %p48 = por %p46, %p47
    %p49 = scmp.ne.s32.totalorder %s38, %s39
    %p50 = scmp.eq.s32.totalorder %s30, 0
    %p51 = por %p49, %p50
    %p52 = scmp.ne.s32.totalorder %s38, %s39
    %p53 = scmp.eq.s32.totalorder %s31, 1
    %p54 = por %p52, %p53
    %p56 = scmp.ne.s32.totalorder %s39, %s55
    %p57 = scmp.eq.s32.totalorder %s31, 0
    %p58 = por %p56, %p57
    %s60 = sadd.s32 %s59, 1
    %p63 = scmp.eq.s32.totalorder %s25, 1
    %p64 = scmp.ne.s32.totalorder %s59, %s61
    %p65 = scmp.eq.s32.totalorder %s25, 0
    %p66 = por %p64, %p65
    %p67 = scmp.ne.s32.totalorder %s59, %s61
    %p68 = scmp.eq.s32.totalorder %s30, 1
    %p69 = por %p67, %p68
    %p70 = scmp.ne.s32.totalorder %s61, %s62
    %p71 = scmp.eq.s32.totalorder %s30, 0
    %p72 = por %p70, %p71
    %p73 = scmp.ne.s32.totalorder %s61, %s62
    %p74 = scmp.eq.s32.totalorder %s31, 1
    %p75 = por %p73, %p74
    %p77 = scmp.ne.s32.totalorder %s62, %s76
    %p78 = scmp.eq.s32.totalorder %s31, 0
    %p79 = por %p77, %p78
    %s81 = sadd.s32 %s80, 1
    %p84 = scmp.eq.s32.totalorder %s25, 1
    %p85 = scmp.ne.s32.totalorder %s80, %s82
    %p86 = scmp.eq.s32.totalorder %s25, 0
    %p87 = por %p85, %p86
    %p88 = scmp.ne.s32.totalorder %s80, %s82
    %p89 = scmp.eq.s32.totalorder %s30, 1
    %p90 = por %p88, %p89
    %p91 = scmp.ne.s32.totalorder %s82, %s83
    %p92 = scmp.eq.s32.totalorder %s30, 0
    %p93 = por %p91, %p92
    %p94 = scmp.ne.s32.totalorder %s82, %s83
    %p95 = scmp.eq.s32.totalorder %s31, 1
    %p96 = por %p94, %p95
    %p98 = scmp.ne.s32.totalorder %s83, %s97
    %p99 = scmp.eq.s32.totalorder %s31, 0
    %p100 = por %p98, %p99
    %s102 = sadd.s32 %s101, 1
    %p105 = scmp.eq.s32.totalorder %s25, 1
    %p106 = scmp.ne.s32.totalorder %s101, %s103
    %p107 = scmp.eq.s32.totalorder %s25, 0
    %p108 = por %p106, %p107
    %p109 = scmp.ne.s32.totalorder %s101, %s103
    %p110 = scmp.eq.s32.totalorder %s30, 1
    %p111 = por %p109, %p110
    %p112 = scmp.ne.s32.totalorder %s103, %s104
    %p113 = scmp.eq.s32.totalorder %s30, 0
    %p114 = por %p112, %p113
    %p115 = scmp.ne.s32.totalorder %s103, %s104
    %p116 = scmp.eq.s32.totalorder %s31, 1
    %p117 = por %p115, %p116
    %p119 = scmp.ne.s32.totalorder %s104, %s118
    %p120 = scmp.eq.s32.totalorder %s31, 0
    %p121 = por %p119, %p120
    %s123 = sadd.s32 %s122, 1
    %p126 = scmp.eq.s32.totalorder %s25, 1
    %p127 = scmp.ne.s32.totalorder %s122, %s124
    %p128 = scmp.eq.s32.totalorder %s25, 0
    %p129 = por %p127, %p128
    %p130 = scmp.ne.s32.totalorder %s122, %s124
    %p131 = scmp.eq.s32.totalorder %s30, 1
    %p132 = por %p130, %p131
    %p133 = scmp.ne.s32.totalorder %s124, %s125
    %p134 = scmp.eq.s32.totalorder %s30, 0
    %p135 = por %p133, %p134
    %p136 = scmp.ne.s32.totalorder %s124, %s125
    %p137 = scmp.eq.s32.totalorder %s31, 1
    %p138 = por %p136, %p137
    %p140 = scmp.ne.s32.totalorder %s125, %s139
    %p141 = scmp.eq.s32.totalorder %s31, 0
    %p142 = por %p140, %p141
    %s144 = sadd.s32 %s143, 1
    %p147 = scmp.eq.s32.totalorder %s25, 1
    %p148 = scmp.ne.s32.totalorder %s143, %s145
    %p149 = scmp.eq.s32.totalorder %s25, 0
    %p150 = por %p148, %p149
    %p151 = scmp.ne.s32.totalorder %s143, %s145
    %p152 = scmp.eq.s32.totalorder %s30, 1
    %p153 = por %p151, %p152
    %p154 = scmp.ne.s32.totalorder %s145, %s146
    %p155 = scmp.eq.s32.totalorder %s30, 0
    %p156 = por %p154, %p155
    %p157 = scmp.ne.s32.totalorder %s145, %s146
    %p158 = scmp.eq.s32.totalorder %s31, 1
    %p159 = por %p157, %p158
    %p161 = scmp.ne.s32.totalorder %s146, %s160
    %p162 = scmp.eq.s32.totalorder %s31, 0
    %p163 = por %p161, %p162
    %s165 = sadd.s32 %s164, 1
    %p168 = scmp.eq.s32.totalorder %s25, 1
    %p169 = scmp.ne.s32.totalorder %s164, %s166
    %p170 = scmp.eq.s32.totalorder %s25, 0
    %p171 = por %p169, %p170
    %p172 = scmp.ne.s32.totalorder %s164, %s166
    %p173 = scmp.eq.s32.totalorder %s30, 1
    %p174 = por %p172, %p173
    %p175 = scmp.ne.s32.totalorder %s166, %s167
    %p176 = scmp.eq.s32.totalorder %s30, 0
    %p177 = por %p175, %p176
    %p178 = scmp.ne.s32.totalorder %s166, %s167
    %p179 = scmp.eq.s32.totalorder %s31, 1
    %p180 = por %p178, %p179
    %p182 = scmp.ne.s32.totalorder %s167, %s181
    %p183 = scmp.eq.s32.totalorder %s31, 0
    %p184 = por %p182, %p183
    %s186 = sadd.s32 %s185, 1
    %p189 = scmp.eq.s32.totalorder %s25, 1
    %p190 = scmp.ne.s32.totalorder %s185, %s187
    %p191 = scmp.eq.s32.totalorder %s25, 0
    %p192 = por %p190, %p191
    %p193 = scmp.ne.s32.totalorder %s185, %s187
    %p194 = scmp.eq.s32.totalorder %s30, 1
    %p195 = por %p193, %p194
    %p196 = scmp.ne.s32.totalorder %s187, %s188
    %p197 = scmp.eq.s32.totalorder %s30, 0
    %p198 = por %p196, %p197
    %p199 = scmp.ne.s32.totalorder %s187, %s188
    %p200 = scmp.eq.s32.totalorder %s31, 1
    %p201 = por %p199, %p200
    %p203 = scmp.ne.s32.totalorder %s188, %s202
    %p204 = scmp.eq.s32.totalorder %s31, 0
    %p205 = por %p203, %p204
    %s207 = sadd.s32 %s206, 1
    %p210 = scmp.eq.s32.totalorder %s25, 1
    %p211 = scmp.ne.s32.totalorder %s206, %s208
    %p212 = scmp.eq.s32.totalorder %s25, 0
    %p213 = por %p211, %p212
    %p214 = scmp.ne.s32.totalorder %s206, %s208
    %p215 = scmp.eq.s32.totalorder %s30, 1
    %p216 = por %p214, %p215
    %p217 = scmp.ne.s32.totalorder %s208, %s209
    %p218 = scmp.eq.s32.totalorder %s30, 0
    %p219 = por %p217, %p218
    %p220 = scmp.ne.s32.totalorder %s208, %s209
    %p221 = scmp.eq.s32.totalorder %s31, 1
    %p222 = por %p220, %p221
    %p224 = scmp.ne.s32.totalorder %s209, %s223
    %p225 = scmp.eq.s32.totalorder %s31, 0
    %p226 = por %p224, %p225
    %s228 = sadd.s32 %s227, 1
    %p231 = scmp.eq.s32.totalorder %s25, 1
    %p232 = scmp.ne.s32.totalorder %s227, %s229
    %p233 = scmp.eq.s32.totalorder %s25, 0
    %p234 = por %p232, %p233
    %p235 = scmp.ne.s32.totalorder %s227, %s229
    %p236 = scmp.eq.s32.totalorder %s30, 1
    %p237 = por %p235, %p236
    %p238 = scmp.ne.s32.totalorder %s229, %s230
    %p239 = scmp.eq.s32.totalorder %s30, 0
    %p240 = por %p238, %p239
    %p241 = scmp.ne.s32.totalorder %s229, %s230
    %p242 = scmp.eq.s32.totalorder %s31, 1
    %p243 = por %p241, %p242
    %p245 = scmp.ne.s32.totalorder %s230, %s244
    %p246 = scmp.eq.s32.totalorder %s31, 0
    %p247 = por %p245, %p246
    %s249 = sadd.s32 %s248, 1
    %p252 = scmp.eq.s32.totalorder %s25, 1
    %p253 = scmp.ne.s32.totalorder %s248, %s250
    %p254 = scmp.eq.s32.totalorder %s25, 0
    %p255 = por %p253, %p254
    %p256 = scmp.ne.s32.totalorder %s248, %s250
    %p257 = scmp.eq.s32.totalorder %s30, 1
    %p258 = por %p256, %p257
    %p259 = scmp.ne.s32.totalorder %s250, %s251
    %p260 = scmp.eq.s32.totalorder %s30, 0
    %p261 = por %p259, %p260
    %p262 = scmp.ne.s32.totalorder %s250, %s251
    %p263 = scmp.eq.s32.totalorder %s31, 1
    %p264 = por %p262, %p263
    %p266 = scmp.ne.s32.totalorder %s251, %s265
    %p267 = scmp.eq.s32.totalorder %s31, 0
    %p268 = por %p266, %p267
    %s270 = sadd.s32 %s269, 1
    %p273 = scmp.eq.s32.totalorder %s25, 1
    %p274 = scmp.ne.s32.totalorder %s269, %s271
    %p275 = scmp.eq.s32.totalorder %s25, 0
    %p276 = por %p274, %p275
    %p277 = scmp.ne.s32.totalorder %s269, %s271
    %p278 = scmp.eq.s32.totalorder %s30, 1
    %p279 = por %p277, %p278
    %p280 = scmp.ne.s32.totalorder %s271, %s272
    %p281 = scmp.eq.s32.totalorder %s30, 0
    %p282 = por %p280, %p281
    %p283 = scmp.ne.s32.totalorder %s271, %s272
    %p284 = scmp.eq.s32.totalorder %s31, 1
    %p285 = por %p283, %p284
    %p287 = scmp.ne.s32.totalorder %s272, %s286
    %p288 = scmp.eq.s32.totalorder %s31, 0
    %p289 = por %p287, %p288
    %s291 = sadd.s32 %s290, 1
    %p294 = scmp.eq.s32.totalorder %s25, 1
    %p295 = scmp.ne.s32.totalorder %s290, %s292
    %p296 = scmp.eq.s32.totalorder %s25, 0
    %p297 = por %p295, %p296
    %p298 = scmp.ne.s32.totalorder %s290, %s292
    %p299 = scmp.eq.s32.totalorder %s30, 1
    %p300 = por %p298, %p299
    %p301 = scmp.ne.s32.totalorder %s292, %s293
    %p302 = scmp.eq.s32.totalorder %s30, 0
    %p303 = por %p301, %p302
    %p304 = scmp.ne.s32.totalorder %s292, %s293
    %p305 = scmp.eq.s32.totalorder %s31, 1
    %p306 = por %p304, %p305
    %p308 = scmp.ne.s32.totalorder %s293, %s307
    %p309 = scmp.eq.s32.totalorder %s31, 0
    %p310 = por %p308, %p309
    %s312 = sadd.s32 %s311, 1
    %p315 = scmp.eq.s32.totalorder %s25, 1
    %p316 = scmp.ne.s32.totalorder %s311, %s313
    %p317 = scmp.eq.s32.totalorder %s25, 0
    %p318 = por %p316, %p317
    %p319 = scmp.ne.s32.totalorder %s311, %s313
    %p320 = scmp.eq.s32.totalorder %s30, 1
    %p321 = por %p319, %p320
    %p322 = scmp.ne.s32.totalorder %s313, %s314
    %p323 = scmp.eq.s32.totalorder %s30, 0
    %p324 = por %p322, %p323
    %p325 = scmp.ne.s32.totalorder %s313, %s314
    %p326 = scmp.eq.s32.totalorder %s31, 1
    %p327 = por %p325, %p326
    %p329 = scmp.ne.s32.totalorder %s314, %s328
    %p330 = scmp.eq.s32.totalorder %s31, 0
    %p331 = por %p329, %p330
    %s333 = sadd.s32 %s332, 1
    %p336 = scmp.eq.s32.totalorder %s25, 1
    %p337 = scmp.ne.s32.totalorder %s332, %s334
    %p338 = scmp.eq.s32.totalorder %s25, 0
    %p339 = por %p337, %p338
    %p340 = scmp.ne.s32.totalorder %s332, %s334
    %p341 = scmp.eq.s32.totalorder %s30, 1
    %p342 = por %p340, %p341
    %p343 = scmp.ne.s32.totalorder %s334, %s335
    %p344 = scmp.eq.s32.totalorder %s30, 0
    %p345 = por %p343, %p344
    %p346 = scmp.ne.s32.totalorder %s334, %s335
    %p347 = scmp.eq.s32.totalorder %s31, 1
    %p348 = por %p346, %p347
    %p350 = scmp.ne.s32.totalorder %s335, %s349
    %p351 = scmp.eq.s32.totalorder %s31, 0
    %p352 = por %p350, %p351
    %s354 = sadd.s32 %s353, 1
    %p357 = scmp.eq.s32.totalorder %s25, 1
    %p358 = scmp.ne.s32.totalorder %s353, %s355
    %p359 = scmp.eq.s32.totalorder %s25, 0
    %p360 = por %p358, %p359
    %p361 = scmp.ne.s32.totalorder %s353, %s355
    %p362 = scmp.eq.s32.totalorder %s30, 1
    %p363 = por %p361, %p362
    %p364 = scmp.ne.s32.totalorder %s355, %s356
    %p365 = scmp.eq.s32.totalorder %s30, 0
    %p366 = por %p364, %p365
    %p367 = scmp.ne.s32.totalorder %s355, %s356
    %p368 = scmp.eq.s32.totalorder %s31, 1
    %p369 = por %p367, %p368
    %p371 = scmp.ne.s32.totalorder %s356, %s370
    %p372 = scmp.eq.s32.totalorder %s31, 0
    %p373 = por %p371, %p372
    %s375 = sadd.s32 %s374, 1
    %p378 = scmp.eq.s32.totalorder %s25, 1
    %p379 = scmp.ne.s32.totalorder %s374, %s376
    %p380 = scmp.eq.s32.totalorder %s25, 0
    %p381 = por %p379, %p380
    %p382 = scmp.ne.s32.totalorder %s374, %s376
    %p383 = scmp.eq.s32.totalorder %s30, 1
    %p384 = por %p382, %p383
    %p385 = scmp.ne.s32.totalorder %s376, %s377
    %p386 = scmp.eq.s32.totalorder %s30, 0
    %p387 = por %p385, %p386
    %p388 = scmp.ne.s32.totalorder %s376, %s377
    %p389 = scmp.eq.s32.totalorder %s31, 1
    %p390 = por %p388, %p389
    %p392 = scmp.ne.s32.totalorder %s377, %s391
    %p393 = scmp.eq.s32.totalorder %s31, 0
    %p394 = por %p392, %p393
    %s396 = sadd.s32 %s395, 1
    %p399 = scmp.eq.s32.totalorder %s25, 1
    %p400 = scmp.ne.s32.totalorder %s395, %s397
    %p401 = scmp.eq.s32.totalorder %s25, 0
    %p402 = por %p400, %p401
    %p403 = scmp.ne.s32.totalorder %s395, %s397
    %p404 = scmp.eq.s32.totalorder %s30, 1
    %p405 = por %p403, %p404
    %p406 = scmp.ne.s32.totalorder %s397, %s398
    %p407 = scmp.eq.s32.totalorder %s30, 0
    %p408 = por %p406, %p407
    %p409 = scmp.ne.s32.totalorder %s397, %s398
    %p410 = scmp.eq.s32.totalorder %s31, 1
    %p411 = por %p409, %p410
    %p413 = scmp.ne.s32.totalorder %s398, %s412
    %p414 = scmp.eq.s32.totalorder %s31, 0
    %p415 = por %p413, %p414
    %s417 = sadd.s32 %s416, 1
    %p420 = scmp.eq.s32.totalorder %s25, 1
    %p421 = scmp.ne.s32.totalorder %s416, %s418
    %p422 = scmp.eq.s32.totalorder %s25, 0
    %p423 = por %p421, %p422
    %p424 = scmp.ne.s32.totalorder %s416, %s418
    %p425 = scmp.eq.s32.totalorder %s30, 1
    %p426 = por %p424, %p425
    %p427 = scmp.ne.s32.totalorder %s418, %s419
    %p428 = scmp.eq.s32.totalorder %s30, 0
    %p429 = por %p427, %p428
    %p430 = scmp.ne.s32.totalorder %s418, %s419
    %p431 = scmp.eq.s32.totalorder %s31, 1
    %p432 = por %p430, %p431
    %p434 = scmp.ne.s32.totalorder %s419, %s433
    %p435 = scmp.eq.s32.totalorder %s31, 0
    %p436 = por %p434, %p435
    %s437 = ssub.s32 %s25, %s32
    %p438 = scmp.eq.s32.totalorder %s437, 0
    %s440 = sadd.s32 %s439, 1
    %s441 = scalar_select %p438, %s439, %s440
    %p444 = pneg %p438
    %p445 = scmp.eq.s32.totalorder %s25, 1
    %p446 = por %p444, %p445
    %p447 = scmp.ne.s32.totalorder %s439, %s442
    %p448 = scmp.eq.s32.totalorder %s25, 0
    %p449 = por %p447, %p448
    %p450 = scmp.ne.s32.totalorder %s439, %s442
    %p451 = scmp.eq.s32.totalorder %s30, 1
    %p452 = por %p450, %p451
    %p453 = scmp.ne.s32.totalorder %s442, %s443
    %p454 = scmp.eq.s32.totalorder %s30, 0
    %p455 = por %p453, %p454
    %p456 = scmp.ne.s32.totalorder %s442, %s443
    %p457 = scmp.eq.s32.totalorder %s31, 1
    %p458 = por %p456, %p457
    %p460 = scmp.ne.s32.totalorder %s443, %s459
    %p461 = scmp.eq.s32.totalorder %s31, 0
    %p462 = por %p460, %p461
    %p463 = scmp.le.s32.totalorder 1, %s25
    %p464 = scmp.lt.s32.totalorder %s25, 3
    %p465 = pnand %p463, %p464
    %p466 = pneg %p465
    // Predicated region
    $region9: #{cnn_v2_forward.1} parent=5 // pred_check
      _
    $region10: #{cnn_v2_forward.1} parent=5 // pred_check_branch
      %468 = sbr.rel (%p465) target = $region12
    $region11: #{cnn_v2_forward.1} parent=5 // pred_region
      %s469 = ssub.s32 %s25, 1
      // Predicated region
      $region13: #{cnn_v2_forward.1} parent=11 // pred_check
        %p470 = pneg %p72
      $region14: #{cnn_v2_forward.1} parent=11 // pred_check_branch
        %472 = sbr.rel (%p470) target = $region16
      $region15: #{cnn_v2_forward.1} parent=11 // pred_region
        _
      $region16: #{cnn_v2_forward.1} parent=11 // pred_fallthru
        _
      // Predicated region
      $region17: #{cnn_v2_forward.1} parent=11 // pred_check
        %p473 = pneg %p93
      $region18: #{cnn_v2_forward.1} parent=11 // pred_check_branch
        %475 = sbr.rel (%p473) target = $region20
      $region19: #{cnn_v2_forward.1} parent=11 // pred_region
        _
      $region20: #{cnn_v2_forward.1} parent=11 // pred_fallthru
        _
      // Predicated region
      $region21: #{cnn_v2_forward.1} parent=11 // pred_check
        %p476 = pneg %p114
      $region22: #{cnn_v2_forward.1} parent=11 // pred_check_branch
        %478 = sbr.rel (%p476) target = $region24
      $region23: #{cnn_v2_forward.1} parent=11 // pred_region
        _
      $region24: #{cnn_v2_forward.1} parent=11 // pred_fallthru
        _
      // Predicated region
      $region25: #{cnn_v2_forward.1} parent=11 // pred_check
        %p479 = pneg %p135
      $region26: #{cnn_v2_forward.1} parent=11 // pred_check_branch
        %481 = sbr.rel (%p479) target = $region28
      $region27: #{cnn_v2_forward.1} parent=11 // pred_region
        _
      $region28: #{cnn_v2_forward.1} parent=11 // pred_fallthru
        _
      // Predicated region
      $region29: #{cnn_v2_forward.1} parent=11 // pred_check
        %p482 = pneg %p156
      $region30: #{cnn_v2_forward.1} parent=11 // pred_check_branch
        %484 = sbr.rel (%p482) target = $region32
      $region31: #{cnn_v2_forward.1} parent=11 // pred_region
        _
      $region32: #{cnn_v2_forward.1} parent=11 // pred_fallthru
        _
      // Predicated region
      $region33: #{cnn_v2_forward.1} parent=11 // pred_check
        %p485 = pneg %p177
      $region34: #{cnn_v2_forward.1} parent=11 // pred_check_branch
        %487 = sbr.rel (%p485) target = $region36
      $region35: #{cnn_v2_forward.1} parent=11 // pred_region
        _
      $region36: #{cnn_v2_forward.1} parent=11 // pred_fallthru
        _
      // Predicated region
      $region37: #{cnn_v2_forward.1} parent=11 // pred_check
        %p488 = pneg %p198
      $region38: #{cnn_v2_forward.1} parent=11 // pred_check_branch
        %490 = sbr.rel (%p488) target = $region40
      $region39: #{cnn_v2_forward.1} parent=11 // pred_region
        _
      $region40: #{cnn_v2_forward.1} parent=11 // pred_fallthru
        _
      // Predicated region
      $region41: #{cnn_v2_forward.1} parent=11 // pred_check
        %p491 = pneg %p219
      $region42: #{cnn_v2_forward.1} parent=11 // pred_check_branch
        %493 = sbr.rel (%p491) target = $region44
      $region43: #{cnn_v2_forward.1} parent=11 // pred_region
        _
      $region44: #{cnn_v2_forward.1} parent=11 // pred_fallthru
        _
      // Predicated region
      $region45: #{cnn_v2_forward.1} parent=11 // pred_check
        %p494 = pneg %p240
      $region46: #{cnn_v2_forward.1} parent=11 // pred_check_branch
        %496 = sbr.rel (%p494) target = $region48
      $region47: #{cnn_v2_forward.1} parent=11 // pred_region
        _
      $region48: #{cnn_v2_forward.1} parent=11 // pred_fallthru
        _
      // Predicated region
      $region49: #{cnn_v2_forward.1} parent=11 // pred_check
        %p497 = pneg %p261
      $region50: #{cnn_v2_forward.1} parent=11 // pred_check_branch
        %499 = sbr.rel (%p497) target = $region52
      $region51: #{cnn_v2_forward.1} parent=11 // pred_region
        _
      $region52: #{cnn_v2_forward.1} parent=11 // pred_fallthru
        _
      // Predicated region
      $region53: #{cnn_v2_forward.1} parent=11 // pred_check
        %p500 = pneg %p282
      $region54: #{cnn_v2_forward.1} parent=11 // pred_check_branch
        %502 = sbr.rel (%p500) target = $region56
      $region55: #{cnn_v2_forward.1} parent=11 // pred_region
        _
      $region56: #{cnn_v2_forward.1} parent=11 // pred_fallthru
        _
      // Predicated region
      $region57: #{cnn_v2_forward.1} parent=11 // pred_check
        %p503 = pneg %p303
      $region58: #{cnn_v2_forward.1} parent=11 // pred_check_branch
        %505 = sbr.rel (%p503) target = $region60
      $region59: #{cnn_v2_forward.1} parent=11 // pred_region
        _
      $region60: #{cnn_v2_forward.1} parent=11 // pred_fallthru
        _
      // Predicated region
      $region61: #{cnn_v2_forward.1} parent=11 // pred_check
        %p506 = pneg %p324
      $region62: #{cnn_v2_forward.1} parent=11 // pred_check_branch
        %508 = sbr.rel (%p506) target = $region64
      $region63: #{cnn_v2_forward.1} parent=11 // pred_region
        _
      $region64: #{cnn_v2_forward.1} parent=11 // pred_fallthru
        _
      // Predicated region
      $region65: #{cnn_v2_forward.1} parent=11 // pred_check
        %p509 = pneg %p345
      $region66: #{cnn_v2_forward.1} parent=11 // pred_check_branch
        %511 = sbr.rel (%p509) target = $region68
      $region67: #{cnn_v2_forward.1} parent=11 // pred_region
        _
      $region68: #{cnn_v2_forward.1} parent=11 // pred_fallthru
        _
      // Predicated region
      $region69: #{cnn_v2_forward.1} parent=11 // pred_check
        %p512 = pneg %p366
      $region70: #{cnn_v2_forward.1} parent=11 // pred_check_branch
        %514 = sbr.rel (%p512) target = $region72
      $region71: #{cnn_v2_forward.1} parent=11 // pred_region
        _
      $region72: #{cnn_v2_forward.1} parent=11 // pred_fallthru
        _
      // Predicated region
      $region73: #{cnn_v2_forward.1} parent=11 // pred_check
        %p515 = pneg %p387
      $region74: #{cnn_v2_forward.1} parent=11 // pred_check_branch
        %517 = sbr.rel (%p515) target = $region76
      $region75: #{cnn_v2_forward.1} parent=11 // pred_region
        _
      $region76: #{cnn_v2_forward.1} parent=11 // pred_fallthru
        _
      // Predicated region
      $region77: #{cnn_v2_forward.1} parent=11 // pred_check
        %p518 = pneg %p408
      $region78: #{cnn_v2_forward.1} parent=11 // pred_check_branch
        %520 = sbr.rel (%p518) target = $region80
      $region79: #{cnn_v2_forward.1} parent=11 // pred_region
        _
      $region80: #{cnn_v2_forward.1} parent=11 // pred_fallthru
        _
      // Predicated region
      $region81: #{cnn_v2_forward.1} parent=11 // pred_check
        %p521 = pneg %p429
      $region82: #{cnn_v2_forward.1} parent=11 // pred_check_branch
        %523 = sbr.rel (%p521) target = $region84
      $region83: #{cnn_v2_forward.1} parent=11 // pred_region
        _
      $region84: #{cnn_v2_forward.1} parent=11 // pred_fallthru
        _
    $region12: #{cnn_v2_forward.1} parent=5 // pred_fallthru
      _
    %p524 = scmp.lt.s32.totalorder %s25, 2
    // Predicated region
    $region85: #{cnn_v2_forward.1} parent=5 // pred_check
      %p525 = pneg %p524
    $region86: #{cnn_v2_forward.1} parent=5 // pred_check_branch
      %527 = sbr.rel (%p525) target = $region88
    $region87: #{cnn_v2_forward.1} parent=5 // pred_region
      // Predicated region
      $region89: #{cnn_v2_forward.1} parent=87 // pred_check
        %p528 = pneg %p45
      $region90: #{cnn_v2_forward.1} parent=87 // pred_check_branch
        %530 = sbr.rel (%p528) target = $region92
      $region91: #{cnn_v2_forward.1} parent=87 // pred_region
        %p531 = scmp.lt.s32.totalorder %s25, 1
        %s532 = scalar_select %p531, %s25, 1
        %s533 = smul.addr %s532, 2
        %s534 = smul.addr %s533, 4
        %s535 = scalar_lea.vmem %s0, %s534
      $region92: #{cnn_v2_forward.1} parent=87 // pred_fallthru
        _
    $region88: #{cnn_v2_forward.1} parent=5 // pred_fallthru
      _
    %p536 = scmp.le.s32.totalorder 1, %s25
    %p537 = scmp.lt.s32.totalorder %s25, 3
    %p538 = pnand %p536, %p537
    %p539 = pneg %p538
    // Predicated region
    $region93: #{cnn_v2_forward.1} parent=5 // pred_check
      _
    $region94: #{cnn_v2_forward.1} parent=5 // pred_check_branch
      %541 = sbr.rel (%p538) target = $region96
    $region95: #{cnn_v2_forward.1} parent=5 // pred_region
      %s542 = ssub.s32 %s25, 1
      %p543 = scmp.lt.s32.totalorder %s30, 1
      %s544 = scalar_select %p543, %s30, 1
      %s545 = smul.addr %s544, 2
      %s546 = smul.addr %s545, 4
      %s547 = scalar_lea.vmem %s0, %s546
      %p548 = pneg %p51
      %p549 = pneg %p48
      %p550 = pneg %p72
      %p551 = pneg %p69
      %p552 = pneg %p93
      %p553 = pneg %p90
      %p554 = pneg %p114
      %p555 = pneg %p111
      %p556 = pneg %p135
      %p557 = pneg %p132
      %p558 = pneg %p156
      %p559 = pneg %p153
      %p560 = pneg %p177
      %p561 = pneg %p174
      %p562 = pneg %p198
      %p563 = pneg %p195
      %p564 = pneg %p219
      %p565 = pneg %p216
      %p566 = pneg %p240
      %p567 = pneg %p237
      %p568 = pneg %p261
      %p569 = pneg %p258
      %p570 = pneg %p282
      %p571 = pneg %p279
      %p572 = pneg %p303
      %p573 = pneg %p300
      %p574 = pneg %p324
      %p575 = pneg %p321
      %p576 = pneg %p345
      %p577 = pneg %p342
      %p578 = pneg %p366
      %p579 = pneg %p363
      %p580 = pneg %p387
      %p581 = pneg %p384
      %p582 = pneg %p408
      %p583 = pneg %p405
      %p584 = pneg %p429
      %p585 = pneg %p426
      %p586 = pneg %p455
      %p587 = pneg %p452
      %p588 = scmp.lt.s32.totalorder %s30, 1
      %s589 = scalar_select %p588, %s30, 1
      %s590 = smul.addr %s589, 8
      %s591 = scalar_lea.vmem %s19, %s590
      %p592 = scmp.lt.s32.totalorder %s30, 1
      %s593 = scalar_select %p592, %s30, 1
      %s594 = smul.addr %s593, 2
      %s595 = smul.addr %s594, 4
      %s596 = scalar_lea.vmem %s0, %s595
      %p597 = scmp.lt.s32.totalorder %s30, 1
      %s598 = scalar_select %p597, %s30, 1
      %s599 = smul.addr %s598, 8
      %s600 = scalar_lea.vmem %s19, %s599
      %v602 = vld [vmem:[%s596] sm:$0xff]
      %v603 = vld [vmem:[%s1] sm:$0xff]
      %v604 = vld [vmem:[%s1 + $0x8] sm:$0xff]
      %v605 = vld [vmem:[%s1 + $0x10] sm:$0xff]
      %v606 = vld [vmem:[%s1 + $0x18] sm:$0xff]
      %v607 = vld [vmem:[%s1 + $0x20] sm:$0xff]
      %v608 = vld [vmem:[%s1 + $0x28] sm:$0xff]
      %v609 = vld [vmem:[%s1 + $0x30] sm:$0xff]
      %v610 = vld [vmem:[%s1 + $0x38] sm:$0xff]
      %v611 = vld [vmem:[%s1 + $0x40] sm:$0xff]
      %v612 = vld [vmem:[%s1 + $0x48] sm:$0xff]
      %v613 = vld [vmem:[%s1 + $0x50] sm:$0xff]
      %v614 = vld [vmem:[%s1 + $0x58] sm:$0xff]
      %v615 = vld [vmem:[%s1 + $0x60] sm:$0xff]
      %v616 = vld [vmem:[%s1 + $0x68] sm:$0xff]
      %v617 = vld [vmem:[%s1 + $0x70] sm:$0xff]
      %v618 = vld [vmem:[%s1 + $0x78] sm:$0xff]
      %v619 = vld [vmem:[%s1 + $0x80] sm:$0xff]
      %v620 = vld [vmem:[%s1 + $0x88] sm:$0xff]
      %v621 = vld [vmem:[%s1 + $0x90] sm:$0xff]
      %v622 = vld [vmem:[%s1 + $0x98] sm:$0xff]
      %v623 = vld [vmem:[%s1 + $0xa0] sm:$0xff]
      %v624 = vld [vmem:[%s1 + $0xa8] sm:$0xff]
      %v625 = vld [vmem:[%s1 + $0xb0] sm:$0xff]
      %v626 = vld [vmem:[%s1 + $0xb8] sm:$0xff]
      %v627 = vld [vmem:[%s1 + $0xc0] sm:$0xff]
      %v628 = vld [vmem:[%s1 + $0xc8] sm:$0xff]
      %v629 = vld [vmem:[%s1 + $0xd0] sm:$0xff]
      %v630 = vld [vmem:[%s1 + $0xd8] sm:$0xff]
      %v631 = vld [vmem:[%s1 + $0xe0] sm:$0xff]
      %v632 = vld [vmem:[%s1 + $0xe8] sm:$0xff]
      %v633 = vld [vmem:[%s1 + $0xf0] sm:$0xff]
      %v634 = vld [vmem:[%s1 + $0xf8] sm:$0xff]
      %v635 = vld [vmem:[%s1 + $0x100] sm:$0xff]
      %v636 = vld [vmem:[%s1 + $0x108] sm:$0xff]
      %v637 = vld [vmem:[%s1 + $0x110] sm:$0xff]
      %v638 = vld [vmem:[%s1 + $0x118] sm:$0xff]
      %v639 = vld [vmem:[%s1 + $0x120] sm:$0xff]
      %v640 = vld [vmem:[%s1 + $0x128] sm:$0xff]
      %v641 = vld [vmem:[%s1 + $0x130] sm:$0xff]
      %v642 = vld [vmem:[%s1 + $0x138] sm:$0xff]
      %v643 = vld [vmem:[%s1 + $0x140] sm:$0xff]
      %v644 = vld [vmem:[%s1 + $0x148] sm:$0xff]
      %v645 = vld [vmem:[%s1 + $0x150] sm:$0xff]
      %v646 = vld [vmem:[%s1 + $0x158] sm:$0xff]
      %v647 = vld [vmem:[%s1 + $0x160] sm:$0xff]
      %v648 = vld [vmem:[%s1 + $0x168] sm:$0xff]
      %v649 = vld [vmem:[%s1 + $0x170] sm:$0xff]
      %v650 = vld [vmem:[%s1 + $0x178] sm:$0xff]
      %v651 = vld [vmem:[%s1 + $0x180] sm:$0xff]
      %v652 = vld [vmem:[%s1 + $0x188] sm:$0xff]
      %v653 = vld [vmem:[%s1 + $0x190] sm:$0xff]
      %v654 = vld [vmem:[%s1 + $0x198] sm:$0xff]
      %v655 = vld [vmem:[%s1 + $0x1a0] sm:$0xff]
      %v656 = vld [vmem:[%s1 + $0x1a8] sm:$0xff]
      %v657 = vld [vmem:[%s1 + $0x1b0] sm:$0xff]
      %v658 = vld [vmem:[%s1 + $0x1b8] sm:$0xff]
      %v659 = vld [vmem:[%s1 + $0x1c0] sm:$0xff]
      %v660 = vld [vmem:[%s1 + $0x1c8] sm:$0xff]
      %v661 = vld [vmem:[%s1 + $0x1d0] sm:$0xff]
      %v662 = vld [vmem:[%s1 + $0x1d8] sm:$0xff]
      %v663 = vld [vmem:[%s1 + $0x1e0] sm:$0xff]
      %v664 = vld [vmem:[%s1 + $0x1e8] sm:$0xff]
      %v665 = vld [vmem:[%s1 + $0x1f0] sm:$0xff]
      %v666 = vld [vmem:[%s1 + $0x1f8] sm:$0xff]
      %v667 = vld [vmem:[%s1 + $0x200] sm:$0xff]
      %v668 = vld [vmem:[%s1 + $0x208] sm:$0xff]
      %v669 = vld [vmem:[%s1 + $0x210] sm:$0xff]
      %v670 = vld [vmem:[%s1 + $0x218] sm:$0xff]
      %v671 = vld [vmem:[%s1 + $0x220] sm:$0xff]
      %v672 = vld [vmem:[%s1 + $0x228] sm:$0xff]
      %v673 = vld [vmem:[%s1 + $0x230] sm:$0xff]
      %v674 = vld [vmem:[%s1 + $0x238] sm:$0xff]
      %v675 = vld [vmem:[%s1 + $0x240] sm:$0xff]
      %v676 = vld [vmem:[%s1 + $0x248] sm:$0xff]
      %v677 = vld [vmem:[%s1 + $0x250] sm:$0xff]
      %v678 = vld [vmem:[%s1 + $0x258] sm:$0xff]
      %v679 = vld [vmem:[%s1 + $0x260] sm:$0xff]
      %v680 = vld [vmem:[%s1 + $0x268] sm:$0xff]
      %v681 = vld [vmem:[%s1 + $0x270] sm:$0xff]
      %v682 = vld [vmem:[%s1 + $0x278] sm:$0xff]
      %v683 = vld [vmem:[%s1 + $0x280] sm:$0xff]
      %v684 = vld [vmem:[%s1 + $0x288] sm:$0xff]
      %v685 = vld [vmem:[%s1 + $0x290] sm:$0xff]
      %v686 = vld [vmem:[%s1 + $0x298] sm:$0xff]
      %v687 = vld [vmem:[%s1 + $0x2a0] sm:$0xff]
      %v688 = vld [vmem:[%s1 + $0x2a8] sm:$0xff]
      %v689 = vld [vmem:[%s1 + $0x2b0] sm:$0xff]
      %v690 = vld [vmem:[%s1 + $0x2b8] sm:$0xff]
      %v691 = vld [vmem:[%s1 + $0x2c0] sm:$0xff]
      %v692 = vld [vmem:[%s1 + $0x2c8] sm:$0xff]
      %v693 = vld [vmem:[%s1 + $0x2d0] sm:$0xff]
      %v694 = vld [vmem:[%s1 + $0x2d8] sm:$0xff]
      %v695 = vld [vmem:[%s1 + $0x2e0] sm:$0xff]
      %v696 = vld [vmem:[%s1 + $0x2e8] sm:$0xff]
      %v697 = vld [vmem:[%s1 + $0x2f0] sm:$0xff]
      %v698 = vld [vmem:[%s1 + $0x2f8] sm:$0xff]
      %v699 = vld [vmem:[%s1 + $0x300] sm:$0xff]
      %v700 = vld [vmem:[%s1 + $0x308] sm:$0xff]
      %v701 = vld [vmem:[%s1 + $0x310] sm:$0xff]
      %v702 = vld [vmem:[%s1 + $0x318] sm:$0xff]
      %v703 = vld [vmem:[%s1 + $0x320] sm:$0xff]
      %v704 = vld [vmem:[%s1 + $0x328] sm:$0xff]
      %v705 = vld [vmem:[%s1 + $0x330] sm:$0xff]
      %v706 = vld [vmem:[%s1 + $0x338] sm:$0xff]
      %v707 = vld [vmem:[%s1 + $0x340] sm:$0xff]
      %v708 = vld [vmem:[%s1 + $0x348] sm:$0xff]
      %v709 = vld [vmem:[%s1 + $0x350] sm:$0xff]
      %v710 = vld [vmem:[%s1 + $0x358] sm:$0xff]
      %v711 = vld [vmem:[%s1 + $0x360] sm:$0xff]
      %v712 = vld [vmem:[%s1 + $0x368] sm:$0xff]
      %v713 = vld [vmem:[%s1 + $0x370] sm:$0xff]
      %v714 = vld [vmem:[%s1 + $0x378] sm:$0xff]
      %v715 = vld [vmem:[%s1 + $0x380] sm:$0xff]
      %v716 = vld [vmem:[%s1 + $0x388] sm:$0xff]
      %v717 = vld [vmem:[%s1 + $0x390] sm:$0xff]
      %v718 = vld [vmem:[%s1 + $0x398] sm:$0xff]
      %v719 = vld [vmem:[%s1 + $0x3a0] sm:$0xff]
      %v720 = vld [vmem:[%s1 + $0x3a8] sm:$0xff]
      %v721 = vld [vmem:[%s1 + $0x3b0] sm:$0xff]
      %v722 = vld [vmem:[%s1 + $0x3b8] sm:$0xff]
      %v723 = vld [vmem:[%s1 + $0x3c0] sm:$0xff]
      %v724 = vld [vmem:[%s1 + $0x3c8] sm:$0xff]
      %v725 = vld [vmem:[%s1 + $0x3d0] sm:$0xff]
      %v726 = vld [vmem:[%s1 + $0x3d8] sm:$0xff]
      %v727 = vld [vmem:[%s1 + $0x3e0] sm:$0xff]
      %v728 = vld [vmem:[%s1 + $0x3e8] sm:$0xff]
      %v729 = vld [vmem:[%s1 + $0x3f0] sm:$0xff]
      %v730 = vld [vmem:[%s1 + $0x3f8] sm:$0xff]
      %v731 = vld [vmem:[%s1 + $0x400] sm:$0xff]
      %v732 = vld [vmem:[%s1 + $0x408] sm:$0xff]
      %v733 = vld [vmem:[%s1 + $0x410] sm:$0xff]
      %v734 = vld [vmem:[%s1 + $0x418] sm:$0xff]
      %v735 = vld [vmem:[%s1 + $0x420] sm:$0xff]
      %v736 = vld [vmem:[%s1 + $0x428] sm:$0xff]
      %v737 = vld [vmem:[%s1 + $0x430] sm:$0xff]
      %v738 = vld [vmem:[%s1 + $0x438] sm:$0xff]
      %v739 = vld [vmem:[%s1 + $0x440] sm:$0xff]
      %v740 = vld [vmem:[%s1 + $0x448] sm:$0xff]
      %v741 = vld [vmem:[%s1 + $0x450] sm:$0xff]
      %v742 = vld [vmem:[%s1 + $0x458] sm:$0xff]
      %v743 = vld [vmem:[%s1 + $0x460] sm:$0xff]
      %v744 = vld [vmem:[%s1 + $0x468] sm:$0xff]
      %v745 = vld [vmem:[%s1 + $0x470] sm:$0xff]
      %v746 = vld [vmem:[%s1 + $0x478] sm:$0xff]
      %v747 = vld [vmem:[%s1 + $0x480] sm:$0xff]
      %v748 = vld [vmem:[%s1 + $0x488] sm:$0xff]
      %v749 = vld [vmem:[%s1 + $0x490] sm:$0xff]
      %v750 = vld [vmem:[%s1 + $0x498] sm:$0xff]
      %v751 = vld [vmem:[%s1 + $0x4a0] sm:$0xff]
      %v752 = vld [vmem:[%s1 + $0x4a8] sm:$0xff]
      %v753 = vld [vmem:[%s1 + $0x4b0] sm:$0xff]
      %v754 = vld [vmem:[%s1 + $0x4b8] sm:$0xff]
      %v755 = vld [vmem:[%s1 + $0x4c0] sm:$0xff]
      %v756 = vld [vmem:[%s1 + $0x4c8] sm:$0xff]
      %v757 = vld [vmem:[%s1 + $0x4d0] sm:$0xff]
      %v758 = vld [vmem:[%s1 + $0x4d8] sm:$0xff]
      %v759 = vld [vmem:[%s1 + $0x4e0] sm:$0xff]
      %v760 = vld [vmem:[%s1 + $0x4e8] sm:$0xff]
      %v761 = vld [vmem:[%s1 + $0x4f0] sm:$0xff]
      %v762 = vld [vmem:[%s1 + $0x4f8] sm:$0xff]
      %v764 = vunpack.c.l.b16 %v602
      %v765 = vunpack.c.h.b16 %v602
      %v766 = vpack.c.b16 %v764, %v764
      %v767 = vpack.c.b16 %v765, %v765
      %v930 = vunpack.c.l.b16 %v603
      %v931 = vunpack.c.h.b16 %v603
      %v932 = vunpack.c.l.b16 %v604
      %v933 = vunpack.c.h.b16 %v604
      %v934 = vunpack.c.l.b16 %v605
      %v935 = vunpack.c.h.b16 %v605
      %v936 = vunpack.c.l.b16 %v606
      %v937 = vunpack.c.h.b16 %v606
      %v938 = vunpack.c.l.b16 %v607
      %v939 = vunpack.c.h.b16 %v607
      %v940 = vunpack.c.l.b16 %v608
      %v941 = vunpack.c.h.b16 %v608
      %v942 = vunpack.c.l.b16 %v609
      %v943 = vunpack.c.h.b16 %v609
      %v944 = vunpack.c.l.b16 %v610
      %v945 = vunpack.c.h.b16 %v610
      %v946 = vunpack.c.l.b16 %v611
      %v947 = vunpack.c.h.b16 %v611
      %v948 = vunpack.c.l.b16 %v612
      %v949 = vunpack.c.h.b16 %v612
      %v950 = vunpack.c.l.b16 %v613
      %v951 = vunpack.c.h.b16 %v613
      %v952 = vunpack.c.l.b16 %v614
      %v953 = vunpack.c.h.b16 %v614
      %v954 = vunpack.c.l.b16 %v615
      %v955 = vunpack.c.h.b16 %v615
      %v956 = vunpack.c.l.b16 %v616
      %v957 = vunpack.c.h.b16 %v616
      %v958 = vunpack.c.l.b16 %v617
      %v959 = vunpack.c.h.b16 %v617
      %v960 = vunpack.c.l.b16 %v618
      %v961 = vunpack.c.h.b16 %v618
      %v962 = vunpack.c.l.b16 %v619
      %v963 = vunpack.c.h.b16 %v619
      %v964 = vunpack.c.l.b16 %v620
      %v965 = vunpack.c.h.b16 %v620
      %v966 = vunpack.c.l.b16 %v621
      %v967 = vunpack.c.h.b16 %v621
      %v968 = vunpack.c.l.b16 %v622
      %v969 = vunpack.c.h.b16 %v622
      %v970 = vunpack.c.l.b16 %v623
      %v971 = vunpack.c.h.b16 %v623
      %v972 = vunpack.c.l.b16 %v624
      %v973 = vunpack.c.h.b16 %v624
      %v974 = vunpack.c.l.b16 %v625
      %v975 = vunpack.c.h.b16 %v625
      %v976 = vunpack.c.l.b16 %v626
      %v977 = vunpack.c.h.b16 %v626
      %v978 = vunpack.c.l.b16 %v627
      %v979 = vunpack.c.h.b16 %v627
      %v980 = vunpack.c.l.b16 %v628
      %v981 = vunpack.c.h.b16 %v628
      %v982 = vunpack.c.l.b16 %v629
      %v983 = vunpack.c.h.b16 %v629
      %v984 = vunpack.c.l.b16 %v630
      %v985 = vunpack.c.h.b16 %v630
      %v986 = vunpack.c.l.b16 %v631
      %v987 = vunpack.c.h.b16 %v631
      %v988 = vunpack.c.l.b16 %v632
      %v989 = vunpack.c.h.b16 %v632
      %v990 = vunpack.c.l.b16 %v633
      %v991 = vunpack.c.h.b16 %v633
      %v992 = vunpack.c.l.b16 %v634
      %v993 = vunpack.c.h.b16 %v634
      %v994 = vunpack.c.l.b16 %v635
      %v995 = vunpack.c.h.b16 %v635
      %v996 = vunpack.c.l.b16 %v636
      %v997 = vunpack.c.h.b16 %v636
      %v998 = vunpack.c.l.b16 %v637
      %v999 = vunpack.c.h.b16 %v637
      %v1000 = vunpack.c.l.b16 %v638
      %v1001 = vunpack.c.h.b16 %v638
      %v1002 = vunpack.c.l.b16 %v639
      %v1003 = vunpack.c.h.b16 %v639
      %v1004 = vunpack.c.l.b16 %v640
      %v1005 = vunpack.c.h.b16 %v640
      %v1006 = vunpack.c.l.b16 %v641
      %v1007 = vunpack.c.h.b16 %v641
      %v1008 = vunpack.c.l.b16 %v642
      %v1009 = vunpack.c.h.b16 %v642
      %v1010 = vunpack.c.l.b16 %v643
      %v1011 = vunpack.c.h.b16 %v643
      %v1012 = vunpack.c.l.b16 %v644
      %v1013 = vunpack.c.h.b16 %v644
      %v1014 = vunpack.c.l.b16 %v645
      %v1015 = vunpack.c.h.b16 %v645
      %v1016 = vunpack.c.l.b16 %v646
      %v1017 = vunpack.c.h.b16 %v646
      %v1018 = vunpack.c.l.b16 %v647
      %v1019 = vunpack.c.h.b16 %v647
      %v1020 = vunpack.c.l.b16 %v648
      %v1021 = vunpack.c.h.b16 %v648
      %v1022 = vunpack.c.l.b16 %v649
      %v1023 = vunpack.c.h.b16 %v649
      %v1024 = vunpack.c.l.b16 %v650
      %v1025 = vunpack.c.h.b16 %v650
      %v1026 = vunpack.c.l.b16 %v651
      %v1027 = vunpack.c.h.b16 %v651
      %v1028 = vunpack.c.l.b16 %v652
      %v1029 = vunpack.c.h.b16 %v652
      %v1030 = vunpack.c.l.b16 %v653
      %v1031 = vunpack.c.h.b16 %v653
      %v1032 = vunpack.c.l.b16 %v654
      %v1033 = vunpack.c.h.b16 %v654
      %v1034 = vunpack.c.l.b16 %v655
      %v1035 = vunpack.c.h.b16 %v655
      %v1036 = vunpack.c.l.b16 %v656
      %v1037 = vunpack.c.h.b16 %v656
      %v1038 = vunpack.c.l.b16 %v657
      %v1039 = vunpack.c.h.b16 %v657
      %v1040 = vunpack.c.l.b16 %v658
      %v1041 = vunpack.c.h.b16 %v658
      %v1042 = vunpack.c.l.b16 %v659
      %v1043 = vunpack.c.h.b16 %v659
      %v1044 = vunpack.c.l.b16 %v660
      %v1045 = vunpack.c.h.b16 %v660
      %v1046 = vunpack.c.l.b16 %v661
      %v1047 = vunpack.c.h.b16 %v661
      %v1048 = vunpack.c.l.b16 %v662
      %v1049 = vunpack.c.h.b16 %v662
      %v1050 = vunpack.c.l.b16 %v663
      %v1051 = vunpack.c.h.b16 %v663
      %v1052 = vunpack.c.l.b16 %v664
      %v1053 = vunpack.c.h.b16 %v664
      %v1054 = vunpack.c.l.b16 %v665
      %v1055 = vunpack.c.h.b16 %v665
      %v1056 = vunpack.c.l.b16 %v666
      %v1057 = vunpack.c.h.b16 %v666
      %v1058 = vunpack.c.l.b16 %v667
      %v1059 = vunpack.c.h.b16 %v667
      %v1060 = vunpack.c.l.b16 %v668
      %v1061 = vunpack.c.h.b16 %v668
      %v1062 = vunpack.c.l.b16 %v669
      %v1063 = vunpack.c.h.b16 %v669
      %v1064 = vunpack.c.l.b16 %v670
      %v1065 = vunpack.c.h.b16 %v670
      %v1066 = vunpack.c.l.b16 %v671
      %v1067 = vunpack.c.h.b16 %v671
      %v1068 = vunpack.c.l.b16 %v672
      %v1069 = vunpack.c.h.b16 %v672
      %v1070 = vunpack.c.l.b16 %v673
      %v1071 = vunpack.c.h.b16 %v673
      %v1072 = vunpack.c.l.b16 %v674
      %v1073 = vunpack.c.h.b16 %v674
      %v1074 = vunpack.c.l.b16 %v675
      %v1075 = vunpack.c.h.b16 %v675
      %v1076 = vunpack.c.l.b16 %v676
      %v1077 = vunpack.c.h.b16 %v676
      %v1078 = vunpack.c.l.b16 %v677
      %v1079 = vunpack.c.h.b16 %v677
      %v1080 = vunpack.c.l.b16 %v678
      %v1081 = vunpack.c.h.b16 %v678
      %v1082 = vunpack.c.l.b16 %v679
      %v1083 = vunpack.c.h.b16 %v679
      %v1084 = vunpack.c.l.b16 %v680
      %v1085 = vunpack.c.h.b16 %v680
      %v1086 = vunpack.c.l.b16 %v681
      %v1087 = vunpack.c.h.b16 %v681
      %v1088 = vunpack.c.l.b16 %v682
      %v1089 = vunpack.c.h.b16 %v682
      %v1090 = vunpack.c.l.b16 %v683
      %v1091 = vunpack.c.h.b16 %v683
      %v1092 = vunpack.c.l.b16 %v684
      %v1093 = vunpack.c.h.b16 %v684
      %v1094 = vunpack.c.l.b16 %v685
      %v1095 = vunpack.c.h.b16 %v685
      %v1096 = vunpack.c.l.b16 %v686
      %v1097 = vunpack.c.h.b16 %v686
      %v1098 = vunpack.c.l.b16 %v687
      %v1099 = vunpack.c.h.b16 %v687
      %v1100 = vunpack.c.l.b16 %v688
      %v1101 = vunpack.c.h.b16 %v688
      %v1102 = vunpack.c.l.b16 %v689
      %v1103 = vunpack.c.h.b16 %v689
      %v1104 = vunpack.c.l.b16 %v690
      %v1105 = vunpack.c.h.b16 %v690
      %v1106 = vunpack.c.l.b16 %v691
      %v1107 = vunpack.c.h.b16 %v691
      %v1108 = vunpack.c.l.b16 %v692
      %v1109 = vunpack.c.h.b16 %v692
      %v1110 = vunpack.c.l.b16 %v693
      %v1111 = vunpack.c.h.b16 %v693
      %v1112 = vunpack.c.l.b16 %v694
      %v1113 = vunpack.c.h.b16 %v694
      %v1114 = vunpack.c.l.b16 %v695
      %v1115 = vunpack.c.h.b16 %v695
      %v1116 = vunpack.c.l.b16 %v696
      %v1117 = vunpack.c.h.b16 %v696
      %v1118 = vunpack.c.l.b16 %v697
      %v1119 = vunpack.c.h.b16 %v697
      %v1120 = vunpack.c.l.b16 %v698
      %v1121 = vunpack.c.h.b16 %v698
      %v1122 = vunpack.c.l.b16 %v699
      %v1123 = vunpack.c.h.b16 %v699
      %v1124 = vunpack.c.l.b16 %v700
      %v1125 = vunpack.c.h.b16 %v700
      %v1126 = vunpack.c.l.b16 %v701
      %v1127 = vunpack.c.h.b16 %v701
      %v1128 = vunpack.c.l.b16 %v702
      %v1129 = vunpack.c.h.b16 %v702
      %v1130 = vunpack.c.l.b16 %v703
      %v1131 = vunpack.c.h.b16 %v703
      %v1132 = vunpack.c.l.b16 %v704
      %v1133 = vunpack.c.h.b16 %v704
      %v1134 = vunpack.c.l.b16 %v705
      %v1135 = vunpack.c.h.b16 %v705
      %v1136 = vunpack.c.l.b16 %v706
      %v1137 = vunpack.c.h.b16 %v706
      %v1138 = vunpack.c.l.b16 %v707
      %v1139 = vunpack.c.h.b16 %v707
      %v1140 = vunpack.c.l.b16 %v708
      %v1141 = vunpack.c.h.b16 %v708
      %v1142 = vunpack.c.l.b16 %v709
      %v1143 = vunpack.c.h.b16 %v709
      %v1144 = vunpack.c.l.b16 %v710
      %v1145 = vunpack.c.h.b16 %v710
      %v1146 = vunpack.c.l.b16 %v711
      %v1147 = vunpack.c.h.b16 %v711
      %v1148 = vunpack.c.l.b16 %v712
      %v1149 = vunpack.c.h.b16 %v712
      %v1150 = vunpack.c.l.b16 %v713
      %v1151 = vunpack.c.h.b16 %v713
      %v1152 = vunpack.c.l.b16 %v714
      %v1153 = vunpack.c.h.b16 %v714
      %v1154 = vunpack.c.l.b16 %v715
      %v1155 = vunpack.c.h.b16 %v715
      %v1156 = vunpack.c.l.b16 %v716
      %v1157 = vunpack.c.h.b16 %v716
      %v1158 = vunpack.c.l.b16 %v717
      %v1159 = vunpack.c.h.b16 %v717
      %v1160 = vunpack.c.l.b16 %v718
      %v1161 = vunpack.c.h.b16 %v718
      %v1162 = vunpack.c.l.b16 %v719
      %v1163 = vunpack.c.h.b16 %v719
      %v1164 = vunpack.c.l.b16 %v720
      %v1165 = vunpack.c.h.b16 %v720
      %v1166 = vunpack.c.l.b16 %v721
      %v1167 = vunpack.c.h.b16 %v721
      %v1168 = vunpack.c.l.b16 %v722
      %v1169 = vunpack.c.h.b16 %v722
      %v1170 = vunpack.c.l.b16 %v723
      %v1171 = vunpack.c.h.b16 %v723
      %v1172 = vunpack.c.l.b16 %v724
      %v1173 = vunpack.c.h.b16 %v724
      %v1174 = vunpack.c.l.b16 %v725
      %v1175 = vunpack.c.h.b16 %v725
      %v1176 = vunpack.c.l.b16 %v726
      %v1177 = vunpack.c.h.b16 %v726
      %v1178 = vunpack.c.l.b16 %v727
      %v1179 = vunpack.c.h.b16 %v727
      %v1180 = vunpack.c.l.b16 %v728
      %v1181 = vunpack.c.h.b16 %v728
      %v1182 = vunpack.c.l.b16 %v729
      %v1183 = vunpack.c.h.b16 %v729
      %v1184 = vunpack.c.l.b16 %v730
      %v1185 = vunpack.c.h.b16 %v730
      %v1186 = vunpack.c.l.b16 %v731
      %v1187 = vunpack.c.h.b16 %v731
      %v1188 = vunpack.c.l.b16 %v732
      %v1189 = vunpack.c.h.b16 %v732
      %v1190 = vunpack.c.l.b16 %v733
      %v1191 = vunpack.c.h.b16 %v733
      %v1192 = vunpack.c.l.b16 %v734
      %v1193 = vunpack.c.h.b16 %v734
      %v1194 = vunpack.c.l.b16 %v735
      %v1195 = vunpack.c.h.b16 %v735
      %v1196 = vunpack.c.l.b16 %v736
      %v1197 = vunpack.c.h.b16 %v736
      %v1198 = vunpack.c.l.b16 %v737
      %v1199 = vunpack.c.h.b16 %v737
      %v1200 = vunpack.c.l.b16 %v738
      %v1201 = vunpack.c.h.b16 %v738
      %v1202 = vunpack.c.l.b16 %v739
      %v1203 = vunpack.c.h.b16 %v739
      %v1204 = vunpack.c.l.b16 %v740
      %v1205 = vunpack.c.h.b16 %v740
      %v1206 = vunpack.c.l.b16 %v741
      %v1207 = vunpack.c.h.b16 %v741
      %v1208 = vunpack.c.l.b16 %v742
      %v1209 = vunpack.c.h.b16 %v742
      %v1210 = vunpack.c.l.b16 %v743
      %v1211 = vunpack.c.h.b16 %v743
      %v1212 = vunpack.c.l.b16 %v744
      %v1213 = vunpack.c.h.b16 %v744
      %v1214 = vunpack.c.l.b16 %v745
      %v1215 = vunpack.c.h.b16 %v745
      %v1216 = vunpack.c.l.b16 %v746
      %v1217 = vunpack.c.h.b16 %v746
      %v1218 = vunpack.c.l.b16 %v747
      %v1219 = vunpack.c.h.b16 %v747
      %v1220 = vunpack.c.l.b16 %v748
      %v1221 = vunpack.c.h.b16 %v748
      %v1222 = vunpack.c.l.b16 %v749
      %v1223 = vunpack.c.h.b16 %v749
      %v1224 = vunpack.c.l.b16 %v750
      %v1225 = vunpack.c.h.b16 %v750
      %v1226 = vunpack.c.l.b16 %v751
      %v1227 = vunpack.c.h.b16 %v751
      %v1228 = vunpack.c.l.b16 %v752
      %v1229 = vunpack.c.h.b16 %v752
      %v1230 = vunpack.c.l.b16 %v753
      %v1231 = vunpack.c.h.b16 %v753
      %v1232 = vunpack.c.l.b16 %v754
      %v1233 = vunpack.c.h.b16 %v754
      %v1234 = vunpack.c.l.b16 %v755
      %v1235 = vunpack.c.h.b16 %v755
      %v1236 = vunpack.c.l.b16 %v756
      %v1237 = vunpack.c.h.b16 %v756
      %v1238 = vunpack.c.l.b16 %v757
      %v1239 = vunpack.c.h.b16 %v757
      %v1240 = vunpack.c.l.b16 %v758
      %v1241 = vunpack.c.h.b16 %v758
      %v1242 = vunpack.c.l.b16 %v759
      %v1243 = vunpack.c.h.b16 %v759
      %v1244 = vunpack.c.l.b16 %v760
      %v1245 = vunpack.c.h.b16 %v760
      %v1246 = vunpack.c.l.b16 %v761
      %v1247 = vunpack.c.h.b16 %v761
      %v1248 = vunpack.c.l.b16 %v762
      %v1249 = vunpack.c.h.b16 %v762
      %v1250 = vpack.c.b16 %v940, %v930
      %v1251 = vpack.c.b16 %v941, %v931
      %v1252 = vpack.c.b16 %v942, %v932
      %v1253 = vpack.c.b16 %v943, %v933
      %v1254 = vpack.c.b16 %v944, %v934
      %v1255 = vpack.c.b16 %v945, %v935
      %v1256 = vpack.c.b16 %v946, %v936
      %v1257 = vpack.c.b16 %v947, %v937
      %v1258 = vpack.c.b16 %v948, %v938
      %v1259 = vpack.c.b16 %v949, %v939
      %v1260 = vpack.c.b16 %v960, %v950
      %v1261 = vpack.c.b16 %v961, %v951
      %v1262 = vpack.c.b16 %v962, %v952
      %v1263 = vpack.c.b16 %v963, %v953
      %v1264 = vpack.c.b16 %v964, %v954
      %v1265 = vpack.c.b16 %v965, %v955
      %v1266 = vpack.c.b16 %v966, %v956
      %v1267 = vpack.c.b16 %v967, %v957
      %v1268 = vpack.c.b16 %v968, %v958
      %v1269 = vpack.c.b16 %v969, %v959
      %v1270 = vpack.c.b16 %v980, %v970
      %v1271 = vpack.c.b16 %v981, %v971
      %v1272 = vpack.c.b16 %v982, %v972
      %v1273 = vpack.c.b16 %v983, %v973
      %v1274 = vpack.c.b16 %v984, %v974
      %v1275 = vpack.c.b16 %v985, %v975
      %v1276 = vpack.c.b16 %v986, %v976
      %v1277 = vpack.c.b16 %v987, %v977
      %v1278 = vpack.c.b16 %v988, %v978
      %v1279 = vpack.c.b16 %v989, %v979
      %v1280 = vpack.c.b16 %v1000, %v990
      %v1281 = vpack.c.b16 %v1001, %v991
      %v1282 = vpack.c.b16 %v1002, %v992
      %v1283 = vpack.c.b16 %v1003, %v993
      %v1284 = vpack.c.b16 %v1004, %v994
      %v1285 = vpack.c.b16 %v1005, %v995
      %v1286 = vpack.c.b16 %v1006, %v996
      %v1287 = vpack.c.b16 %v1007, %v997
      %v1288 = vpack.c.b16 %v1008, %v998
      %v1289 = vpack.c.b16 %v1009, %v999
      %v1290 = vpack.c.b16 %v1020, %v1010
      %v1291 = vpack.c.b16 %v1021, %v1011
      %v1292 = vpack.c.b16 %v1022, %v1012
      %v1293 = vpack.c.b16 %v1023, %v1013
      %v1294 = vpack.c.b16 %v1024, %v1014
      %v1295 = vpack.c.b16 %v1025, %v1015
      %v1296 = vpack.c.b16 %v1026, %v1016
      %v1297 = vpack.c.b16 %v1027, %v1017
      %v1298 = vpack.c.b16 %v1028, %v1018
      %v1299 = vpack.c.b16 %v1029, %v1019
      %v1300 = vpack.c.b16 %v1040, %v1030
      %v1301 = vpack.c.b16 %v1041, %v1031
      %v1302 = vpack.c.b16 %v1042, %v1032
      %v1303 = vpack.c.b16 %v1043, %v1033
      %v1304 = vpack.c.b16 %v1044, %v1034
      %v1305 = vpack.c.b16 %v1045, %v1035
      %v1306 = vpack.c.b16 %v1046, %v1036
      %v1307 = vpack.c.b16 %v1047, %v1037
      %v1308 = vpack.c.b16 %v1048, %v1038
      %v1309 = vpack.c.b16 %v1049, %v1039
      %v1310 = vpack.c.b16 %v1060, %v1050
      %v1311 = vpack.c.b16 %v1061, %v1051
      %v1312 = vpack.c.b16 %v1062, %v1052
      %v1313 = vpack.c.b16 %v1063, %v1053
      %v1314 = vpack.c.b16 %v1064, %v1054
      %v1315 = vpack.c.b16 %v1065, %v1055
      %v1316 = vpack.c.b16 %v1066, %v1056
      %v1317 = vpack.c.b16 %v1067, %v1057
      %v1318 = vpack.c.b16 %v1068, %v1058
      %v1319 = vpack.c.b16 %v1069, %v1059
      %v1320 = vpack.c.b16 %v1080, %v1070
      %v1321 = vpack.c.b16 %v1081, %v1071
      %v1322 = vpack.c.b16 %v1082, %v1072
      %v1323 = vpack.c.b16 %v1083, %v1073
      %v1324 = vpack.c.b16 %v1084, %v1074
      %v1325 = vpack.c.b16 %v1085, %v1075
      %v1326 = vpack.c.b16 %v1086, %v1076
      %v1327 = vpack.c.b16 %v1087, %v1077
      %v1328 = vpack.c.b16 %v1088, %v1078
      %v1329 = vpack.c.b16 %v1089, %v1079
      %v1330 = vpack.c.b16 %v1100, %v1090
      %v1331 = vpack.c.b16 %v1101, %v1091
      %v1332 = vpack.c.b16 %v1102, %v1092
      %v1333 = vpack.c.b16 %v1103, %v1093
      %v1334 = vpack.c.b16 %v1104, %v1094
      %v1335 = vpack.c.b16 %v1105, %v1095
      %v1336 = vpack.c.b16 %v1106, %v1096
      %v1337 = vpack.c.b16 %v1107, %v1097
      %v1338 = vpack.c.b16 %v1108, %v1098
      %v1339 = vpack.c.b16 %v1109, %v1099
      %v1340 = vpack.c.b16 %v1120, %v1110
      %v1341 = vpack.c.b16 %v1121, %v1111
      %v1342 = vpack.c.b16 %v1122, %v1112
      %v1343 = vpack.c.b16 %v1123, %v1113
      %v1344 = vpack.c.b16 %v1124, %v1114
      %v1345 = vpack.c.b16 %v1125, %v1115
      %v1346 = vpack.c.b16 %v1126, %v1116
      %v1347 = vpack.c.b16 %v1127, %v1117
      %v1348 = vpack.c.b16 %v1128, %v1118
      %v1349 = vpack.c.b16 %v1129, %v1119
      %v1350 = vpack.c.b16 %v1140, %v1130
      %v1351 = vpack.c.b16 %v1141, %v1131
      %v1352 = vpack.c.b16 %v1142, %v1132
      %v1353 = vpack.c.b16 %v1143, %v1133
      %v1354 = vpack.c.b16 %v1144, %v1134
      %v1355 = vpack.c.b16 %v1145, %v1135
      %v1356 = vpack.c.b16 %v1146, %v1136
      %v1357 = vpack.c.b16 %v1147, %v1137
      %v1358 = vpack.c.b16 %v1148, %v1138
      %v1359 = vpack.c.b16 %v1149, %v1139
      %v1360 = vpack.c.b16 %v1160, %v1150
      %v1361 = vpack.c.b16 %v1161, %v1151
      %v1362 = vpack.c.b16 %v1162, %v1152
      %v1363 = vpack.c.b16 %v1163, %v1153
      %v1364 = vpack.c.b16 %v1164, %v1154
      %v1365 = vpack.c.b16 %v1165, %v1155
      %v1366 = vpack.c.b16 %v1166, %v1156
      %v1367 = vpack.c.b16 %v1167, %v1157
      %v1368 = vpack.c.b16 %v1168, %v1158
      %v1369 = vpack.c.b16 %v1169, %v1159
      %v1370 = vpack.c.b16 %v1180, %v1170
      %v1371 = vpack.c.b16 %v1181, %v1171
      %v1372 = vpack.c.b16 %v1182, %v1172
      %v1373 = vpack.c.b16 %v1183, %v1173
      %v1374 = vpack.c.b16 %v1184, %v1174
      %v1375 = vpack.c.b16 %v1185, %v1175
      %v1376 = vpack.c.b16 %v1186, %v1176
      %v1377 = vpack.c.b16 %v1187, %v1177
      %v1378 = vpack.c.b16 %v1188, %v1178
      %v1379 = vpack.c.b16 %v1189, %v1179
      %v1380 = vpack.c.b16 %v1200, %v1190
      %v1381 = vpack.c.b16 %v1201, %v1191
      %v1382 = vpack.c.b16 %v1202, %v1192
      %v1383 = vpack.c.b16 %v1203, %v1193
      %v1384 = vpack.c.b16 %v1204, %v1194
      %v1385 = vpack.c.b16 %v1205, %v1195
      %v1386 = vpack.c.b16 %v1206, %v1196
      %v1387 = vpack.c.b16 %v1207, %v1197
      %v1388 = vpack.c.b16 %v1208, %v1198
      %v1389 = vpack.c.b16 %v1209, %v1199
      %v1390 = vpack.c.b16 %v1220, %v1210
      %v1391 = vpack.c.b16 %v1221, %v1211
      %v1392 = vpack.c.b16 %v1222, %v1212
      %v1393 = vpack.c.b16 %v1223, %v1213
      %v1394 = vpack.c.b16 %v1224, %v1214
      %v1395 = vpack.c.b16 %v1225, %v1215
      %v1396 = vpack.c.b16 %v1226, %v1216
      %v1397 = vpack.c.b16 %v1227, %v1217
      %v1398 = vpack.c.b16 %v1228, %v1218
      %v1399 = vpack.c.b16 %v1229, %v1219
      %v1400 = vpack.c.b16 %v1240, %v1230
      %v1401 = vpack.c.b16 %v1241, %v1231
      %v1402 = vpack.c.b16 %v1242, %v1232
      %v1403 = vpack.c.b16 %v1243, %v1233
      %v1404 = vpack.c.b16 %v1244, %v1234
      %v1405 = vpack.c.b16 %v1245, %v1235
      %v1406 = vpack.c.b16 %v1246, %v1236
      %v1407 = vpack.c.b16 %v1247, %v1237
      %v1408 = vpack.c.b16 %v1248, %v1238
      %v1409 = vpack.c.b16 %v1249, %v1239
      %1570 = vmatprep.subr.bf16.mxu0 %v1321
      %1571 = vmatpush1.bf16.msra.mxu0 %v1320
      %1572 = vmatprep.subr.bf16.mxu0 %v1311
      %1573 = vmatpush1.bf16.msra.mxu0 %v1310
      %1574 = vmatprep.subr.bf16.mxu0 %v1301
      %1575 = vmatpush1.bf16.msra.mxu0 %v1300
      %1576 = vmatprep.subr.bf16.mxu0 %v1291
      %1577 = vmatpush1.bf16.msra.mxu0 %v1290
      %1578 = vmatprep.subr.bf16.mxu0 %v1281
      %1579 = vmatpush1.bf16.msra.mxu0 %v1280
      %1580 = vmatprep.subr.bf16.mxu0 %v1271
      %1581 = vmatpush1.bf16.msra.mxu0 %v1270
      %1582 = vmatprep.subr.bf16.mxu0 %v1261
      %1583 = vmatpush1.bf16.msra.mxu0 %v1260
      %1584 = vmatprep.subr.bf16.mxu0 %v1251
      %1585 = vmatpush1.bf16.msra.mxu0 %v1250
      %1586 = vmatprep.subr.bf16.mxu0 %v1401
      %1587 = vmatpush2.bf16.msra.mxu0 %v1400
      %1588 = vmatprep.subr.bf16.mxu0 %v1391
      %1589 = vmatpush2.bf16.msra.mxu0 %v1390
      %1590 = vmatprep.subr.bf16.mxu0 %v1381
      %1591 = vmatpush2.bf16.msra.mxu0 %v1380
      %1592 = vmatprep.subr.bf16.mxu0 %v1371
      %1593 = vmatpush2.bf16.msra.mxu0 %v1370
      %1594 = vmatprep.subr.bf16.mxu0 %v1361
      %1595 = vmatpush2.bf16.msra.mxu0 %v1360
      %1596 = vmatprep.subr.bf16.mxu0 %v1351
      %1597 = vmatpush2.bf16.msra.mxu0 %v1350
      %1598 = vmatprep.subr.bf16.mxu0 %v1341
      %1599 = vmatpush2.bf16.msra.mxu0 %v1340
      %1600 = vmatprep.subr.bf16.mxu0 %v1331
      %1601 = vmatpush2.bf16.msra.mxu0 %v1330
      %1602 = vmatprep.mubr.bf16.mxu0 %v767
      %1603 = vmatmul.mubr.bf16.gmra.mxu0 %v766
      %v1604 = vpop.f32.mrf.mxu0
      %v1605 = vadd.f32 0.0, %v1604
      %v1606 = vpop.f32.mrf.mxu0
      %v1607 = vadd.f32 0.0, %v1606
      %v1608 = vpop.f32.mrf.mxu0
      %v1609 = vpop.f32.mrf.mxu0
      %1610 = vdwg.mxu0
      %1611 = vmatprep.subr.bf16.mxu0 %v1323
      %1612 = vmatpush1.bf16.msra.mxu0 %v1322
      %1613 = vmatprep.subr.bf16.mxu0 %v1313
      %1614 = vmatpush1.bf16.msra.mxu0 %v1312
      %1615 = vmatprep.subr.bf16.mxu0 %v1303
      %1616 = vmatpush1.bf16.msra.mxu0 %v1302
      %1617 = vmatprep.subr.bf16.mxu0 %v1293
      %1618 = vmatpush1.bf16.msra.mxu0 %v1292
      %1619 = vmatprep.subr.bf16.mxu0 %v1283
      %1620 = vmatpush1.bf16.msra.mxu0 %v1282
      %1621 = vmatprep.subr.bf16.mxu0 %v1273
      %1622 = vmatpush1.bf16.msra.mxu0 %v1272
      %1623 = vmatprep.subr.bf16.mxu0 %v1263
      %1624 = vmatpush1.bf16.msra.mxu0 %v1262
      %1625 = vmatprep.subr.bf16.mxu0 %v1253
      %1626 = vmatpush1.bf16.msra.mxu0 %v1252
      %1627 = vmatprep.subr.bf16.mxu0 %v1403
      %1628 = vmatpush2.bf16.msra.mxu0 %v1402
      %1629 = vmatprep.subr.bf16.mxu0 %v1393
      %1630 = vmatpush2.bf16.msra.mxu0 %v1392
      %1631 = vmatprep.subr.bf16.mxu0 %v1383
      %1632 = vmatpush2.bf16.msra.mxu0 %v1382
      %1633 = vmatprep.subr.bf16.mxu0 %v1373
      %1634 = vmatpush2.bf16.msra.mxu0 %v1372
      %1635 = vmatprep.subr.bf16.mxu0 %v1363
      %1636 = vmatpush2.bf16.msra.mxu0 %v1362
      %1637 = vmatprep.subr.bf16.mxu0 %v1353
      %1638 = vmatpush2.bf16.msra.mxu0 %v1352
      %1639 = vmatprep.subr.bf16.mxu0 %v1343
      %1640 = vmatpush2.bf16.msra.mxu0 %v1342
      %1641 = vmatprep.subr.bf16.mxu0 %v1333
      %1642 = vmatpush2.bf16.msra.mxu0 %v1332
      %1643 = vmatprep.mubr.bf16.mxu0 %v767
      %1644 = vmatmul.mubr.bf16.gmra.mxu0 %v766
      %v1645 = vpop.f32.mrf.mxu0
      %v1646 = vadd.f32 0.0, %v1645
      %v1647 = vpop.f32.mrf.mxu0
      %v1648 = vadd.f32 0.0, %v1647
      %v1649 = vpop.f32.mrf.mxu0
      %v1650 = vpop.f32.mrf.mxu0
      %1651 = vdwg.mxu0
      %1652 = vmatprep.subr.bf16.mxu0 %v1325
      %1653 = vmatpush1.bf16.msra.mxu0 %v1324
      %1654 = vmatprep.subr.bf16.mxu0 %v1315
      %1655 = vmatpush1.bf16.msra.mxu0 %v1314
      %1656 = vmatprep.subr.bf16.mxu0 %v1305
      %1657 = vmatpush1.bf16.msra.mxu0 %v1304
      %1658 = vmatprep.subr.bf16.mxu0 %v1295
      %1659 = vmatpush1.bf16.msra.mxu0 %v1294
      %1660 = vmatprep.subr.bf16.mxu0 %v1285
      %1661 = vmatpush1.bf16.msra.mxu0 %v1284
      %1662 = vmatprep.subr.bf16.mxu0 %v1275
      %1663 = vmatpush1.bf16.msra.mxu0 %v1274
      %1664 = vmatprep.subr.bf16.mxu0 %v1265
      %1665 = vmatpush1.bf16.msra.mxu0 %v1264
      %1666 = vmatprep.subr.bf16.mxu0 %v1255
      %1667 = vmatpush1.bf16.msra.mxu0 %v1254
      %1668 = vmatprep.subr.bf16.mxu0 %v1405
      %1669 = vmatpush2.bf16.msra.mxu0 %v1404
      %1670 = vmatprep.subr.bf16.mxu0 %v1395
      %1671 = vmatpush2.bf16.msra.mxu0 %v1394
      %1672 = vmatprep.subr.bf16.mxu0 %v1385
      %1673 = vmatpush2.bf16.msra.mxu0 %v1384
      %1674 = vmatprep.subr.bf16.mxu0 %v1375
      %1675 = vmatpush2.bf16.msra.mxu0 %v1374
      %1676 = vmatprep.subr.bf16.mxu0 %v1365
      %1677 = vmatpush2.bf16.msra.mxu0 %v1364
      %1678 = vmatprep.subr.bf16.mxu0 %v1355
      %1679 = vmatpush2.bf16.msra.mxu0 %v1354
      %1680 = vmatprep.subr.bf16.mxu0 %v1345
      %1681 = vmatpush2.bf16.msra.mxu0 %v1344
      %1682 = vmatprep.subr.bf16.mxu0 %v1335
      %1683 = vmatpush2.bf16.msra.mxu0 %v1334
      %1684 = vmatprep.mubr.bf16.mxu0 %v767
      %1685 = vmatmul.mubr.bf16.gmra.mxu0 %v766
      %v1686 = vpop.f32.mrf.mxu0
      %v1687 = vadd.f32 0.0, %v1686
      %v1688 = vpop.f32.mrf.mxu0
      %v1689 = vadd.f32 0.0, %v1688
      %v1690 = vpop.f32.mrf.mxu0
      %v1691 = vpop.f32.mrf.mxu0
      %1692 = vdwg.mxu0
      %1693 = vmatprep.subr.bf16.mxu0 %v1327
      %1694 = vmatpush1.bf16.msra.mxu0 %v1326
      %1695 = vmatprep.subr.bf16.mxu0 %v1317
      %1696 = vmatpush1.bf16.msra.mxu0 %v1316
      %1697 = vmatprep.subr.bf16.mxu0 %v1307
      %1698 = vmatpush1.bf16.msra.mxu0 %v1306
      %1699 = vmatprep.subr.bf16.mxu0 %v1297
      %1700 = vmatpush1.bf16.msra.mxu0 %v1296
      %1701 = vmatprep.subr.bf16.mxu0 %v1287
      %1702 = vmatpush1.bf16.msra.mxu0 %v1286
      %1703 = vmatprep.subr.bf16.mxu0 %v1277
      %1704 = vmatpush1.bf16.msra.mxu0 %v1276
      %1705 = vmatprep.subr.bf16.mxu0 %v1267
      %1706 = vmatpush1.bf16.msra.mxu0 %v1266
      %1707 = vmatprep.subr.bf16.mxu0 %v1257
      %1708 = vmatpush1.bf16.msra.mxu0 %v1256
      %1709 = vmatprep.subr.bf16.mxu0 %v1407
      %1710 = vmatpush2.bf16.msra.mxu0 %v1406
      %1711 = vmatprep.subr.bf16.mxu0 %v1397
      %1712 = vmatpush2.bf16.msra.mxu0 %v1396
      %1713 = vmatprep.subr.bf16.mxu0 %v1387
      %1714 = vmatpush2.bf16.msra.mxu0 %v1386
      %1715 = vmatprep.subr.bf16.mxu0 %v1377
      %1716 = vmatpush2.bf16.msra.mxu0 %v1376
      %1717 = vmatprep.subr.bf16.mxu0 %v1367
      %1718 = vmatpush2.bf16.msra.mxu0 %v1366
      %1719 = vmatprep.subr.bf16.mxu0 %v1357
      %1720 = vmatpush2.bf16.msra.mxu0 %v1356
      %1721 = vmatprep.subr.bf16.mxu0 %v1347
      %1722 = vmatpush2.bf16.msra.mxu0 %v1346
      %1723 = vmatprep.subr.bf16.mxu0 %v1337
      %1724 = vmatpush2.bf16.msra.mxu0 %v1336
      %1725 = vmatprep.mubr.bf16.mxu0 %v767
      %1726 = vmatmul.mubr.bf16.gmra.mxu0 %v766
      %v1727 = vpop.f32.mrf.mxu0
      %v1728 = vadd.f32 0.0, %v1727
      %v1729 = vpop.f32.mrf.mxu0
      %v1730 = vadd.f32 0.0, %v1729
      %v1731 = vpop.f32.mrf.mxu0
      %v1732 = vpop.f32.mrf.mxu0
      %1733 = vdwg.mxu0
      %1734 = vmatprep.subr.bf16.mxu0 %v1329
      %1735 = vmatpush1.bf16.msra.mxu0 %v1328
      %1736 = vmatprep.subr.bf16.mxu0 %v1319
      %1737 = vmatpush1.bf16.msra.mxu0 %v1318
      %1738 = vmatprep.subr.bf16.mxu0 %v1309
      %1739 = vmatpush1.bf16.msra.mxu0 %v1308
      %1740 = vmatprep.subr.bf16.mxu0 %v1299
      %1741 = vmatpush1.bf16.msra.mxu0 %v1298
      %1742 = vmatprep.subr.bf16.mxu0 %v1289
      %1743 = vmatpush1.bf16.msra.mxu0 %v1288
      %1744 = vmatprep.subr.bf16.mxu0 %v1279
      %1745 = vmatpush1.bf16.msra.mxu0 %v1278
      %1746 = vmatprep.subr.bf16.mxu0 %v1269
      %1747 = vmatpush1.bf16.msra.mxu0 %v1268
      %1748 = vmatprep.subr.bf16.mxu0 %v1259
      %1749 = vmatpush1.bf16.msra.mxu0 %v1258
      %1750 = vmatprep.subr.bf16.mxu0 %v1409
      %1751 = vmatpush2.bf16.msra.mxu0 %v1408
      %1752 = vmatprep.subr.bf16.mxu0 %v1399
      %1753 = vmatpush2.bf16.msra.mxu0 %v1398
      %1754 = vmatprep.subr.bf16.mxu0 %v1389
      %1755 = vmatpush2.bf16.msra.mxu0 %v1388
      %1756 = vmatprep.subr.bf16.mxu0 %v1379
      %1757 = vmatpush2.bf16.msra.mxu0 %v1378
      %1758 = vmatprep.subr.bf16.mxu0 %v1369
      %1759 = vmatpush2.bf16.msra.mxu0 %v1368
      %1760 = vmatprep.subr.bf16.mxu0 %v1359
      %1761 = vmatpush2.bf16.msra.mxu0 %v1358
      %1762 = vmatprep.subr.bf16.mxu0 %v1349
      %1763 = vmatpush2.bf16.msra.mxu0 %v1348
      %1764 = vmatprep.subr.bf16.mxu0 %v1339
      %1765 = vmatpush2.bf16.msra.mxu0 %v1338
      %1766 = vmatprep.mubr.bf16.mxu0 %v767
      %1767 = vmatmul.mubr.bf16.gmra.mxu0 %v766
      %v1768 = vpop.f32.mrf.mxu0
      %v1769 = vadd.f32 0.0, %v1768
      %v1770 = vpop.f32.mrf.mxu0
      %v1771 = vadd.f32 0.0, %v1770
      %v1772 = vpop.f32.mrf.mxu0
      %v1773 = vpop.f32.mrf.mxu0
      %1774 = vdwg.mxu0
      %v1775 = vld [vmem:[%s1 + $0x500] sm:$0xff]
      %v1776 = vld [vmem:[%s1 + $0x508] sm:$0xff]
      %v1777 = vld [vmem:[%s1 + $0x510] sm:$0xff]
      %v1778 = vld [vmem:[%s1 + $0x518] sm:$0xff]
      %v1779 = vld [vmem:[%s1 + $0x520] sm:$0xff]
      %v1780 = vld [vmem:[%s1 + $0x528] sm:$0xff]
      %v1781 = vld [vmem:[%s1 + $0x530] sm:$0xff]
      %v1782 = vld [vmem:[%s1 + $0x538] sm:$0xff]
      %v1783 = vld [vmem:[%s1 + $0x540] sm:$0xff]
      %v1784 = vld [vmem:[%s1 + $0x548] sm:$0xff]
      %v1785 = vld [vmem:[%s1 + $0x550] sm:$0xff]
      %v1786 = vld [vmem:[%s1 + $0x558] sm:$0xff]
      %v1787 = vld [vmem:[%s1 + $0x560] sm:$0xff]
      %v1788 = vld [vmem:[%s1 + $0x568] sm:$0xff]
      %v1789 = vld [vmem:[%s1 + $0x570] sm:$0xff]
      %v1790 = vld [vmem:[%s1 + $0x578] sm:$0xff]
      %v1791 = vld [vmem:[%s1 + $0x580] sm:$0xff]
      %v1792 = vld [vmem:[%s1 + $0x588] sm:$0xff]
      %v1793 = vld [vmem:[%s1 + $0x590] sm:$0xff]
      %v1794 = vld [vmem:[%s1 + $0x598] sm:$0xff]
      %v1795 = vld [vmem:[%s1 + $0x5a0] sm:$0xff]
      %v1796 = vld [vmem:[%s1 + $0x5a8] sm:$0xff]
      %v1797 = vld [vmem:[%s1 + $0x5b0] sm:$0xff]
      %v1798 = vld [vmem:[%s1 + $0x5b8] sm:$0xff]
      %v1799 = vld [vmem:[%s1 + $0x5c0] sm:$0xff]
      %v1800 = vld [vmem:[%s1 + $0x5c8] sm:$0xff]
      %v1801 = vld [vmem:[%s1 + $0x5d0] sm:$0xff]
      %v1802 = vld [vmem:[%s1 + $0x5d8] sm:$0xff]
      %v1803 = vld [vmem:[%s1 + $0x5e0] sm:$0xff]
      %v1804 = vld [vmem:[%s1 + $0x5e8] sm:$0xff]
      %v1805 = vld [vmem:[%s1 + $0x5f0] sm:$0xff]
      %v1806 = vld [vmem:[%s1 + $0x5f8] sm:$0xff]
      %v1807 = vld [vmem:[%s1 + $0x600] sm:$0xff]
      %v1808 = vld [vmem:[%s1 + $0x608] sm:$0xff]
      %v1809 = vld [vmem:[%s1 + $0x610] sm:$0xff]
      %v1810 = vld [vmem:[%s1 + $0x618] sm:$0xff]
      %v1811 = vld [vmem:[%s1 + $0x620] sm:$0xff]
      %v1812 = vld [vmem:[%s1 + $0x628] sm:$0xff]
      %v1813 = vld [vmem:[%s1 + $0x630] sm:$0xff]
      %v1814 = vld [vmem:[%s1 + $0x638] sm:$0xff]
      %v1815 = vld [vmem:[%s1 + $0x640] sm:$0xff]
      %v1816 = vld [vmem:[%s1 + $0x648] sm:$0xff]
      %v1817 = vld [vmem:[%s1 + $0x650] sm:$0xff]
      %v1818 = vld [vmem:[%s1 + $0x658] sm:$0xff]
      %v1819 = vld [vmem:[%s1 + $0x660] sm:$0xff]
      %v1820 = vld [vmem:[%s1 + $0x668] sm:$0xff]
      %v1821 = vld [vmem:[%s1 + $0x670] sm:$0xff]
      %v1822 = vld [vmem:[%s1 + $0x678] sm:$0xff]
      %v1823 = vld [vmem:[%s1 + $0x680] sm:$0xff]
      %v1824 = vld [vmem:[%s1 + $0x688] sm:$0xff]
      %v1825 = vld [vmem:[%s1 + $0x690] sm:$0xff]
      %v1826 = vld [vmem:[%s1 + $0x698] sm:$0xff]
      %v1827 = vld [vmem:[%s1 + $0x6a0] sm:$0xff]
      %v1828 = vld [vmem:[%s1 + $0x6a8] sm:$0xff]
      %v1829 = vld [vmem:[%s1 + $0x6b0] sm:$0xff]
      %v1830 = vld [vmem:[%s1 + $0x6b8] sm:$0xff]
      %v1831 = vld [vmem:[%s1 + $0x6c0] sm:$0xff]
      %v1832 = vld [vmem:[%s1 + $0x6c8] sm:$0xff]
      %v1833 = vld [vmem:[%s1 + $0x6d0] sm:$0xff]
      %v1834 = vld [vmem:[%s1 + $0x6d8] sm:$0xff]
      %v1835 = vld [vmem:[%s1 + $0x6e0] sm:$0xff]
      %v1836 = vld [vmem:[%s1 + $0x6e8] sm:$0xff]
      %v1837 = vld [vmem:[%s1 + $0x6f0] sm:$0xff]
      %v1838 = vld [vmem:[%s1 + $0x6f8] sm:$0xff]
      %v1839 = vld [vmem:[%s1 + $0x700] sm:$0xff]
      %v1840 = vld [vmem:[%s1 + $0x708] sm:$0xff]
      %v1841 = vld [vmem:[%s1 + $0x710] sm:$0xff]
      %v1842 = vld [vmem:[%s1 + $0x718] sm:$0xff]
      %v1843 = vld [vmem:[%s1 + $0x720] sm:$0xff]
      %v1844 = vld [vmem:[%s1 + $0x728] sm:$0xff]
      %v1845 = vld [vmem:[%s1 + $0x730] sm:$0xff]
      %v1846 = vld [vmem:[%s1 + $0x738] sm:$0xff]
      %v1847 = vld [vmem:[%s1 + $0x740] sm:$0xff]
      %v1848 = vld [vmem:[%s1 + $0x748] sm:$0xff]
      %v1849 = vld [vmem:[%s1 + $0x750] sm:$0xff]
      %v1850 = vld [vmem:[%s1 + $0x758] sm:$0xff]
      %v1851 = vld [vmem:[%s1 + $0x760] sm:$0xff]
      %v1852 = vld [vmem:[%s1 + $0x768] sm:$0xff]
      %v1853 = vld [vmem:[%s1 + $0x770] sm:$0xff]
      %v1854 = vld [vmem:[%s1 + $0x778] sm:$0xff]
      %v1855 = vld [vmem:[%s1 + $0x780] sm:$0xff]
      %v1856 = vld [vmem:[%s1 + $0x788] sm:$0xff]
      %v1857 = vld [vmem:[%s1 + $0x790] sm:$0xff]
      %v1858 = vld [vmem:[%s1 + $0x798] sm:$0xff]
      %v1859 = vld [vmem:[%s1 + $0x7a0] sm:$0xff]
      %v1860 = vld [vmem:[%s1 + $0x7a8] sm:$0xff]
      %v1861 = vld [vmem:[%s1 + $0x7b0] sm:$0xff]
      %v1862 = vld [vmem:[%s1 + $0x7b8] sm:$0xff]
      %v1863 = vld [vmem:[%s1 + $0x7c0] sm:$0xff]
      %v1864 = vld [vmem:[%s1 + $0x7c8] sm:$0xff]
      %v1865 = vld [vmem:[%s1 + $0x7d0] sm:$0xff]
      %v1866 = vld [vmem:[%s1 + $0x7d8] sm:$0xff]
      %v1867 = vld [vmem:[%s1 + $0x7e0] sm:$0xff]
      %v1868 = vld [vmem:[%s1 + $0x7e8] sm:$0xff]
      %v1869 = vld [vmem:[%s1 + $0x7f0] sm:$0xff]
      %v1870 = vld [vmem:[%s1 + $0x7f8] sm:$0xff]
      %v1871 = vld [vmem:[%s1 + $0x800] sm:$0xff]
      %v1872 = vld [vmem:[%s1 + $0x808] sm:$0xff]
      %v1873 = vld [vmem:[%s1 + $0x810] sm:$0xff]
      %v1874 = vld [vmem:[%s1 + $0x818] sm:$0xff]
      %v1875 = vld [vmem:[%s1 + $0x820] sm:$0xff]
      %v1876 = vld [vmem:[%s1 + $0x828] sm:$0xff]
      %v1877 = vld [vmem:[%s1 + $0x830] sm:$0xff]
      %v1878 = vld [vmem:[%s1 + $0x838] sm:$0xff]
      %v1879 = vld [vmem:[%s1 + $0x840] sm:$0xff]
      %v1880 = vld [vmem:[%s1 + $0x848] sm:$0xff]
      %v1881 = vld [vmem:[%s1 + $0x850] sm:$0xff]
      %v1882 = vld [vmem:[%s1 + $0x858] sm:$0xff]
      %v1883 = vld [vmem:[%s1 + $0x860] sm:$0xff]
      %v1884 = vld [vmem:[%s1 + $0x868] sm:$0xff]
      %v1885 = vld [vmem:[%s1 + $0x870] sm:$0xff]
      %v1886 = vld [vmem:[%s1 + $0x878] sm:$0xff]
      %v1887 = vld [vmem:[%s1 + $0x880] sm:$0xff]
      %v1888 = vld [vmem:[%s1 + $0x888] sm:$0xff]
      %v1889 = vld [vmem:[%s1 + $0x890] sm:$0xff]
      %v1890 = vld [vmem:[%s1 + $0x898] sm:$0xff]
      %v1891 = vld [vmem:[%s1 + $0x8a0] sm:$0xff]
      %v1892 = vld [vmem:[%s1 + $0x8a8] sm:$0xff]
      %v1893 = vld [vmem:[%s1 + $0x8b0] sm:$0xff]
      %v1894 = vld [vmem:[%s1 + $0x8b8] sm:$0xff]
      %v1895 = vld [vmem:[%s1 + $0x8c0] sm:$0xff]
      %v1896 = vld [vmem:[%s1 + $0x8c8] sm:$0xff]
      %v1897 = vld [vmem:[%s1 + $0x8d0] sm:$0xff]
      %v1898 = vld [vmem:[%s1 + $0x8d8] sm:$0xff]
      %v1899 = vld [vmem:[%s1 + $0x8e0] sm:$0xff]
      %v1900 = vld [vmem:[%s1 + $0x8e8] sm:$0xff]
      %v1901 = vld [vmem:[%s1 + $0x8f0] sm:$0xff]
      %v1902 = vld [vmem:[%s1 + $0x8f8] sm:$0xff]
      %v1903 = vld [vmem:[%s1 + $0x900] sm:$0xff]
      %v1904 = vld [vmem:[%s1 + $0x908] sm:$0xff]
      %v1905 = vld [vmem:[%s1 + $0x910] sm:$0xff]
      %v1906 = vld [vmem:[%s1 + $0x918] sm:$0xff]
      %v1907 = vld [vmem:[%s1 + $0x920] sm:$0xff]
      %v1908 = vld [vmem:[%s1 + $0x928] sm:$0xff]
      %v1909 = vld [vmem:[%s1 + $0x930] sm:$0xff]
      %v1910 = vld [vmem:[%s1 + $0x938] sm:$0xff]
      %v1911 = vld [vmem:[%s1 + $0x940] sm:$0xff]
      %v1912 = vld [vmem:[%s1 + $0x948] sm:$0xff]
      %v1913 = vld [vmem:[%s1 + $0x950] sm:$0xff]
      %v1914 = vld [vmem:[%s1 + $0x958] sm:$0xff]
      %v1915 = vld [vmem:[%s1 + $0x960] sm:$0xff]
      %v1916 = vld [vmem:[%s1 + $0x968] sm:$0xff]
      %v1917 = vld [vmem:[%s1 + $0x970] sm:$0xff]
      %v1918 = vld [vmem:[%s1 + $0x978] sm:$0xff]
      %v1919 = vld [vmem:[%s1 + $0x980] sm:$0xff]
      %v1920 = vld [vmem:[%s1 + $0x988] sm:$0xff]
      %v1921 = vld [vmem:[%s1 + $0x990] sm:$0xff]
      %v1922 = vld [vmem:[%s1 + $0x998] sm:$0xff]
      %v1923 = vld [vmem:[%s1 + $0x9a0] sm:$0xff]
      %v1924 = vld [vmem:[%s1 + $0x9a8] sm:$0xff]
      %v1925 = vld [vmem:[%s1 + $0x9b0] sm:$0xff]
      %v1926 = vld [vmem:[%s1 + $0x9b8] sm:$0xff]
      %v1927 = vld [vmem:[%s1 + $0x9c0] sm:$0xff]
      %v1928 = vld [vmem:[%s1 + $0x9c8] sm:$0xff]
      %v1929 = vld [vmem:[%s1 + $0x9d0] sm:$0xff]
      %v1930 = vld [vmem:[%s1 + $0x9d8] sm:$0xff]
      %v1931 = vld [vmem:[%s1 + $0x9e0] sm:$0xff]
      %v1932 = vld [vmem:[%s1 + $0x9e8] sm:$0xff]
      %v1933 = vld [vmem:[%s1 + $0x9f0] sm:$0xff]
      %v1934 = vld [vmem:[%s1 + $0x9f8] sm:$0xff]
      %v2095 = vunpack.c.l.b16 %v1775
      %v2096 = vunpack.c.h.b16 %v1775
      %v2097 = vunpack.c.l.b16 %v1776
      %v2098 = vunpack.c.h.b16 %v1776
      %v2099 = vunpack.c.l.b16 %v1777
      %v2100 = vunpack.c.h.b16 %v1777
      %v2101 = vunpack.c.l.b16 %v1778
      %v2102 = vunpack.c.h.b16 %v1778
      %v2103 = vunpack.c.l.b16 %v1779
      %v2104 = vunpack.c.h.b16 %v1779
      %v2105 = vunpack.c.l.b16 %v1780
      %v2106 = vunpack.c.h.b16 %v1780
      %v2107 = vunpack.c.l.b16 %v1781
      %v2108 = vunpack.c.h.b16 %v1781
      %v2109 = vunpack.c.l.b16 %v1782
      %v2110 = vunpack.c.h.b16 %v1782
      %v2111 = vunpack.c.l.b16 %v1783
      %v2112 = vunpack.c.h.b16 %v1783
      %v2113 = vunpack.c.l.b16 %v1784
      %v2114 = vunpack.c.h.b16 %v1784
      %v2115 = vunpack.c.l.b16 %v1785
      %v2116 = vunpack.c.h.b16 %v1785
      %v2117 = vunpack.c.l.b16 %v1786
      %v2118 = vunpack.c.h.b16 %v1786
      %v2119 = vunpack.c.l.b16 %v1787
      %v2120 = vunpack.c.h.b16 %v1787
      %v2121 = vunpack.c.l.b16 %v1788
      %v2122 = vunpack.c.h.b16 %v1788
      %v2123 = vunpack.c.l.b16 %v1789
      %v2124 = vunpack.c.h.b16 %v1789
      %v2125 = vunpack.c.l.b16 %v1790
      %v2126 = vunpack.c.h.b16 %v1790
      %v2127 = vunpack.c.l.b16 %v1791
      %v2128 = vunpack.c.h.b16 %v1791
      %v2129 = vunpack.c.l.b16 %v1792
      %v2130 = vunpack.c.h.b16 %v1792
      %v2131 = vunpack.c.l.b16 %v1793
      %v2132 = vunpack.c.h.b16 %v1793
      %v2133 = vunpack.c.l.b16 %v1794
      %v2134 = vunpack.c.h.b16 %v1794
      %v2135 = vunpack.c.l.b16 %v1795
      %v2136 = vunpack.c.h.b16 %v1795
      %v2137 = vunpack.c.l.b16 %v1796
      %v2138 = vunpack.c.h.b16 %v1796
      %v2139 = vunpack.c.l.b16 %v1797
      %v2140 = vunpack.c.h.b16 %v1797
      %v2141 = vunpack.c.l.b16 %v1798
      %v2142 = vunpack.c.h.b16 %v1798
      %v2143 = vunpack.c.l.b16 %v1799
      %v2144 = vunpack.c.h.b16 %v1799
      %v2145 = vunpack.c.l.b16 %v1800
      %v2146 = vunpack.c.h.b16 %v1800
      %v2147 = vunpack.c.l.b16 %v1801
      %v2148 = vunpack.c.h.b16 %v1801
      %v2149 = vunpack.c.l.b16 %v1802
      %v2150 = vunpack.c.h.b16 %v1802
      %v2151 = vunpack.c.l.b16 %v1803
      %v2152 = vunpack.c.h.b16 %v1803
      %v2153 = vunpack.c.l.b16 %v1804
      %v2154 = vunpack.c.h.b16 %v1804
      %v2155 = vunpack.c.l.b16 %v1805
      %v2156 = vunpack.c.h.b16 %v1805
      %v2157 = vunpack.c.l.b16 %v1806
      %v2158 = vunpack.c.h.b16 %v1806
      %v2159 = vunpack.c.l.b16 %v1807
      %v2160 = vunpack.c.h.b16 %v1807
      %v2161 = vunpack.c.l.b16 %v1808
      %v2162 = vunpack.c.h.b16 %v1808
      %v2163 = vunpack.c.l.b16 %v1809
      %v2164 = vunpack.c.h.b16 %v1809
      %v2165 = vunpack.c.l.b16 %v1810
      %v2166 = vunpack.c.h.b16 %v1810
      %v2167 = vunpack.c.l.b16 %v1811
      %v2168 = vunpack.c.h.b16 %v1811
      %v2169 = vunpack.c.l.b16 %v1812
      %v2170 = vunpack.c.h.b16 %v1812
      %v2171 = vunpack.c.l.b16 %v1813
      %v2172 = vunpack.c.h.b16 %v1813
      %v2173 = vunpack.c.l.b16 %v1814
      %v2174 = vunpack.c.h.b16 %v1814
      %v2175 = vunpack.c.l.b16 %v1815
      %v2176 = vunpack.c.h.b16 %v1815
      %v2177 = vunpack.c.l.b16 %v1816
      %v2178 = vunpack.c.h.b16 %v1816
      %v2179 = vunpack.c.l.b16 %v1817
      %v2180 = vunpack.c.h.b16 %v1817
      %v2181 = vunpack.c.l.b16 %v1818
      %v2182 = vunpack.c.h.b16 %v1818
      %v2183 = vunpack.c.l.b16 %v1819
      %v2184 = vunpack.c.h.b16 %v1819
      %v2185 = vunpack.c.l.b16 %v1820
      %v2186 = vunpack.c.h.b16 %v1820
      %v2187 = vunpack.c.l.b16 %v1821
      %v2188 = vunpack.c.h.b16 %v1821
      %v2189 = vunpack.c.l.b16 %v1822
      %v2190 = vunpack.c.h.b16 %v1822
      %v2191 = vunpack.c.l.b16 %v1823
      %v2192 = vunpack.c.h.b16 %v1823
      %v2193 = vunpack.c.l.b16 %v1824
      %v2194 = vunpack.c.h.b16 %v1824
      %v2195 = vunpack.c.l.b16 %v1825
      %v2196 = vunpack.c.h.b16 %v1825
      %v2197 = vunpack.c.l.b16 %v1826
      %v2198 = vunpack.c.h.b16 %v1826
      %v2199 = vunpack.c.l.b16 %v1827
      %v2200 = vunpack.c.h.b16 %v1827
      %v2201 = vunpack.c.l.b16 %v1828
      %v2202 = vunpack.c.h.b16 %v1828
      %v2203 = vunpack.c.l.b16 %v1829
      %v2204 = vunpack.c.h.b16 %v1829
      %v2205 = vunpack.c.l.b16 %v1830
      %v2206 = vunpack.c.h.b16 %v1830
      %v2207 = vunpack.c.l.b16 %v1831
      %v2208 = vunpack.c.h.b16 %v1831
      %v2209 = vunpack.c.l.b16 %v1832
      %v2210 = vunpack.c.h.b16 %v1832
      %v2211 = vunpack.c.l.b16 %v1833
      %v2212 = vunpack.c.h.b16 %v1833
      %v2213 = vunpack.c.l.b16 %v1834
      %v2214 = vunpack.c.h.b16 %v1834
      %v2215 = vunpack.c.l.b16 %v1835
      %v2216 = vunpack.c.h.b16 %v1835
      %v2217 = vunpack.c.l.b16 %v1836
      %v2218 = vunpack.c.h.b16 %v1836
      %v2219 = vunpack.c.l.b16 %v1837
      %v2220 = vunpack.c.h.b16 %v1837
      %v2221 = vunpack.c.l.b16 %v1838
      %v2222 = vunpack.c.h.b16 %v1838
      %v2223 = vunpack.c.l.b16 %v1839
      %v2224 = vunpack.c.h.b16 %v1839
      %v2225 = vunpack.c.l.b16 %v1840
      %v2226 = vunpack.c.h.b16 %v1840
      %v2227 = vunpack.c.l.b16 %v1841
      %v2228 = vunpack.c.h.b16 %v1841
      %v2229 = vunpack.c.l.b16 %v1842
      %v2230 = vunpack.c.h.b16 %v1842
      %v2231 = vunpack.c.l.b16 %v1843
      %v2232 = vunpack.c.h.b16 %v1843
      %v2233 = vunpack.c.l.b16 %v1844
      %v2234 = vunpack.c.h.b16 %v1844
      %v2235 = vunpack.c.l.b16 %v1845
      %v2236 = vunpack.c.h.b16 %v1845
      %v2237 = vunpack.c.l.b16 %v1846
      %v2238 = vunpack.c.h.b16 %v1846
      %v2239 = vunpack.c.l.b16 %v1847
      %v2240 = vunpack.c.h.b16 %v1847
      %v2241 = vunpack.c.l.b16 %v1848
      %v2242 = vunpack.c.h.b16 %v1848
      %v2243 = vunpack.c.l.b16 %v1849
      %v2244 = vunpack.c.h.b16 %v1849
      %v2245 = vunpack.c.l.b16 %v1850
      %v2246 = vunpack.c.h.b16 %v1850
      %v2247 = vunpack.c.l.b16 %v1851
      %v2248 = vunpack.c.h.b16 %v1851
      %v2249 = vunpack.c.l.b16 %v1852
      %v2250 = vunpack.c.h.b16 %v1852
      %v2251 = vunpack.c.l.b16 %v1853
      %v2252 = vunpack.c.h.b16 %v1853
      %v2253 = vunpack.c.l.b16 %v1854
      %v2254 = vunpack.c.h.b16 %v1854
      %v2255 = vunpack.c.l.b16 %v1855
      %v2256 = vunpack.c.h.b16 %v1855
      %v2257 = vunpack.c.l.b16 %v1856
      %v2258 = vunpack.c.h.b16 %v1856
      %v2259 = vunpack.c.l.b16 %v1857
      %v2260 = vunpack.c.h.b16 %v1857
      %v2261 = vunpack.c.l.b16 %v1858
      %v2262 = vunpack.c.h.b16 %v1858
      %v2263 = vunpack.c.l.b16 %v1859
      %v2264 = vunpack.c.h.b16 %v1859
      %v2265 = vunpack.c.l.b16 %v1860
      %v2266 = vunpack.c.h.b16 %v1860
      %v2267 = vunpack.c.l.b16 %v1861
      %v2268 = vunpack.c.h.b16 %v1861
      %v2269 = vunpack.c.l.b16 %v1862
      %v2270 = vunpack.c.h.b16 %v1862
      %v2271 = vunpack.c.l.b16 %v1863
      %v2272 = vunpack.c.h.b16 %v1863
      %v2273 = vunpack.c.l.b16 %v1864
      %v2274 = vunpack.c.h.b16 %v1864
      %v2275 = vunpack.c.l.b16 %v1865
      %v2276 = vunpack.c.h.b16 %v1865
      %v2277 = vunpack.c.l.b16 %v1866
      %v2278 = vunpack.c.h.b16 %v1866
      %v2279 = vunpack.c.l.b16 %v1867
      %v2280 = vunpack.c.h.b16 %v1867
      %v2281 = vunpack.c.l.b16 %v1868
      %v2282 = vunpack.c.h.b16 %v1868
      %v2283 = vunpack.c.l.b16 %v1869
      %v2284 = vunpack.c.h.b16 %v1869
      %v2285 = vunpack.c.l.b16 %v1870
      %v2286 = vunpack.c.h.b16 %v1870
      %v2287 = vunpack.c.l.b16 %v1871
      %v2288 = vunpack.c.h.b16 %v1871
      %v2289 = vunpack.c.l.b16 %v1872
      %v2290 = vunpack.c.h.b16 %v1872
      %v2291 = vunpack.c.l.b16 %v1873
      %v2292 = vunpack.c.h.b16 %v1873
      %v2293 = vunpack.c.l.b16 %v1874
      %v2294 = vunpack.c.h.b16 %v1874
      %v2295 = vunpack.c.l.b16 %v1875
      %v2296 = vunpack.c.h.b16 %v1875
      %v2297 = vunpack.c.l.b16 %v1876
      %v2298 = vunpack.c.h.b16 %v1876
      %v2299 = vunpack.c.l.b16 %v1877
      %v2300 = vunpack.c.h.b16 %v1877
      %v2301 = vunpack.c.l.b16 %v1878
      %v2302 = vunpack.c.h.b16 %v1878
      %v2303 = vunpack.c.l.b16 %v1879
      %v2304 = vunpack.c.h.b16 %v1879
      %v2305 = vunpack.c.l.b16 %v1880
      %v2306 = vunpack.c.h.b16 %v1880
      %v2307 = vunpack.c.l.b16 %v1881
      %v2308 = vunpack.c.h.b16 %v1881
      %v2309 = vunpack.c.l.b16 %v1882
      %v2310 = vunpack.c.h.b16 %v1882
      %v2311 = vunpack.c.l.b16 %v1883
      %v2312 = vunpack.c.h.b16 %v1883
      %v2313 = vunpack.c.l.b16 %v1884
      %v2314 = vunpack.c.h.b16 %v1884
      %v2315 = vunpack.c.l.b16 %v1885
      %v2316 = vunpack.c.h.b16 %v1885
      %v2317 = vunpack.c.l.b16 %v1886
      %v2318 = vunpack.c.h.b16 %v1886
      %v2319 = vunpack.c.l.b16 %v1887
      %v2320 = vunpack.c.h.b16 %v1887
      %v2321 = vunpack.c.l.b16 %v1888
      %v2322 = vunpack.c.h.b16 %v1888
      %v2323 = vunpack.c.l.b16 %v1889
      %v2324 = vunpack.c.h.b16 %v1889
      %v2325 = vunpack.c.l.b16 %v1890
      %v2326 = vunpack.c.h.b16 %v1890
      %v2327 = vunpack.c.l.b16 %v1891
      %v2328 = vunpack.c.h.b16 %v1891
      %v2329 = vunpack.c.l.b16 %v1892
      %v2330 = vunpack.c.h.b16 %v1892
      %v2331 = vunpack.c.l.b16 %v1893
      %v2332 = vunpack.c.h.b16 %v1893
      %v2333 = vunpack.c.l.b16 %v1894
      %v2334 = vunpack.c.h.b16 %v1894
      %v2335 = vunpack.c.l.b16 %v1895
      %v2336 = vunpack.c.h.b16 %v1895
      %v2337 = vunpack.c.l.b16 %v1896
      %v2338 = vunpack.c.h.b16 %v1896
      %v2339 = vunpack.c.l.b16 %v1897
      %v2340 = vunpack.c.h.b16 %v1897
      %v2341 = vunpack.c.l.b16 %v1898
      %v2342 = vunpack.c.h.b16 %v1898
      %v2343 = vunpack.c.l.b16 %v1899
      %v2344 = vunpack.c.h.b16 %v1899
      %v2345 = vunpack.c.l.b16 %v1900
      %v2346 = vunpack.c.h.b16 %v1900
      %v2347 = vunpack.c.l.b16 %v1901
      %v2348 = vunpack.c.h.b16 %v1901
      %v2349 = vunpack.c.l.b16 %v1902
      %v2350 = vunpack.c.h.b16 %v1902
      %v2351 = vunpack.c.l.b16 %v1903
      %v2352 = vunpack.c.h.b16 %v1903
      %v2353 = vunpack.c.l.b16 %v1904
      %v2354 = vunpack.c.h.b16 %v1904
      %v2355 = vunpack.c.l.b16 %v1905
      %v2356 = vunpack.c.h.b16 %v1905
      %v2357 = vunpack.c.l.b16 %v1906
      %v2358 = vunpack.c.h.b16 %v1906
      %v2359 = vunpack.c.l.b16 %v1907
      %v2360 = vunpack.c.h.b16 %v1907
      %v2361 = vunpack.c.l.b16 %v1908
      %v2362 = vunpack.c.h.b16 %v1908
      %v2363 = vunpack.c.l.b16 %v1909
      %v2364 = vunpack.c.h.b16 %v1909
      %v2365 = vunpack.c.l.b16 %v1910
      %v2366 = vunpack.c.h.b16 %v1910
      %v2367 = vunpack.c.l.b16 %v1911
      %v2368 = vunpack.c.h.b16 %v1911
      %v2369 = vunpack.c.l.b16 %v1912
      %v2370 = vunpack.c.h.b16 %v1912
      %v2371 = vunpack.c.l.b16 %v1913
      %v2372 = vunpack.c.h.b16 %v1913
      %v2373 = vunpack.c.l.b16 %v1914
      %v2374 = vunpack.c.h.b16 %v1914
      %v2375 = vunpack.c.l.b16 %v1915
      %v2376 = vunpack.c.h.b16 %v1915
      %v2377 = vunpack.c.l.b16 %v1916
      %v2378 = vunpack.c.h.b16 %v1916
      %v2379 = vunpack.c.l.b16 %v1917
      %v2380 = vunpack.c.h.b16 %v1917
      %v2381 = vunpack.c.l.b16 %v1918
      %v2382 = vunpack.c.h.b16 %v1918
      %v2383 = vunpack.c.l.b16 %v1919
      %v2384 = vunpack.c.h.b16 %v1919
      %v2385 = vunpack.c.l.b16 %v1920
      %v2386 = vunpack.c.h.b16 %v1920
      %v2387 = vunpack.c.l.b16 %v1921
      %v2388 = vunpack.c.h.b16 %v1921
      %v2389 = vunpack.c.l.b16 %v1922
      %v2390 = vunpack.c.h.b16 %v1922
      %v2391 = vunpack.c.l.b16 %v1923
      %v2392 = vunpack.c.h.b16 %v1923
      %v2393 = vunpack.c.l.b16 %v1924
      %v2394 = vunpack.c.h.b16 %v1924
      %v2395 = vunpack.c.l.b16 %v1925
      %v2396 = vunpack.c.h.b16 %v1925
      %v2397 = vunpack.c.l.b16 %v1926
      %v2398 = vunpack.c.h.b16 %v1926
      %v2399 = vunpack.c.l.b16 %v1927
      %v2400 = vunpack.c.h.b16 %v1927
      %v2401 = vunpack.c.l.b16 %v1928
      %v2402 = vunpack.c.h.b16 %v1928
      %v2403 = vunpack.c.l.b16 %v1929
      %v2404 = vunpack.c.h.b16 %v1929
      %v2405 = vunpack.c.l.b16 %v1930
      %v2406 = vunpack.c.h.b16 %v1930
      %v2407 = vunpack.c.l.b16 %v1931
      %v2408 = vunpack.c.h.b16 %v1931
      %v2409 = vunpack.c.l.b16 %v1932
      %v2410 = vunpack.c.h.b16 %v1932
      %v2411 = vunpack.c.l.b16 %v1933
      %v2412 = vunpack.c.h.b16 %v1933
      %v2413 = vunpack.c.l.b16 %v1934
      %v2414 = vunpack.c.h.b16 %v1934
      %v2415 = vpack.c.b16 %v2105, %v2095
      %v2416 = vpack.c.b16 %v2106, %v2096
      %v2417 = vpack.c.b16 %v2107, %v2097
      %v2418 = vpack.c.b16 %v2108, %v2098
      %v2419 = vpack.c.b16 %v2109, %v2099
      %v2420 = vpack.c.b16 %v2110, %v2100
      %v2421 = vpack.c.b16 %v2111, %v2101
      %v2422 = vpack.c.b16 %v2112, %v2102
      %v2423 = vpack.c.b16 %v2113, %v2103
      %v2424 = vpack.c.b16 %v2114, %v2104
      %v2425 = vpack.c.b16 %v2125, %v2115
      %v2426 = vpack.c.b16 %v2126, %v2116
      %v2427 = vpack.c.b16 %v2127, %v2117
      %v2428 = vpack.c.b16 %v2128, %v2118
      %v2429 = vpack.c.b16 %v2129, %v2119
      %v2430 = vpack.c.b16 %v2130, %v2120
      %v2431 = vpack.c.b16 %v2131, %v2121
      %v2432 = vpack.c.b16 %v2132, %v2122
      %v2433 = vpack.c.b16 %v2133, %v2123
      %v2434 = vpack.c.b16 %v2134, %v2124
      %v2435 = vpack.c.b16 %v2145, %v2135
      %v2436 = vpack.c.b16 %v2146, %v2136
      %v2437 = vpack.c.b16 %v2147, %v2137
      %v2438 = vpack.c.b16 %v2148, %v2138
      %v2439 = vpack.c.b16 %v2149, %v2139
      %v2440 = vpack.c.b16 %v2150, %v2140
      %v2441 = vpack.c.b16 %v2151, %v2141
      %v2442 = vpack.c.b16 %v2152, %v2142
      %v2443 = vpack.c.b16 %v2153, %v2143
      %v2444 = vpack.c.b16 %v2154, %v2144
      %v2445 = vpack.c.b16 %v2165, %v2155
      %v2446 = vpack.c.b16 %v2166, %v2156
      %v2447 = vpack.c.b16 %v2167, %v2157
      %v2448 = vpack.c.b16 %v2168, %v2158
      %v2449 = vpack.c.b16 %v2169, %v2159
      %v2450 = vpack.c.b16 %v2170, %v2160
      %v2451 = vpack.c.b16 %v2171, %v2161
      %v2452 = vpack.c.b16 %v2172, %v2162
      %v2453 = vpack.c.b16 %v2173, %v2163
      %v2454 = vpack.c.b16 %v2174, %v2164
      %v2455 = vpack.c.b16 %v2185, %v2175
      %v2456 = vpack.c.b16 %v2186, %v2176
      %v2457 = vpack.c.b16 %v2187, %v2177
      %v2458 = vpack.c.b16 %v2188, %v2178
      %v2459 = vpack.c.b16 %v2189, %v2179
      %v2460 = vpack.c.b16 %v2190, %v2180
      %v2461 = vpack.c.b16 %v2191, %v2181
      %v2462 = vpack.c.b16 %v2192, %v2182
      %v2463 = vpack.c.b16 %v2193, %v2183
      %v2464 = vpack.c.b16 %v2194, %v2184
      %v2465 = vpack.c.b16 %v2205, %v2195
      %v2466 = vpack.c.b16 %v2206, %v2196
      %v2467 = vpack.c.b16 %v2207, %v2197
      %v2468 = vpack.c.b16 %v2208, %v2198
      %v2469 = vpack.c.b16 %v2209, %v2199
      %v2470 = vpack.c.b16 %v2210, %v2200
      %v2471 = vpack.c.b16 %v2211, %v2201
      %v2472 = vpack.c.b16 %v2212, %v2202
      %v2473 = vpack.c.b16 %v2213, %v2203
      %v2474 = vpack.c.b16 %v2214, %v2204
      %v2475 = vpack.c.b16 %v2225, %v2215
      %v2476 = vpack.c.b16 %v2226, %v2216
      %v2477 = vpack.c.b16 %v2227, %v2217
      %v2478 = vpack.c.b16 %v2228, %v2218
      %v2479 = vpack.c.b16 %v2229, %v2219
      %v2480 = vpack.c.b16 %v2230, %v2220
      %v2481 = vpack.c.b16 %v2231, %v2221
      %v2482 = vpack.c.b16 %v2232, %v2222
      %v2483 = vpack.c.b16 %v2233, %v2223
      %v2484 = vpack.c.b16 %v2234, %v2224
      %v2485 = vpack.c.b16 %v2245, %v2235
      %v2486 = vpack.c.b16 %v2246, %v2236
      %v2487 = vpack.c.b16 %v2247, %v2237
      %v2488 = vpack.c.b16 %v2248, %v2238
      %v2489 = vpack.c.b16 %v2249, %v2239
      %v2490 = vpack.c.b16 %v2250, %v2240
      %v2491 = vpack.c.b16 %v2251, %v2241
      %v2492 = vpack.c.b16 %v2252, %v2242
      %v2493 = vpack.c.b16 %v2253, %v2243
      %v2494 = vpack.c.b16 %v2254, %v2244
      %v2495 = vpack.c.b16 %v2265, %v2255
      %v2496 = vpack.c.b16 %v2266, %v2256
      %v2497 = vpack.c.b16 %v2267, %v2257
      %v2498 = vpack.c.b16 %v2268, %v2258
      %v2499 = vpack.c.b16 %v2269, %v2259
      %v2500 = vpack.c.b16 %v2270, %v2260
      %v2501 = vpack.c.b16 %v2271, %v2261
      %v2502 = vpack.c.b16 %v2272, %v2262
      %v2503 = vpack.c.b16 %v2273, %v2263
      %v2504 = vpack.c.b16 %v2274, %v2264
      %v2505 = vpack.c.b16 %v2285, %v2275
      %v2506 = vpack.c.b16 %v2286, %v2276
      %v2507 = vpack.c.b16 %v2287, %v2277
      %v2508 = vpack.c.b16 %v2288, %v2278
      %v2509 = vpack.c.b16 %v2289, %v2279
      %v2510 = vpack.c.b16 %v2290, %v2280
      %v2511 = vpack.c.b16 %v2291, %v2281
      %v2512 = vpack.c.b16 %v2292, %v2282
      %v2513 = vpack.c.b16 %v2293, %v2283
      %v2514 = vpack.c.b16 %v2294, %v2284
      %v2515 = vpack.c.b16 %v2305, %v2295
      %v2516 = vpack.c.b16 %v2306, %v2296
      %v2517 = vpack.c.b16 %v2307, %v2297
      %v2518 = vpack.c.b16 %v2308, %v2298
      %v2519 = vpack.c.b16 %v2309, %v2299
      %v2520 = vpack.c.b16 %v2310, %v2300
      %v2521 = vpack.c.b16 %v2311, %v2301
      %v2522 = vpack.c.b16 %v2312, %v2302
      %v2523 = vpack.c.b16 %v2313, %v2303
      %v2524 = vpack.c.b16 %v2314, %v2304
      %v2525 = vpack.c.b16 %v2325, %v2315
      %v2526 = vpack.c.b16 %v2326, %v2316
      %v2527 = vpack.c.b16 %v2327, %v2317
      %v2528 = vpack.c.b16 %v2328, %v2318
      %v2529 = vpack.c.b16 %v2329, %v2319
      %v2530 = vpack.c.b16 %v2330, %v2320
      %v2531 = vpack.c.b16 %v2331, %v2321
      %v2532 = vpack.c.b16 %v2332, %v2322
      %v2533 = vpack.c.b16 %v2333, %v2323
      %v2534 = vpack.c.b16 %v2334, %v2324
      %v2535 = vpack.c.b16 %v2345, %v2335
      %v2536 = vpack.c.b16 %v2346, %v2336
      %v2537 = vpack.c.b16 %v2347, %v2337
      %v2538 = vpack.c.b16 %v2348, %v2338
      %v2539 = vpack.c.b16 %v2349, %v2339
      %v2540 = vpack.c.b16 %v2350, %v2340
      %v2541 = vpack.c.b16 %v2351, %v2341
      %v2542 = vpack.c.b16 %v2352, %v2342
      %v2543 = vpack.c.b16 %v2353, %v2343
      %v2544 = vpack.c.b16 %v2354, %v2344
      %v2545 = vpack.c.b16 %v2365, %v2355
      %v2546 = vpack.c.b16 %v2366, %v2356
      %v2547 = vpack.c.b16 %v2367, %v2357
      %v2548 = vpack.c.b16 %v2368, %v2358
      %v2549 = vpack.c.b16 %v2369, %v2359
      %v2550 = vpack.c.b16 %v2370, %v2360
      %v2551 = vpack.c.b16 %v2371, %v2361
      %v2552 = vpack.c.b16 %v2372, %v2362
      %v2553 = vpack.c.b16 %v2373, %v2363
      %v2554 = vpack.c.b16 %v2374, %v2364
      %v2555 = vpack.c.b16 %v2385, %v2375
      %v2556 = vpack.c.b16 %v2386, %v2376
      %v2557 = vpack.c.b16 %v2387, %v2377
      %v2558 = vpack.c.b16 %v2388, %v2378
      %v2559 = vpack.c.b16 %v2389, %v2379
      %v2560 = vpack.c.b16 %v2390, %v2380
      %v2561 = vpack.c.b16 %v2391, %v2381
      %v2562 = vpack.c.b16 %v2392, %v2382
      %v2563 = vpack.c.b16 %v2393, %v2383
      %v2564 = vpack.c.b16 %v2394, %v2384
      %v2565 = vpack.c.b16 %v2405, %v2395
      %v2566 = vpack.c.b16 %v2406, %v2396
      %v2567 = vpack.c.b16 %v2407, %v2397
      %v2568 = vpack.c.b16 %v2408, %v2398
      %v2569 = vpack.c.b16 %v2409, %v2399
      %v2570 = vpack.c.b16 %v2410, %v2400
      %v2571 = vpack.c.b16 %v2411, %v2401
      %v2572 = vpack.c.b16 %v2412, %v2402
      %v2573 = vpack.c.b16 %v2413, %v2403
      %v2574 = vpack.c.b16 %v2414, %v2404
      %2735 = vmatprep.subr.bf16.mxu0 %v2486
      %2736 = vmatpush1.bf16.msra.mxu0 %v2485
      %2737 = vmatprep.subr.bf16.mxu0 %v2476
      %2738 = vmatpush1.bf16.msra.mxu0 %v2475
      %2739 = vmatprep.subr.bf16.mxu0 %v2466
      %2740 = vmatpush1.bf16.msra.mxu0 %v2465
      %2741 = vmatprep.subr.bf16.mxu0 %v2456
      %2742 = vmatpush1.bf16.msra.mxu0 %v2455
      %2743 = vmatprep.subr.bf16.mxu0 %v2446
      %2744 = vmatpush1.bf16.msra.mxu0 %v2445
      %2745 = vmatprep.subr.bf16.mxu0 %v2436
      %2746 = vmatpush1.bf16.msra.mxu0 %v2435
      %2747 = vmatprep.subr.bf16.mxu0 %v2426
      %2748 = vmatpush1.bf16.msra.mxu0 %v2425
      %2749 = vmatprep.subr.bf16.mxu0 %v2416
      %2750 = vmatpush1.bf16.msra.mxu0 %v2415
      %2751 = vmatprep.subr.bf16.mxu0 %v2566
      %2752 = vmatpush2.bf16.msra.mxu0 %v2565
      %2753 = vmatprep.subr.bf16.mxu0 %v2556
      %2754 = vmatpush2.bf16.msra.mxu0 %v2555
      %2755 = vmatprep.subr.bf16.mxu0 %v2546
      %2756 = vmatpush2.bf16.msra.mxu0 %v2545
      %2757 = vmatprep.subr.bf16.mxu0 %v2536
      %2758 = vmatpush2.bf16.msra.mxu0 %v2535
      %2759 = vmatprep.subr.bf16.mxu0 %v2526
      %2760 = vmatpush2.bf16.msra.mxu0 %v2525
      %2761 = vmatprep.subr.bf16.mxu0 %v2516
      %2762 = vmatpush2.bf16.msra.mxu0 %v2515
      %2763 = vmatprep.subr.bf16.mxu0 %v2506
      %2764 = vmatpush2.bf16.msra.mxu0 %v2505
      %2765 = vmatprep.subr.bf16.mxu0 %v2496
      %2766 = vmatpush2.bf16.msra.mxu0 %v2495
      %2767 = vmatprep.mubr.bf16.mxu0 %v767
      %2768 = vmatmul.mubr.bf16.gmra.mxu0 %v766
      %v2769 = vpop.f32.mrf.mxu0
      %v2770 = vadd.f32 0.0, %v2769
      %v2771 = vpop.f32.mrf.mxu0
      %v2772 = vadd.f32 0.0, %v2771
      %v2773 = vpop.f32.mrf.mxu0
      %v2774 = vpop.f32.mrf.mxu0
      %2775 = vdwg.mxu0
      %2776 = vmatprep.subr.bf16.mxu0 %v2488
      %2777 = vmatpush1.bf16.msra.mxu0 %v2487
      %2778 = vmatprep.subr.bf16.mxu0 %v2478
      %2779 = vmatpush1.bf16.msra.mxu0 %v2477
      %2780 = vmatprep.subr.bf16.mxu0 %v2468
      %2781 = vmatpush1.bf16.msra.mxu0 %v2467
      %2782 = vmatprep.subr.bf16.mxu0 %v2458
      %2783 = vmatpush1.bf16.msra.mxu0 %v2457
      %2784 = vmatprep.subr.bf16.mxu0 %v2448
      %2785 = vmatpush1.bf16.msra.mxu0 %v2447
      %2786 = vmatprep.subr.bf16.mxu0 %v2438
      %2787 = vmatpush1.bf16.msra.mxu0 %v2437
      %2788 = vmatprep.subr.bf16.mxu0 %v2428
      %2789 = vmatpush1.bf16.msra.mxu0 %v2427
      %2790 = vmatprep.subr.bf16.mxu0 %v2418
      %2791 = vmatpush1.bf16.msra.mxu0 %v2417
      %2792 = vmatprep.subr.bf16.mxu0 %v2568
      %2793 = vmatpush2.bf16.msra.mxu0 %v2567
      %2794 = vmatprep.subr.bf16.mxu0 %v2558
      %2795 = vmatpush2.bf16.msra.mxu0 %v2557
      %2796 = vmatprep.subr.bf16.mxu0 %v2548
      %2797 = vmatpush2.bf16.msra.mxu0 %v2547
      %2798 = vmatprep.subr.bf16.mxu0 %v2538
      %2799 = vmatpush2.bf16.msra.mxu0 %v2537
      %2800 = vmatprep.subr.bf16.mxu0 %v2528
      %2801 = vmatpush2.bf16.msra.mxu0 %v2527
      %2802 = vmatprep.subr.bf16.mxu0 %v2518
      %2803 = vmatpush2.bf16.msra.mxu0 %v2517
      %2804 = vmatprep.subr.bf16.mxu0 %v2508
      %2805 = vmatpush2.bf16.msra.mxu0 %v2507
      %2806 = vmatprep.subr.bf16.mxu0 %v2498
      %2807 = vmatpush2.bf16.msra.mxu0 %v2497
      %2808 = vmatprep.mubr.bf16.mxu0 %v767
      %2809 = vmatmul.mubr.bf16.gmra.mxu0 %v766
      %v2810 = vpop.f32.mrf.mxu0
      %v2811 = vadd.f32 0.0, %v2810
      %v2812 = vpop.f32.mrf.mxu0
      %v2813 = vadd.f32 0.0, %v2812
      %v2814 = vpop.f32.mrf.mxu0
      %v2815 = vpop.f32.mrf.mxu0
      %2816 = vdwg.mxu0
      %2817 = vmatprep.subr.bf16.mxu0 %v2490
      %2818 = vmatpush1.bf16.msra.mxu0 %v2489
      %2819 = vmatprep.subr.bf16.mxu0 %v2480
      %2820 = vmatpush1.bf16.msra.mxu0 %v2479
      %2821 = vmatprep.subr.bf16.mxu0 %v2470
      %2822 = vmatpush1.bf16.msra.mxu0 %v2469
      %2823 = vmatprep.subr.bf16.mxu0 %v2460
      %2824 = vmatpush1.bf16.msra.mxu0 %v2459
      %2825 = vmatprep.subr.bf16.mxu0 %v2450
      %2826 = vmatpush1.bf16.msra.mxu0 %v2449
      %2827 = vmatprep.subr.bf16.mxu0 %v2440
      %2828 = vmatpush1.bf16.msra.mxu0 %v2439
      %2829 = vmatprep.subr.bf16.mxu0 %v2430
      %2830 = vmatpush1.bf16.msra.mxu0 %v2429
      %2831 = vmatprep.subr.bf16.mxu0 %v2420
      %2832 = vmatpush1.bf16.msra.mxu0 %v2419
      %2833 = vmatprep.subr.bf16.mxu0 %v2570
      %2834 = vmatpush2.bf16.msra.mxu0 %v2569
      %2835 = vmatprep.subr.bf16.mxu0 %v2560
      %2836 = vmatpush2.bf16.msra.mxu0 %v2559
      %2837 = vmatprep.subr.bf16.mxu0 %v2550
      %2838 = vmatpush2.bf16.msra.mxu0 %v2549
      %2839 = vmatprep.subr.bf16.mxu0 %v2540
      %2840 = vmatpush2.bf16.msra.mxu0 %v2539
      %2841 = vmatprep.subr.bf16.mxu0 %v2530
      %2842 = vmatpush2.bf16.msra.mxu0 %v2529
      %2843 = vmatprep.subr.bf16.mxu0 %v2520
      %2844 = vmatpush2.bf16.msra.mxu0 %v2519
      %2845 = vmatprep.subr.bf16.mxu0 %v2510
      %2846 = vmatpush2.bf16.msra.mxu0 %v2509
      %2847 = vmatprep.subr.bf16.mxu0 %v2500
      %2848 = vmatpush2.bf16.msra.mxu0 %v2499
      %2849 = vmatprep.mubr.bf16.mxu0 %v767
      %2850 = vmatmul.mubr.bf16.gmra.mxu0 %v766
      %v2851 = vpop.f32.mrf.mxu0
      %v2852 = vadd.f32 0.0, %v2851
      %v2853 = vpop.f32.mrf.mxu0
      %v2854 = vadd.f32 0.0, %v2853
      %v2855 = vpop.f32.mrf.mxu0
      %v2856 = vpop.f32.mrf.mxu0
      %2857 = vdwg.mxu0
      %2858 = vmatprep.subr.bf16.mxu0 %v2492
      %2859 = vmatpush1.bf16.msra.mxu0 %v2491
      %2860 = vmatprep.subr.bf16.mxu0 %v2482
      %2861 = vmatpush1.bf16.msra.mxu0 %v2481
      %2862 = vmatprep.subr.bf16.mxu0 %v2472
      %2863 = vmatpush1.bf16.msra.mxu0 %v2471
      %2864 = vmatprep.subr.bf16.mxu0 %v2462
      %2865 = vmatpush1.bf16.msra.mxu0 %v2461
      %2866 = vmatprep.subr.bf16.mxu0 %v2452
      %2867 = vmatpush1.bf16.msra.mxu0 %v2451
      %2868 = vmatprep.subr.bf16.mxu0 %v2442
      %2869 = vmatpush1.bf16.msra.mxu0 %v2441
      %2870 = vmatprep.subr.bf16.mxu0 %v2432
      %2871 = vmatpush1.bf16.msra.mxu0 %v2431
      %2872 = vmatprep.subr.bf16.mxu0 %v2422
      %2873 = vmatpush1.bf16.msra.mxu0 %v2421
      %2874 = vmatprep.subr.bf16.mxu0 %v2572
      %2875 = vmatpush2.bf16.msra.mxu0 %v2571
      %2876 = vmatprep.subr.bf16.mxu0 %v2562
      %2877 = vmatpush2.bf16.msra.mxu0 %v2561
      %2878 = vmatprep.subr.bf16.mxu0 %v2552
      %2879 = vmatpush2.bf16.msra.mxu0 %v2551
      %2880 = vmatprep.subr.bf16.mxu0 %v2542
      %2881 = vmatpush2.bf16.msra.mxu0 %v2541
      %2882 = vmatprep.subr.bf16.mxu0 %v2532
      %2883 = vmatpush2.bf16.msra.mxu0 %v2531
      %2884 = vmatprep.subr.bf16.mxu0 %v2522
      %2885 = vmatpush2.bf16.msra.mxu0 %v2521
      %2886 = vmatprep.subr.bf16.mxu0 %v2512
      %2887 = vmatpush2.bf16.msra.mxu0 %v2511
      %2888 = vmatprep.subr.bf16.mxu0 %v2502
      %2889 = vmatpush2.bf16.msra.mxu0 %v2501
      %2890 = vmatprep.mubr.bf16.mxu0 %v767
      %2891 = vmatmul.mubr.bf16.gmra.mxu0 %v766
      %v2892 = vpop.f32.mrf.mxu0
      %v2893 = vadd.f32 0.0, %v2892
      %v2894 = vpop.f32.mrf.mxu0
      %v2895 = vadd.f32 0.0, %v2894
      %v2896 = vpop.f32.mrf.mxu0
      %v2897 = vpop.f32.mrf.mxu0
      %2898 = vdwg.mxu0
      %2899 = vmatprep.subr.bf16.mxu0 %v2494
      %2900 = vmatpush1.bf16.msra.mxu0 %v2493
      %2901 = vmatprep.subr.bf16.mxu0 %v2484
      %2902 = vmatpush1.bf16.msra.mxu0 %v2483
      %2903 = vmatprep.subr.bf16.mxu0 %v2474
      %2904 = vmatpush1.bf16.msra.mxu0 %v2473
      %2905 = vmatprep.subr.bf16.mxu0 %v2464
      %2906 = vmatpush1.bf16.msra.mxu0 %v2463
      %2907 = vmatprep.subr.bf16.mxu0 %v2454
      %2908 = vmatpush1.bf16.msra.mxu0 %v2453
      %2909 = vmatprep.subr.bf16.mxu0 %v2444
      %2910 = vmatpush1.bf16.msra.mxu0 %v2443
      %2911 = vmatprep.subr.bf16.mxu0 %v2434
      %2912 = vmatpush1.bf16.msra.mxu0 %v2433
      %2913 = vmatprep.subr.bf16.mxu0 %v2424
      %2914 = vmatpush1.bf16.msra.mxu0 %v2423
      %2915 = vmatprep.subr.bf16.mxu0 %v2574
      %2916 = vmatpush2.bf16.msra.mxu0 %v2573
      %2917 = vmatprep.subr.bf16.mxu0 %v2564
      %2918 = vmatpush2.bf16.msra.mxu0 %v2563
      %2919 = vmatprep.subr.bf16.mxu0 %v2554
      %2920 = vmatpush2.bf16.msra.mxu0 %v2553
      %2921 = vmatprep.subr.bf16.mxu0 %v2544
      %2922 = vmatpush2.bf16.msra.mxu0 %v2543
      %2923 = vmatprep.subr.bf16.mxu0 %v2534
      %2924 = vmatpush2.bf16.msra.mxu0 %v2533
      %2925 = vmatprep.subr.bf16.mxu0 %v2524
      %2926 = vmatpush2.bf16.msra.mxu0 %v2523
      %2927 = vmatprep.subr.bf16.mxu0 %v2514
      %2928 = vmatpush2.bf16.msra.mxu0 %v2513
      %2929 = vmatprep.subr.bf16.mxu0 %v2504
      %2930 = vmatpush2.bf16.msra.mxu0 %v2503
      %2931 = vmatprep.mubr.bf16.mxu0 %v767
      %2932 = vmatmul.mubr.bf16.gmra.mxu0 %v766
      %v2933 = vpop.f32.mrf.mxu0
      %v2934 = vadd.f32 0.0, %v2933
      %v2935 = vpop.f32.mrf.mxu0
      %v2936 = vadd.f32 0.0, %v2935
      %v2937 = vpop.f32.mrf.mxu0
      %v2938 = vpop.f32.mrf.mxu0
      %2939 = vdwg.mxu0
      %v2940 = vmax.f32 %v1605, %v2770
      %v2941 = vmax.f32 %v1607, %v2772
      %v2942 = vmax.f32 %v1646, %v2811
      %v2943 = vmax.f32 %v1648, %v2813
      %v2944 = vmax.f32 %v1687, %v2852
      %v2945 = vmax.f32 %v1689, %v2854
      %v2946 = vmax.f32 %v1728, %v2893
      %v2947 = vmax.f32 %v1730, %v2895
      %v2948 = vmax.f32 %v1769, %v2934
      %v2949 = vmax.f32 %v1771, %v2936
      %v2950 = vld [vmem:[%s1 + $0xa00] sm:$0xff]
      %v2951 = vld [vmem:[%s1 + $0xa08] sm:$0xff]
      %v2952 = vld [vmem:[%s1 + $0xa10] sm:$0xff]
      %v2953 = vld [vmem:[%s1 + $0xa18] sm:$0xff]
      %v2954 = vld [vmem:[%s1 + $0xa20] sm:$0xff]
      %v2955 = vld [vmem:[%s1 + $0xa28] sm:$0xff]
      %v2956 = vld [vmem:[%s1 + $0xa30] sm:$0xff]
      %v2957 = vld [vmem:[%s1 + $0xa38] sm:$0xff]
      %v2958 = vld [vmem:[%s1 + $0xa40] sm:$0xff]
      %v2959 = vld [vmem:[%s1 + $0xa48] sm:$0xff]
      %v2960 = vld [vmem:[%s1 + $0xa50] sm:$0xff]
      %v2961 = vld [vmem:[%s1 + $0xa58] sm:$0xff]
      %v2962 = vld [vmem:[%s1 + $0xa60] sm:$0xff]
      %v2963 = vld [vmem:[%s1 + $0xa68] sm:$0xff]
      %v2964 = vld [vmem:[%s1 + $0xa70] sm:$0xff]
      %v2965 = vld [vmem:[%s1 + $0xa78] sm:$0xff]
      %v2966 = vld [vmem:[%s1 + $0xa80] sm:$0xff]
      %v2967 = vld [vmem:[%s1 + $0xa88] sm:$0xff]
      %v2968 = vld [vmem:[%s1 + $0xa90] sm:$0xff]
      %v2969 = vld [vmem:[%s1 + $0xa98] sm:$0xff]
      %v2970 = vld [vmem:[%s1 + $0xaa0] sm:$0xff]
      %v2971 = vld [vmem:[%s1 + $0xaa8] sm:$0xff]
      %v2972 = vld [vmem:[%s1 + $0xab0] sm:$0xff]
      %v2973 = vld [vmem:[%s1 + $0xab8] sm:$0xff]
      %v2974 = vld [vmem:[%s1 + $0xac0] sm:$0xff]
      %v2975 = vld [vmem:[%s1 + $0xac8] sm:$0xff]
      %v2976 = vld [vmem:[%s1 + $0xad0] sm:$0xff]
      %v2977 = vld [vmem:[%s1 + $0xad8] sm:$0xff]
      %v2978 = vld [vmem:[%s1 + $0xae0] sm:$0xff]
      %v2979 = vld [vmem:[%s1 + $0xae8] sm:$0xff]
      %v2980 = vld [vmem:[%s1 + $0xaf0] sm:$0xff]
      %v2981 = vld [vmem:[%s1 + $0xaf8] sm:$0xff]
      %v2982 = vld [vmem:[%s1 + $0xb00] sm:$0xff]
      %v2983 = vld [vmem:[%s1 + $0xb08] sm:$0xff]
      %v2984 = vld [vmem:[%s1 + $0xb10] sm:$0xff]
      %v2985 = vld [vmem:[%s1 + $0xb18] sm:$0xff]
      %v2986 = vld [vmem:[%s1 + $0xb20] sm:$0xff]
      %v2987 = vld [vmem:[%s1 + $0xb28] sm:$0xff]
      %v2988 = vld [vmem:[%s1 + $0xb30] sm:$0xff]
      %v2989 = vld [vmem:[%s1 + $0xb38] sm:$0xff]
      %v2990 = vld [vmem:[%s1 + $0xb40] sm:$0xff]
      %v2991 = vld [vmem:[%s1 + $0xb48] sm:$0xff]
      %v2992 = vld [vmem:[%s1 + $0xb50] sm:$0xff]
      %v2993 = vld [vmem:[%s1 + $0xb58] sm:$0xff]
      %v2994 = vld [vmem:[%s1 + $0xb60] sm:$0xff]
      %v2995 = vld [vmem:[%s1 + $0xb68] sm:$0xff]
      %v2996 = vld [vmem:[%s1 + $0xb70] sm:$0xff]
      %v2997 = vld [vmem:[%s1 + $0xb78] sm:$0xff]
      %v2998 = vld [vmem:[%s1 + $0xb80] sm:$0xff]
      %v2999 = vld [vmem:[%s1 + $0xb88] sm:$0xff]
      %v3000 = vld [vmem:[%s1 + $0xb90] sm:$0xff]
      %v3001 = vld [vmem:[%s1 + $0xb98] sm:$0xff]
      %v3002 = vld [vmem:[%s1 + $0xba0] sm:$0xff]
      %v3003 = vld [vmem:[%s1 + $0xba8] sm:$0xff]
      %v3004 = vld [vmem:[%s1 + $0xbb0] sm:$0xff]
      %v3005 = vld [vmem:[%s1 + $0xbb8] sm:$0xff]
      %v3006 = vld [vmem:[%s1 + $0xbc0] sm:$0xff]
      %v3007 = vld [vmem:[%s1 + $0xbc8] sm:$0xff]
      %v3008 = vld [vmem:[%s1 + $0xbd0] sm:$0xff]
      %v3009 = vld [vmem:[%s1 + $0xbd8] sm:$0xff]
      %v3010 = vld [vmem:[%s1 + $0xbe0] sm:$0xff]
      %v3011 = vld [vmem:[%s1 + $0xbe8] sm:$0xff]
      %v3012 = vld [vmem:[%s1 + $0xbf0] sm:$0xff]
      %v3013 = vld [vmem:[%s1 + $0xbf8] sm:$0xff]
      %v3014 = vld [vmem:[%s1 + $0xc00] sm:$0xff]
      %v3015 = vld [vmem:[%s1 + $0xc08] sm:$0xff]
      %v3016 = vld [vmem:[%s1 + $0xc10] sm:$0xff]
      %v3017 = vld [vmem:[%s1 + $0xc18] sm:$0xff]
      %v3018 = vld [vmem:[%s1 + $0xc20] sm:$0xff]
      %v3019 = vld [vmem:[%s1 + $0xc28] sm:$0xff]
      %v3020 = vld [vmem:[%s1 + $0xc30] sm:$0xff]
      %v3021 = vld [vmem:[%s1 + $0xc38] sm:$0xff]
      %v3022 = vld [vmem:[%s1 + $0xc40] sm:$0xff]
      %v3023 = vld [vmem:[%s1 + $0xc48] sm:$0xff]
      %v3024 = vld [vmem:[%s1 + $0xc50] sm:$0xff]
      %v3025 = vld [vmem:[%s1 + $0xc58] sm:$0xff]
      %v3026 = vld [vmem:[%s1 + $0xc60] sm:$0xff]
      %v3027 = vld [vmem:[%s1 + $0xc68] sm:$0xff]
      %v3028 = vld [vmem:[%s1 + $0xc70] sm:$0xff]
      %v3029 = vld [vmem:[%s1 + $0xc78] sm:$0xff]
      %v3030 = vld [vmem:[%s1 + $0xc80] sm:$0xff]
      %v3031 = vld [vmem:[%s1 + $0xc88] sm:$0xff]
      %v3032 = vld [vmem:[%s1 + $0xc90] sm:$0xff]
      %v3033 = vld [vmem:[%s1 + $0xc98] sm:$0xff]
      %v3034 = vld [vmem:[%s1 + $0xca0] sm:$0xff]
      %v3035 = vld [vmem:[%s1 + $0xca8] sm:$0xff]
      %v3036 = vld [vmem:[%s1 + $0xcb0] sm:$0xff]
      %v3037 = vld [vmem:[%s1 + $0xcb8] sm:$0xff]
      %v3038 = vld [vmem:[%s1 + $0xcc0] sm:$0xff]
      %v3039 = vld [vmem:[%s1 + $0xcc8] sm:$0xff]
      %v3040 = vld [vmem:[%s1 + $0xcd0] sm:$0xff]
      %v3041 = vld [vmem:[%s1 + $0xcd8] sm:$0xff]
      %v3042 = vld [vmem:[%s1 + $0xce0] sm:$0xff]
      %v3043 = vld [vmem:[%s1 + $0xce8] sm:$0xff]
      %v3044 = vld [vmem:[%s1 + $0xcf0] sm:$0xff]
      %v3045 = vld [vmem:[%s1 + $0xcf8] sm:$0xff]
      %v3046 = vld [vmem:[%s1 + $0xd00] sm:$0xff]
      %v3047 = vld [vmem:[%s1 + $0xd08] sm:$0xff]
      %v3048 = vld [vmem:[%s1 + $0xd10] sm:$0xff]
      %v3049 = vld [vmem:[%s1 + $0xd18] sm:$0xff]
      %v3050 = vld [vmem:[%s1 + $0xd20] sm:$0xff]
      %v3051 = vld [vmem:[%s1 + $0xd28] sm:$0xff]
      %v3052 = vld [vmem:[%s1 + $0xd30] sm:$0xff]
      %v3053 = vld [vmem:[%s1 + $0xd38] sm:$0xff]
      %v3054 = vld [vmem:[%s1 + $0xd40] sm:$0xff]
      %v3055 = vld [vmem:[%s1 + $0xd48] sm:$0xff]
      %v3056 = vld [vmem:[%s1 + $0xd50] sm:$0xff]
      %v3057 = vld [vmem:[%s1 + $0xd58] sm:$0xff]
      %v3058 = vld [vmem:[%s1 + $0xd60] sm:$0xff]
      %v3059 = vld [vmem:[%s1 + $0xd68] sm:$0xff]
      %v3060 = vld [vmem:[%s1 + $0xd70] sm:$0xff]
      %v3061 = vld [vmem:[%s1 + $0xd78] sm:$0xff]
      %v3062 = vld [vmem:[%s1 + $0xd80] sm:$0xff]
      %v3063 = vld [vmem:[%s1 + $0xd88] sm:$0xff]
      %v3064 = vld [vmem:[%s1 + $0xd90] sm:$0xff]
      %v3065 = vld [vmem:[%s1 + $0xd98] sm:$0xff]
      %v3066 = vld [vmem:[%s1 + $0xda0] sm:$0xff]
      %v3067 = vld [vmem:[%s1 + $0xda8] sm:$0xff]
      %v3068 = vld [vmem:[%s1 + $0xdb0] sm:$0xff]
      %v3069 = vld [vmem:[%s1 + $0xdb8] sm:$0xff]
      %v3070 = vld [vmem:[%s1 + $0xdc0] sm:$0xff]
      %v3071 = vld [vmem:[%s1 + $0xdc8] sm:$0xff]
      %v3072 = vld [vmem:[%s1 + $0xdd0] sm:$0xff]
      %v3073 = vld [vmem:[%s1 + $0xdd8] sm:$0xff]
      %v3074 = vld [vmem:[%s1 + $0xde0] sm:$0xff]
      %v3075 = vld [vmem:[%s1 + $0xde8] sm:$0xff]
      %v3076 = vld [vmem:[%s1 + $0xdf0] sm:$0xff]
      %v3077 = vld [vmem:[%s1 + $0xdf8] sm:$0xff]
      %v3078 = vld [vmem:[%s1 + $0xe00] sm:$0xff]
      %v3079 = vld [vmem:[%s1 + $0xe08] sm:$0xff]
      %v3080 = vld [vmem:[%s1 + $0xe10] sm:$0xff]
      %v3081 = vld [vmem:[%s1 + $0xe18] sm:$0xff]
      %v3082 = vld [vmem:[%s1 + $0xe20] sm:$0xff]
      %v3083 = vld [vmem:[%s1 + $0xe28] sm:$0xff]
      %v3084 = vld [vmem:[%s1 + $0xe30] sm:$0xff]
      %v3085 = vld [vmem:[%s1 + $0xe38] sm:$0xff]
      %v3086 = vld [vmem:[%s1 + $0xe40] sm:$0xff]
      %v3087 = vld [vmem:[%s1 + $0xe48] sm:$0xff]
      %v3088 = vld [vmem:[%s1 + $0xe50] sm:$0xff]
      %v3089 = vld [vmem:[%s1 + $0xe58] sm:$0xff]
      %v3090 = vld [vmem:[%s1 + $0xe60] sm:$0xff]
      %v3091 = vld [vmem:[%s1 + $0xe68] sm:$0xff]
      %v3092 = vld [vmem:[%s1 + $0xe70] sm:$0xff]
      %v3093 = vld [vmem:[%s1 + $0xe78] sm:$0xff]
      %v3094 = vld [vmem:[%s1 + $0xe80] sm:$0xff]
      %v3095 = vld [vmem:[%s1 + $0xe88] sm:$0xff]
      %v3096 = vld [vmem:[%s1 + $0xe90] sm:$0xff]
      %v3097 = vld [vmem:[%s1 + $0xe98] sm:$0xff]
      %v3098 = vld [vmem:[%s1 + $0xea0] sm:$0xff]
      %v3099 = vld [vmem:[%s1 + $0xea8] sm:$0xff]
      %v3100 = vld [vmem:[%s1 + $0xeb0] sm:$0xff]
      %v3101 = vld [vmem:[%s1 + $0xeb8] sm:$0xff]
      %v3102 = vld [vmem:[%s1 + $0xec0] sm:$0xff]
      %v3103 = vld [vmem:[%s1 + $0xec8] sm:$0xff]
      %v3104 = vld [vmem:[%s1 + $0xed0] sm:$0xff]
      %v3105 = vld [vmem:[%s1 + $0xed8] sm:$0xff]
      %v3106 = vld [vmem:[%s1 + $0xee0] sm:$0xff]
      %v3107 = vld [vmem:[%s1 + $0xee8] sm:$0xff]
      %v3108 = vld [vmem:[%s1 + $0xef0] sm:$0xff]
      %v3109 = vld [vmem:[%s1 + $0xef8] sm:$0xff]
      %v3270 = vunpack.c.l.b16 %v2950
      %v3271 = vunpack.c.h.b16 %v2950
      %v3272 = vunpack.c.l.b16 %v2951
      %v3273 = vunpack.c.h.b16 %v2951
      %v3274 = vunpack.c.l.b16 %v2952
      %v3275 = vunpack.c.h.b16 %v2952
      %v3276 = vunpack.c.l.b16 %v2953
      %v3277 = vunpack.c.h.b16 %v2953
      %v3278 = vunpack.c.l.b16 %v2954
      %v3279 = vunpack.c.h.b16 %v2954
      %v3280 = vunpack.c.l.b16 %v2955
      %v3281 = vunpack.c.h.b16 %v2955
      %v3282 = vunpack.c.l.b16 %v2956
      %v3283 = vunpack.c.h.b16 %v2956
      %v3284 = vunpack.c.l.b16 %v2957
      %v3285 = vunpack.c.h.b16 %v2957
      %v3286 = vunpack.c.l.b16 %v2958
      %v3287 = vunpack.c.h.b16 %v2958
      %v3288 = vunpack.c.l.b16 %v2959
      %v3289 = vunpack.c.h.b16 %v2959
      %v3290 = vunpack.c.l.b16 %v2960
      %v3291 = vunpack.c.h.b16 %v2960
      %v3292 = vunpack.c.l.b16 %v2961
      %v3293 = vunpack.c.h.b16 %v2961
      %v3294 = vunpack.c.l.b16 %v2962
      %v3295 = vunpack.c.h.b16 %v2962
      %v3296 = vunpack.c.l.b16 %v2963
      %v3297 = vunpack.c.h.b16 %v2963
      %v3298 = vunpack.c.l.b16 %v2964
      %v3299 = vunpack.c.h.b16 %v2964
      %v3300 = vunpack.c.l.b16 %v2965
      %v3301 = vunpack.c.h.b16 %v2965
      %v3302 = vunpack.c.l.b16 %v2966
      %v3303 = vunpack.c.h.b16 %v2966
      %v3304 = vunpack.c.l.b16 %v2967
      %v3305 = vunpack.c.h.b16 %v2967
      %v3306 = vunpack.c.l.b16 %v2968
      %v3307 = vunpack.c.h.b16 %v2968
      %v3308 = vunpack.c.l.b16 %v2969
      %v3309 = vunpack.c.h.b16 %v2969
      %v3310 = vunpack.c.l.b16 %v2970
      %v3311 = vunpack.c.h.b16 %v2970
      %v3312 = vunpack.c.l.b16 %v2971
      %v3313 = vunpack.c.h.b16 %v2971
      %v3314 = vunpack.c.l.b16 %v2972
      %v3315 = vunpack.c.h.b16 %v2972
      %v3316 = vunpack.c.l.b16 %v2973
      %v3317 = vunpack.c.h.b16 %v2973
      %v3318 = vunpack.c.l.b16 %v2974
      %v3319 = vunpack.c.h.b16 %v2974
      %v3320 = vunpack.c.l.b16 %v2975
      %v3321 = vunpack.c.h.b16 %v2975
      %v3322 = vunpack.c.l.b16 %v2976
      %v3323 = vunpack.c.h.b16 %v2976
      %v3324 = vunpack.c.l.b16 %v2977
      %v3325 = vunpack.c.h.b16 %v2977
      %v3326 = vunpack.c.l.b16 %v2978
      %v3327 = vunpack.c.h.b16 %v2978
      %v3328 = vunpack.c.l.b16 %v2979
      %v3329 = vunpack.c.h.b16 %v2979
      %v3330 = vunpack.c.l.b16 %v2980
      %v3331 = vunpack.c.h.b16 %v2980
      %v3332 = vunpack.c.l.b16 %v2981
      %v3333 = vunpack.c.h.b16 %v2981
      %v3334 = vunpack.c.l.b16 %v2982
      %v3335 = vunpack.c.h.b16 %v2982
      %v3336 = vunpack.c.l.b16 %v2983
      %v3337 = vunpack.c.h.b16 %v2983
      %v3338 = vunpack.c.l.b16 %v2984
      %v3339 = vunpack.c.h.b16 %v2984
      %v3340 = vunpack.c.l.b16 %v2985
      %v3341 = vunpack.c.h.b16 %v2985
      %v3342 = vunpack.c.l.b16 %v2986
      %v3343 = vunpack.c.h.b16 %v2986
      %v3344 = vunpack.c.l.b16 %v2987
      %v3345 = vunpack.c.h.b16 %v2987
      %v3346 = vunpack.c.l.b16 %v2988
      %v3347 = vunpack.c.h.b16 %v2988
      %v3348 = vunpack.c.l.b16 %v2989
      %v3349 = vunpack.c.h.b16 %v2989
      %v3350 = vunpack.c.l.b16 %v2990
      %v3351 = vunpack.c.h.b16 %v2990
      %v3352 = vunpack.c.l.b16 %v2991
      %v3353 = vunpack.c.h.b16 %v2991
      %v3354 = vunpack.c.l.b16 %v2992
      %v3355 = vunpack.c.h.b16 %v2992
      %v3356 = vunpack.c.l.b16 %v2993
      %v3357 = vunpack.c.h.b16 %v2993
      %v3358 = vunpack.c.l.b16 %v2994
      %v3359 = vunpack.c.h.b16 %v2994
      %v3360 = vunpack.c.l.b16 %v2995
      %v3361 = vunpack.c.h.b16 %v2995
      %v3362 = vunpack.c.l.b16 %v2996
      %v3363 = vunpack.c.h.b16 %v2996
      %v3364 = vunpack.c.l.b16 %v2997
      %v3365 = vunpack.c.h.b16 %v2997
      %v3366 = vunpack.c.l.b16 %v2998
      %v3367 = vunpack.c.h.b16 %v2998
      %v3368 = vunpack.c.l.b16 %v2999
      %v3369 = vunpack.c.h.b16 %v2999
      %v3370 = vunpack.c.l.b16 %v3000
      %v3371 = vunpack.c.h.b16 %v3000
      %v3372 = vunpack.c.l.b16 %v3001
      %v3373 = vunpack.c.h.b16 %v3001
      %v3374 = vunpack.c.l.b16 %v3002
      %v3375 = vunpack.c.h.b16 %v3002
      %v3376 = vunpack.c.l.b16 %v3003
      %v3377 = vunpack.c.h.b16 %v3003
      %v3378 = vunpack.c.l.b16 %v3004
      %v3379 = vunpack.c.h.b16 %v3004
      %v3380 = vunpack.c.l.b16 %v3005
      %v3381 = vunpack.c.h.b16 %v3005
      %v3382 = vunpack.c.l.b16 %v3006
      %v3383 = vunpack.c.h.b16 %v3006
      %v3384 = vunpack.c.l.b16 %v3007
      %v3385 = vunpack.c.h.b16 %v3007
      %v3386 = vunpack.c.l.b16 %v3008
      %v3387 = vunpack.c.h.b16 %v3008
      %v3388 = vunpack.c.l.b16 %v3009
      %v3389 = vunpack.c.h.b16 %v3009
      %v3390 = vunpack.c.l.b16 %v3010
      %v3391 = vunpack.c.h.b16 %v3010
      %v3392 = vunpack.c.l.b16 %v3011
      %v3393 = vunpack.c.h.b16 %v3011
      %v3394 = vunpack.c.l.b16 %v3012
      %v3395 = vunpack.c.h.b16 %v3012
      %v3396 = vunpack.c.l.b16 %v3013
      %v3397 = vunpack.c.h.b16 %v3013
      %v3398 = vunpack.c.l.b16 %v3014
      %v3399 = vunpack.c.h.b16 %v3014
      %v3400 = vunpack.c.l.b16 %v3015
      %v3401 = vunpack.c.h.b16 %v3015
      %v3402 = vunpack.c.l.b16 %v3016
      %v3403 = vunpack.c.h.b16 %v3016
      %v3404 = vunpack.c.l.b16 %v3017
      %v3405 = vunpack.c.h.b16 %v3017
      %v3406 = vunpack.c.l.b16 %v3018
      %v3407 = vunpack.c.h.b16 %v3018
      %v3408 = vunpack.c.l.b16 %v3019
      %v3409 = vunpack.c.h.b16 %v3019
      %v3410 = vunpack.c.l.b16 %v3020
      %v3411 = vunpack.c.h.b16 %v3020
      %v3412 = vunpack.c.l.b16 %v3021
      %v3413 = vunpack.c.h.b16 %v3021
      %v3414 = vunpack.c.l.b16 %v3022
      %v3415 = vunpack.c.h.b16 %v3022
      %v3416 = vunpack.c.l.b16 %v3023
      %v3417 = vunpack.c.h.b16 %v3023
      %v3418 = vunpack.c.l.b16 %v3024
      %v3419 = vunpack.c.h.b16 %v3024
      %v3420 = vunpack.c.l.b16 %v3025
      %v3421 = vunpack.c.h.b16 %v3025
      %v3422 = vunpack.c.l.b16 %v3026
      %v3423 = vunpack.c.h.b16 %v3026
      %v3424 = vunpack.c.l.b16 %v3027
      %v3425 = vunpack.c.h.b16 %v3027
      %v3426 = vunpack.c.l.b16 %v3028
      %v3427 = vunpack.c.h.b16 %v3028
      %v3428 = vunpack.c.l.b16 %v3029
      %v3429 = vunpack.c.h.b16 %v3029
      %v3430 = vunpack.c.l.b16 %v3030
      %v3431 = vunpack.c.h.b16 %v3030
      %v3432 = vunpack.c.l.b16 %v3031
      %v3433 = vunpack.c.h.b16 %v3031
      %v3434 = vunpack.c.l.b16 %v3032
      %v3435 = vunpack.c.h.b16 %v3032
      %v3436 = vunpack.c.l.b16 %v3033
      %v3437 = vunpack.c.h.b16 %v3033
      %v3438 = vunpack.c.l.b16 %v3034
      %v3439 = vunpack.c.h.b16 %v3034
      %v3440 = vunpack.c.l.b16 %v3035
      %v3441 = vunpack.c.h.b16 %v3035
      %v3442 = vunpack.c.l.b16 %v3036
      %v3443 = vunpack.c.h.b16 %v3036
      %v3444 = vunpack.c.l.b16 %v3037
      %v3445 = vunpack.c.h.b16 %v3037
      %v3446 = vunpack.c.l.b16 %v3038
      %v3447 = vunpack.c.h.b16 %v3038
      %v3448 = vunpack.c.l.b16 %v3039
      %v3449 = vunpack.c.h.b16 %v3039
      %v3450 = vunpack.c.l.b16 %v3040
      %v3451 = vunpack.c.h.b16 %v3040
      %v3452 = vunpack.c.l.b16 %v3041
      %v3453 = vunpack.c.h.b16 %v3041
      %v3454 = vunpack.c.l.b16 %v3042
      %v3455 = vunpack.c.h.b16 %v3042
      %v3456 = vunpack.c.l.b16 %v3043
      %v3457 = vunpack.c.h.b16 %v3043
      %v3458 = vunpack.c.l.b16 %v3044
      %v3459 = vunpack.c.h.b16 %v3044
      %v3460 = vunpack.c.l.b16 %v3045
      %v3461 = vunpack.c.h.b16 %v3045
      %v3462 = vunpack.c.l.b16 %v3046
      %v3463 = vunpack.c.h.b16 %v3046
      %v3464 = vunpack.c.l.b16 %v3047
      %v3465 = vunpack.c.h.b16 %v3047
      %v3466 = vunpack.c.l.b16 %v3048
      %v3467 = vunpack.c.h.b16 %v3048
      %v3468 = vunpack.c.l.b16 %v3049
      %v3469 = vunpack.c.h.b16 %v3049
      %v3470 = vunpack.c.l.b16 %v3050
      %v3471 = vunpack.c.h.b16 %v3050
      %v3472 = vunpack.c.l.b16 %v3051
      %v3473 = vunpack.c.h.b16 %v3051
      %v3474 = vunpack.c.l.b16 %v3052
      %v3475 = vunpack.c.h.b16 %v3052
      %v3476 = vunpack.c.l.b16 %v3053
      %v3477 = vunpack.c.h.b16 %v3053
      %v3478 = vunpack.c.l.b16 %v3054
      %v3479 = vunpack.c.h.b16 %v3054
      %v3480 = vunpack.c.l.b16 %v3055
      %v3481 = vunpack.c.h.b16 %v3055
      %v3482 = vunpack.c.l.b16 %v3056
      %v3483 = vunpack.c.h.b16 %v3056
      %v3484 = vunpack.c.l.b16 %v3057
      %v3485 = vunpack.c.h.b16 %v3057
      %v3486 = vunpack.c.l.b16 %v3058
      %v3487 = vunpack.c.h.b16 %v3058
      %v3488 = vunpack.c.l.b16 %v3059
      %v3489 = vunpack.c.h.b16 %v3059
      %v3490 = vunpack.c.l.b16 %v3060
      %v3491 = vunpack.c.h.b16 %v3060
      %v3492 = vunpack.c.l.b16 %v3061
      %v3493 = vunpack.c.h.b16 %v3061
      %v3494 = vunpack.c.l.b16 %v3062
      %v3495 = vunpack.c.h.b16 %v3062
      %v3496 = vunpack.c.l.b16 %v3063
      %v3497 = vunpack.c.h.b16 %v3063
      %v3498 = vunpack.c.l.b16 %v3064
      %v3499 = vunpack.c.h.b16 %v3064
      %v3500 = vunpack.c.l.b16 %v3065
      %v3501 = vunpack.c.h.b16 %v3065
      %v3502 = vunpack.c.l.b16 %v3066
      %v3503 = vunpack.c.h.b16 %v3066
      %v3504 = vunpack.c.l.b16 %v3067
      %v3505 = vunpack.c.h.b16 %v3067
      %v3506 = vunpack.c.l.b16 %v3068
      %v3507 = vunpack.c.h.b16 %v3068
      %v3508 = vunpack.c.l.b16 %v3069
      %v3509 = vunpack.c.h.b16 %v3069
      %v3510 = vunpack.c.l.b16 %v3070
      %v3511 = vunpack.c.h.b16 %v3070
      %v3512 = vunpack.c.l.b16 %v3071
      %v3513 = vunpack.c.h.b16 %v3071
      %v3514 = vunpack.c.l.b16 %v3072
      %v3515 = vunpack.c.h.b16 %v3072
      %v3516 = vunpack.c.l.b16 %v3073
      %v3517 = vunpack.c.h.b16 %v3073
      %v3518 = vunpack.c.l.b16 %v3074
      %v3519 = vunpack.c.h.b16 %v3074
      %v3520 = vunpack.c.l.b16 %v3075
      %v3521 = vunpack.c.h.b16 %v3075
      %v3522 = vunpack.c.l.b16 %v3076
      %v3523 = vunpack.c.h.b16 %v3076
      %v3524 = vunpack.c.l.b16 %v3077
      %v3525 = vunpack.c.h.b16 %v3077
      %v3526 = vunpack.c.l.b16 %v3078
      %v3527 = vunpack.c.h.b16 %v3078
      %v3528 = vunpack.c.l.b16 %v3079
      %v3529 = vunpack.c.h.b16 %v3079
      %v3530 = vunpack.c.l.b16 %v3080
      %v3531 = vunpack.c.h.b16 %v3080
      %v3532 = vunpack.c.l.b16 %v3081
      %v3533 = vunpack.c.h.b16 %v3081
      %v3534 = vunpack.c.l.b16 %v3082
      %v3535 = vunpack.c.h.b16 %v3082
      %v3536 = vunpack.c.l.b16 %v3083
      %v3537 = vunpack.c.h.b16 %v3083
      %v3538 = vunpack.c.l.b16 %v3084
      %v3539 = vunpack.c.h.b16 %v3084
      %v3540 = vunpack.c.l.b16 %v3085
      %v3541 = vunpack.c.h.b16 %v3085
      %v3542 = vunpack.c.l.b16 %v3086
      %v3543 = vunpack.c.h.b16 %v3086
      %v3544 = vunpack.c.l.b16 %v3087
      %v3545 = vunpack.c.h.b16 %v3087
      %v3546 = vunpack.c.l.b16 %v3088
      %v3547 = vunpack.c.h.b16 %v3088
      %v3548 = vunpack.c.l.b16 %v3089
      %v3549 = vunpack.c.h.b16 %v3089
      %v3550 = vunpack.c.l.b16 %v3090
      %v3551 = vunpack.c.h.b16 %v3090
      %v3552 = vunpack.c.l.b16 %v3091
      %v3553 = vunpack.c.h.b16 %v3091
      %v3554 = vunpack.c.l.b16 %v3092
      %v3555 = vunpack.c.h.b16 %v3092
      %v3556 = vunpack.c.l.b16 %v3093
      %v3557 = vunpack.c.h.b16 %v3093
      %v3558 = vunpack.c.l.b16 %v3094
      %v3559 = vunpack.c.h.b16 %v3094
      %v3560 = vunpack.c.l.b16 %v3095
      %v3561 = vunpack.c.h.b16 %v3095
      %v3562 = vunpack.c.l.b16 %v3096
      %v3563 = vunpack.c.h.b16 %v3096
      %v3564 = vunpack.c.l.b16 %v3097
      %v3565 = vunpack.c.h.b16 %v3097
      %v3566 = vunpack.c.l.b16 %v3098
      %v3567 = vunpack.c.h.b16 %v3098
      %v3568 = vunpack.c.l.b16 %v3099
      %v3569 = vunpack.c.h.b16 %v3099
      %v3570 = vunpack.c.l.b16 %v3100
      %v3571 = vunpack.c.h.b16 %v3100
      %v3572 = vunpack.c.l.b16 %v3101
      %v3573 = vunpack.c.h.b16 %v3101
      %v3574 = vunpack.c.l.b16 %v3102
      %v3575 = vunpack.c.h.b16 %v3102
      %v3576 = vunpack.c.l.b16 %v3103
      %v3577 = vunpack.c.h.b16 %v3103
      %v3578 = vunpack.c.l.b16 %v3104
      %v3579 = vunpack.c.h.b16 %v3104
      %v3580 = vunpack.c.l.b16 %v3105
      %v3581 = vunpack.c.h.b16 %v3105
      %v3582 = vunpack.c.l.b16 %v3106
      %v3583 = vunpack.c.h.b16 %v3106
      %v3584 = vunpack.c.l.b16 %v3107
      %v3585 = vunpack.c.h.b16 %v3107
      %v3586 = vunpack.c.l.b16 %v3108
      %v3587 = vunpack.c.h.b16 %v3108
      %v3588 = vunpack.c.l.b16 %v3109
      %v3589 = vunpack.c.h.b16 %v3109
      %v3590 = vpack.c.b16 %v3280, %v3270
      %v3591 = vpack.c.b16 %v3281, %v3271
      %v3592 = vpack.c.b16 %v3282, %v3272
      %v3593 = vpack.c.b16 %v3283, %v3273
      %v3594 = vpack.c.b16 %v3284, %v3274
      %v3595 = vpack.c.b16 %v3285, %v3275
      %v3596 = vpack.c.b16 %v3286, %v3276
      %v3597 = vpack.c.b16 %v3287, %v3277
      %v3598 = vpack.c.b16 %v3288, %v3278
      %v3599 = vpack.c.b16 %v3289, %v3279
      %v3600 = vpack.c.b16 %v3300, %v3290
      %v3601 = vpack.c.b16 %v3301, %v3291
      %v3602 = vpack.c.b16 %v3302, %v3292
      %v3603 = vpack.c.b16 %v3303, %v3293
      %v3604 = vpack.c.b16 %v3304, %v3294
      %v3605 = vpack.c.b16 %v3305, %v3295
      %v3606 = vpack.c.b16 %v3306, %v3296
      %v3607 = vpack.c.b16 %v3307, %v3297
      %v3608 = vpack.c.b16 %v3308, %v3298
      %v3609 = vpack.c.b16 %v3309, %v3299
      %v3610 = vpack.c.b16 %v3320, %v3310
      %v3611 = vpack.c.b16 %v3321, %v3311
      %v3612 = vpack.c.b16 %v3322, %v3312
      %v3613 = vpack.c.b16 %v3323, %v3313
      %v3614 = vpack.c.b16 %v3324, %v3314
      %v3615 = vpack.c.b16 %v3325, %v3315
      %v3616 = vpack.c.b16 %v3326, %v3316
      %v3617 = vpack.c.b16 %v3327, %v3317
      %v3618 = vpack.c.b16 %v3328, %v3318
      %v3619 = vpack.c.b16 %v3329, %v3319
      %v3620 = vpack.c.b16 %v3340, %v3330
      %v3621 = vpack.c.b16 %v3341, %v3331
      %v3622 = vpack.c.b16 %v3342, %v3332
      %v3623 = vpack.c.b16 %v3343, %v3333
      %v3624 = vpack.c.b16 %v3344, %v3334
      %v3625 = vpack.c.b16 %v3345, %v3335
      %v3626 = vpack.c.b16 %v3346, %v3336
      %v3627 = vpack.c.b16 %v3347, %v3337
      %v3628 = vpack.c.b16 %v3348, %v3338
      %v3629 = vpack.c.b16 %v3349, %v3339
      %v3630 = vpack.c.b16 %v3360, %v3350
      %v3631 = vpack.c.b16 %v3361, %v3351
      %v3632 = vpack.c.b16 %v3362, %v3352
      %v3633 = vpack.c.b16 %v3363, %v3353
      %v3634 = vpack.c.b16 %v3364, %v3354
      %v3635 = vpack.c.b16 %v3365, %v3355
      %v3636 = vpack.c.b16 %v3366, %v3356
      %v3637 = vpack.c.b16 %v3367, %v3357
      %v3638 = vpack.c.b16 %v3368, %v3358
      %v3639 = vpack.c.b16 %v3369, %v3359
      %v3640 = vpack.c.b16 %v3380, %v3370
      %v3641 = vpack.c.b16 %v3381, %v3371
      %v3642 = vpack.c.b16 %v3382, %v3372
      %v3643 = vpack.c.b16 %v3383, %v3373
      %v3644 = vpack.c.b16 %v3384, %v3374
      %v3645 = vpack.c.b16 %v3385, %v3375
      %v3646 = vpack.c.b16 %v3386, %v3376
      %v3647 = vpack.c.b16 %v3387, %v3377
      %v3648 = vpack.c.b16 %v3388, %v3378
      %v3649 = vpack.c.b16 %v3389, %v3379
      %v3650 = vpack.c.b16 %v3400, %v3390
      %v3651 = vpack.c.b16 %v3401, %v3391
      %v3652 = vpack.c.b16 %v3402, %v3392
      %v3653 = vpack.c.b16 %v3403, %v3393
      %v3654 = vpack.c.b16 %v3404, %v3394
      %v3655 = vpack.c.b16 %v3405, %v3395
      %v3656 = vpack.c.b16 %v3406, %v3396
      %v3657 = vpack.c.b16 %v3407, %v3397
      %v3658 = vpack.c.b16 %v3408, %v3398
      %v3659 = vpack.c.b16 %v3409, %v3399
      %v3660 = vpack.c.b16 %v3420, %v3410
      %v3661 = vpack.c.b16 %v3421, %v3411
      %v3662 = vpack.c.b16 %v3422, %v3412
      %v3663 = vpack.c.b16 %v3423, %v3413
      %v3664 = vpack.c.b16 %v3424, %v3414
      %v3665 = vpack.c.b16 %v3425, %v3415
      %v3666 = vpack.c.b16 %v3426, %v3416
      %v3667 = vpack.c.b16 %v3427, %v3417
      %v3668 = vpack.c.b16 %v3428, %v3418
      %v3669 = vpack.c.b16 %v3429, %v3419
      %v3670 = vpack.c.b16 %v3440, %v3430
      %v3671 = vpack.c.b16 %v3441, %v3431
      %v3672 = vpack.c.b16 %v3442, %v3432
      %v3673 = vpack.c.b16 %v3443, %v3433
      %v3674 = vpack.c.b16 %v3444, %v3434
      %v3675 = vpack.c.b16 %v3445, %v3435
      %v3676 = vpack.c.b16 %v3446, %v3436
      %v3677 = vpack.c.b16 %v3447, %v3437
      %v3678 = vpack.c.b16 %v3448, %v3438
      %v3679 = vpack.c.b16 %v3449, %v3439
      %v3680 = vpack.c.b16 %v3460, %v3450
      %v3681 = vpack.c.b16 %v3461, %v3451
      %v3682 = vpack.c.b16 %v3462, %v3452
      %v3683 = vpack.c.b16 %v3463, %v3453
      %v3684 = vpack.c.b16 %v3464, %v3454
      %v3685 = vpack.c.b16 %v3465, %v3455
      %v3686 = vpack.c.b16 %v3466, %v3456
      %v3687 = vpack.c.b16 %v3467, %v3457
      %v3688 = vpack.c.b16 %v3468, %v3458
      %v3689 = vpack.c.b16 %v3469, %v3459
      %v3690 = vpack.c.b16 %v3480, %v3470
      %v3691 = vpack.c.b16 %v3481, %v3471
      %v3692 = vpack.c.b16 %v3482, %v3472
      %v3693 = vpack.c.b16 %v3483, %v3473
      %v3694 = vpack.c.b16 %v3484, %v3474
      %v3695 = vpack.c.b16 %v3485, %v3475
      %v3696 = vpack.c.b16 %v3486, %v3476
      %v3697 = vpack.c.b16 %v3487, %v3477
      %v3698 = vpack.c.b16 %v3488, %v3478
      %v3699 = vpack.c.b16 %v3489, %v3479
      %v3700 = vpack.c.b16 %v3500, %v3490
      %v3701 = vpack.c.b16 %v3501, %v3491
      %v3702 = vpack.c.b16 %v3502, %v3492
      %v3703 = vpack.c.b16 %v3503, %v3493
      %v3704 = vpack.c.b16 %v3504, %v3494
      %v3705 = vpack.c.b16 %v3505, %v3495
      %v3706 = vpack.c.b16 %v3506, %v3496
      %v3707 = vpack.c.b16 %v3507, %v3497
      %v3708 = vpack.c.b16 %v3508, %v3498
      %v3709 = vpack.c.b16 %v3509, %v3499
      %v3710 = vpack.c.b16 %v3520, %v3510
      %v3711 = vpack.c.b16 %v3521, %v3511
      %v3712 = vpack.c.b16 %v3522, %v3512
      %v3713 = vpack.c.b16 %v3523, %v3513
      %v3714 = vpack.c.b16 %v3524, %v3514
      %v3715 = vpack.c.b16 %v3525, %v3515
      %v3716 = vpack.c.b16 %v3526, %v3516
      %v3717 = vpack.c.b16 %v3527, %v3517
      %v3718 = vpack.c.b16 %v3528, %v3518
      %v3719 = vpack.c.b16 %v3529, %v3519
      %v3720 = vpack.c.b16 %v3540, %v3530
      %v3721 = vpack.c.b16 %v3541, %v3531
      %v3722 = vpack.c.b16 %v3542, %v3532
      %v3723 = vpack.c.b16 %v3543, %v3533
      %v3724 = vpack.c.b16 %v3544, %v3534
      %v3725 = vpack.c.b16 %v3545, %v3535
      %v3726 = vpack.c.b16 %v3546, %v3536
      %v3727 = vpack.c.b16 %v3547, %v3537
      %v3728 = vpack.c.b16 %v3548, %v3538
      %v3729 = vpack.c.b16 %v3549, %v3539
      %v3730 = vpack.c.b16 %v3560, %v3550
      %v3731 = vpack.c.b16 %v3561, %v3551
      %v3732 = vpack.c.b16 %v3562, %v3552
      %v3733 = vpack.c.b16 %v3563, %v3553
      %v3734 = vpack.c.b16 %v3564, %v3554
      %v3735 = vpack.c.b16 %v3565, %v3555
      %v3736 = vpack.c.b16 %v3566, %v3556
      %v3737 = vpack.c.b16 %v3567, %v3557
      %v3738 = vpack.c.b16 %v3568, %v3558
      %v3739 = vpack.c.b16 %v3569, %v3559
      %v3740 = vpack.c.b16 %v3580, %v3570
      %v3741 = vpack.c.b16 %v3581, %v3571
      %v3742 = vpack.c.b16 %v3582, %v3572
      %v3743 = vpack.c.b16 %v3583, %v3573
      %v3744 = vpack.c.b16 %v3584, %v3574
      %v3745 = vpack.c.b16 %v3585, %v3575
      %v3746 = vpack.c.b16 %v3586, %v3576
      %v3747 = vpack.c.b16 %v3587, %v3577
      %v3748 = vpack.c.b16 %v3588, %v3578
      %v3749 = vpack.c.b16 %v3589, %v3579
      %3910 = vmatprep.subr.bf16.mxu0 %v3661
      %3911 = vmatpush1.bf16.msra.mxu0 %v3660
      %3912 = vmatprep.subr.bf16.mxu0 %v3651
      %3913 = vmatpush1.bf16.msra.mxu0 %v3650
      %3914 = vmatprep.subr.bf16.mxu0 %v3641
      %3915 = vmatpush1.bf16.msra.mxu0 %v3640
      %3916 = vmatprep.subr.bf16.mxu0 %v3631
      %3917 = vmatpush1.bf16.msra.mxu0 %v3630
      %3918 = vmatprep.subr.bf16.mxu0 %v3621
      %3919 = vmatpush1.bf16.msra.mxu0 %v3620
      %3920 = vmatprep.subr.bf16.mxu0 %v3611
      %3921 = vmatpush1.bf16.msra.mxu0 %v3610
      %3922 = vmatprep.subr.bf16.mxu0 %v3601
      %3923 = vmatpush1.bf16.msra.mxu0 %v3600
      %3924 = vmatprep.subr.bf16.mxu0 %v3591
      %3925 = vmatpush1.bf16.msra.mxu0 %v3590
      %3926 = vmatprep.subr.bf16.mxu0 %v3741
      %3927 = vmatpush2.bf16.msra.mxu0 %v3740
      %3928 = vmatprep.subr.bf16.mxu0 %v3731
      %3929 = vmatpush2.bf16.msra.mxu0 %v3730
      %3930 = vmatprep.subr.bf16.mxu0 %v3721
      %3931 = vmatpush2.bf16.msra.mxu0 %v3720
      %3932 = vmatprep.subr.bf16.mxu0 %v3711
      %3933 = vmatpush2.bf16.msra.mxu0 %v3710
      %3934 = vmatprep.subr.bf16.mxu0 %v3701
      %3935 = vmatpush2.bf16.msra.mxu0 %v3700
      %3936 = vmatprep.subr.bf16.mxu0 %v3691
      %3937 = vmatpush2.bf16.msra.mxu0 %v3690
      %3938 = vmatprep.subr.bf16.mxu0 %v3681
      %3939 = vmatpush2.bf16.msra.mxu0 %v3680
      %3940 = vmatprep.subr.bf16.mxu0 %v3671
      %3941 = vmatpush2.bf16.msra.mxu0 %v3670
      %3942 = vmatprep.mubr.bf16.mxu0 %v767
      %3943 = vmatmul.mubr.bf16.gmra.mxu0 %v766
      %v3944 = vpop.f32.mrf.mxu0
      %v3945 = vadd.f32 0.0, %v3944
      %v3946 = vpop.f32.mrf.mxu0
      %v3947 = vadd.f32 0.0, %v3946
      %v3948 = vpop.f32.mrf.mxu0
      %v3949 = vpop.f32.mrf.mxu0
      %3950 = vdwg.mxu0
      %3951 = vmatprep.subr.bf16.mxu0 %v3663
      %3952 = vmatpush1.bf16.msra.mxu0 %v3662
      %3953 = vmatprep.subr.bf16.mxu0 %v3653
      %3954 = vmatpush1.bf16.msra.mxu0 %v3652
      %3955 = vmatprep.subr.bf16.mxu0 %v3643
      %3956 = vmatpush1.bf16.msra.mxu0 %v3642
      %3957 = vmatprep.subr.bf16.mxu0 %v3633
      %3958 = vmatpush1.bf16.msra.mxu0 %v3632
      %3959 = vmatprep.subr.bf16.mxu0 %v3623
      %3960 = vmatpush1.bf16.msra.mxu0 %v3622
      %3961 = vmatprep.subr.bf16.mxu0 %v3613
      %3962 = vmatpush1.bf16.msra.mxu0 %v3612
      %3963 = vmatprep.subr.bf16.mxu0 %v3603
      %3964 = vmatpush1.bf16.msra.mxu0 %v3602
      %3965 = vmatprep.subr.bf16.mxu0 %v3593
      %3966 = vmatpush1.bf16.msra.mxu0 %v3592
      %3967 = vmatprep.subr.bf16.mxu0 %v3743
      %3968 = vmatpush2.bf16.msra.mxu0 %v3742
      %3969 = vmatprep.subr.bf16.mxu0 %v3733
      %3970 = vmatpush2.bf16.msra.mxu0 %v3732
      %3971 = vmatprep.subr.bf16.mxu0 %v3723
      %3972 = vmatpush2.bf16.msra.mxu0 %v3722
      %3973 = vmatprep.subr.bf16.mxu0 %v3713
      %3974 = vmatpush2.bf16.msra.mxu0 %v3712
      %3975 = vmatprep.subr.bf16.mxu0 %v3703
      %3976 = vmatpush2.bf16.msra.mxu0 %v3702
      %3977 = vmatprep.subr.bf16.mxu0 %v3693
      %3978 = vmatpush2.bf16.msra.mxu0 %v3692
      %3979 = vmatprep.subr.bf16.mxu0 %v3683
      %3980 = vmatpush2.bf16.msra.mxu0 %v3682
      %3981 = vmatprep.subr.bf16.mxu0 %v3673
      %3982 = vmatpush2.bf16.msra.mxu0 %v3672
      %3983 = vmatprep.mubr.bf16.mxu0 %v767
      %3984 = vmatmul.mubr.bf16.gmra.mxu0 %v766
      %v3985 = vpop.f32.mrf.mxu0
      %v3986 = vadd.f32 0.0, %v3985
      %v3987 = vpop.f32.mrf.mxu0
      %v3988 = vadd.f32 0.0, %v3987
      %v3989 = vpop.f32.mrf.mxu0
      %v3990 = vpop.f32.mrf.mxu0
      %3991 = vdwg.mxu0
      %3992 = vmatprep.subr.bf16.mxu0 %v3665
      %3993 = vmatpush1.bf16.msra.mxu0 %v3664
      %3994 = vmatprep.subr.bf16.mxu0 %v3655
      %3995 = vmatpush1.bf16.msra.mxu0 %v3654
      %3996 = vmatprep.subr.bf16.mxu0 %v3645
      %3997 = vmatpush1.bf16.msra.mxu0 %v3644
      %3998 = vmatprep.subr.bf16.mxu0 %v3635
      %3999 = vmatpush1.bf16.msra.mxu0 %v3634
      %4000 = vmatprep.subr.bf16.mxu0 %v3625
      %4001 = vmatpush1.bf16.msra.mxu0 %v3624
      %4002 = vmatprep.subr.bf16.mxu0 %v3615
      %4003 = vmatpush1.bf16.msra.mxu0 %v3614
      %4004 = vmatprep.subr.bf16.mxu0 %v3605
      %4005 = vmatpush1.bf16.msra.mxu0 %v3604
      %4006 = vmatprep.subr.bf16.mxu0 %v3595
      %4007 = vmatpush1.bf16.msra.mxu0 %v3594
      %4008 = vmatprep.subr.bf16.mxu0 %v3745
      %4009 = vmatpush2.bf16.msra.mxu0 %v3744
      %4010 = vmatprep.subr.bf16.mxu0 %v3735
      %4011 = vmatpush2.bf16.msra.mxu0 %v3734
      %4012 = vmatprep.subr.bf16.mxu0 %v3725
      %4013 = vmatpush2.bf16.msra.mxu0 %v3724
      %4014 = vmatprep.subr.bf16.mxu0 %v3715
      %4015 = vmatpush2.bf16.msra.mxu0 %v3714
      %4016 = vmatprep.subr.bf16.mxu0 %v3705
      %4017 = vmatpush2.bf16.msra.mxu0 %v3704
      %4018 = vmatprep.subr.bf16.mxu0 %v3695
      %4019 = vmatpush2.bf16.msra.mxu0 %v3694
      %4020 = vmatprep.subr.bf16.mxu0 %v3685
      %4021 = vmatpush2.bf16.msra.mxu0 %v3684
      %4022 = vmatprep.subr.bf16.mxu0 %v3675
      %4023 = vmatpush2.bf16.msra.mxu0 %v3674
      %4024 = vmatprep.mubr.bf16.mxu0 %v767
      %4025 = vmatmul.mubr.bf16.gmra.mxu0 %v766
      %v4026 = vpop.f32.mrf.mxu0
      %v4027 = vadd.f32 0.0, %v4026
      %v4028 = vpop.f32.mrf.mxu0
      %v4029 = vadd.f32 0.0, %v4028
      %v4030 = vpop.f32.mrf.mxu0
      %v4031 = vpop.f32.mrf.mxu0
      %4032 = vdwg.mxu0
      %4033 = vmatprep.subr.bf16.mxu0 %v3667
      %4034 = vmatpush1.bf16.msra.mxu0 %v3666
      %4035 = vmatprep.subr.bf16.mxu0 %v3657
      %4036 = vmatpush1.bf16.msra.mxu0 %v3656
      %4037 = vmatprep.subr.bf16.mxu0 %v3647
      %4038 = vmatpush1.bf16.msra.mxu0 %v3646
      %4039 = vmatprep.subr.bf16.mxu0 %v3637
      %4040 = vmatpush1.bf16.msra.mxu0 %v3636
      %4041 = vmatprep.subr.bf16.mxu0 %v3627
      %4042 = vmatpush1.bf16.msra.mxu0 %v3626
      %4043 = vmatprep.subr.bf16.mxu0 %v3617
      %4044 = vmatpush1.bf16.msra.mxu0 %v3616
      %4045 = vmatprep.subr.bf16.mxu0 %v3607
      %4046 = vmatpush1.bf16.msra.mxu0 %v3606
      %4047 = vmatprep.subr.bf16.mxu0 %v3597
      %4048 = vmatpush1.bf16.msra.mxu0 %v3596
      %4049 = vmatprep.subr.bf16.mxu0 %v3747
      %4050 = vmatpush2.bf16.msra.mxu0 %v3746
      %4051 = vmatprep.subr.bf16.mxu0 %v3737
      %4052 = vmatpush2.bf16.msra.mxu0 %v3736
      %4053 = vmatprep.subr.bf16.mxu0 %v3727
      %4054 = vmatpush2.bf16.msra.mxu0 %v3726
      %4055 = vmatprep.subr.bf16.mxu0 %v3717
      %4056 = vmatpush2.bf16.msra.mxu0 %v3716
      %4057 = vmatprep.subr.bf16.mxu0 %v3707
      %4058 = vmatpush2.bf16.msra.mxu0 %v3706
      %4059 = vmatprep.subr.bf16.mxu0 %v3697
      %4060 = vmatpush2.bf16.msra.mxu0 %v3696
      %4061 = vmatprep.subr.bf16.mxu0 %v3687
      %4062 = vmatpush2.bf16.msra.mxu0 %v3686
      %4063 = vmatprep.subr.bf16.mxu0 %v3677
      %4064 = vmatpush2.bf16.msra.mxu0 %v3676
      %4065 = vmatprep.mubr.bf16.mxu0 %v767
      %4066 = vmatmul.mubr.bf16.gmra.mxu0 %v766
      %v4067 = vpop.f32.mrf.mxu0
      %v4068 = vadd.f32 0.0, %v4067
      %v4069 = vpop.f32.mrf.mxu0
      %v4070 = vadd.f32 0.0, %v4069
      %v4071 = vpop.f32.mrf.mxu0
      %v4072 = vpop.f32.mrf.mxu0
      %4073 = vdwg.mxu0
      %4074 = vmatprep.subr.bf16.mxu0 %v3669
      %4075 = vmatpush1.bf16.msra.mxu0 %v3668
      %4076 = vmatprep.subr.bf16.mxu0 %v3659
      %4077 = vmatpush1.bf16.msra.mxu0 %v3658
      %4078 = vmatprep.subr.bf16.mxu0 %v3649
      %4079 = vmatpush1.bf16.msra.mxu0 %v3648
      %4080 = vmatprep.subr.bf16.mxu0 %v3639
      %4081 = vmatpush1.bf16.msra.mxu0 %v3638
      %4082 = vmatprep.subr.bf16.mxu0 %v3629
      %4083 = vmatpush1.bf16.msra.mxu0 %v3628
      %4084 = vmatprep.subr.bf16.mxu0 %v3619
      %4085 = vmatpush1.bf16.msra.mxu0 %v3618
      %4086 = vmatprep.subr.bf16.mxu0 %v3609
      %4087 = vmatpush1.bf16.msra.mxu0 %v3608
      %4088 = vmatprep.subr.bf16.mxu0 %v3599
      %4089 = vmatpush1.bf16.msra.mxu0 %v3598
      %4090 = vmatprep.subr.bf16.mxu0 %v3749
      %4091 = vmatpush2.bf16.msra.mxu0 %v3748
      %4092 = vmatprep.subr.bf16.mxu0 %v3739
      %4093 = vmatpush2.bf16.msra.mxu0 %v3738
      %4094 = vmatprep.subr.bf16.mxu0 %v3729
      %4095 = vmatpush2.bf16.msra.mxu0 %v3728
      %4096 = vmatprep.subr.bf16.mxu0 %v3719
      %4097 = vmatpush2.bf16.msra.mxu0 %v3718
      %4098 = vmatprep.subr.bf16.mxu0 %v3709
      %4099 = vmatpush2.bf16.msra.mxu0 %v3708
      %4100 = vmatprep.subr.bf16.mxu0 %v3699
      %4101 = vmatpush2.bf16.msra.mxu0 %v3698
      %4102 = vmatprep.subr.bf16.mxu0 %v3689
      %4103 = vmatpush2.bf16.msra.mxu0 %v3688
      %4104 = vmatprep.subr.bf16.mxu0 %v3679
      %4105 = vmatpush2.bf16.msra.mxu0 %v3678
      %4106 = vmatprep.mubr.bf16.mxu0 %v767
      %4107 = vmatmul.mubr.bf16.gmra.mxu0 %v766
      %v4108 = vpop.f32.mrf.mxu0
      %v4109 = vadd.f32 0.0, %v4108
      %v4110 = vpop.f32.mrf.mxu0
      %v4111 = vadd.f32 0.0, %v4110
      %v4112 = vpop.f32.mrf.mxu0
      %v4113 = vpop.f32.mrf.mxu0
      %4114 = vdwg.mxu0
      %v4115 = vmax.f32 %v2940, %v3945
      %v4116 = vmax.f32 %v2941, %v3947
      %v4117 = vmax.f32 %v2942, %v3986
      %v4118 = vmax.f32 %v2943, %v3988
      %v4119 = vmax.f32 %v2944, %v4027
      %v4120 = vmax.f32 %v2945, %v4029
      %v4121 = vmax.f32 %v2946, %v4068
      %v4122 = vmax.f32 %v2947, %v4070
      %v4123 = vmax.f32 %v2948, %v4109
      %v4124 = vmax.f32 %v2949, %v4111
      %v4125 = vld [vmem:[%s2] sm:$0xff]
      %v4126 = vld [vmem:[%s2 + $0x8] sm:$0x3]
      %v4129 = vlaneseq
      %v4130 = vshrl.u32 %v4129, 7
      %v4131 = vsub.s32 0, %v4130
      %v4132 = vrot.slane %v4125, %v4131
      %v4133 = vlaneseq
      %v4134 = vshrl.u32 %v4133, 7
      %v4135 = vsub.s32 1, %v4134
      %v4136 = vrot.slane %v4125, %v4135
      %v4137 = vlaneseq
      %v4138 = vshrl.u32 %v4137, 7
      %v4139 = vsub.s32 2, %v4138
      %v4140 = vrot.slane %v4125, %v4139
      %v4141 = vlaneseq
      %v4142 = vshrl.u32 %v4141, 7
      %v4143 = vsub.s32 3, %v4142
      %v4144 = vrot.slane %v4125, %v4143
      %v4145 = vlaneseq
      %v4146 = vshrl.u32 %v4145, 7
      %v4147 = vsub.s32 4, %v4146
      %v4148 = vrot.slane %v4125, %v4147
      %v4149 = vlaneseq
      %v4150 = vshrl.u32 %v4149, 7
      %v4151 = vsub.s32 5, %v4150
      %v4152 = vrot.slane %v4125, %v4151
      %v4153 = vlaneseq
      %v4154 = vshrl.u32 %v4153, 7
      %v4155 = vsub.s32 6, %v4154
      %v4156 = vrot.slane %v4125, %v4155
      %v4157 = vlaneseq
      %v4158 = vshrl.u32 %v4157, 7
      %v4159 = vsub.s32 7, %v4158
      %v4160 = vrot.slane %v4125, %v4159
      %v4161 = vlaneseq
      %v4162 = vshrl.u32 %v4161, 7
      %v4163 = vsub.s32 0, %v4162
      %v4164 = vrot.slane %v4126, %v4163
      %v4165 = vlaneseq
      %v4166 = vshrl.u32 %v4165, 7
      %v4167 = vsub.s32 1, %v4166
      %v4168 = vrot.slane %v4126, %v4167
      %v4179 = vadd.f32 %v4115, %v4132
      %v4180 = vadd.f32 %v4116, %v4136
      %v4181 = vadd.f32 %v4117, %v4140
      %v4182 = vadd.f32 %v4118, %v4144
      %v4183 = vadd.f32 %v4119, %v4148
      %v4184 = vadd.f32 %v4120, %v4152
      %v4185 = vadd.f32 %v4121, %v4156
      %v4186 = vadd.f32 %v4122, %v4160
      %v4187 = vadd.f32 %v4123, %v4164
      %v4188 = vadd.f32 %v4124, %v4168
      %v4189 = vmax.f32 %v4179, 0.0
      %v4190 = vmax.f32 %v4180, 0.0
      %v4191 = vmax.f32 %v4181, 0.0
      %v4192 = vmax.f32 %v4182, 0.0
      %v4193 = vmax.f32 %v4183, 0.0
      %v4194 = vmax.f32 %v4184, 0.0
      %v4195 = vmax.f32 %v4185, 0.0
      %v4196 = vmax.f32 %v4186, 0.0
      %v4197 = vmax.f32 %v4187, 0.0
      %v4198 = vmax.f32 %v4188, 0.0
      %v4199 = vld [vmem:[%s3] sm:$0xff]
      %v4200 = vld [vmem:[%s3 + $0x8] sm:$0x3]
      %v4203 = vlaneseq
      %v4204 = vshrl.u32 %v4203, 7
      %v4205 = vsub.s32 0, %v4204
      %v4206 = vrot.slane %v4199, %v4205
      %v4207 = vlaneseq
      %v4208 = vshrl.u32 %v4207, 7
      %v4209 = vsub.s32 1, %v4208
      %v4210 = vrot.slane %v4199, %v4209
      %v4211 = vlaneseq
      %v4212 = vshrl.u32 %v4211, 7
      %v4213 = vsub.s32 2, %v4212
      %v4214 = vrot.slane %v4199, %v4213
      %v4215 = vlaneseq
      %v4216 = vshrl.u32 %v4215, 7
      %v4217 = vsub.s32 3, %v4216
      %v4218 = vrot.slane %v4199, %v4217
      %v4219 = vlaneseq
      %v4220 = vshrl.u32 %v4219, 7
      %v4221 = vsub.s32 4, %v4220
      %v4222 = vrot.slane %v4199, %v4221
      %v4223 = vlaneseq
      %v4224 = vshrl.u32 %v4223, 7
      %v4225 = vsub.s32 5, %v4224
      %v4226 = vrot.slane %v4199, %v4225
      %v4227 = vlaneseq
      %v4228 = vshrl.u32 %v4227, 7
      %v4229 = vsub.s32 6, %v4228
      %v4230 = vrot.slane %v4199, %v4229
      %v4231 = vlaneseq
      %v4232 = vshrl.u32 %v4231, 7
      %v4233 = vsub.s32 7, %v4232
      %v4234 = vrot.slane %v4199, %v4233
      %v4235 = vlaneseq
      %v4236 = vshrl.u32 %v4235, 7
      %v4237 = vsub.s32 0, %v4236
      %v4238 = vrot.slane %v4200, %v4237
      %v4239 = vlaneseq
      %v4240 = vshrl.u32 %v4239, 7
      %v4241 = vsub.s32 1, %v4240
      %v4242 = vrot.slane %v4200, %v4241
      %v4253 = vmul.f32 %v4189, %v4206
      %v4254 = vmul.f32 %v4190, %v4210
      %v4255 = vmul.f32 %v4191, %v4214
      %v4256 = vmul.f32 %v4192, %v4218
      %v4257 = vmul.f32 %v4193, %v4222
      %v4258 = vmul.f32 %v4194, %v4226
      %v4259 = vmul.f32 %v4195, %v4230
      %v4260 = vmul.f32 %v4196, %v4234
      %v4261 = vmul.f32 %v4197, %v4238
      %v4262 = vmul.f32 %v4198, %v4242
      %v4263 = vld [vmem:[%s4] sm:$0xff]
      %v4264 = vld [vmem:[%s4 + $0x8] sm:$0x3]
      %v4267 = vlaneseq
      %v4268 = vshrl.u32 %v4267, 7
      %v4269 = vsub.s32 0, %v4268
      %v4270 = vrot.slane %v4263, %v4269
      %v4271 = vlaneseq
      %v4272 = vshrl.u32 %v4271, 7
      %v4273 = vsub.s32 1, %v4272
      %v4274 = vrot.slane %v4263, %v4273
      %v4275 = vlaneseq
      %v4276 = vshrl.u32 %v4275, 7
      %v4277 = vsub.s32 2, %v4276
      %v4278 = vrot.slane %v4263, %v4277
      %v4279 = vlaneseq
      %v4280 = vshrl.u32 %v4279, 7
      %v4281 = vsub.s32 3, %v4280
      %v4282 = vrot.slane %v4263, %v4281
      %v4283 = vlaneseq
      %v4284 = vshrl.u32 %v4283, 7
      %v4285 = vsub.s32 4, %v4284
      %v4286 = vrot.slane %v4263, %v4285
      %v4287 = vlaneseq
      %v4288 = vshrl.u32 %v4287, 7
      %v4289 = vsub.s32 5, %v4288
      %v4290 = vrot.slane %v4263, %v4289
      %v4291 = vlaneseq
      %v4292 = vshrl.u32 %v4291, 7
      %v4293 = vsub.s32 6, %v4292
      %v4294 = vrot.slane %v4263, %v4293
      %v4295 = vlaneseq
      %v4296 = vshrl.u32 %v4295, 7
      %v4297 = vsub.s32 7, %v4296
      %v4298 = vrot.slane %v4263, %v4297
      %v4299 = vlaneseq
      %v4300 = vshrl.u32 %v4299, 7
      %v4301 = vsub.s32 0, %v4300
      %v4302 = vrot.slane %v4264, %v4301
      %v4303 = vlaneseq
      %v4304 = vshrl.u32 %v4303, 7
      %v4305 = vsub.s32 1, %v4304
      %v4306 = vrot.slane %v4264, %v4305
      %v4317 = vadd.f32 %v4253, %v4270
      %v4318 = vadd.f32 %v4254, %v4274
      %v4319 = vadd.f32 %v4255, %v4278
      %v4320 = vadd.f32 %v4256, %v4282
      %v4321 = vadd.f32 %v4257, %v4286
      %v4322 = vadd.f32 %v4258, %v4290
      %v4323 = vadd.f32 %v4259, %v4294
      %v4324 = vadd.f32 %v4260, %v4298
      %v4325 = vadd.f32 %v4261, %v4302
      %v4326 = vadd.f32 %v4262, %v4306
      %v4328 = vcombine.high %v4317, %v4317
      %v4330 = vunpack.c.l.s4 1966171168
      %v4331 = vunpack.c.0.s8 %v4330
      %v4332 = vlaneseq
      %v4333 = vshrl.u32 %v4332, 7
      %v4334 = vsub.s32 %v4331, %v4333
      %v4335 = vrot.slane %v4317, %v4334
      %v4337 = vunpack.c.l.s4 1966171168
      %v4338 = vunpack.c.0.s8 %v4337
      %v4339 = vlaneseq
      %v4340 = vshrl.u32 %v4339, 7
      %v4341 = vsub.s32 %v4338, %v4340
      %v4342 = vrot.slane %v4328, %v4341
      %v4343 = vcombine.high %v4335, %v4335
      %v4344 = vcombine.high %v4342, %v4342
      %v4346 = vunpack.c.l.s4 1966171168
      %v4347 = vunpack.c.0.s8 %v4346
      %v4348 = vlaneseq
      %v4349 = vshrl.u32 %v4348, 7
      %v4350 = vsub.s32 %v4347, %v4349
      %v4351 = vrot.slane %v4335, %v4350
      %v4353 = vunpack.c.l.s4 1966171168
      %v4354 = vunpack.c.0.s8 %v4353
      %v4355 = vlaneseq
      %v4356 = vshrl.u32 %v4355, 7
      %v4357 = vsub.s32 %v4354, %v4356
      %v4358 = vrot.slane %v4342, %v4357
      %v4360 = vunpack.c.l.s4 1966171168
      %v4361 = vunpack.c.0.s8 %v4360
      %v4362 = vlaneseq
      %v4363 = vshrl.u32 %v4362, 7
      %v4364 = vsub.s32 %v4361, %v4363
      %v4365 = vrot.slane %v4343, %v4364
      %v4367 = vunpack.c.l.s4 1966171168
      %v4368 = vunpack.c.0.s8 %v4367
      %v4369 = vlaneseq
      %v4370 = vshrl.u32 %v4369, 7
      %v4371 = vsub.s32 %v4368, %v4370
      %v4372 = vrot.slane %v4344, %v4371
      %v4373 = vcombine.high %v4351, %v4351
      %v4374 = vcombine.high %v4358, %v4358
      %v4375 = vcombine.high %v4365, %v4365
      %v4376 = vcombine.high %v4372, %v4372
      %v4386 = vcombine.high %v4318, %v4318
      %v4388 = vunpack.c.l.s4 1966171168
      %v4389 = vunpack.c.0.s8 %v4388
      %v4390 = vlaneseq
      %v4391 = vshrl.u32 %v4390, 7
      %v4392 = vsub.s32 %v4389, %v4391
      %v4393 = vrot.slane %v4318, %v4392
      %v4395 = vunpack.c.l.s4 1966171168
      %v4396 = vunpack.c.0.s8 %v4395
      %v4397 = vlaneseq
      %v4398 = vshrl.u32 %v4397, 7
      %v4399 = vsub.s32 %v4396, %v4398
      %v4400 = vrot.slane %v4386, %v4399
      %v4401 = vcombine.high %v4393, %v4393
      %v4402 = vcombine.high %v4400, %v4400
      %v4404 = vunpack.c.l.s4 1966171168
      %v4405 = vunpack.c.0.s8 %v4404
      %v4406 = vlaneseq
      %v4407 = vshrl.u32 %v4406, 7
      %v4408 = vsub.s32 %v4405, %v4407
      %v4409 = vrot.slane %v4393, %v4408
      %v4411 = vunpack.c.l.s4 1966171168
      %v4412 = vunpack.c.0.s8 %v4411
      %v4413 = vlaneseq
      %v4414 = vshrl.u32 %v4413, 7
      %v4415 = vsub.s32 %v4412, %v4414
      %v4416 = vrot.slane %v4400, %v4415
      %v4418 = vunpack.c.l.s4 1966171168
      %v4419 = vunpack.c.0.s8 %v4418
      %v4420 = vlaneseq
      %v4421 = vshrl.u32 %v4420, 7
      %v4422 = vsub.s32 %v4419, %v4421
      %v4423 = vrot.slane %v4401, %v4422
      %v4425 = vunpack.c.l.s4 1966171168
      %v4426 = vunpack.c.0.s8 %v4425
      %v4427 = vlaneseq
      %v4428 = vshrl.u32 %v4427, 7
      %v4429 = vsub.s32 %v4426, %v4428
      %v4430 = vrot.slane %v4402, %v4429
      %v4431 = vcombine.high %v4409, %v4409
      %v4432 = vcombine.high %v4416, %v4416
      %v4433 = vcombine.high %v4423, %v4423
      %v4434 = vcombine.high %v4430, %v4430
      %v4436 = vcombine.high %v4319, %v4319
      %v4438 = vunpack.c.l.s4 1966171168
      %v4439 = vunpack.c.0.s8 %v4438
      %v4440 = vlaneseq
      %v4441 = vshrl.u32 %v4440, 7
      %v4442 = vsub.s32 %v4439, %v4441
      %v4443 = vrot.slane %v4319, %v4442
      %v4445 = vunpack.c.l.s4 1966171168
      %v4446 = vunpack.c.0.s8 %v4445
      %v4447 = vlaneseq
      %v4448 = vshrl.u32 %v4447, 7
      %v4449 = vsub.s32 %v4446, %v4448
      %v4450 = vrot.slane %v4436, %v4449
      %v4451 = vcombine.high %v4443, %v4443
      %v4452 = vcombine.high %v4450, %v4450
      %v4454 = vunpack.c.l.s4 1966171168
      %v4455 = vunpack.c.0.s8 %v4454
      %v4456 = vlaneseq
      %v4457 = vshrl.u32 %v4456, 7
      %v4458 = vsub.s32 %v4455, %v4457
      %v4459 = vrot.slane %v4443, %v4458
      %v4461 = vunpack.c.l.s4 1966171168
      %v4462 = vunpack.c.0.s8 %v4461
      %v4463 = vlaneseq
      %v4464 = vshrl.u32 %v4463, 7
      %v4465 = vsub.s32 %v4462, %v4464
      %v4466 = vrot.slane %v4450, %v4465
      %v4468 = vunpack.c.l.s4 1966171168
      %v4469 = vunpack.c.0.s8 %v4468
      %v4470 = vlaneseq
      %v4471 = vshrl.u32 %v4470, 7
      %v4472 = vsub.s32 %v4469, %v4471
      %v4473 = vrot.slane %v4451, %v4472
      %v4475 = vunpack.c.l.s4 1966171168
      %v4476 = vunpack.c.0.s8 %v4475
      %v4477 = vlaneseq
      %v4478 = vshrl.u32 %v4477, 7
      %v4479 = vsub.s32 %v4476, %v4478
      %v4480 = vrot.slane %v4452, %v4479
      %v4481 = vcombine.high %v4459, %v4459
      %v4482 = vcombine.high %v4466, %v4466
      %v4483 = vcombine.high %v4473, %v4473
      %v4484 = vcombine.high %v4480, %v4480
      %v4486 = vcombine.high %v4320, %v4320
      %v4488 = vunpack.c.l.s4 1966171168
      %v4489 = vunpack.c.0.s8 %v4488
      %v4490 = vlaneseq
      %v4491 = vshrl.u32 %v4490, 7
      %v4492 = vsub.s32 %v4489, %v4491
      %v4493 = vrot.slane %v4320, %v4492
      %v4495 = vunpack.c.l.s4 1966171168
      %v4496 = vunpack.c.0.s8 %v4495
      %v4497 = vlaneseq
      %v4498 = vshrl.u32 %v4497, 7
      %v4499 = vsub.s32 %v4496, %v4498
      %v4500 = vrot.slane %v4486, %v4499
      %v4501 = vcombine.high %v4493, %v4493
      %v4502 = vcombine.high %v4500, %v4500
      %v4504 = vunpack.c.l.s4 1966171168
      %v4505 = vunpack.c.0.s8 %v4504
      %v4506 = vlaneseq
      %v4507 = vshrl.u32 %v4506, 7
      %v4508 = vsub.s32 %v4505, %v4507
      %v4509 = vrot.slane %v4493, %v4508
      %v4511 = vunpack.c.l.s4 1966171168
      %v4512 = vunpack.c.0.s8 %v4511
      %v4513 = vlaneseq
      %v4514 = vshrl.u32 %v4513, 7
      %v4515 = vsub.s32 %v4512, %v4514
      %v4516 = vrot.slane %v4500, %v4515
      %v4518 = vunpack.c.l.s4 1966171168
      %v4519 = vunpack.c.0.s8 %v4518
      %v4520 = vlaneseq
      %v4521 = vshrl.u32 %v4520, 7
      %v4522 = vsub.s32 %v4519, %v4521
      %v4523 = vrot.slane %v4501, %v4522
      %v4525 = vunpack.c.l.s4 1966171168
      %v4526 = vunpack.c.0.s8 %v4525
      %v4527 = vlaneseq
      %v4528 = vshrl.u32 %v4527, 7
      %v4529 = vsub.s32 %v4526, %v4528
      %v4530 = vrot.slane %v4502, %v4529
      %v4531 = vcombine.high %v4509, %v4509
      %v4532 = vcombine.high %v4516, %v4516
      %v4533 = vcombine.high %v4523, %v4523
      %v4534 = vcombine.high %v4530, %v4530
      %v4536 = vcombine.high %v4321, %v4321
      %v4538 = vunpack.c.l.s4 1966171168
      %v4539 = vunpack.c.0.s8 %v4538
      %v4540 = vlaneseq
      %v4541 = vshrl.u32 %v4540, 7
      %v4542 = vsub.s32 %v4539, %v4541
      %v4543 = vrot.slane %v4321, %v4542
      %v4545 = vunpack.c.l.s4 1966171168
      %v4546 = vunpack.c.0.s8 %v4545
      %v4547 = vlaneseq
      %v4548 = vshrl.u32 %v4547, 7
      %v4549 = vsub.s32 %v4546, %v4548
      %v4550 = vrot.slane %v4536, %v4549
      %v4551 = vcombine.high %v4543, %v4543
      %v4552 = vcombine.high %v4550, %v4550
      %v4554 = vunpack.c.l.s4 1966171168
      %v4555 = vunpack.c.0.s8 %v4554
      %v4556 = vlaneseq
      %v4557 = vshrl.u32 %v4556, 7
      %v4558 = vsub.s32 %v4555, %v4557
      %v4559 = vrot.slane %v4543, %v4558
      %v4561 = vunpack.c.l.s4 1966171168
      %v4562 = vunpack.c.0.s8 %v4561
      %v4563 = vlaneseq
      %v4564 = vshrl.u32 %v4563, 7
      %v4565 = vsub.s32 %v4562, %v4564
      %v4566 = vrot.slane %v4550, %v4565
      %v4568 = vunpack.c.l.s4 1966171168
      %v4569 = vunpack.c.0.s8 %v4568
      %v4570 = vlaneseq
      %v4571 = vshrl.u32 %v4570, 7
      %v4572 = vsub.s32 %v4569, %v4571
      %v4573 = vrot.slane %v4551, %v4572
      %v4575 = vunpack.c.l.s4 1966171168
      %v4576 = vunpack.c.0.s8 %v4575
      %v4577 = vlaneseq
      %v4578 = vshrl.u32 %v4577, 7
      %v4579 = vsub.s32 %v4576, %v4578
      %v4580 = vrot.slane %v4552, %v4579
      %v4581 = vcombine.high %v4559, %v4559
      %v4582 = vcombine.high %v4566, %v4566
      %v4583 = vcombine.high %v4573, %v4573
      %v4584 = vcombine.high %v4580, %v4580
      %v4594 = vcombine.high %v4322, %v4322
      %v4596 = vunpack.c.l.s4 1966171168
      %v4597 = vunpack.c.0.s8 %v4596
      %v4598 = vlaneseq
      %v4599 = vshrl.u32 %v4598, 7
      %v4600 = vsub.s32 %v4597, %v4599
      %v4601 = vrot.slane %v4322, %v4600
      %v4603 = vunpack.c.l.s4 1966171168
      %v4604 = vunpack.c.0.s8 %v4603
      %v4605 = vlaneseq
      %v4606 = vshrl.u32 %v4605, 7
      %v4607 = vsub.s32 %v4604, %v4606
      %v4608 = vrot.slane %v4594, %v4607
      %v4609 = vcombine.high %v4601, %v4601
      %v4610 = vcombine.high %v4608, %v4608
      %v4612 = vunpack.c.l.s4 1966171168
      %v4613 = vunpack.c.0.s8 %v4612
      %v4614 = vlaneseq
      %v4615 = vshrl.u32 %v4614, 7
      %v4616 = vsub.s32 %v4613, %v4615
      %v4617 = vrot.slane %v4601, %v4616
      %v4619 = vunpack.c.l.s4 1966171168
      %v4620 = vunpack.c.0.s8 %v4619
      %v4621 = vlaneseq
      %v4622 = vshrl.u32 %v4621, 7
      %v4623 = vsub.s32 %v4620, %v4622
      %v4624 = vrot.slane %v4608, %v4623
      %v4626 = vunpack.c.l.s4 1966171168
      %v4627 = vunpack.c.0.s8 %v4626
      %v4628 = vlaneseq
      %v4629 = vshrl.u32 %v4628, 7
      %v4630 = vsub.s32 %v4627, %v4629
      %v4631 = vrot.slane %v4609, %v4630
      %v4633 = vunpack.c.l.s4 1966171168
      %v4634 = vunpack.c.0.s8 %v4633
      %v4635 = vlaneseq
      %v4636 = vshrl.u32 %v4635, 7
      %v4637 = vsub.s32 %v4634, %v4636
      %v4638 = vrot.slane %v4610, %v4637
      %v4639 = vcombine.high %v4617, %v4617
      %v4640 = vcombine.high %v4624, %v4624
      %v4641 = vcombine.high %v4631, %v4631
      %v4642 = vcombine.high %v4638, %v4638
      %v4644 = vcombine.high %v4323, %v4323
      %v4646 = vunpack.c.l.s4 1966171168
      %v4647 = vunpack.c.0.s8 %v4646
      %v4648 = vlaneseq
      %v4649 = vshrl.u32 %v4648, 7
      %v4650 = vsub.s32 %v4647, %v4649
      %v4651 = vrot.slane %v4323, %v4650
      %v4653 = vunpack.c.l.s4 1966171168
      %v4654 = vunpack.c.0.s8 %v4653
      %v4655 = vlaneseq
      %v4656 = vshrl.u32 %v4655, 7
      %v4657 = vsub.s32 %v4654, %v4656
      %v4658 = vrot.slane %v4644, %v4657
      %v4659 = vcombine.high %v4651, %v4651
      %v4660 = vcombine.high %v4658, %v4658
      %v4662 = vunpack.c.l.s4 1966171168
      %v4663 = vunpack.c.0.s8 %v4662
      %v4664 = vlaneseq
      %v4665 = vshrl.u32 %v4664, 7
      %v4666 = vsub.s32 %v4663, %v4665
      %v4667 = vrot.slane %v4651, %v4666
      %v4669 = vunpack.c.l.s4 1966171168
      %v4670 = vunpack.c.0.s8 %v4669
      %v4671 = vlaneseq
      %v4672 = vshrl.u32 %v4671, 7
      %v4673 = vsub.s32 %v4670, %v4672
      %v4674 = vrot.slane %v4658, %v4673
      %v4676 = vunpack.c.l.s4 1966171168
      %v4677 = vunpack.c.0.s8 %v4676
      %v4678 = vlaneseq
      %v4679 = vshrl.u32 %v4678, 7
      %v4680 = vsub.s32 %v4677, %v4679
      %v4681 = vrot.slane %v4659, %v4680
      %v4683 = vunpack.c.l.s4 1966171168
      %v4684 = vunpack.c.0.s8 %v4683
      %v4685 = vlaneseq
      %v4686 = vshrl.u32 %v4685, 7
      %v4687 = vsub.s32 %v4684, %v4686
      %v4688 = vrot.slane %v4660, %v4687
      %v4689 = vcombine.high %v4667, %v4667
      %v4690 = vcombine.high %v4674, %v4674
      %v4691 = vcombine.high %v4681, %v4681
      %v4692 = vcombine.high %v4688, %v4688
      %v4694 = vcombine.high %v4324, %v4324
      %v4696 = vunpack.c.l.s4 1966171168
      %v4697 = vunpack.c.0.s8 %v4696
      %v4698 = vlaneseq
      %v4699 = vshrl.u32 %v4698, 7
      %v4700 = vsub.s32 %v4697, %v4699
      %v4701 = vrot.slane %v4324, %v4700
      %v4703 = vunpack.c.l.s4 1966171168
      %v4704 = vunpack.c.0.s8 %v4703
      %v4705 = vlaneseq
      %v4706 = vshrl.u32 %v4705, 7
      %v4707 = vsub.s32 %v4704, %v4706
      %v4708 = vrot.slane %v4694, %v4707
      %v4709 = vcombine.high %v4701, %v4701
      %v4710 = vcombine.high %v4708, %v4708
      %v4712 = vunpack.c.l.s4 1966171168
      %v4713 = vunpack.c.0.s8 %v4712
      %v4714 = vlaneseq
      %v4715 = vshrl.u32 %v4714, 7
      %v4716 = vsub.s32 %v4713, %v4715
      %v4717 = vrot.slane %v4701, %v4716
      %v4719 = vunpack.c.l.s4 1966171168
      %v4720 = vunpack.c.0.s8 %v4719
      %v4721 = vlaneseq
      %v4722 = vshrl.u32 %v4721, 7
      %v4723 = vsub.s32 %v4720, %v4722
      %v4724 = vrot.slane %v4708, %v4723
      %v4726 = vunpack.c.l.s4 1966171168
      %v4727 = vunpack.c.0.s8 %v4726
      %v4728 = vlaneseq
      %v4729 = vshrl.u32 %v4728, 7
      %v4730 = vsub.s32 %v4727, %v4729
      %v4731 = vrot.slane %v4709, %v4730
      %v4733 = vunpack.c.l.s4 1966171168
      %v4734 = vunpack.c.0.s8 %v4733
      %v4735 = vlaneseq
      %v4736 = vshrl.u32 %v4735, 7
      %v4737 = vsub.s32 %v4734, %v4736
      %v4738 = vrot.slane %v4710, %v4737
      %v4739 = vcombine.high %v4717, %v4717
      %v4740 = vcombine.high %v4724, %v4724
      %v4741 = vcombine.high %v4731, %v4731
      %v4742 = vcombine.high %v4738, %v4738
      %v4744 = vcombine.high %v4325, %v4325
      %v4746 = vunpack.c.l.s4 1966171168
      %v4747 = vunpack.c.0.s8 %v4746
      %v4748 = vlaneseq
      %v4749 = vshrl.u32 %v4748, 7
      %v4750 = vsub.s32 %v4747, %v4749
      %v4751 = vrot.slane %v4325, %v4750
      %v4753 = vunpack.c.l.s4 1966171168
      %v4754 = vunpack.c.0.s8 %v4753
      %v4755 = vlaneseq
      %v4756 = vshrl.u32 %v4755, 7
      %v4757 = vsub.s32 %v4754, %v4756
      %v4758 = vrot.slane %v4744, %v4757
      %v4759 = vcombine.high %v4751, %v4751
      %v4760 = vcombine.high %v4758, %v4758
      %v4762 = vunpack.c.l.s4 1966171168
      %v4763 = vunpack.c.0.s8 %v4762
      %v4764 = vlaneseq
      %v4765 = vshrl.u32 %v4764, 7
      %v4766 = vsub.s32 %v4763, %v4765
      %v4767 = vrot.slane %v4751, %v4766
      %v4769 = vunpack.c.l.s4 1966171168
      %v4770 = vunpack.c.0.s8 %v4769
      %v4771 = vlaneseq
      %v4772 = vshrl.u32 %v4771, 7
      %v4773 = vsub.s32 %v4770, %v4772
      %v4774 = vrot.slane %v4758, %v4773
      %v4776 = vunpack.c.l.s4 1966171168
      %v4777 = vunpack.c.0.s8 %v4776
      %v4778 = vlaneseq
      %v4779 = vshrl.u32 %v4778, 7
      %v4780 = vsub.s32 %v4777, %v4779
      %v4781 = vrot.slane %v4759, %v4780
      %v4783 = vunpack.c.l.s4 1966171168
      %v4784 = vunpack.c.0.s8 %v4783
      %v4785 = vlaneseq
      %v4786 = vshrl.u32 %v4785, 7
      %v4787 = vsub.s32 %v4784, %v4786
      %v4788 = vrot.slane %v4760, %v4787
      %v4789 = vcombine.high %v4767, %v4767
      %v4790 = vcombine.high %v4774, %v4774
      %v4791 = vcombine.high %v4781, %v4781
      %v4792 = vcombine.high %v4788, %v4788
      %v4802 = vcombine.high %v4326, %v4326
      %v4804 = vunpack.c.l.s4 1966171168
      %v4805 = vunpack.c.0.s8 %v4804
      %v4806 = vlaneseq
      %v4807 = vshrl.u32 %v4806, 7
      %v4808 = vsub.s32 %v4805, %v4807
      %v4809 = vrot.slane %v4326, %v4808
      %v4811 = vunpack.c.l.s4 1966171168
      %v4812 = vunpack.c.0.s8 %v4811
      %v4813 = vlaneseq
      %v4814 = vshrl.u32 %v4813, 7
      %v4815 = vsub.s32 %v4812, %v4814
      %v4816 = vrot.slane %v4802, %v4815
      %v4817 = vcombine.high %v4809, %v4809
      %v4818 = vcombine.high %v4816, %v4816
      %v4820 = vunpack.c.l.s4 1966171168
      %v4821 = vunpack.c.0.s8 %v4820
      %v4822 = vlaneseq
      %v4823 = vshrl.u32 %v4822, 7
      %v4824 = vsub.s32 %v4821, %v4823
      %v4825 = vrot.slane %v4809, %v4824
      %v4827 = vunpack.c.l.s4 1966171168
      %v4828 = vunpack.c.0.s8 %v4827
      %v4829 = vlaneseq
      %v4830 = vshrl.u32 %v4829, 7
      %v4831 = vsub.s32 %v4828, %v4830
      %v4832 = vrot.slane %v4816, %v4831
      %v4834 = vunpack.c.l.s4 1966171168
      %v4835 = vunpack.c.0.s8 %v4834
      %v4836 = vlaneseq
      %v4837 = vshrl.u32 %v4836, 7
      %v4838 = vsub.s32 %v4835, %v4837
      %v4839 = vrot.slane %v4817, %v4838
      %v4841 = vunpack.c.l.s4 1966171168
      %v4842 = vunpack.c.0.s8 %v4841
      %v4843 = vlaneseq
      %v4844 = vshrl.u32 %v4843, 7
      %v4845 = vsub.s32 %v4842, %v4844
      %v4846 = vrot.slane %v4818, %v4845
      %v4847 = vcombine.high %v4825, %v4825
      %v4848 = vcombine.high %v4832, %v4832
      %v4849 = vcombine.high %v4839, %v4839
      %v4850 = vcombine.high %v4846, %v4846
      %v4851 = vlaneseq
      %v4852 = vshrl.u32 %v4851, 7
      %v4853 = vsub.s32 0, %v4852
      %v4854 = vrot.slane %v4351, %v4853
      %v4855 = vlaneseq
      %v4856 = vshrl.u32 %v4855, 7
      %v4857 = vsub.s32 0, %v4856
      %v4858 = vrot.slane %v4365, %v4857
      %v4859 = vlaneseq
      %v4860 = vshrl.u32 %v4859, 7
      %v4861 = vsub.s32 0, %v4860
      %v4862 = vrot.slane %v4373, %v4861
      %v4863 = vlaneseq
      %v4864 = vshrl.u32 %v4863, 7
      %v4865 = vsub.s32 0, %v4864
      %v4866 = vrot.slane %v4375, %v4865
      %v4867 = vlaneseq
      %v4868 = vshrl.u32 %v4867, 7
      %v4869 = vsub.s32 0, %v4868
      %v4870 = vrot.slane %v4358, %v4869
      %v4871 = vlaneseq
      %v4872 = vshrl.u32 %v4871, 7
      %v4873 = vsub.s32 0, %v4872
      %v4874 = vrot.slane %v4372, %v4873
      %v4875 = vlaneseq
      %v4876 = vshrl.u32 %v4875, 7
      %v4877 = vsub.s32 0, %v4876
      %v4878 = vrot.slane %v4374, %v4877
      %v4879 = vlaneseq
      %v4880 = vshrl.u32 %v4879, 7
      %v4881 = vsub.s32 0, %v4880
      %v4882 = vrot.slane %v4376, %v4881
      %4883 = vrot.lane.b32.xlu0 %v4854, 64
      %v4884 = vpop.permute.xlu0 %4883
      %4885 = vrot.lane.b32.xlu0 %v4858, 64
      %v4886 = vpop.permute.xlu0 %4885
      %4887 = vrot.lane.b32.xlu0 %v4862, 64
      %v4888 = vpop.permute.xlu0 %4887
      %4889 = vrot.lane.b32.xlu0 %v4866, 64
      %v4890 = vpop.permute.xlu0 %4889
      %4891 = vrot.lane.b32.xlu0 %v4870, 64
      %v4892 = vpop.permute.xlu0 %4891
      %4893 = vrot.lane.b32.xlu0 %v4874, 64
      %v4894 = vpop.permute.xlu0 %4893
      %4895 = vrot.lane.b32.xlu0 %v4878, 64
      %v4896 = vpop.permute.xlu0 %4895
      %4897 = vrot.lane.b32.xlu0 %v4882, 64
      %v4898 = vpop.permute.xlu0 %4897
      %v4907 = vlaneseq
      %v4908 = vshrl.u32 %v4907, 7
      %v4909 = vsub.s32 0, %v4908
      %v4910 = vrot.slane %v4409, %v4909
      %v4911 = vlaneseq
      %v4912 = vshrl.u32 %v4911, 7
      %v4913 = vsub.s32 0, %v4912
      %v4914 = vrot.slane %v4423, %v4913
      %v4915 = vlaneseq
      %v4916 = vshrl.u32 %v4915, 7
      %v4917 = vsub.s32 0, %v4916
      %v4918 = vrot.slane %v4431, %v4917
      %v4919 = vlaneseq
      %v4920 = vshrl.u32 %v4919, 7
      %v4921 = vsub.s32 0, %v4920
      %v4922 = vrot.slane %v4433, %v4921
      %v4923 = vlaneseq
      %v4924 = vshrl.u32 %v4923, 7
      %v4925 = vsub.s32 0, %v4924
      %v4926 = vrot.slane %v4416, %v4925
      %v4927 = vlaneseq
      %v4928 = vshrl.u32 %v4927, 7
      %v4929 = vsub.s32 0, %v4928
      %v4930 = vrot.slane %v4430, %v4929
      %v4931 = vlaneseq
      %v4932 = vshrl.u32 %v4931, 7
      %v4933 = vsub.s32 0, %v4932
      %v4934 = vrot.slane %v4432, %v4933
      %v4935 = vlaneseq
      %v4936 = vshrl.u32 %v4935, 7
      %v4937 = vsub.s32 0, %v4936
      %v4938 = vrot.slane %v4434, %v4937
      %4947 = vrot.lane.b32.xlu0 %v4910, 64
      %v4948 = vpop.permute.xlu0 %4947
      %4949 = vrot.lane.b32.xlu0 %v4914, 64
      %v4950 = vpop.permute.xlu0 %4949
      %4951 = vrot.lane.b32.xlu0 %v4918, 64
      %v4952 = vpop.permute.xlu0 %4951
      %4953 = vrot.lane.b32.xlu0 %v4922, 64
      %v4954 = vpop.permute.xlu0 %4953
      %4955 = vrot.lane.b32.xlu0 %v4926, 64
      %v4956 = vpop.permute.xlu0 %4955
      %4957 = vrot.lane.b32.xlu0 %v4930, 64
      %v4958 = vpop.permute.xlu0 %4957
      %4959 = vrot.lane.b32.xlu0 %v4934, 64
      %v4960 = vpop.permute.xlu0 %4959
      %4961 = vrot.lane.b32.xlu0 %v4938, 64
      %v4962 = vpop.permute.xlu0 %4961
      %v4971 = vlaneseq
      %v4972 = vshrl.u32 %v4971, 7
      %v4973 = vsub.s32 0, %v4972
      %v4974 = vrot.slane %v4459, %v4973
      %v4975 = vlaneseq
      %v4976 = vshrl.u32 %v4975, 7
      %v4977 = vsub.s32 0, %v4976
      %v4978 = vrot.slane %v4473, %v4977
      %v4979 = vlaneseq
      %v4980 = vshrl.u32 %v4979, 7
      %v4981 = vsub.s32 0, %v4980
      %v4982 = vrot.slane %v4481, %v4981
      %v4983 = vlaneseq
      %v4984 = vshrl.u32 %v4983, 7
      %v4985 = vsub.s32 0, %v4984
      %v4986 = vrot.slane %v4483, %v4985
      %v4987 = vlaneseq
      %v4988 = vshrl.u32 %v4987, 7
      %v4989 = vsub.s32 0, %v4988
      %v4990 = vrot.slane %v4466, %v4989
      %v4991 = vlaneseq
      %v4992 = vshrl.u32 %v4991, 7
      %v4993 = vsub.s32 0, %v4992
      %v4994 = vrot.slane %v4480, %v4993
      %v4995 = vlaneseq
      %v4996 = vshrl.u32 %v4995, 7
      %v4997 = vsub.s32 0, %v4996
      %v4998 = vrot.slane %v4482, %v4997
      %v4999 = vlaneseq
      %v5000 = vshrl.u32 %v4999, 7
      %v5001 = vsub.s32 0, %v5000
      %v5002 = vrot.slane %v4484, %v5001
      %5011 = vrot.lane.b32.xlu0 %v4974, 64
      %v5012 = vpop.permute.xlu0 %5011
      %5013 = vrot.lane.b32.xlu0 %v4978, 64
      %v5014 = vpop.permute.xlu0 %5013
      %5015 = vrot.lane.b32.xlu0 %v4982, 64
      %v5016 = vpop.permute.xlu0 %5015
      %5017 = vrot.lane.b32.xlu0 %v4986, 64
      %v5018 = vpop.permute.xlu0 %5017
      %5019 = vrot.lane.b32.xlu0 %v4990, 64
      %v5020 = vpop.permute.xlu0 %5019
      %5021 = vrot.lane.b32.xlu0 %v4994, 64
      %v5022 = vpop.permute.xlu0 %5021
      %5023 = vrot.lane.b32.xlu0 %v4998, 64
      %v5024 = vpop.permute.xlu0 %5023
      %5025 = vrot.lane.b32.xlu0 %v5002, 64
      %v5026 = vpop.permute.xlu0 %5025
      %v5035 = vlaneseq
      %v5036 = vshrl.u32 %v5035, 7
      %v5037 = vsub.s32 0, %v5036
      %v5038 = vrot.slane %v4509, %v5037
      %v5039 = vlaneseq
      %v5040 = vshrl.u32 %v5039, 7
      %v5041 = vsub.s32 0, %v5040
      %v5042 = vrot.slane %v4523, %v5041
      %v5043 = vlaneseq
      %v5044 = vshrl.u32 %v5043, 7
      %v5045 = vsub.s32 0, %v5044
      %v5046 = vrot.slane %v4531, %v5045
      %v5047 = vlaneseq
      %v5048 = vshrl.u32 %v5047, 7
      %v5049 = vsub.s32 0, %v5048
      %v5050 = vrot.slane %v4533, %v5049
      %v5051 = vlaneseq
      %v5052 = vshrl.u32 %v5051, 7
      %v5053 = vsub.s32 0, %v5052
      %v5054 = vrot.slane %v4516, %v5053
      %v5055 = vlaneseq
      %v5056 = vshrl.u32 %v5055, 7
      %v5057 = vsub.s32 0, %v5056
      %v5058 = vrot.slane %v4530, %v5057
      %v5059 = vlaneseq
      %v5060 = vshrl.u32 %v5059, 7
      %v5061 = vsub.s32 0, %v5060
      %v5062 = vrot.slane %v4532, %v5061
      %v5063 = vlaneseq
      %v5064 = vshrl.u32 %v5063, 7
      %v5065 = vsub.s32 0, %v5064
      %v5066 = vrot.slane %v4534, %v5065
      %5075 = vrot.lane.b32.xlu0 %v5038, 64
      %v5076 = vpop.permute.xlu0 %5075
      %5077 = vrot.lane.b32.xlu0 %v5042, 64
      %v5078 = vpop.permute.xlu0 %5077
      %5079 = vrot.lane.b32.xlu0 %v5046, 64
      %v5080 = vpop.permute.xlu0 %5079
      %5081 = vrot.lane.b32.xlu0 %v5050, 64
      %v5082 = vpop.permute.xlu0 %5081
      %5083 = vrot.lane.b32.xlu0 %v5054, 64
      %v5084 = vpop.permute.xlu0 %5083
      %5085 = vrot.lane.b32.xlu0 %v5058, 64
      %v5086 = vpop.permute.xlu0 %5085
      %5087 = vrot.lane.b32.xlu0 %v5062, 64
      %v5088 = vpop.permute.xlu0 %5087
      %5089 = vrot.lane.b32.xlu0 %v5066, 64
      %v5090 = vpop.permute.xlu0 %5089
      %v5099 = vlaneseq
      %v5100 = vshrl.u32 %v5099, 7
      %v5101 = vsub.s32 0, %v5100
      %v5102 = vrot.slane %v4559, %v5101
      %v5103 = vlaneseq
      %v5104 = vshrl.u32 %v5103, 7
      %v5105 = vsub.s32 0, %v5104
      %v5106 = vrot.slane %v4573, %v5105
      %v5107 = vlaneseq
      %v5108 = vshrl.u32 %v5107, 7
      %v5109 = vsub.s32 0, %v5108
      %v5110 = vrot.slane %v4581, %v5109
      %v5111 = vlaneseq
      %v5112 = vshrl.u32 %v5111, 7
      %v5113 = vsub.s32 0, %v5112
      %v5114 = vrot.slane %v4583, %v5113
      %v5115 = vlaneseq
      %v5116 = vshrl.u32 %v5115, 7
      %v5117 = vsub.s32 0, %v5116
      %v5118 = vrot.slane %v4566, %v5117
      %v5119 = vlaneseq
      %v5120 = vshrl.u32 %v5119, 7
      %v5121 = vsub.s32 0, %v5120
      %v5122 = vrot.slane %v4580, %v5121
      %v5123 = vlaneseq
      %v5124 = vshrl.u32 %v5123, 7
      %v5125 = vsub.s32 0, %v5124
      %v5126 = vrot.slane %v4582, %v5125
      %v5127 = vlaneseq
      %v5128 = vshrl.u32 %v5127, 7
      %v5129 = vsub.s32 0, %v5128
      %v5130 = vrot.slane %v4584, %v5129
      %5131 = vrot.lane.b32.xlu0 %v5102, 64
      %v5132 = vpop.permute.xlu0 %5131
      %5133 = vrot.lane.b32.xlu0 %v5106, 64
      %v5134 = vpop.permute.xlu0 %5133
      %5135 = vrot.lane.b32.xlu0 %v5110, 64
      %v5136 = vpop.permute.xlu0 %5135
      %5137 = vrot.lane.b32.xlu0 %v5114, 64
      %v5138 = vpop.permute.xlu0 %5137
      %5139 = vrot.lane.b32.xlu0 %v5118, 64
      %v5140 = vpop.permute.xlu0 %5139
      %5141 = vrot.lane.b32.xlu0 %v5122, 64
      %v5142 = vpop.permute.xlu0 %5141
      %5143 = vrot.lane.b32.xlu0 %v5126, 64
      %v5144 = vpop.permute.xlu0 %5143
      %5145 = vrot.lane.b32.xlu0 %v5130, 64
      %v5146 = vpop.permute.xlu0 %5145
      %v5155 = vlaneseq
      %v5156 = vshrl.u32 %v5155, 7
      %v5157 = vsub.s32 0, %v5156
      %v5158 = vrot.slane %v4617, %v5157
      %v5159 = vlaneseq
      %v5160 = vshrl.u32 %v5159, 7
      %v5161 = vsub.s32 0, %v5160
      %v5162 = vrot.slane %v4631, %v5161
      %v5163 = vlaneseq
      %v5164 = vshrl.u32 %v5163, 7
      %v5165 = vsub.s32 0, %v5164
      %v5166 = vrot.slane %v4639, %v5165
      %v5167 = vlaneseq
      %v5168 = vshrl.u32 %v5167, 7
      %v5169 = vsub.s32 0, %v5168
      %v5170 = vrot.slane %v4641, %v5169
      %v5171 = vlaneseq
      %v5172 = vshrl.u32 %v5171, 7
      %v5173 = vsub.s32 0, %v5172
      %v5174 = vrot.slane %v4624, %v5173
      %v5175 = vlaneseq
      %v5176 = vshrl.u32 %v5175, 7
      %v5177 = vsub.s32 0, %v5176
      %v5178 = vrot.slane %v4638, %v5177
      %v5179 = vlaneseq
      %v5180 = vshrl.u32 %v5179, 7
      %v5181 = vsub.s32 0, %v5180
      %v5182 = vrot.slane %v4640, %v5181
      %v5183 = vlaneseq
      %v5184 = vshrl.u32 %v5183, 7
      %v5185 = vsub.s32 0, %v5184
      %v5186 = vrot.slane %v4642, %v5185
      %5195 = vrot.lane.b32.xlu0 %v5158, 64
      %v5196 = vpop.permute.xlu0 %5195
      %5197 = vrot.lane.b32.xlu0 %v5162, 64
      %v5198 = vpop.permute.xlu0 %5197
      %5199 = vrot.lane.b32.xlu0 %v5166, 64
      %v5200 = vpop.permute.xlu0 %5199
      %5201 = vrot.lane.b32.xlu0 %v5170, 64
      %v5202 = vpop.permute.xlu0 %5201
      %5203 = vrot.lane.b32.xlu0 %v5174, 64
      %v5204 = vpop.permute.xlu0 %5203
      %5205 = vrot.lane.b32.xlu0 %v5178, 64
      %v5206 = vpop.permute.xlu0 %5205
      %5207 = vrot.lane.b32.xlu0 %v5182, 64
      %v5208 = vpop.permute.xlu0 %5207
      %5209 = vrot.lane.b32.xlu0 %v5186, 64
      %v5210 = vpop.permute.xlu0 %5209
      %v5219 = vlaneseq
      %v5220 = vshrl.u32 %v5219, 7
      %v5221 = vsub.s32 0, %v5220
      %v5222 = vrot.slane %v4667, %v5221
      %v5223 = vlaneseq
      %v5224 = vshrl.u32 %v5223, 7
      %v5225 = vsub.s32 0, %v5224
      %v5226 = vrot.slane %v4681, %v5225
      %v5227 = vlaneseq
      %v5228 = vshrl.u32 %v5227, 7
      %v5229 = vsub.s32 0, %v5228
      %v5230 = vrot.slane %v4689, %v5229
      %v5231 = vlaneseq
      %v5232 = vshrl.u32 %v5231, 7
      %v5233 = vsub.s32 0, %v5232
      %v5234 = vrot.slane %v4691, %v5233
      %v5235 = vlaneseq
      %v5236 = vshrl.u32 %v5235, 7
      %v5237 = vsub.s32 0, %v5236
      %v5238 = vrot.slane %v4674, %v5237
      %v5239 = vlaneseq
      %v5240 = vshrl.u32 %v5239, 7
      %v5241 = vsub.s32 0, %v5240
      %v5242 = vrot.slane %v4688, %v5241
      %v5243 = vlaneseq
      %v5244 = vshrl.u32 %v5243, 7
      %v5245 = vsub.s32 0, %v5244
      %v5246 = vrot.slane %v4690, %v5245
      %v5247 = vlaneseq
      %v5248 = vshrl.u32 %v5247, 7
      %v5249 = vsub.s32 0, %v5248
      %v5250 = vrot.slane %v4692, %v5249
      %5259 = vrot.lane.b32.xlu0 %v5222, 64
      %v5260 = vpop.permute.xlu0 %5259
      %5261 = vrot.lane.b32.xlu0 %v5226, 64
      %v5262 = vpop.permute.xlu0 %5261
      %5263 = vrot.lane.b32.xlu0 %v5230, 64
      %v5264 = vpop.permute.xlu0 %5263
      %5265 = vrot.lane.b32.xlu0 %v5234, 64
      %v5266 = vpop.permute.xlu0 %5265
      %5267 = vrot.lane.b32.xlu0 %v5238, 64
      %v5268 = vpop.permute.xlu0 %5267
      %5269 = vrot.lane.b32.xlu0 %v5242, 64
      %v5270 = vpop.permute.xlu0 %5269
      %5271 = vrot.lane.b32.xlu0 %v5246, 64
      %v5272 = vpop.permute.xlu0 %5271
      %5273 = vrot.lane.b32.xlu0 %v5250, 64
      %v5274 = vpop.permute.xlu0 %5273
      %v5283 = vlaneseq
      %v5284 = vshrl.u32 %v5283, 7
      %v5285 = vsub.s32 0, %v5284
      %v5286 = vrot.slane %v4717, %v5285
      %v5287 = vlaneseq
      %v5288 = vshrl.u32 %v5287, 7
      %v5289 = vsub.s32 0, %v5288
      %v5290 = vrot.slane %v4731, %v5289
      %v5291 = vlaneseq
      %v5292 = vshrl.u32 %v5291, 7
      %v5293 = vsub.s32 0, %v5292
      %v5294 = vrot.slane %v4739, %v5293
      %v5295 = vlaneseq
      %v5296 = vshrl.u32 %v5295, 7
      %v5297 = vsub.s32 0, %v5296
      %v5298 = vrot.slane %v4741, %v5297
      %v5299 = vlaneseq
      %v5300 = vshrl.u32 %v5299, 7
      %v5301 = vsub.s32 0, %v5300
      %v5302 = vrot.slane %v4724, %v5301
      %v5303 = vlaneseq
      %v5304 = vshrl.u32 %v5303, 7
      %v5305 = vsub.s32 0, %v5304
      %v5306 = vrot.slane %v4738, %v5305
      %v5307 = vlaneseq
      %v5308 = vshrl.u32 %v5307, 7
      %v5309 = vsub.s32 0, %v5308
      %v5310 = vrot.slane %v4740, %v5309
      %v5311 = vlaneseq
      %v5312 = vshrl.u32 %v5311, 7
      %v5313 = vsub.s32 0, %v5312
      %v5314 = vrot.slane %v4742, %v5313
      %5323 = vrot.lane.b32.xlu0 %v5286, 64
      %v5324 = vpop.permute.xlu0 %5323
      %5325 = vrot.lane.b32.xlu0 %v5290, 64
      %v5326 = vpop.permute.xlu0 %5325
      %5327 = vrot.lane.b32.xlu0 %v5294, 64
      %v5328 = vpop.permute.xlu0 %5327
      %5329 = vrot.lane.b32.xlu0 %v5298, 64
      %v5330 = vpop.permute.xlu0 %5329
      %5331 = vrot.lane.b32.xlu0 %v5302, 64
      %v5332 = vpop.permute.xlu0 %5331
      %5333 = vrot.lane.b32.xlu0 %v5306, 64
      %v5334 = vpop.permute.xlu0 %5333
      %5335 = vrot.lane.b32.xlu0 %v5310, 64
      %v5336 = vpop.permute.xlu0 %5335
      %5337 = vrot.lane.b32.xlu0 %v5314, 64
      %v5338 = vpop.permute.xlu0 %5337
      %vm5347 = vcmask 1040384
      %v5348 = vsel %vm5347, %v4351, %v4884
      %v5349 = vsel %vm5347, %v4365, %v4886
      %v5350 = vsel %vm5347, %v4373, %v4888
      %v5351 = vsel %vm5347, %v4375, %v4890
      %v5352 = vsel %vm5347, %v4358, %v4892
      %v5353 = vsel %vm5347, %v4372, %v4894
      %v5354 = vsel %vm5347, %v4374, %v4896
      %v5355 = vsel %vm5347, %v4376, %v4898
      %vm5356 = vcmask 1041408
      %v5357 = vsel %vm5356, %v5348, %v4910
      %v5358 = vsel %vm5356, %v5349, %v4914
      %v5359 = vsel %vm5356, %v5350, %v4918
      %v5360 = vsel %vm5356, %v5351, %v4922
      %v5361 = vsel %vm5356, %v5352, %v4926
      %v5362 = vsel %vm5356, %v5353, %v4930
      %v5363 = vsel %vm5356, %v5354, %v4934
      %v5364 = vsel %vm5356, %v5355, %v4938
      %vm5365 = vcmask 1042432
      %v5366 = vsel %vm5365, %v5357, %v4948
      %v5367 = vsel %vm5365, %v5358, %v4950
      %v5368 = vsel %vm5365, %v5359, %v4952
      %v5369 = vsel %vm5365, %v5360, %v4954
      %v5370 = vsel %vm5365, %v5361, %v4956
      %v5371 = vsel %vm5365, %v5362, %v4958
      %v5372 = vsel %vm5365, %v5363, %v4960
      %v5373 = vsel %vm5365, %v5364, %v4962
      %vm5374 = vcmask 1043456
      %v5375 = vsel %vm5374, %v5366, %v4974
      %v5376 = vsel %vm5374, %v5367, %v4978
      %v5377 = vsel %vm5374, %v5368, %v4982
      %v5378 = vsel %vm5374, %v5369, %v4986
      %v5379 = vsel %vm5374, %v5370, %v4990
      %v5380 = vsel %vm5374, %v5371, %v4994
      %v5381 = vsel %vm5374, %v5372, %v4998
      %v5382 = vsel %vm5374, %v5373, %v5002
      %vm5383 = vcmask 1044480
      %v5384 = vsel %vm5383, %v5375, %v5012
      %v5385 = vsel %vm5383, %v5376, %v5014
      %v5386 = vsel %vm5383, %v5377, %v5016
      %v5387 = vsel %vm5383, %v5378, %v5018
      %v5388 = vsel %vm5383, %v5379, %v5020
      %v5389 = vsel %vm5383, %v5380, %v5022
      %v5390 = vsel %vm5383, %v5381, %v5024
      %v5391 = vsel %vm5383, %v5382, %v5026
      %vm5392 = vcmask 1045504
      %v5393 = vsel %vm5392, %v5384, %v5038
      %v5394 = vsel %vm5392, %v5385, %v5042
      %v5395 = vsel %vm5392, %v5386, %v5046
      %v5396 = vsel %vm5392, %v5387, %v5050
      %v5397 = vsel %vm5392, %v5388, %v5054
      %v5398 = vsel %vm5392, %v5389, %v5058
      %v5399 = vsel %vm5392, %v5390, %v5062
      %v5400 = vsel %vm5392, %v5391, %v5066
      %vm5401 = vcmask 1046528
      %v5402 = vsel %vm5401, %v5393, %v5076
      %v5403 = vsel %vm5401, %v5394, %v5078
      %v5404 = vsel %vm5401, %v5395, %v5080
      %v5405 = vsel %vm5401, %v5396, %v5082
      %v5406 = vsel %vm5401, %v5397, %v5084
      %v5407 = vsel %vm5401, %v5398, %v5086
      %v5408 = vsel %vm5401, %v5399, %v5088
      %v5409 = vsel %vm5401, %v5400, %v5090
      %v5410 = vsel %vm5347, %v4559, %v5132
      %v5411 = vsel %vm5347, %v4573, %v5134
      %v5412 = vsel %vm5347, %v4581, %v5136
      %v5413 = vsel %vm5347, %v4583, %v5138
      %v5414 = vsel %vm5347, %v4566, %v5140
      %v5415 = vsel %vm5347, %v4580, %v5142
      %v5416 = vsel %vm5347, %v4582, %v5144
      %v5417 = vsel %vm5347, %v4584, %v5146
      %v5418 = vsel %vm5356, %v5410, %v5158
      %v5419 = vsel %vm5356, %v5411, %v5162
      %v5420 = vsel %vm5356, %v5412, %v5166
      %v5421 = vsel %vm5356, %v5413, %v5170
      %v5422 = vsel %vm5356, %v5414, %v5174
      %v5423 = vsel %vm5356, %v5415, %v5178
      %v5424 = vsel %vm5356, %v5416, %v5182
      %v5425 = vsel %vm5356, %v5417, %v5186
      %v5426 = vsel %vm5365, %v5418, %v5196
      %v5427 = vsel %vm5365, %v5419, %v5198
      %v5428 = vsel %vm5365, %v5420, %v5200
      %v5429 = vsel %vm5365, %v5421, %v5202
      %v5430 = vsel %vm5365, %v5422, %v5204
      %v5431 = vsel %vm5365, %v5423, %v5206
      %v5432 = vsel %vm5365, %v5424, %v5208
      %v5433 = vsel %vm5365, %v5425, %v5210
      %v5434 = vsel %vm5374, %v5426, %v5222
      %v5435 = vsel %vm5374, %v5427, %v5226
      %v5436 = vsel %vm5374, %v5428, %v5230
      %v5437 = vsel %vm5374, %v5429, %v5234
      %v5438 = vsel %vm5374, %v5430, %v5238
      %v5439 = vsel %vm5374, %v5431, %v5242
      %v5440 = vsel %vm5374, %v5432, %v5246
      %v5441 = vsel %vm5374, %v5433, %v5250
      %v5442 = vsel %vm5383, %v5434, %v5260
      %v5443 = vsel %vm5383, %v5435, %v5262
      %v5444 = vsel %vm5383, %v5436, %v5264
      %v5445 = vsel %vm5383, %v5437, %v5266
      %v5446 = vsel %vm5383, %v5438, %v5268
      %v5447 = vsel %vm5383, %v5439, %v5270
      %v5448 = vsel %vm5383, %v5440, %v5272
      %v5449 = vsel %vm5383, %v5441, %v5274
      %v5450 = vsel %vm5392, %v5442, %v5286
      %v5451 = vsel %vm5392, %v5443, %v5290
      %v5452 = vsel %vm5392, %v5444, %v5294
      %v5453 = vsel %vm5392, %v5445, %v5298
      %v5454 = vsel %vm5392, %v5446, %v5302
      %v5455 = vsel %vm5392, %v5447, %v5306
      %v5456 = vsel %vm5392, %v5448, %v5310
      %v5457 = vsel %vm5392, %v5449, %v5314
      %v5458 = vsel %vm5401, %v5450, %v5324
      %v5459 = vsel %vm5401, %v5451, %v5326
      %v5460 = vsel %vm5401, %v5452, %v5328
      %v5461 = vsel %vm5401, %v5453, %v5330
      %v5462 = vsel %vm5401, %v5454, %v5332
      %v5463 = vsel %vm5401, %v5455, %v5334
      %v5464 = vsel %vm5401, %v5456, %v5336
      %v5465 = vsel %vm5401, %v5457, %v5338
      %v5466 = vlaneseq
      %v5467 = vshrl.u32 %v5466, 7
      %v5468 = vsub.s32 0, %v5467
      %v5469 = vrot.slane %v4767, %v5468
      %v5470 = vlaneseq
      %v5471 = vshrl.u32 %v5470, 7
      %v5472 = vsub.s32 0, %v5471
      %v5473 = vrot.slane %v4781, %v5472
      %v5474 = vlaneseq
      %v5475 = vshrl.u32 %v5474, 7
      %v5476 = vsub.s32 0, %v5475
      %v5477 = vrot.slane %v4789, %v5476
      %v5478 = vlaneseq
      %v5479 = vshrl.u32 %v5478, 7
      %v5480 = vsub.s32 0, %v5479
      %v5481 = vrot.slane %v4791, %v5480
      %v5482 = vlaneseq
      %v5483 = vshrl.u32 %v5482, 7
      %v5484 = vsub.s32 0, %v5483
      %v5485 = vrot.slane %v4774, %v5484
      %v5486 = vlaneseq
      %v5487 = vshrl.u32 %v5486, 7
      %v5488 = vsub.s32 0, %v5487
      %v5489 = vrot.slane %v4788, %v5488
      %v5490 = vlaneseq
      %v5491 = vshrl.u32 %v5490, 7
      %v5492 = vsub.s32 0, %v5491
      %v5493 = vrot.slane %v4790, %v5492
      %v5494 = vlaneseq
      %v5495 = vshrl.u32 %v5494, 7
      %v5496 = vsub.s32 0, %v5495
      %v5497 = vrot.slane %v4792, %v5496
      %5498 = vrot.lane.b32.xlu0 %v5469, 64
      %v5499 = vpop.permute.xlu0 %5498
      %5500 = vrot.lane.b32.xlu0 %v5473, 64
      %v5501 = vpop.permute.xlu0 %5500
      %5502 = vrot.lane.b32.xlu0 %v5477, 64
      %v5503 = vpop.permute.xlu0 %5502
      %5504 = vrot.lane.b32.xlu0 %v5481, 64
      %v5505 = vpop.permute.xlu0 %5504
      %5506 = vrot.lane.b32.xlu0 %v5485, 64
      %v5507 = vpop.permute.xlu0 %5506
      %5508 = vrot.lane.b32.xlu0 %v5489, 64
      %v5509 = vpop.permute.xlu0 %5508
      %5510 = vrot.lane.b32.xlu0 %v5493, 64
      %v5511 = vpop.permute.xlu0 %5510
      %5512 = vrot.lane.b32.xlu0 %v5497, 64
      %v5513 = vpop.permute.xlu0 %5512
      %v5522 = vlaneseq
      %v5523 = vshrl.u32 %v5522, 7
      %v5524 = vsub.s32 0, %v5523
      %v5525 = vrot.slane %v4825, %v5524
      %v5526 = vlaneseq
      %v5527 = vshrl.u32 %v5526, 7
      %v5528 = vsub.s32 0, %v5527
      %v5529 = vrot.slane %v4839, %v5528
      %v5530 = vlaneseq
      %v5531 = vshrl.u32 %v5530, 7
      %v5532 = vsub.s32 0, %v5531
      %v5533 = vrot.slane %v4847, %v5532
      %v5534 = vlaneseq
      %v5535 = vshrl.u32 %v5534, 7
      %v5536 = vsub.s32 0, %v5535
      %v5537 = vrot.slane %v4849, %v5536
      %v5538 = vlaneseq
      %v5539 = vshrl.u32 %v5538, 7
      %v5540 = vsub.s32 0, %v5539
      %v5541 = vrot.slane %v4832, %v5540
      %v5542 = vlaneseq
      %v5543 = vshrl.u32 %v5542, 7
      %v5544 = vsub.s32 0, %v5543
      %v5545 = vrot.slane %v4846, %v5544
      %v5546 = vlaneseq
      %v5547 = vshrl.u32 %v5546, 7
      %v5548 = vsub.s32 0, %v5547
      %v5549 = vrot.slane %v4848, %v5548
      %v5550 = vlaneseq
      %v5551 = vshrl.u32 %v5550, 7
      %v5552 = vsub.s32 0, %v5551
      %v5553 = vrot.slane %v4850, %v5552
      %v5562 = vsel %vm5347, %v4767, %v5499
      %v5563 = vsel %vm5347, %v4781, %v5501
      %v5564 = vsel %vm5347, %v4789, %v5503
      %v5565 = vsel %vm5347, %v4791, %v5505
      %v5566 = vsel %vm5347, %v4774, %v5507
      %v5567 = vsel %vm5347, %v4788, %v5509
      %v5568 = vsel %vm5347, %v4790, %v5511
      %v5569 = vsel %vm5347, %v4792, %v5513
      %v5570 = vsel %vm5356, %v5562, %v5525
      %v5571 = vsel %vm5356, %v5563, %v5529
      %v5572 = vsel %vm5356, %v5564, %v5533
      %v5573 = vsel %vm5356, %v5565, %v5537
      %v5574 = vsel %vm5356, %v5566, %v5541
      %v5575 = vsel %vm5356, %v5567, %v5545
      %v5576 = vsel %vm5356, %v5568, %v5549
      %v5577 = vsel %vm5356, %v5569, %v5553
      %v5602 = vcombine.high %v5402, %v5402
      %v5604 = vunpack.c.l.s4 1966171168
      %v5605 = vunpack.c.0.s8 %v5604
      %v5606 = vlaneseq
      %v5607 = vshrl.u32 %v5606, 7
      %v5608 = vsub.s32 %v5605, %v5607
      %v5609 = vrot.slane %v5402, %v5608
      %v5611 = vunpack.c.l.s4 1966171168
      %v5612 = vunpack.c.0.s8 %v5611
      %v5613 = vlaneseq
      %v5614 = vshrl.u32 %v5613, 7
      %v5615 = vsub.s32 %v5612, %v5614
      %v5616 = vrot.slane %v5602, %v5615
      %v5617 = vcombine.high %v5609, %v5609
      %v5618 = vcombine.high %v5616, %v5616
      %v5620 = vunpack.c.l.s4 1966171168
      %v5621 = vunpack.c.0.s8 %v5620
      %v5622 = vlaneseq
      %v5623 = vshrl.u32 %v5622, 7
      %v5624 = vsub.s32 %v5621, %v5623
      %v5625 = vrot.slane %v5609, %v5624
      %v5627 = vunpack.c.l.s4 1966171168
      %v5628 = vunpack.c.0.s8 %v5627
      %v5629 = vlaneseq
      %v5630 = vshrl.u32 %v5629, 7
      %v5631 = vsub.s32 %v5628, %v5630
      %v5632 = vrot.slane %v5616, %v5631
      %v5634 = vunpack.c.l.s4 1966171168
      %v5635 = vunpack.c.0.s8 %v5634
      %v5636 = vlaneseq
      %v5637 = vshrl.u32 %v5636, 7
      %v5638 = vsub.s32 %v5635, %v5637
      %v5639 = vrot.slane %v5617, %v5638
      %v5641 = vunpack.c.l.s4 1966171168
      %v5642 = vunpack.c.0.s8 %v5641
      %v5643 = vlaneseq
      %v5644 = vshrl.u32 %v5643, 7
      %v5645 = vsub.s32 %v5642, %v5644
      %v5646 = vrot.slane %v5618, %v5645
      %v5647 = vcombine.high %v5625, %v5625
      %v5648 = vcombine.high %v5632, %v5632
      %v5649 = vcombine.high %v5639, %v5639
      %v5650 = vcombine.high %v5646, %v5646
      %v5651 = vcombine.high %v5458, %v5458
      %v5653 = vunpack.c.l.s4 1966171168
      %v5654 = vunpack.c.0.s8 %v5653
      %v5655 = vlaneseq
      %v5656 = vshrl.u32 %v5655, 7
      %v5657 = vsub.s32 %v5654, %v5656
      %v5658 = vrot.slane %v5458, %v5657
      %v5660 = vunpack.c.l.s4 1966171168
      %v5661 = vunpack.c.0.s8 %v5660
      %v5662 = vlaneseq
      %v5663 = vshrl.u32 %v5662, 7
      %v5664 = vsub.s32 %v5661, %v5663
      %v5665 = vrot.slane %v5651, %v5664
      %v5666 = vcombine.high %v5658, %v5658
      %v5667 = vcombine.high %v5665, %v5665
      %v5669 = vunpack.c.l.s4 1966171168
      %v5670 = vunpack.c.0.s8 %v5669
      %v5671 = vlaneseq
      %v5672 = vshrl.u32 %v5671, 7
      %v5673 = vsub.s32 %v5670, %v5672
      %v5674 = vrot.slane %v5658, %v5673
      %v5676 = vunpack.c.l.s4 1966171168
      %v5677 = vunpack.c.0.s8 %v5676
      %v5678 = vlaneseq
      %v5679 = vshrl.u32 %v5678, 7
      %v5680 = vsub.s32 %v5677, %v5679
      %v5681 = vrot.slane %v5665, %v5680
      %v5683 = vunpack.c.l.s4 1966171168
      %v5684 = vunpack.c.0.s8 %v5683
      %v5685 = vlaneseq
      %v5686 = vshrl.u32 %v5685, 7
      %v5687 = vsub.s32 %v5684, %v5686
      %v5688 = vrot.slane %v5666, %v5687
      %v5690 = vunpack.c.l.s4 1966171168
      %v5691 = vunpack.c.0.s8 %v5690
      %v5692 = vlaneseq
      %v5693 = vshrl.u32 %v5692, 7
      %v5694 = vsub.s32 %v5691, %v5693
      %v5695 = vrot.slane %v5667, %v5694
      %v5696 = vcombine.high %v5674, %v5674
      %v5697 = vcombine.high %v5681, %v5681
      %v5698 = vcombine.high %v5688, %v5688
      %v5699 = vcombine.high %v5695, %v5695
      %v5701 = vunpack.c.l.s4 1966171168
      %v5702 = vunpack.c.0.s8 %v5701
      %v5703 = vlaneseq
      %v5704 = vshrl.u32 %v5703, 7
      %v5705 = vsub.s32 %v5702, %v5704
      %v5706 = vrot.slane %v5570, %v5705
      %v5708 = vunpack.c.l.s4 1966171168
      %v5709 = vunpack.c.0.s8 %v5708
      %v5710 = vlaneseq
      %v5711 = vshrl.u32 %v5710, 7
      %v5712 = vsub.s32 %v5709, %v5711
      %v5713 = vrot.slane %v5706, %v5712
      %v5714 = vcombine.high %v5403, %v5403
      %v5716 = vunpack.c.l.s4 1966171168
      %v5717 = vunpack.c.0.s8 %v5716
      %v5718 = vlaneseq
      %v5719 = vshrl.u32 %v5718, 7
      %v5720 = vsub.s32 %v5717, %v5719
      %v5721 = vrot.slane %v5403, %v5720
      %v5723 = vunpack.c.l.s4 1966171168
      %v5724 = vunpack.c.0.s8 %v5723
      %v5725 = vlaneseq
      %v5726 = vshrl.u32 %v5725, 7
      %v5727 = vsub.s32 %v5724, %v5726
      %v5728 = vrot.slane %v5714, %v5727
      %v5729 = vcombine.high %v5721, %v5721
      %v5730 = vcombine.high %v5728, %v5728
      %v5732 = vunpack.c.l.s4 1966171168
      %v5733 = vunpack.c.0.s8 %v5732
      %v5734 = vlaneseq
      %v5735 = vshrl.u32 %v5734, 7
      %v5736 = vsub.s32 %v5733, %v5735
      %v5737 = vrot.slane %v5721, %v5736
      %v5739 = vunpack.c.l.s4 1966171168
      %v5740 = vunpack.c.0.s8 %v5739
      %v5741 = vlaneseq
      %v5742 = vshrl.u32 %v5741, 7
      %v5743 = vsub.s32 %v5740, %v5742
      %v5744 = vrot.slane %v5728, %v5743
      %v5746 = vunpack.c.l.s4 1966171168
      %v5747 = vunpack.c.0.s8 %v5746
      %v5748 = vlaneseq
      %v5749 = vshrl.u32 %v5748, 7
      %v5750 = vsub.s32 %v5747, %v5749
      %v5751 = vrot.slane %v5729, %v5750
      %v5753 = vunpack.c.l.s4 1966171168
      %v5754 = vunpack.c.0.s8 %v5753
      %v5755 = vlaneseq
      %v5756 = vshrl.u32 %v5755, 7
      %v5757 = vsub.s32 %v5754, %v5756
      %v5758 = vrot.slane %v5730, %v5757
      %v5759 = vcombine.high %v5737, %v5737
      %v5760 = vcombine.high %v5744, %v5744
      %v5761 = vcombine.high %v5751, %v5751
      %v5762 = vcombine.high %v5758, %v5758
      %v5763 = vcombine.high %v5459, %v5459
      %v5765 = vunpack.c.l.s4 1966171168
      %v5766 = vunpack.c.0.s8 %v5765
      %v5767 = vlaneseq
      %v5768 = vshrl.u32 %v5767, 7
      %v5769 = vsub.s32 %v5766, %v5768
      %v5770 = vrot.slane %v5459, %v5769
      %v5772 = vunpack.c.l.s4 1966171168
      %v5773 = vunpack.c.0.s8 %v5772
      %v5774 = vlaneseq
      %v5775 = vshrl.u32 %v5774, 7
      %v5776 = vsub.s32 %v5773, %v5775
      %v5777 = vrot.slane %v5763, %v5776
      %v5778 = vcombine.high %v5770, %v5770
      %v5779 = vcombine.high %v5777, %v5777
      %v5781 = vunpack.c.l.s4 1966171168
      %v5782 = vunpack.c.0.s8 %v5781
      %v5783 = vlaneseq
      %v5784 = vshrl.u32 %v5783, 7
      %v5785 = vsub.s32 %v5782, %v5784
      %v5786 = vrot.slane %v5770, %v5785
      %v5788 = vunpack.c.l.s4 1966171168
      %v5789 = vunpack.c.0.s8 %v5788
      %v5790 = vlaneseq
      %v5791 = vshrl.u32 %v5790, 7
      %v5792 = vsub.s32 %v5789, %v5791
      %v5793 = vrot.slane %v5777, %v5792
      %v5795 = vunpack.c.l.s4 1966171168
      %v5796 = vunpack.c.0.s8 %v5795
      %v5797 = vlaneseq
      %v5798 = vshrl.u32 %v5797, 7
      %v5799 = vsub.s32 %v5796, %v5798
      %v5800 = vrot.slane %v5778, %v5799
      %v5802 = vunpack.c.l.s4 1966171168
      %v5803 = vunpack.c.0.s8 %v5802
      %v5804 = vlaneseq
      %v5805 = vshrl.u32 %v5804, 7
      %v5806 = vsub.s32 %v5803, %v5805
      %v5807 = vrot.slane %v5779, %v5806
      %v5808 = vcombine.high %v5786, %v5786
      %v5809 = vcombine.high %v5793, %v5793
      %v5810 = vcombine.high %v5800, %v5800
      %v5811 = vcombine.high %v5807, %v5807
      %v5813 = vunpack.c.l.s4 1966171168
      %v5814 = vunpack.c.0.s8 %v5813
      %v5815 = vlaneseq
      %v5816 = vshrl.u32 %v5815, 7
      %v5817 = vsub.s32 %v5814, %v5816
      %v5818 = vrot.slane %v5571, %v5817
      %v5820 = vunpack.c.l.s4 1966171168
      %v5821 = vunpack.c.0.s8 %v5820
      %v5822 = vlaneseq
      %v5823 = vshrl.u32 %v5822, 7
      %v5824 = vsub.s32 %v5821, %v5823
      %v5825 = vrot.slane %v5818, %v5824
      %v5826 = vcombine.high %v5404, %v5404
      %v5828 = vunpack.c.l.s4 1966171168
      %v5829 = vunpack.c.0.s8 %v5828
      %v5830 = vlaneseq
      %v5831 = vshrl.u32 %v5830, 7
      %v5832 = vsub.s32 %v5829, %v5831
      %v5833 = vrot.slane %v5404, %v5832
      %v5835 = vunpack.c.l.s4 1966171168
      %v5836 = vunpack.c.0.s8 %v5835
      %v5837 = vlaneseq
      %v5838 = vshrl.u32 %v5837, 7
      %v5839 = vsub.s32 %v5836, %v5838
      %v5840 = vrot.slane %v5826, %v5839
      %v5841 = vcombine.high %v5833, %v5833
      %v5842 = vcombine.high %v5840, %v5840
      %v5844 = vunpack.c.l.s4 1966171168
      %v5845 = vunpack.c.0.s8 %v5844
      %v5846 = vlaneseq
      %v5847 = vshrl.u32 %v5846, 7
      %v5848 = vsub.s32 %v5845, %v5847
      %v5849 = vrot.slane %v5833, %v5848
      %v5851 = vunpack.c.l.s4 1966171168
      %v5852 = vunpack.c.0.s8 %v5851
      %v5853 = vlaneseq
      %v5854 = vshrl.u32 %v5853, 7
      %v5855 = vsub.s32 %v5852, %v5854
      %v5856 = vrot.slane %v5840, %v5855
      %v5858 = vunpack.c.l.s4 1966171168
      %v5859 = vunpack.c.0.s8 %v5858
      %v5860 = vlaneseq
      %v5861 = vshrl.u32 %v5860, 7
      %v5862 = vsub.s32 %v5859, %v5861
      %v5863 = vrot.slane %v5841, %v5862
      %v5865 = vunpack.c.l.s4 1966171168
      %v5866 = vunpack.c.0.s8 %v5865
      %v5867 = vlaneseq
      %v5868 = vshrl.u32 %v5867, 7
      %v5869 = vsub.s32 %v5866, %v5868
      %v5870 = vrot.slane %v5842, %v5869
      %v5871 = vcombine.high %v5849, %v5849
      %v5872 = vcombine.high %v5856, %v5856
      %v5873 = vcombine.high %v5863, %v5863
      %v5874 = vcombine.high %v5870, %v5870
      %v5875 = vcombine.high %v5460, %v5460
      %v5877 = vunpack.c.l.s4 1966171168
      %v5878 = vunpack.c.0.s8 %v5877
      %v5879 = vlaneseq
      %v5880 = vshrl.u32 %v5879, 7
      %v5881 = vsub.s32 %v5878, %v5880
      %v5882 = vrot.slane %v5460, %v5881
      %v5884 = vunpack.c.l.s4 1966171168
      %v5885 = vunpack.c.0.s8 %v5884
      %v5886 = vlaneseq
      %v5887 = vshrl.u32 %v5886, 7
      %v5888 = vsub.s32 %v5885, %v5887
      %v5889 = vrot.slane %v5875, %v5888
      %v5890 = vcombine.high %v5882, %v5882
      %v5891 = vcombine.high %v5889, %v5889
      %v5893 = vunpack.c.l.s4 1966171168
      %v5894 = vunpack.c.0.s8 %v5893
      %v5895 = vlaneseq
      %v5896 = vshrl.u32 %v5895, 7
      %v5897 = vsub.s32 %v5894, %v5896
      %v5898 = vrot.slane %v5882, %v5897
      %v5900 = vunpack.c.l.s4 1966171168
      %v5901 = vunpack.c.0.s8 %v5900
      %v5902 = vlaneseq
      %v5903 = vshrl.u32 %v5902, 7
      %v5904 = vsub.s32 %v5901, %v5903
      %v5905 = vrot.slane %v5889, %v5904
      %v5907 = vunpack.c.l.s4 1966171168
      %v5908 = vunpack.c.0.s8 %v5907
      %v5909 = vlaneseq
      %v5910 = vshrl.u32 %v5909, 7
      %v5911 = vsub.s32 %v5908, %v5910
      %v5912 = vrot.slane %v5890, %v5911
      %v5914 = vunpack.c.l.s4 1966171168
      %v5915 = vunpack.c.0.s8 %v5914
      %v5916 = vlaneseq
      %v5917 = vshrl.u32 %v5916, 7
      %v5918 = vsub.s32 %v5915, %v5917
      %v5919 = vrot.slane %v5891, %v5918
      %v5920 = vcombine.high %v5898, %v5898
      %v5921 = vcombine.high %v5905, %v5905
      %v5922 = vcombine.high %v5912, %v5912
      %v5923 = vcombine.high %v5919, %v5919
      %v5925 = vunpack.c.l.s4 1966171168
      %v5926 = vunpack.c.0.s8 %v5925
      %v5927 = vlaneseq
      %v5928 = vshrl.u32 %v5927, 7
      %v5929 = vsub.s32 %v5926, %v5928
      %v5930 = vrot.slane %v5572, %v5929
      %v5932 = vunpack.c.l.s4 1966171168
      %v5933 = vunpack.c.0.s8 %v5932
      %v5934 = vlaneseq
      %v5935 = vshrl.u32 %v5934, 7
      %v5936 = vsub.s32 %v5933, %v5935
      %v5937 = vrot.slane %v5930, %v5936
      %v5938 = vcombine.high %v5405, %v5405
      %v5940 = vunpack.c.l.s4 1966171168
      %v5941 = vunpack.c.0.s8 %v5940
      %v5942 = vlaneseq
      %v5943 = vshrl.u32 %v5942, 7
      %v5944 = vsub.s32 %v5941, %v5943
      %v5945 = vrot.slane %v5405, %v5944
      %v5947 = vunpack.c.l.s4 1966171168
      %v5948 = vunpack.c.0.s8 %v5947
      %v5949 = vlaneseq
      %v5950 = vshrl.u32 %v5949, 7
      %v5951 = vsub.s32 %v5948, %v5950
      %v5952 = vrot.slane %v5938, %v5951
      %v5953 = vcombine.high %v5945, %v5945
      %v5954 = vcombine.high %v5952, %v5952
      %v5956 = vunpack.c.l.s4 1966171168
      %v5957 = vunpack.c.0.s8 %v5956
      %v5958 = vlaneseq
      %v5959 = vshrl.u32 %v5958, 7
      %v5960 = vsub.s32 %v5957, %v5959
      %v5961 = vrot.slane %v5945, %v5960
      %v5963 = vunpack.c.l.s4 1966171168
      %v5964 = vunpack.c.0.s8 %v5963
      %v5965 = vlaneseq
      %v5966 = vshrl.u32 %v5965, 7
      %v5967 = vsub.s32 %v5964, %v5966
      %v5968 = vrot.slane %v5952, %v5967
      %v5970 = vunpack.c.l.s4 1966171168
      %v5971 = vunpack.c.0.s8 %v5970
      %v5972 = vlaneseq
      %v5973 = vshrl.u32 %v5972, 7
      %v5974 = vsub.s32 %v5971, %v5973
      %v5975 = vrot.slane %v5953, %v5974
      %v5977 = vunpack.c.l.s4 1966171168
      %v5978 = vunpack.c.0.s8 %v5977
      %v5979 = vlaneseq
      %v5980 = vshrl.u32 %v5979, 7
      %v5981 = vsub.s32 %v5978, %v5980
      %v5982 = vrot.slane %v5954, %v5981
      %v5983 = vcombine.high %v5961, %v5961
      %v5984 = vcombine.high %v5968, %v5968
      %v5985 = vcombine.high %v5975, %v5975
      %v5986 = vcombine.high %v5982, %v5982
      %v5987 = vcombine.high %v5461, %v5461
      %v5989 = vunpack.c.l.s4 1966171168
      %v5990 = vunpack.c.0.s8 %v5989
      %v5991 = vlaneseq
      %v5992 = vshrl.u32 %v5991, 7
      %v5993 = vsub.s32 %v5990, %v5992
      %v5994 = vrot.slane %v5461, %v5993
      %v5996 = vunpack.c.l.s4 1966171168
      %v5997 = vunpack.c.0.s8 %v5996
      %v5998 = vlaneseq
      %v5999 = vshrl.u32 %v5998, 7
      %v6000 = vsub.s32 %v5997, %v5999
      %v6001 = vrot.slane %v5987, %v6000
      %v6002 = vcombine.high %v5994, %v5994
      %v6003 = vcombine.high %v6001, %v6001
      %v6005 = vunpack.c.l.s4 1966171168
      %v6006 = vunpack.c.0.s8 %v6005
      %v6007 = vlaneseq
      %v6008 = vshrl.u32 %v6007, 7
      %v6009 = vsub.s32 %v6006, %v6008
      %v6010 = vrot.slane %v5994, %v6009
      %v6012 = vunpack.c.l.s4 1966171168
      %v6013 = vunpack.c.0.s8 %v6012
      %v6014 = vlaneseq
      %v6015 = vshrl.u32 %v6014, 7
      %v6016 = vsub.s32 %v6013, %v6015
      %v6017 = vrot.slane %v6001, %v6016
      %v6019 = vunpack.c.l.s4 1966171168
      %v6020 = vunpack.c.0.s8 %v6019
      %v6021 = vlaneseq
      %v6022 = vshrl.u32 %v6021, 7
      %v6023 = vsub.s32 %v6020, %v6022
      %v6024 = vrot.slane %v6002, %v6023
      %v6026 = vunpack.c.l.s4 1966171168
      %v6027 = vunpack.c.0.s8 %v6026
      %v6028 = vlaneseq
      %v6029 = vshrl.u32 %v6028, 7
      %v6030 = vsub.s32 %v6027, %v6029
      %v6031 = vrot.slane %v6003, %v6030
      %v6032 = vcombine.high %v6010, %v6010
      %v6033 = vcombine.high %v6017, %v6017
      %v6034 = vcombine.high %v6024, %v6024
      %v6035 = vcombine.high %v6031, %v6031
      %v6037 = vunpack.c.l.s4 1966171168
      %v6038 = vunpack.c.0.s8 %v6037
      %v6039 = vlaneseq
      %v6040 = vshrl.u32 %v6039, 7
      %v6041 = vsub.s32 %v6038, %v6040
      %v6042 = vrot.slane %v5573, %v6041
      %v6044 = vunpack.c.l.s4 1966171168
      %v6045 = vunpack.c.0.s8 %v6044
      %v6046 = vlaneseq
      %v6047 = vshrl.u32 %v6046, 7
      %v6048 = vsub.s32 %v6045, %v6047
      %v6049 = vrot.slane %v6042, %v6048
      %v6050 = vcombine.high %v5406, %v5406
      %v6052 = vunpack.c.l.s4 1966171168
      %v6053 = vunpack.c.0.s8 %v6052
      %v6054 = vlaneseq
      %v6055 = vshrl.u32 %v6054, 7
      %v6056 = vsub.s32 %v6053, %v6055
      %v6057 = vrot.slane %v5406, %v6056
      %v6059 = vunpack.c.l.s4 1966171168
      %v6060 = vunpack.c.0.s8 %v6059
      %v6061 = vlaneseq
      %v6062 = vshrl.u32 %v6061, 7
      %v6063 = vsub.s32 %v6060, %v6062
      %v6064 = vrot.slane %v6050, %v6063
      %v6065 = vcombine.high %v6057, %v6057
      %v6066 = vcombine.high %v6064, %v6064
      %v6068 = vunpack.c.l.s4 1966171168
      %v6069 = vunpack.c.0.s8 %v6068
      %v6070 = vlaneseq
      %v6071 = vshrl.u32 %v6070, 7
      %v6072 = vsub.s32 %v6069, %v6071
      %v6073 = vrot.slane %v6057, %v6072
      %v6075 = vunpack.c.l.s4 1966171168
      %v6076 = vunpack.c.0.s8 %v6075
      %v6077 = vlaneseq
      %v6078 = vshrl.u32 %v6077, 7
      %v6079 = vsub.s32 %v6076, %v6078
      %v6080 = vrot.slane %v6064, %v6079
      %v6082 = vunpack.c.l.s4 1966171168
      %v6083 = vunpack.c.0.s8 %v6082
      %v6084 = vlaneseq
      %v6085 = vshrl.u32 %v6084, 7
      %v6086 = vsub.s32 %v6083, %v6085
      %v6087 = vrot.slane %v6065, %v6086
      %v6089 = vunpack.c.l.s4 1966171168
      %v6090 = vunpack.c.0.s8 %v6089
      %v6091 = vlaneseq
      %v6092 = vshrl.u32 %v6091, 7
      %v6093 = vsub.s32 %v6090, %v6092
      %v6094 = vrot.slane %v6066, %v6093
      %v6095 = vcombine.high %v6073, %v6073
      %v6096 = vcombine.high %v6080, %v6080
      %v6097 = vcombine.high %v6087, %v6087
      %v6098 = vcombine.high %v6094, %v6094
      %v6099 = vcombine.high %v5462, %v5462
      %v6101 = vunpack.c.l.s4 1966171168
      %v6102 = vunpack.c.0.s8 %v6101
      %v6103 = vlaneseq
      %v6104 = vshrl.u32 %v6103, 7
      %v6105 = vsub.s32 %v6102, %v6104
      %v6106 = vrot.slane %v5462, %v6105
      %v6108 = vunpack.c.l.s4 1966171168
      %v6109 = vunpack.c.0.s8 %v6108
      %v6110 = vlaneseq
      %v6111 = vshrl.u32 %v6110, 7
      %v6112 = vsub.s32 %v6109, %v6111
      %v6113 = vrot.slane %v6099, %v6112
      %v6114 = vcombine.high %v6106, %v6106
      %v6115 = vcombine.high %v6113, %v6113
      %v6117 = vunpack.c.l.s4 1966171168
      %v6118 = vunpack.c.0.s8 %v6117
      %v6119 = vlaneseq
      %v6120 = vshrl.u32 %v6119, 7
      %v6121 = vsub.s32 %v6118, %v6120
      %v6122 = vrot.slane %v6106, %v6121
      %v6124 = vunpack.c.l.s4 1966171168
      %v6125 = vunpack.c.0.s8 %v6124
      %v6126 = vlaneseq
      %v6127 = vshrl.u32 %v6126, 7
      %v6128 = vsub.s32 %v6125, %v6127
      %v6129 = vrot.slane %v6113, %v6128
      %v6131 = vunpack.c.l.s4 1966171168
      %v6132 = vunpack.c.0.s8 %v6131
      %v6133 = vlaneseq
      %v6134 = vshrl.u32 %v6133, 7
      %v6135 = vsub.s32 %v6132, %v6134
      %v6136 = vrot.slane %v6114, %v6135
      %v6138 = vunpack.c.l.s4 1966171168
      %v6139 = vunpack.c.0.s8 %v6138
      %v6140 = vlaneseq
      %v6141 = vshrl.u32 %v6140, 7
      %v6142 = vsub.s32 %v6139, %v6141
      %v6143 = vrot.slane %v6115, %v6142
      %v6144 = vcombine.high %v6122, %v6122
      %v6145 = vcombine.high %v6129, %v6129
      %v6146 = vcombine.high %v6136, %v6136
      %v6147 = vcombine.high %v6143, %v6143
      %v6149 = vunpack.c.l.s4 1966171168
      %v6150 = vunpack.c.0.s8 %v6149
      %v6151 = vlaneseq
      %v6152 = vshrl.u32 %v6151, 7
      %v6153 = vsub.s32 %v6150, %v6152
      %v6154 = vrot.slane %v5574, %v6153
      %v6156 = vunpack.c.l.s4 1966171168
      %v6157 = vunpack.c.0.s8 %v6156
      %v6158 = vlaneseq
      %v6159 = vshrl.u32 %v6158, 7
      %v6160 = vsub.s32 %v6157, %v6159
      %v6161 = vrot.slane %v6154, %v6160
      %v6162 = vcombine.high %v5407, %v5407
      %v6164 = vunpack.c.l.s4 1966171168
      %v6165 = vunpack.c.0.s8 %v6164
      %v6166 = vlaneseq
      %v6167 = vshrl.u32 %v6166, 7
      %v6168 = vsub.s32 %v6165, %v6167
      %v6169 = vrot.slane %v5407, %v6168
      %v6171 = vunpack.c.l.s4 1966171168
      %v6172 = vunpack.c.0.s8 %v6171
      %v6173 = vlaneseq
      %v6174 = vshrl.u32 %v6173, 7
      %v6175 = vsub.s32 %v6172, %v6174
      %v6176 = vrot.slane %v6162, %v6175
      %v6177 = vcombine.high %v6169, %v6169
      %v6178 = vcombine.high %v6176, %v6176
      %v6180 = vunpack.c.l.s4 1966171168
      %v6181 = vunpack.c.0.s8 %v6180
      %v6182 = vlaneseq
      %v6183 = vshrl.u32 %v6182, 7
      %v6184 = vsub.s32 %v6181, %v6183
      %v6185 = vrot.slane %v6169, %v6184
      %v6187 = vunpack.c.l.s4 1966171168
      %v6188 = vunpack.c.0.s8 %v6187
      %v6189 = vlaneseq
      %v6190 = vshrl.u32 %v6189, 7
      %v6191 = vsub.s32 %v6188, %v6190
      %v6192 = vrot.slane %v6176, %v6191
      %v6194 = vunpack.c.l.s4 1966171168
      %v6195 = vunpack.c.0.s8 %v6194
      %v6196 = vlaneseq
      %v6197 = vshrl.u32 %v6196, 7
      %v6198 = vsub.s32 %v6195, %v6197
      %v6199 = vrot.slane %v6177, %v6198
      %v6201 = vunpack.c.l.s4 1966171168
      %v6202 = vunpack.c.0.s8 %v6201
      %v6203 = vlaneseq
      %v6204 = vshrl.u32 %v6203, 7
      %v6205 = vsub.s32 %v6202, %v6204
      %v6206 = vrot.slane %v6178, %v6205
      %v6207 = vcombine.high %v6185, %v6185
      %v6208 = vcombine.high %v6192, %v6192
      %v6209 = vcombine.high %v6199, %v6199
      %v6210 = vcombine.high %v6206, %v6206
      %v6211 = vcombine.high %v5463, %v5463
      %v6213 = vunpack.c.l.s4 1966171168
      %v6214 = vunpack.c.0.s8 %v6213
      %v6215 = vlaneseq
      %v6216 = vshrl.u32 %v6215, 7
      %v6217 = vsub.s32 %v6214, %v6216
      %v6218 = vrot.slane %v5463, %v6217
      %v6220 = vunpack.c.l.s4 1966171168
      %v6221 = vunpack.c.0.s8 %v6220
      %v6222 = vlaneseq
      %v6223 = vshrl.u32 %v6222, 7
      %v6224 = vsub.s32 %v6221, %v6223
      %v6225 = vrot.slane %v6211, %v6224
      %v6226 = vcombine.high %v6218, %v6218
      %v6227 = vcombine.high %v6225, %v6225
      %v6229 = vunpack.c.l.s4 1966171168
      %v6230 = vunpack.c.0.s8 %v6229
      %v6231 = vlaneseq
      %v6232 = vshrl.u32 %v6231, 7
      %v6233 = vsub.s32 %v6230, %v6232
      %v6234 = vrot.slane %v6218, %v6233
      %v6236 = vunpack.c.l.s4 1966171168
      %v6237 = vunpack.c.0.s8 %v6236
      %v6238 = vlaneseq
      %v6239 = vshrl.u32 %v6238, 7
      %v6240 = vsub.s32 %v6237, %v6239
      %v6241 = vrot.slane %v6225, %v6240
      %v6243 = vunpack.c.l.s4 1966171168
      %v6244 = vunpack.c.0.s8 %v6243
      %v6245 = vlaneseq
      %v6246 = vshrl.u32 %v6245, 7
      %v6247 = vsub.s32 %v6244, %v6246
      %v6248 = vrot.slane %v6226, %v6247
      %v6250 = vunpack.c.l.s4 1966171168
      %v6251 = vunpack.c.0.s8 %v6250
      %v6252 = vlaneseq
      %v6253 = vshrl.u32 %v6252, 7
      %v6254 = vsub.s32 %v6251, %v6253
      %v6255 = vrot.slane %v6227, %v6254
      %v6256 = vcombine.high %v6234, %v6234
      %v6257 = vcombine.high %v6241, %v6241
      %v6258 = vcombine.high %v6248, %v6248
      %v6259 = vcombine.high %v6255, %v6255
      %v6261 = vunpack.c.l.s4 1966171168
      %v6262 = vunpack.c.0.s8 %v6261
      %v6263 = vlaneseq
      %v6264 = vshrl.u32 %v6263, 7
      %v6265 = vsub.s32 %v6262, %v6264
      %v6266 = vrot.slane %v5575, %v6265
      %v6268 = vunpack.c.l.s4 1966171168
      %v6269 = vunpack.c.0.s8 %v6268
      %v6270 = vlaneseq
      %v6271 = vshrl.u32 %v6270, 7
      %v6272 = vsub.s32 %v6269, %v6271
      %v6273 = vrot.slane %v6266, %v6272
      %v6274 = vcombine.high %v5408, %v5408
      %v6276 = vunpack.c.l.s4 1966171168
      %v6277 = vunpack.c.0.s8 %v6276
      %v6278 = vlaneseq
      %v6279 = vshrl.u32 %v6278, 7
      %v6280 = vsub.s32 %v6277, %v6279
      %v6281 = vrot.slane %v5408, %v6280
      %v6283 = vunpack.c.l.s4 1966171168
      %v6284 = vunpack.c.0.s8 %v6283
      %v6285 = vlaneseq
      %v6286 = vshrl.u32 %v6285, 7
      %v6287 = vsub.s32 %v6284, %v6286
      %v6288 = vrot.slane %v6274, %v6287
      %v6289 = vcombine.high %v6281, %v6281
      %v6290 = vcombine.high %v6288, %v6288
      %v6292 = vunpack.c.l.s4 1966171168
      %v6293 = vunpack.c.0.s8 %v6292
      %v6294 = vlaneseq
      %v6295 = vshrl.u32 %v6294, 7
      %v6296 = vsub.s32 %v6293, %v6295
      %v6297 = vrot.slane %v6281, %v6296
      %v6299 = vunpack.c.l.s4 1966171168
      %v6300 = vunpack.c.0.s8 %v6299
      %v6301 = vlaneseq
      %v6302 = vshrl.u32 %v6301, 7
      %v6303 = vsub.s32 %v6300, %v6302
      %v6304 = vrot.slane %v6288, %v6303
      %v6306 = vunpack.c.l.s4 1966171168
      %v6307 = vunpack.c.0.s8 %v6306
      %v6308 = vlaneseq
      %v6309 = vshrl.u32 %v6308, 7
      %v6310 = vsub.s32 %v6307, %v6309
      %v6311 = vrot.slane %v6289, %v6310
      %v6313 = vunpack.c.l.s4 1966171168
      %v6314 = vunpack.c.0.s8 %v6313
      %v6315 = vlaneseq
      %v6316 = vshrl.u32 %v6315, 7
      %v6317 = vsub.s32 %v6314, %v6316
      %v6318 = vrot.slane %v6290, %v6317
      %v6319 = vcombine.high %v6297, %v6297
      %v6320 = vcombine.high %v6304, %v6304
      %v6321 = vcombine.high %v6311, %v6311
      %v6322 = vcombine.high %v6318, %v6318
      %v6323 = vcombine.high %v5464, %v5464
      %v6325 = vunpack.c.l.s4 1966171168
      %v6326 = vunpack.c.0.s8 %v6325
      %v6327 = vlaneseq
      %v6328 = vshrl.u32 %v6327, 7
      %v6329 = vsub.s32 %v6326, %v6328
      %v6330 = vrot.slane %v5464, %v6329
      %v6332 = vunpack.c.l.s4 1966171168
      %v6333 = vunpack.c.0.s8 %v6332
      %v6334 = vlaneseq
      %v6335 = vshrl.u32 %v6334, 7
      %v6336 = vsub.s32 %v6333, %v6335
      %v6337 = vrot.slane %v6323, %v6336
      %v6338 = vcombine.high %v6330, %v6330
      %v6339 = vcombine.high %v6337, %v6337
      %v6341 = vunpack.c.l.s4 1966171168
      %v6342 = vunpack.c.0.s8 %v6341
      %v6343 = vlaneseq
      %v6344 = vshrl.u32 %v6343, 7
      %v6345 = vsub.s32 %v6342, %v6344
      %v6346 = vrot.slane %v6330, %v6345
      %v6348 = vunpack.c.l.s4 1966171168
      %v6349 = vunpack.c.0.s8 %v6348
      %v6350 = vlaneseq
      %v6351 = vshrl.u32 %v6350, 7
      %v6352 = vsub.s32 %v6349, %v6351
      %v6353 = vrot.slane %v6337, %v6352
      %v6355 = vunpack.c.l.s4 1966171168
      %v6356 = vunpack.c.0.s8 %v6355
      %v6357 = vlaneseq
      %v6358 = vshrl.u32 %v6357, 7
      %v6359 = vsub.s32 %v6356, %v6358
      %v6360 = vrot.slane %v6338, %v6359
      %v6362 = vunpack.c.l.s4 1966171168
      %v6363 = vunpack.c.0.s8 %v6362
      %v6364 = vlaneseq
      %v6365 = vshrl.u32 %v6364, 7
      %v6366 = vsub.s32 %v6363, %v6365
      %v6367 = vrot.slane %v6339, %v6366
      %v6368 = vcombine.high %v6346, %v6346
      %v6369 = vcombine.high %v6353, %v6353
      %v6370 = vcombine.high %v6360, %v6360
      %v6371 = vcombine.high %v6367, %v6367
      %v6373 = vunpack.c.l.s4 1966171168
      %v6374 = vunpack.c.0.s8 %v6373
      %v6375 = vlaneseq
      %v6376 = vshrl.u32 %v6375, 7
      %v6377 = vsub.s32 %v6374, %v6376
      %v6378 = vrot.slane %v5576, %v6377
      %v6380 = vunpack.c.l.s4 1966171168
      %v6381 = vunpack.c.0.s8 %v6380
      %v6382 = vlaneseq
      %v6383 = vshrl.u32 %v6382, 7
      %v6384 = vsub.s32 %v6381, %v6383
      %v6385 = vrot.slane %v6378, %v6384
      %v6386 = vcombine.high %v5409, %v5409
      %v6388 = vunpack.c.l.s4 1966171168
      %v6389 = vunpack.c.0.s8 %v6388
      %v6390 = vlaneseq
      %v6391 = vshrl.u32 %v6390, 7
      %v6392 = vsub.s32 %v6389, %v6391
      %v6393 = vrot.slane %v5409, %v6392
      %v6395 = vunpack.c.l.s4 1966171168
      %v6396 = vunpack.c.0.s8 %v6395
      %v6397 = vlaneseq
      %v6398 = vshrl.u32 %v6397, 7
      %v6399 = vsub.s32 %v6396, %v6398
      %v6400 = vrot.slane %v6386, %v6399
      %v6401 = vcombine.high %v6393, %v6393
      %v6402 = vcombine.high %v6400, %v6400
      %v6404 = vunpack.c.l.s4 1966171168
      %v6405 = vunpack.c.0.s8 %v6404
      %v6406 = vlaneseq
      %v6407 = vshrl.u32 %v6406, 7
      %v6408 = vsub.s32 %v6405, %v6407
      %v6409 = vrot.slane %v6393, %v6408
      %v6411 = vunpack.c.l.s4 1966171168
      %v6412 = vunpack.c.0.s8 %v6411
      %v6413 = vlaneseq
      %v6414 = vshrl.u32 %v6413, 7
      %v6415 = vsub.s32 %v6412, %v6414
      %v6416 = vrot.slane %v6400, %v6415
      %v6418 = vunpack.c.l.s4 1966171168
      %v6419 = vunpack.c.0.s8 %v6418
      %v6420 = vlaneseq
      %v6421 = vshrl.u32 %v6420, 7
      %v6422 = vsub.s32 %v6419, %v6421
      %v6423 = vrot.slane %v6401, %v6422
      %v6425 = vunpack.c.l.s4 1966171168
      %v6426 = vunpack.c.0.s8 %v6425
      %v6427 = vlaneseq
      %v6428 = vshrl.u32 %v6427, 7
      %v6429 = vsub.s32 %v6426, %v6428
      %v6430 = vrot.slane %v6402, %v6429
      %v6431 = vcombine.high %v6409, %v6409
      %v6432 = vcombine.high %v6416, %v6416
      %v6433 = vcombine.high %v6423, %v6423
      %v6434 = vcombine.high %v6430, %v6430
      %v6435 = vcombine.high %v5465, %v5465
      %v6437 = vunpack.c.l.s4 1966171168
      %v6438 = vunpack.c.0.s8 %v6437
      %v6439 = vlaneseq
      %v6440 = vshrl.u32 %v6439, 7
      %v6441 = vsub.s32 %v6438, %v6440
      %v6442 = vrot.slane %v5465, %v6441
      %v6444 = vunpack.c.l.s4 1966171168
      %v6445 = vunpack.c.0.s8 %v6444
      %v6446 = vlaneseq
      %v6447 = vshrl.u32 %v6446, 7
      %v6448 = vsub.s32 %v6445, %v6447
      %v6449 = vrot.slane %v6435, %v6448
      %v6450 = vcombine.high %v6442, %v6442
      %v6451 = vcombine.high %v6449, %v6449
      %v6453 = vunpack.c.l.s4 1966171168
      %v6454 = vunpack.c.0.s8 %v6453
      %v6455 = vlaneseq
      %v6456 = vshrl.u32 %v6455, 7
      %v6457 = vsub.s32 %v6454, %v6456
      %v6458 = vrot.slane %v6442, %v6457
      %v6460 = vunpack.c.l.s4 1966171168
      %v6461 = vunpack.c.0.s8 %v6460
      %v6462 = vlaneseq
      %v6463 = vshrl.u32 %v6462, 7
      %v6464 = vsub.s32 %v6461, %v6463
      %v6465 = vrot.slane %v6449, %v6464
      %v6467 = vunpack.c.l.s4 1966171168
      %v6468 = vunpack.c.0.s8 %v6467
      %v6469 = vlaneseq
      %v6470 = vshrl.u32 %v6469, 7
      %v6471 = vsub.s32 %v6468, %v6470
      %v6472 = vrot.slane %v6450, %v6471
      %v6474 = vunpack.c.l.s4 1966171168
      %v6475 = vunpack.c.0.s8 %v6474
      %v6476 = vlaneseq
      %v6477 = vshrl.u32 %v6476, 7
      %v6478 = vsub.s32 %v6475, %v6477
      %v6479 = vrot.slane %v6451, %v6478
      %v6480 = vcombine.high %v6458, %v6458
      %v6481 = vcombine.high %v6465, %v6465
      %v6482 = vcombine.high %v6472, %v6472
      %v6483 = vcombine.high %v6479, %v6479
      %v6485 = vunpack.c.l.s4 1966171168
      %v6486 = vunpack.c.0.s8 %v6485
      %v6487 = vlaneseq
      %v6488 = vshrl.u32 %v6487, 7
      %v6489 = vsub.s32 %v6486, %v6488
      %v6490 = vrot.slane %v5577, %v6489
      %v6492 = vunpack.c.l.s4 1966171168
      %v6493 = vunpack.c.0.s8 %v6492
      %v6494 = vlaneseq
      %v6495 = vshrl.u32 %v6494, 7
      %v6496 = vsub.s32 %v6493, %v6495
      %v6497 = vrot.slane %v6490, %v6496
      %v6498 = vld [vmem:[%s5] sm:$0xf]
      %v6499 = vld [vmem:[%s5 + $0x4] sm:$0xf]
      %v6500 = vld [vmem:[%s5 + $0x8] sm:$0xf]
      %v6501 = vld [vmem:[%s5 + $0xc] sm:$0xf]
      %v6502 = vld [vmem:[%s5 + $0x10] sm:$0xf]
      %v6503 = vld [vmem:[%s5 + $0x14] sm:$0xf]
      %v6504 = vld [vmem:[%s5 + $0x18] sm:$0xf]
      %v6505 = vld [vmem:[%s5 + $0x1c] sm:$0xf]
      %v6506 = vcombine.low %v5625, %v5639
      %v6507 = vcombine.low %v5647, %v5649
      %v6508 = vcombine.low %v5632, %v5646
      %v6509 = vcombine.low %v5648, %v5650
      %v6511 = vunpack.c.l.s4 1966171168
      %v6512 = vunpack.c.0.s8 %v6511
      %v6513 = vlaneseq
      %v6514 = vshrl.u32 %v6513, 7
      %v6515 = vsub.s32 %v6512, %v6514
      %v6516 = vrot.slane %v6506, %v6515
      %v6518 = vunpack.c.l.s4 1966171168
      %v6519 = vunpack.c.0.s8 %v6518
      %v6520 = vlaneseq
      %v6521 = vshrl.u32 %v6520, 7
      %v6522 = vsub.s32 %v6519, %v6521
      %v6523 = vrot.slane %v6507, %v6522
      %v6525 = vunpack.c.l.s4 1966171168
      %v6526 = vunpack.c.0.s8 %v6525
      %v6527 = vlaneseq
      %v6528 = vshrl.u32 %v6527, 7
      %v6529 = vsub.s32 %v6526, %v6528
      %v6530 = vrot.slane %v6508, %v6529
      %v6532 = vunpack.c.l.s4 1966171168
      %v6533 = vunpack.c.0.s8 %v6532
      %v6534 = vlaneseq
      %v6535 = vshrl.u32 %v6534, 7
      %v6536 = vsub.s32 %v6533, %v6535
      %v6537 = vrot.slane %v6509, %v6536
      %v6538 = vcombine.low %v6516, %v6523
      %v6539 = vcombine.low %v6530, %v6537
      %v6541 = vunpack.c.l.s4 1966171168
      %v6542 = vunpack.c.0.s8 %v6541
      %v6543 = vlaneseq
      %v6544 = vshrl.u32 %v6543, 7
      %v6545 = vsub.s32 %v6542, %v6544
      %v6546 = vrot.slane %v6538, %v6545
      %v6548 = vunpack.c.l.s4 1966171168
      %v6549 = vunpack.c.0.s8 %v6548
      %v6550 = vlaneseq
      %v6551 = vshrl.u32 %v6550, 7
      %v6552 = vsub.s32 %v6549, %v6551
      %v6553 = vrot.slane %v6539, %v6552
      %v6554 = vcombine.low %v6546, %v6553
      %v6555 = vcombine.low %v5674, %v5688
      %v6556 = vcombine.low %v5696, %v5698
      %v6557 = vcombine.low %v5681, %v5695
      %v6558 = vcombine.low %v5697, %v5699
      %v6560 = vunpack.c.l.s4 1966171168
      %v6561 = vunpack.c.0.s8 %v6560
      %v6562 = vlaneseq
      %v6563 = vshrl.u32 %v6562, 7
      %v6564 = vsub.s32 %v6561, %v6563
      %v6565 = vrot.slane %v6555, %v6564
      %v6567 = vunpack.c.l.s4 1966171168
      %v6568 = vunpack.c.0.s8 %v6567
      %v6569 = vlaneseq
      %v6570 = vshrl.u32 %v6569, 7
      %v6571 = vsub.s32 %v6568, %v6570
      %v6572 = vrot.slane %v6556, %v6571
      %v6574 = vunpack.c.l.s4 1966171168
      %v6575 = vunpack.c.0.s8 %v6574
      %v6576 = vlaneseq
      %v6577 = vshrl.u32 %v6576, 7
      %v6578 = vsub.s32 %v6575, %v6577
      %v6579 = vrot.slane %v6557, %v6578
      %v6581 = vunpack.c.l.s4 1966171168
      %v6582 = vunpack.c.0.s8 %v6581
      %v6583 = vlaneseq
      %v6584 = vshrl.u32 %v6583, 7
      %v6585 = vsub.s32 %v6582, %v6584
      %v6586 = vrot.slane %v6558, %v6585
      %v6587 = vcombine.low %v6565, %v6572
      %v6588 = vcombine.low %v6579, %v6586
      %v6590 = vunpack.c.l.s4 1966171168
      %v6591 = vunpack.c.0.s8 %v6590
      %v6592 = vlaneseq
      %v6593 = vshrl.u32 %v6592, 7
      %v6594 = vsub.s32 %v6591, %v6593
      %v6595 = vrot.slane %v6587, %v6594
      %v6597 = vunpack.c.l.s4 1966171168
      %v6598 = vunpack.c.0.s8 %v6597
      %v6599 = vlaneseq
      %v6600 = vshrl.u32 %v6599, 7
      %v6601 = vsub.s32 %v6598, %v6600
      %v6602 = vrot.slane %v6588, %v6601
      %v6603 = vcombine.low %v6595, %v6602
      %v6604 = vcombine.low %v5713, %v5737
      %v6605 = vcombine.low %v5751, %v5759
      %v6606 = vcombine.low %v5761, %v5744
      %v6607 = vcombine.low %v5758, %v5760
      %v6609 = vunpack.c.l.s4 1966171168
      %v6610 = vunpack.c.0.s8 %v6609
      %v6611 = vlaneseq
      %v6612 = vshrl.u32 %v6611, 7
      %v6613 = vsub.s32 %v6610, %v6612
      %v6614 = vrot.slane %v6604, %v6613
      %v6616 = vunpack.c.l.s4 1966171168
      %v6617 = vunpack.c.0.s8 %v6616
      %v6618 = vlaneseq
      %v6619 = vshrl.u32 %v6618, 7
      %v6620 = vsub.s32 %v6617, %v6619
      %v6621 = vrot.slane %v6605, %v6620
      %v6623 = vunpack.c.l.s4 1966171168
      %v6624 = vunpack.c.0.s8 %v6623
      %v6625 = vlaneseq
      %v6626 = vshrl.u32 %v6625, 7
      %v6627 = vsub.s32 %v6624, %v6626
      %v6628 = vrot.slane %v6606, %v6627
      %v6630 = vunpack.c.l.s4 1966171168
      %v6631 = vunpack.c.0.s8 %v6630
      %v6632 = vlaneseq
      %v6633 = vshrl.u32 %v6632, 7
      %v6634 = vsub.s32 %v6631, %v6633
      %v6635 = vrot.slane %v6607, %v6634
      %v6636 = vcombine.low %v6614, %v6621
      %v6637 = vcombine.low %v6628, %v6635
      %v6639 = vunpack.c.l.s4 1966171168
      %v6640 = vunpack.c.0.s8 %v6639
      %v6641 = vlaneseq
      %v6642 = vshrl.u32 %v6641, 7
      %v6643 = vsub.s32 %v6640, %v6642
      %v6644 = vrot.slane %v6636, %v6643
      %v6646 = vunpack.c.l.s4 1966171168
      %v6647 = vunpack.c.0.s8 %v6646
      %v6648 = vlaneseq
      %v6649 = vshrl.u32 %v6648, 7
      %v6650 = vsub.s32 %v6647, %v6649
      %v6651 = vrot.slane %v6637, %v6650
      %v6652 = vcombine.low %v6644, %v6651
      %v6653 = vcombine.low %v5762, %v5786
      %v6654 = vcombine.low %v5800, %v5808
      %v6655 = vcombine.low %v5810, %v5793
      %v6656 = vcombine.low %v5807, %v5809
      %v6658 = vunpack.c.l.s4 1966171168
      %v6659 = vunpack.c.0.s8 %v6658
      %v6660 = vlaneseq
      %v6661 = vshrl.u32 %v6660, 7
      %v6662 = vsub.s32 %v6659, %v6661
      %v6663 = vrot.slane %v6653, %v6662
      %v6665 = vunpack.c.l.s4 1966171168
      %v6666 = vunpack.c.0.s8 %v6665
      %v6667 = vlaneseq
      %v6668 = vshrl.u32 %v6667, 7
      %v6669 = vsub.s32 %v6666, %v6668
      %v6670 = vrot.slane %v6654, %v6669
      %v6672 = vunpack.c.l.s4 1966171168
      %v6673 = vunpack.c.0.s8 %v6672
      %v6674 = vlaneseq
      %v6675 = vshrl.u32 %v6674, 7
      %v6676 = vsub.s32 %v6673, %v6675
      %v6677 = vrot.slane %v6655, %v6676
      %v6679 = vunpack.c.l.s4 1966171168
      %v6680 = vunpack.c.0.s8 %v6679
      %v6681 = vlaneseq
      %v6682 = vshrl.u32 %v6681, 7
      %v6683 = vsub.s32 %v6680, %v6682
      %v6684 = vrot.slane %v6656, %v6683
      %v6685 = vcombine.low %v6663, %v6670
      %v6686 = vcombine.low %v6677, %v6684
      %v6688 = vunpack.c.l.s4 1966171168
      %v6689 = vunpack.c.0.s8 %v6688
      %v6690 = vlaneseq
      %v6691 = vshrl.u32 %v6690, 7
      %v6692 = vsub.s32 %v6689, %v6691
      %v6693 = vrot.slane %v6685, %v6692
      %v6695 = vunpack.c.l.s4 1966171168
      %v6696 = vunpack.c.0.s8 %v6695
      %v6697 = vlaneseq
      %v6698 = vshrl.u32 %v6697, 7
      %v6699 = vsub.s32 %v6696, %v6698
      %v6700 = vrot.slane %v6686, %v6699
      %v6701 = vcombine.low %v6693, %v6700
      %v6702 = vcombine.low %v5811, %v5825
      %v6703 = vcombine.low %v5849, %v5863
      %v6704 = vcombine.low %v5871, %v5873
      %v6705 = vcombine.low %v5856, %v5870
      %v6707 = vunpack.c.l.s4 1966171168
      %v6708 = vunpack.c.0.s8 %v6707
      %v6709 = vlaneseq
      %v6710 = vshrl.u32 %v6709, 7
      %v6711 = vsub.s32 %v6708, %v6710
      %v6712 = vrot.slane %v6702, %v6711
      %v6714 = vunpack.c.l.s4 1966171168
      %v6715 = vunpack.c.0.s8 %v6714
      %v6716 = vlaneseq
      %v6717 = vshrl.u32 %v6716, 7
      %v6718 = vsub.s32 %v6715, %v6717
      %v6719 = vrot.slane %v6703, %v6718
      %v6721 = vunpack.c.l.s4 1966171168
      %v6722 = vunpack.c.0.s8 %v6721
      %v6723 = vlaneseq
      %v6724 = vshrl.u32 %v6723, 7
      %v6725 = vsub.s32 %v6722, %v6724
      %v6726 = vrot.slane %v6704, %v6725
      %v6728 = vunpack.c.l.s4 1966171168
      %v6729 = vunpack.c.0.s8 %v6728
      %v6730 = vlaneseq
      %v6731 = vshrl.u32 %v6730, 7
      %v6732 = vsub.s32 %v6729, %v6731
      %v6733 = vrot.slane %v6705, %v6732
      %v6734 = vcombine.low %v6712, %v6719
      %v6735 = vcombine.low %v6726, %v6733
      %v6737 = vunpack.c.l.s4 1966171168
      %v6738 = vunpack.c.0.s8 %v6737
      %v6739 = vlaneseq
      %v6740 = vshrl.u32 %v6739, 7
      %v6741 = vsub.s32 %v6738, %v6740
      %v6742 = vrot.slane %v6734, %v6741
      %v6744 = vunpack.c.l.s4 1966171168
      %v6745 = vunpack.c.0.s8 %v6744
      %v6746 = vlaneseq
      %v6747 = vshrl.u32 %v6746, 7
      %v6748 = vsub.s32 %v6745, %v6747
      %v6749 = vrot.slane %v6735, %v6748
      %v6750 = vcombine.low %v6742, %v6749
      %v6751 = vcombine.low %v5872, %v5874
      %v6752 = vcombine.low %v5898, %v5912
      %v6753 = vcombine.low %v5920, %v5922
      %v6754 = vcombine.low %v5905, %v5919
      %v6756 = vunpack.c.l.s4 1966171168
      %v6757 = vunpack.c.0.s8 %v6756
      %v6758 = vlaneseq
      %v6759 = vshrl.u32 %v6758, 7
      %v6760 = vsub.s32 %v6757, %v6759
      %v6761 = vrot.slane %v6751, %v6760
      %v6763 = vunpack.c.l.s4 1966171168
      %v6764 = vunpack.c.0.s8 %v6763
      %v6765 = vlaneseq
      %v6766 = vshrl.u32 %v6765, 7
      %v6767 = vsub.s32 %v6764, %v6766
      %v6768 = vrot.slane %v6752, %v6767
      %v6770 = vunpack.c.l.s4 1966171168
      %v6771 = vunpack.c.0.s8 %v6770
      %v6772 = vlaneseq
      %v6773 = vshrl.u32 %v6772, 7
      %v6774 = vsub.s32 %v6771, %v6773
      %v6775 = vrot.slane %v6753, %v6774
      %v6777 = vunpack.c.l.s4 1966171168
      %v6778 = vunpack.c.0.s8 %v6777
      %v6779 = vlaneseq
      %v6780 = vshrl.u32 %v6779, 7
      %v6781 = vsub.s32 %v6778, %v6780
      %v6782 = vrot.slane %v6754, %v6781
      %v6783 = vcombine.low %v6761, %v6768
      %v6784 = vcombine.low %v6775, %v6782
      %v6786 = vunpack.c.l.s4 1966171168
      %v6787 = vunpack.c.0.s8 %v6786
      %v6788 = vlaneseq
      %v6789 = vshrl.u32 %v6788, 7
      %v6790 = vsub.s32 %v6787, %v6789
      %v6791 = vrot.slane %v6783, %v6790
      %v6793 = vunpack.c.l.s4 1966171168
      %v6794 = vunpack.c.0.s8 %v6793
      %v6795 = vlaneseq
      %v6796 = vshrl.u32 %v6795, 7
      %v6797 = vsub.s32 %v6794, %v6796
      %v6798 = vrot.slane %v6784, %v6797
      %v6799 = vcombine.low %v6791, %v6798
      %v6800 = vcombine.low %v5921, %v5923
      %v6801 = vcombine.low %v5937, %v5961
      %v6802 = vcombine.low %v5975, %v5983
      %v6803 = vcombine.low %v5985, %v5968
      %v6805 = vunpack.c.l.s4 1966171168
      %v6806 = vunpack.c.0.s8 %v6805
      %v6807 = vlaneseq
      %v6808 = vshrl.u32 %v6807, 7
      %v6809 = vsub.s32 %v6806, %v6808
      %v6810 = vrot.slane %v6800, %v6809
      %v6812 = vunpack.c.l.s4 1966171168
      %v6813 = vunpack.c.0.s8 %v6812
      %v6814 = vlaneseq
      %v6815 = vshrl.u32 %v6814, 7
      %v6816 = vsub.s32 %v6813, %v6815
      %v6817 = vrot.slane %v6801, %v6816
      %v6819 = vunpack.c.l.s4 1966171168
      %v6820 = vunpack.c.0.s8 %v6819
      %v6821 = vlaneseq
      %v6822 = vshrl.u32 %v6821, 7
      %v6823 = vsub.s32 %v6820, %v6822
      %v6824 = vrot.slane %v6802, %v6823
      %v6826 = vunpack.c.l.s4 1966171168
      %v6827 = vunpack.c.0.s8 %v6826
      %v6828 = vlaneseq
      %v6829 = vshrl.u32 %v6828, 7
      %v6830 = vsub.s32 %v6827, %v6829
      %v6831 = vrot.slane %v6803, %v6830
      %v6832 = vcombine.low %v6810, %v6817
      %v6833 = vcombine.low %v6824, %v6831
      %v6835 = vunpack.c.l.s4 1966171168
      %v6836 = vunpack.c.0.s8 %v6835
      %v6837 = vlaneseq
      %v6838 = vshrl.u32 %v6837, 7
      %v6839 = vsub.s32 %v6836, %v6838
      %v6840 = vrot.slane %v6832, %v6839
      %v6842 = vunpack.c.l.s4 1966171168
      %v6843 = vunpack.c.0.s8 %v6842
      %v6844 = vlaneseq
      %v6845 = vshrl.u32 %v6844, 7
      %v6846 = vsub.s32 %v6843, %v6845
      %v6847 = vrot.slane %v6833, %v6846
      %v6848 = vcombine.low %v6840, %v6847
      %v6849 = vcombine.low %v5982, %v5984
      %v6850 = vcombine.low %v5986, %v6010
      %v6851 = vcombine.low %v6024, %v6032
      %v6852 = vcombine.low %v6034, %v6017
      %v6854 = vunpack.c.l.s4 1966171168
      %v6855 = vunpack.c.0.s8 %v6854
      %v6856 = vlaneseq
      %v6857 = vshrl.u32 %v6856, 7
      %v6858 = vsub.s32 %v6855, %v6857
      %v6859 = vrot.slane %v6849, %v6858
      %v6861 = vunpack.c.l.s4 1966171168
      %v6862 = vunpack.c.0.s8 %v6861
      %v6863 = vlaneseq
      %v6864 = vshrl.u32 %v6863, 7
      %v6865 = vsub.s32 %v6862, %v6864
      %v6866 = vrot.slane %v6850, %v6865
      %v6868 = vunpack.c.l.s4 1966171168
      %v6869 = vunpack.c.0.s8 %v6868
      %v6870 = vlaneseq
      %v6871 = vshrl.u32 %v6870, 7
      %v6872 = vsub.s32 %v6869, %v6871
      %v6873 = vrot.slane %v6851, %v6872
      %v6875 = vunpack.c.l.s4 1966171168
      %v6876 = vunpack.c.0.s8 %v6875
      %v6877 = vlaneseq
      %v6878 = vshrl.u32 %v6877, 7
      %v6879 = vsub.s32 %v6876, %v6878
      %v6880 = vrot.slane %v6852, %v6879
      %v6881 = vcombine.low %v6859, %v6866
      %v6882 = vcombine.low %v6873, %v6880
      %v6884 = vunpack.c.l.s4 1966171168
      %v6885 = vunpack.c.0.s8 %v6884
      %v6886 = vlaneseq
      %v6887 = vshrl.u32 %v6886, 7
      %v6888 = vsub.s32 %v6885, %v6887
      %v6889 = vrot.slane %v6881, %v6888
      %v6891 = vunpack.c.l.s4 1966171168
      %v6892 = vunpack.c.0.s8 %v6891
      %v6893 = vlaneseq
      %v6894 = vshrl.u32 %v6893, 7
      %v6895 = vsub.s32 %v6892, %v6894
      %v6896 = vrot.slane %v6882, %v6895
      %v6897 = vcombine.low %v6889, %v6896
      %v6898 = vcombine.low %v6031, %v6033
      %v6899 = vcombine.low %v6035, %v6049
      %v6900 = vcombine.low %v6073, %v6087
      %v6901 = vcombine.low %v6095, %v6097
      %v6903 = vunpack.c.l.s4 1966171168
      %v6904 = vunpack.c.0.s8 %v6903
      %v6905 = vlaneseq
      %v6906 = vshrl.u32 %v6905, 7
      %v6907 = vsub.s32 %v6904, %v6906
      %v6908 = vrot.slane %v6898, %v6907
      %v6910 = vunpack.c.l.s4 1966171168
      %v6911 = vunpack.c.0.s8 %v6910
      %v6912 = vlaneseq
      %v6913 = vshrl.u32 %v6912, 7
      %v6914 = vsub.s32 %v6911, %v6913
      %v6915 = vrot.slane %v6899, %v6914
      %v6917 = vunpack.c.l.s4 1966171168
      %v6918 = vunpack.c.0.s8 %v6917
      %v6919 = vlaneseq
      %v6920 = vshrl.u32 %v6919, 7
      %v6921 = vsub.s32 %v6918, %v6920
      %v6922 = vrot.slane %v6900, %v6921
      %v6924 = vunpack.c.l.s4 1966171168
      %v6925 = vunpack.c.0.s8 %v6924
      %v6926 = vlaneseq
      %v6927 = vshrl.u32 %v6926, 7
      %v6928 = vsub.s32 %v6925, %v6927
      %v6929 = vrot.slane %v6901, %v6928
      %v6930 = vcombine.low %v6908, %v6915
      %v6931 = vcombine.low %v6922, %v6929
      %v6933 = vunpack.c.l.s4 1966171168
      %v6934 = vunpack.c.0.s8 %v6933
      %v6935 = vlaneseq
      %v6936 = vshrl.u32 %v6935, 7
      %v6937 = vsub.s32 %v6934, %v6936
      %v6938 = vrot.slane %v6930, %v6937
      %v6940 = vunpack.c.l.s4 1966171168
      %v6941 = vunpack.c.0.s8 %v6940
      %v6942 = vlaneseq
      %v6943 = vshrl.u32 %v6942, 7
      %v6944 = vsub.s32 %v6941, %v6943
      %v6945 = vrot.slane %v6931, %v6944
      %v6946 = vcombine.low %v6938, %v6945
      %v6947 = vcombine.low %v6080, %v6094
      %v6948 = vcombine.low %v6096, %v6098
      %v6949 = vcombine.low %v6122, %v6136
      %v6950 = vcombine.low %v6144, %v6146
      %v6952 = vunpack.c.l.s4 1966171168
      %v6953 = vunpack.c.0.s8 %v6952
      %v6954 = vlaneseq
      %v6955 = vshrl.u32 %v6954, 7
      %v6956 = vsub.s32 %v6953, %v6955
      %v6957 = vrot.slane %v6947, %v6956
      %v6959 = vunpack.c.l.s4 1966171168
      %v6960 = vunpack.c.0.s8 %v6959
      %v6961 = vlaneseq
      %v6962 = vshrl.u32 %v6961, 7
      %v6963 = vsub.s32 %v6960, %v6962
      %v6964 = vrot.slane %v6948, %v6963
      %v6966 = vunpack.c.l.s4 1966171168
      %v6967 = vunpack.c.0.s8 %v6966
      %v6968 = vlaneseq
      %v6969 = vshrl.u32 %v6968, 7
      %v6970 = vsub.s32 %v6967, %v6969
      %v6971 = vrot.slane %v6949, %v6970
      %v6973 = vunpack.c.l.s4 1966171168
      %v6974 = vunpack.c.0.s8 %v6973
      %v6975 = vlaneseq
      %v6976 = vshrl.u32 %v6975, 7
      %v6977 = vsub.s32 %v6974, %v6976
      %v6978 = vrot.slane %v6950, %v6977
      %v6979 = vcombine.low %v6957, %v6964
      %v6980 = vcombine.low %v6971, %v6978
      %v6982 = vunpack.c.l.s4 1966171168
      %v6983 = vunpack.c.0.s8 %v6982
      %v6984 = vlaneseq
      %v6985 = vshrl.u32 %v6984, 7
      %v6986 = vsub.s32 %v6983, %v6985
      %v6987 = vrot.slane %v6979, %v6986
      %v6989 = vunpack.c.l.s4 1966171168
      %v6990 = vunpack.c.0.s8 %v6989
      %v6991 = vlaneseq
      %v6992 = vshrl.u32 %v6991, 7
      %v6993 = vsub.s32 %v6990, %v6992
      %v6994 = vrot.slane %v6980, %v6993
      %v6995 = vcombine.low %v6987, %v6994
      %v6996 = vcombine.low %v6129, %v6143
      %v6997 = vcombine.low %v6145, %v6147
      %v6998 = vcombine.low %v6161, %v6185
      %v6999 = vcombine.low %v6199, %v6207
      %v7001 = vunpack.c.l.s4 1966171168
      %v7002 = vunpack.c.0.s8 %v7001
      %v7003 = vlaneseq
      %v7004 = vshrl.u32 %v7003, 7
      %v7005 = vsub.s32 %v7002, %v7004
      %v7006 = vrot.slane %v6996, %v7005
      %v7008 = vunpack.c.l.s4 1966171168
      %v7009 = vunpack.c.0.s8 %v7008
      %v7010 = vlaneseq
      %v7011 = vshrl.u32 %v7010, 7
      %v7012 = vsub.s32 %v7009, %v7011
      %v7013 = vrot.slane %v6997, %v7012
      %v7015 = vunpack.c.l.s4 1966171168
      %v7016 = vunpack.c.0.s8 %v7015
      %v7017 = vlaneseq
      %v7018 = vshrl.u32 %v7017, 7
      %v7019 = vsub.s32 %v7016, %v7018
      %v7020 = vrot.slane %v6998, %v7019
      %v7022 = vunpack.c.l.s4 1966171168
      %v7023 = vunpack.c.0.s8 %v7022
      %v7024 = vlaneseq
      %v7025 = vshrl.u32 %v7024, 7
      %v7026 = vsub.s32 %v7023, %v7025
      %v7027 = vrot.slane %v6999, %v7026
      %v7028 = vcombine.low %v7006, %v7013
      %v7029 = vcombine.low %v7020, %v7027
      %v7031 = vunpack.c.l.s4 1966171168
      %v7032 = vunpack.c.0.s8 %v7031
      %v7033 = vlaneseq
      %v7034 = vshrl.u32 %v7033, 7
      %v7035 = vsub.s32 %v7032, %v7034
      %v7036 = vrot.slane %v7028, %v7035
      %v7038 = vunpack.c.l.s4 1966171168
      %v7039 = vunpack.c.0.s8 %v7038
      %v7040 = vlaneseq
      %v7041 = vshrl.u32 %v7040, 7
      %v7042 = vsub.s32 %v7039, %v7041
      %v7043 = vrot.slane %v7029, %v7042
      %v7044 = vcombine.low %v7036, %v7043
      %v7045 = vcombine.low %v6209, %v6192
      %v7046 = vcombine.low %v6206, %v6208
      %v7047 = vcombine.low %v6210, %v6234
      %v7048 = vcombine.low %v6248, %v6256
      %v7050 = vunpack.c.l.s4 1966171168
      %v7051 = vunpack.c.0.s8 %v7050
      %v7052 = vlaneseq
      %v7053 = vshrl.u32 %v7052, 7
      %v7054 = vsub.s32 %v7051, %v7053
      %v7055 = vrot.slane %v7045, %v7054
      %v7057 = vunpack.c.l.s4 1966171168
      %v7058 = vunpack.c.0.s8 %v7057
      %v7059 = vlaneseq
      %v7060 = vshrl.u32 %v7059, 7
      %v7061 = vsub.s32 %v7058, %v7060
      %v7062 = vrot.slane %v7046, %v7061
      %v7064 = vunpack.c.l.s4 1966171168
      %v7065 = vunpack.c.0.s8 %v7064
      %v7066 = vlaneseq
      %v7067 = vshrl.u32 %v7066, 7
      %v7068 = vsub.s32 %v7065, %v7067
      %v7069 = vrot.slane %v7047, %v7068
      %v7071 = vunpack.c.l.s4 1966171168
      %v7072 = vunpack.c.0.s8 %v7071
      %v7073 = vlaneseq
      %v7074 = vshrl.u32 %v7073, 7
      %v7075 = vsub.s32 %v7072, %v7074
      %v7076 = vrot.slane %v7048, %v7075
      %v7077 = vcombine.low %v7055, %v7062
      %v7078 = vcombine.low %v7069, %v7076
      %v7080 = vunpack.c.l.s4 1966171168
      %v7081 = vunpack.c.0.s8 %v7080
      %v7082 = vlaneseq
      %v7083 = vshrl.u32 %v7082, 7
      %v7084 = vsub.s32 %v7081, %v7083
      %v7085 = vrot.slane %v7077, %v7084
      %v7087 = vunpack.c.l.s4 1966171168
      %v7088 = vunpack.c.0.s8 %v7087
      %v7089 = vlaneseq
      %v7090 = vshrl.u32 %v7089, 7
      %v7091 = vsub.s32 %v7088, %v7090
      %v7092 = vrot.slane %v7078, %v7091
      %v7093 = vcombine.low %v7085, %v7092
      %v7094 = vcombine.low %v6258, %v6241
      %v7095 = vcombine.low %v6255, %v6257
      %v7096 = vcombine.low %v6259, %v6273
      %v7097 = vcombine.low %v6297, %v6311
      %v7099 = vunpack.c.l.s4 1966171168
      %v7100 = vunpack.c.0.s8 %v7099
      %v7101 = vlaneseq
      %v7102 = vshrl.u32 %v7101, 7
      %v7103 = vsub.s32 %v7100, %v7102
      %v7104 = vrot.slane %v7094, %v7103
      %v7106 = vunpack.c.l.s4 1966171168
      %v7107 = vunpack.c.0.s8 %v7106
      %v7108 = vlaneseq
      %v7109 = vshrl.u32 %v7108, 7
      %v7110 = vsub.s32 %v7107, %v7109
      %v7111 = vrot.slane %v7095, %v7110
      %v7113 = vunpack.c.l.s4 1966171168
      %v7114 = vunpack.c.0.s8 %v7113
      %v7115 = vlaneseq
      %v7116 = vshrl.u32 %v7115, 7
      %v7117 = vsub.s32 %v7114, %v7116
      %v7118 = vrot.slane %v7096, %v7117
      %v7120 = vunpack.c.l.s4 1966171168
      %v7121 = vunpack.c.0.s8 %v7120
      %v7122 = vlaneseq
      %v7123 = vshrl.u32 %v7122, 7
      %v7124 = vsub.s32 %v7121, %v7123
      %v7125 = vrot.slane %v7097, %v7124
      %v7126 = vcombine.low %v7104, %v7111
      %v7127 = vcombine.low %v7118, %v7125
      %v7129 = vunpack.c.l.s4 1966171168
      %v7130 = vunpack.c.0.s8 %v7129
      %v7131 = vlaneseq
      %v7132 = vshrl.u32 %v7131, 7
      %v7133 = vsub.s32 %v7130, %v7132
      %v7134 = vrot.slane %v7126, %v7133
      %v7136 = vunpack.c.l.s4 1966171168
      %v7137 = vunpack.c.0.s8 %v7136
      %v7138 = vlaneseq
      %v7139 = vshrl.u32 %v7138, 7
      %v7140 = vsub.s32 %v7137, %v7139
      %v7141 = vrot.slane %v7127, %v7140
      %v7142 = vcombine.low %v7134, %v7141
      %v7143 = vcombine.low %v6319, %v6321
      %v7144 = vcombine.low %v6304, %v6318
      %v7145 = vcombine.low %v6320, %v6322
      %v7146 = vcombine.low %v6346, %v6360
      %v7148 = vunpack.c.l.s4 1966171168
      %v7149 = vunpack.c.0.s8 %v7148
      %v7150 = vlaneseq
      %v7151 = vshrl.u32 %v7150, 7
      %v7152 = vsub.s32 %v7149, %v7151
      %v7153 = vrot.slane %v7143, %v7152
      %v7155 = vunpack.c.l.s4 1966171168
      %v7156 = vunpack.c.0.s8 %v7155
      %v7157 = vlaneseq
      %v7158 = vshrl.u32 %v7157, 7
      %v7159 = vsub.s32 %v7156, %v7158
      %v7160 = vrot.slane %v7144, %v7159
      %v7162 = vunpack.c.l.s4 1966171168
      %v7163 = vunpack.c.0.s8 %v7162
      %v7164 = vlaneseq
      %v7165 = vshrl.u32 %v7164, 7
      %v7166 = vsub.s32 %v7163, %v7165
      %v7167 = vrot.slane %v7145, %v7166
      %v7169 = vunpack.c.l.s4 1966171168
      %v7170 = vunpack.c.0.s8 %v7169
      %v7171 = vlaneseq
      %v7172 = vshrl.u32 %v7171, 7
      %v7173 = vsub.s32 %v7170, %v7172
      %v7174 = vrot.slane %v7146, %v7173
      %v7175 = vcombine.low %v7153, %v7160
      %v7176 = vcombine.low %v7167, %v7174
      %v7178 = vunpack.c.l.s4 1966171168
      %v7179 = vunpack.c.0.s8 %v7178
      %v7180 = vlaneseq
      %v7181 = vshrl.u32 %v7180, 7
      %v7182 = vsub.s32 %v7179, %v7181
      %v7183 = vrot.slane %v7175, %v7182
      %v7185 = vunpack.c.l.s4 1966171168
      %v7186 = vunpack.c.0.s8 %v7185
      %v7187 = vlaneseq
      %v7188 = vshrl.u32 %v7187, 7
      %v7189 = vsub.s32 %v7186, %v7188
      %v7190 = vrot.slane %v7176, %v7189
      %v7191 = vcombine.low %v7183, %v7190
      %v7192 = vcombine.low %v6368, %v6370
      %v7193 = vcombine.low %v6353, %v6367
      %v7194 = vcombine.low %v6369, %v6371
      %v7195 = vcombine.low %v6385, %v6409
      %v7197 = vunpack.c.l.s4 1966171168
      %v7198 = vunpack.c.0.s8 %v7197
      %v7199 = vlaneseq
      %v7200 = vshrl.u32 %v7199, 7
      %v7201 = vsub.s32 %v7198, %v7200
      %v7202 = vrot.slane %v7192, %v7201
      %v7204 = vunpack.c.l.s4 1966171168
      %v7205 = vunpack.c.0.s8 %v7204
      %v7206 = vlaneseq
      %v7207 = vshrl.u32 %v7206, 7
      %v7208 = vsub.s32 %v7205, %v7207
      %v7209 = vrot.slane %v7193, %v7208
      %v7211 = vunpack.c.l.s4 1966171168
      %v7212 = vunpack.c.0.s8 %v7211
      %v7213 = vlaneseq
      %v7214 = vshrl.u32 %v7213, 7
      %v7215 = vsub.s32 %v7212, %v7214
      %v7216 = vrot.slane %v7194, %v7215
      %v7218 = vunpack.c.l.s4 1966171168
      %v7219 = vunpack.c.0.s8 %v7218
      %v7220 = vlaneseq
      %v7221 = vshrl.u32 %v7220, 7
      %v7222 = vsub.s32 %v7219, %v7221
      %v7223 = vrot.slane %v7195, %v7222
      %v7224 = vcombine.low %v7202, %v7209
      %v7225 = vcombine.low %v7216, %v7223
      %v7227 = vunpack.c.l.s4 1966171168
      %v7228 = vunpack.c.0.s8 %v7227
      %v7229 = vlaneseq
      %v7230 = vshrl.u32 %v7229, 7
      %v7231 = vsub.s32 %v7228, %v7230
      %v7232 = vrot.slane %v7224, %v7231
      %v7234 = vunpack.c.l.s4 1966171168
      %v7235 = vunpack.c.0.s8 %v7234
      %v7236 = vlaneseq
      %v7237 = vshrl.u32 %v7236, 7
      %v7238 = vsub.s32 %v7235, %v7237
      %v7239 = vrot.slane %v7225, %v7238
      %v7240 = vcombine.low %v7232, %v7239
      %v7241 = vcombine.low %v6423, %v6431
      %v7242 = vcombine.low %v6433, %v6416
      %v7243 = vcombine.low %v6430, %v6432
      %v7244 = vcombine.low %v6434, %v6458
      %v7246 = vunpack.c.l.s4 1966171168
      %v7247 = vunpack.c.0.s8 %v7246
      %v7248 = vlaneseq
      %v7249 = vshrl.u32 %v7248, 7
      %v7250 = vsub.s32 %v7247, %v7249
      %v7251 = vrot.slane %v7241, %v7250
      %v7253 = vunpack.c.l.s4 1966171168
      %v7254 = vunpack.c.0.s8 %v7253
      %v7255 = vlaneseq
      %v7256 = vshrl.u32 %v7255, 7
      %v7257 = vsub.s32 %v7254, %v7256
      %v7258 = vrot.slane %v7242, %v7257
      %v7260 = vunpack.c.l.s4 1966171168
      %v7261 = vunpack.c.0.s8 %v7260
      %v7262 = vlaneseq
      %v7263 = vshrl.u32 %v7262, 7
      %v7264 = vsub.s32 %v7261, %v7263
      %v7265 = vrot.slane %v7243, %v7264
      %v7267 = vunpack.c.l.s4 1966171168
      %v7268 = vunpack.c.0.s8 %v7267
      %v7269 = vlaneseq
      %v7270 = vshrl.u32 %v7269, 7
      %v7271 = vsub.s32 %v7268, %v7270
      %v7272 = vrot.slane %v7244, %v7271
      %v7273 = vcombine.low %v7251, %v7258
      %v7274 = vcombine.low %v7265, %v7272
      %v7276 = vunpack.c.l.s4 1966171168
      %v7277 = vunpack.c.0.s8 %v7276
      %v7278 = vlaneseq
      %v7279 = vshrl.u32 %v7278, 7
      %v7280 = vsub.s32 %v7277, %v7279
      %v7281 = vrot.slane %v7273, %v7280
      %v7283 = vunpack.c.l.s4 1966171168
      %v7284 = vunpack.c.0.s8 %v7283
      %v7285 = vlaneseq
      %v7286 = vshrl.u32 %v7285, 7
      %v7287 = vsub.s32 %v7284, %v7286
      %v7288 = vrot.slane %v7274, %v7287
      %v7289 = vcombine.low %v7281, %v7288
      %v7290 = vcombine.low %v6472, %v6480
      %v7291 = vcombine.low %v6482, %v6465
      %v7292 = vcombine.low %v6479, %v6481
      %v7293 = vcombine.low %v6483, %v6497
      %v7295 = vunpack.c.l.s4 1966171168
      %v7296 = vunpack.c.0.s8 %v7295
      %v7297 = vlaneseq
      %v7298 = vshrl.u32 %v7297, 7
      %v7299 = vsub.s32 %v7296, %v7298
      %v7300 = vrot.slane %v7290, %v7299
      %v7302 = vunpack.c.l.s4 1966171168
      %v7303 = vunpack.c.0.s8 %v7302
      %v7304 = vlaneseq
      %v7305 = vshrl.u32 %v7304, 7
      %v7306 = vsub.s32 %v7303, %v7305
      %v7307 = vrot.slane %v7291, %v7306
      %v7309 = vunpack.c.l.s4 1966171168
      %v7310 = vunpack.c.0.s8 %v7309
      %v7311 = vlaneseq
      %v7312 = vshrl.u32 %v7311, 7
      %v7313 = vsub.s32 %v7310, %v7312
      %v7314 = vrot.slane %v7292, %v7313
      %v7316 = vunpack.c.l.s4 1966171168
      %v7317 = vunpack.c.0.s8 %v7316
      %v7318 = vlaneseq
      %v7319 = vshrl.u32 %v7318, 7
      %v7320 = vsub.s32 %v7317, %v7319
      %v7321 = vrot.slane %v7293, %v7320
      %v7322 = vcombine.low %v7300, %v7307
      %v7323 = vcombine.low %v7314, %v7321
      %v7325 = vunpack.c.l.s4 1966171168
      %v7326 = vunpack.c.0.s8 %v7325
      %v7327 = vlaneseq
      %v7328 = vshrl.u32 %v7327, 7
      %v7329 = vsub.s32 %v7326, %v7328
      %v7330 = vrot.slane %v7322, %v7329
      %v7332 = vunpack.c.l.s4 1966171168
      %v7333 = vunpack.c.0.s8 %v7332
      %v7334 = vlaneseq
      %v7335 = vshrl.u32 %v7334, 7
      %v7336 = vsub.s32 %v7333, %v7335
      %v7337 = vrot.slane %v7323, %v7336
      %v7338 = vcombine.low %v7330, %v7337
      %v7356 = vpack.c.bf16 %v6603, %v6554
      %v7357 = vpack.c.bf16 %v6701, %v6652
      %v7358 = vpack.c.bf16 %v6799, %v6750
      %v7359 = vpack.c.bf16 %v6897, %v6848
      %v7360 = vpack.c.bf16 %v6995, %v6946
      %v7361 = vpack.c.bf16 %v7093, %v7044
      %v7362 = vpack.c.bf16 %v7191, %v7142
      %v7363 = vpack.c.bf16 %v7289, %v7240
      %v7364 = vpack.c.bf16 %v7338, %v7338
      %v7365 = vcombine.high %v5706, %v5706
      %v7367 = vunpack.c.l.s4 1966171168
      %v7368 = vunpack.c.0.s8 %v7367
      %v7369 = vlaneseq
      %v7370 = vshrl.u32 %v7369, 7
      %v7371 = vsub.s32 %v7368, %v7370
      %v7372 = vrot.slane %v7365, %v7371
      %v7373 = vcombine.high %v5818, %v5818
      %v7375 = vunpack.c.l.s4 1966171168
      %v7376 = vunpack.c.0.s8 %v7375
      %v7377 = vlaneseq
      %v7378 = vshrl.u32 %v7377, 7
      %v7379 = vsub.s32 %v7376, %v7378
      %v7380 = vrot.slane %v7373, %v7379
      %v7381 = vcombine.high %v5930, %v5930
      %v7383 = vunpack.c.l.s4 1966171168
      %v7384 = vunpack.c.0.s8 %v7383
      %v7385 = vlaneseq
      %v7386 = vshrl.u32 %v7385, 7
      %v7387 = vsub.s32 %v7384, %v7386
      %v7388 = vrot.slane %v7381, %v7387
      %v7389 = vcombine.high %v6042, %v6042
      %v7391 = vunpack.c.l.s4 1966171168
      %v7392 = vunpack.c.0.s8 %v7391
      %v7393 = vlaneseq
      %v7394 = vshrl.u32 %v7393, 7
      %v7395 = vsub.s32 %v7392, %v7394
      %v7396 = vrot.slane %v7389, %v7395
      %v7397 = vcombine.high %v6154, %v6154
      %v7399 = vunpack.c.l.s4 1966171168
      %v7400 = vunpack.c.0.s8 %v7399
      %v7401 = vlaneseq
      %v7402 = vshrl.u32 %v7401, 7
      %v7403 = vsub.s32 %v7400, %v7402
      %v7404 = vrot.slane %v7397, %v7403
      %v7405 = vcombine.high %v6266, %v6266
      %v7407 = vunpack.c.l.s4 1966171168
      %v7408 = vunpack.c.0.s8 %v7407
      %v7409 = vlaneseq
      %v7410 = vshrl.u32 %v7409, 7
      %v7411 = vsub.s32 %v7408, %v7410
      %v7412 = vrot.slane %v7405, %v7411
      %v7413 = vcombine.high %v6378, %v6378
      %v7415 = vunpack.c.l.s4 1966171168
      %v7416 = vunpack.c.0.s8 %v7415
      %v7417 = vlaneseq
      %v7418 = vshrl.u32 %v7417, 7
      %v7419 = vsub.s32 %v7416, %v7418
      %v7420 = vrot.slane %v7413, %v7419
      %v7421 = vcombine.high %v6490, %v6490
      %v7423 = vunpack.c.l.s4 1966171168
      %v7424 = vunpack.c.0.s8 %v7423
      %v7425 = vlaneseq
      %v7426 = vshrl.u32 %v7425, 7
      %v7427 = vsub.s32 %v7424, %v7426
      %v7428 = vrot.slane %v7421, %v7427
      %v7429 = vld [vmem:[%s5 + $0x20] sm:$0xf]
      %v7430 = vld [vmem:[%s5 + $0x24] sm:$0xf]
      %v7431 = vld [vmem:[%s5 + $0x28] sm:$0xf]
      %v7432 = vld [vmem:[%s5 + $0x2c] sm:$0xf]
      %v7433 = vld [vmem:[%s5 + $0x30] sm:$0xf]
      %v7434 = vld [vmem:[%s5 + $0x34] sm:$0xf]
      %v7435 = vld [vmem:[%s5 + $0x38] sm:$0xf]
      %v7436 = vld [vmem:[%s5 + $0x3c] sm:$0xf]
      %v7437 = vcombine.low %v5639, %v5647
      %v7438 = vcombine.low %v5649, %v5632
      %v7439 = vcombine.low %v5646, %v5648
      %v7440 = vcombine.low %v5650, %v5674
      %v7442 = vunpack.c.l.s4 1966171168
      %v7443 = vunpack.c.0.s8 %v7442
      %v7444 = vlaneseq
      %v7445 = vshrl.u32 %v7444, 7
      %v7446 = vsub.s32 %v7443, %v7445
      %v7447 = vrot.slane %v7437, %v7446
      %v7449 = vunpack.c.l.s4 1966171168
      %v7450 = vunpack.c.0.s8 %v7449
      %v7451 = vlaneseq
      %v7452 = vshrl.u32 %v7451, 7
      %v7453 = vsub.s32 %v7450, %v7452
      %v7454 = vrot.slane %v7438, %v7453
      %v7456 = vunpack.c.l.s4 1966171168
      %v7457 = vunpack.c.0.s8 %v7456
      %v7458 = vlaneseq
      %v7459 = vshrl.u32 %v7458, 7
      %v7460 = vsub.s32 %v7457, %v7459
      %v7461 = vrot.slane %v7439, %v7460
      %v7463 = vunpack.c.l.s4 1966171168
      %v7464 = vunpack.c.0.s8 %v7463
      %v7465 = vlaneseq
      %v7466 = vshrl.u32 %v7465, 7
      %v7467 = vsub.s32 %v7464, %v7466
      %v7468 = vrot.slane %v7440, %v7467
      %v7469 = vcombine.low %v7447, %v7454
      %v7470 = vcombine.low %v7461, %v7468
      %v7472 = vunpack.c.l.s4 1966171168
      %v7473 = vunpack.c.0.s8 %v7472
      %v7474 = vlaneseq
      %v7475 = vshrl.u32 %v7474, 7
      %v7476 = vsub.s32 %v7473, %v7475
      %v7477 = vrot.slane %v7469, %v7476
      %v7479 = vunpack.c.l.s4 1966171168
      %v7480 = vunpack.c.0.s8 %v7479
      %v7481 = vlaneseq
      %v7482 = vshrl.u32 %v7481, 7
      %v7483 = vsub.s32 %v7480, %v7482
      %v7484 = vrot.slane %v7470, %v7483
      %v7485 = vcombine.low %v7477, %v7484
      %v7486 = vcombine.low %v5688, %v5696
      %v7487 = vcombine.low %v5698, %v5681
      %v7488 = vcombine.low %v5695, %v5697
      %v7489 = vcombine.low %v5699, %v5713
      %v7491 = vunpack.c.l.s4 1966171168
      %v7492 = vunpack.c.0.s8 %v7491
      %v7493 = vlaneseq
      %v7494 = vshrl.u32 %v7493, 7
      %v7495 = vsub.s32 %v7492, %v7494
      %v7496 = vrot.slane %v7486, %v7495
      %v7498 = vunpack.c.l.s4 1966171168
      %v7499 = vunpack.c.0.s8 %v7498
      %v7500 = vlaneseq
      %v7501 = vshrl.u32 %v7500, 7
      %v7502 = vsub.s32 %v7499, %v7501
      %v7503 = vrot.slane %v7487, %v7502
      %v7505 = vunpack.c.l.s4 1966171168
      %v7506 = vunpack.c.0.s8 %v7505
      %v7507 = vlaneseq
      %v7508 = vshrl.u32 %v7507, 7
      %v7509 = vsub.s32 %v7506, %v7508
      %v7510 = vrot.slane %v7488, %v7509
      %v7512 = vunpack.c.l.s4 1966171168
      %v7513 = vunpack.c.0.s8 %v7512
      %v7514 = vlaneseq
      %v7515 = vshrl.u32 %v7514, 7
      %v7516 = vsub.s32 %v7513, %v7515
      %v7517 = vrot.slane %v7489, %v7516
      %v7518 = vcombine.low %v7496, %v7503
      %v7519 = vcombine.low %v7510, %v7517
      %v7521 = vunpack.c.l.s4 1966171168
      %v7522 = vunpack.c.0.s8 %v7521
      %v7523 = vlaneseq
      %v7524 = vshrl.u32 %v7523, 7
      %v7525 = vsub.s32 %v7522, %v7524
      %v7526 = vrot.slane %v7518, %v7525
      %v7528 = vunpack.c.l.s4 1966171168
      %v7529 = vunpack.c.0.s8 %v7528
      %v7530 = vlaneseq
      %v7531 = vshrl.u32 %v7530, 7
      %v7532 = vsub.s32 %v7529, %v7531
      %v7533 = vrot.slane %v7519, %v7532
      %v7534 = vcombine.low %v7526, %v7533
      %v7535 = vcombine.low %v7372, %v5751
      %v7536 = vcombine.low %v5759, %v5761
      %v7537 = vcombine.low %v5744, %v5758
      %v7538 = vcombine.low %v5760, %v5762
      %v7540 = vunpack.c.l.s4 1966171168
      %v7541 = vunpack.c.0.s8 %v7540
      %v7542 = vlaneseq
      %v7543 = vshrl.u32 %v7542, 7
      %v7544 = vsub.s32 %v7541, %v7543
      %v7545 = vrot.slane %v7535, %v7544
      %v7547 = vunpack.c.l.s4 1966171168
      %v7548 = vunpack.c.0.s8 %v7547
      %v7549 = vlaneseq
      %v7550 = vshrl.u32 %v7549, 7
      %v7551 = vsub.s32 %v7548, %v7550
      %v7552 = vrot.slane %v7536, %v7551
      %v7554 = vunpack.c.l.s4 1966171168
      %v7555 = vunpack.c.0.s8 %v7554
      %v7556 = vlaneseq
      %v7557 = vshrl.u32 %v7556, 7
      %v7558 = vsub.s32 %v7555, %v7557
      %v7559 = vrot.slane %v7537, %v7558
      %v7561 = vunpack.c.l.s4 1966171168
      %v7562 = vunpack.c.0.s8 %v7561
      %v7563 = vlaneseq
      %v7564 = vshrl.u32 %v7563, 7
      %v7565 = vsub.s32 %v7562, %v7564
      %v7566 = vrot.slane %v7538, %v7565
      %v7567 = vcombine.low %v7545, %v7552
      %v7568 = vcombine.low %v7559, %v7566
      %v7570 = vunpack.c.l.s4 1966171168
      %v7571 = vunpack.c.0.s8 %v7570
      %v7572 = vlaneseq
      %v7573 = vshrl.u32 %v7572, 7
      %v7574 = vsub.s32 %v7571, %v7573
      %v7575 = vrot.slane %v7567, %v7574
      %v7577 = vunpack.c.l.s4 1966171168
      %v7578 = vunpack.c.0.s8 %v7577
      %v7579 = vlaneseq
      %v7580 = vshrl.u32 %v7579, 7
      %v7581 = vsub.s32 %v7578, %v7580
      %v7582 = vrot.slane %v7568, %v7581
      %v7583 = vcombine.low %v7575, %v7582
      %v7584 = vcombine.low %v5786, %v5800
      %v7585 = vcombine.low %v5808, %v5810
      %v7586 = vcombine.low %v5793, %v5807
      %v7587 = vcombine.low %v5809, %v5811
      %v7589 = vunpack.c.l.s4 1966171168
      %v7590 = vunpack.c.0.s8 %v7589
      %v7591 = vlaneseq
      %v7592 = vshrl.u32 %v7591, 7
      %v7593 = vsub.s32 %v7590, %v7592
      %v7594 = vrot.slane %v7584, %v7593
      %v7596 = vunpack.c.l.s4 1966171168
      %v7597 = vunpack.c.0.s8 %v7596
      %v7598 = vlaneseq
      %v7599 = vshrl.u32 %v7598, 7
      %v7600 = vsub.s32 %v7597, %v7599
      %v7601 = vrot.slane %v7585, %v7600
      %v7603 = vunpack.c.l.s4 1966171168
      %v7604 = vunpack.c.0.s8 %v7603
      %v7605 = vlaneseq
      %v7606 = vshrl.u32 %v7605, 7
      %v7607 = vsub.s32 %v7604, %v7606
      %v7608 = vrot.slane %v7586, %v7607
      %v7610 = vunpack.c.l.s4 1966171168
      %v7611 = vunpack.c.0.s8 %v7610
      %v7612 = vlaneseq
      %v7613 = vshrl.u32 %v7612, 7
      %v7614 = vsub.s32 %v7611, %v7613
      %v7615 = vrot.slane %v7587, %v7614
      %v7616 = vcombine.low %v7594, %v7601
      %v7617 = vcombine.low %v7608, %v7615
      %v7619 = vunpack.c.l.s4 1966171168
      %v7620 = vunpack.c.0.s8 %v7619
      %v7621 = vlaneseq
      %v7622 = vshrl.u32 %v7621, 7
      %v7623 = vsub.s32 %v7620, %v7622
      %v7624 = vrot.slane %v7616, %v7623
      %v7626 = vunpack.c.l.s4 1966171168
      %v7627 = vunpack.c.0.s8 %v7626
      %v7628 = vlaneseq
      %v7629 = vshrl.u32 %v7628, 7
      %v7630 = vsub.s32 %v7627, %v7629
      %v7631 = vrot.slane %v7617, %v7630
      %v7632 = vcombine.low %v7624, %v7631
      %v7633 = vcombine.low %v5825, %v7380
      %v7634 = vcombine.low %v5863, %v5871
      %v7635 = vcombine.low %v5873, %v5856
      %v7636 = vcombine.low %v5870, %v5872
      %v7638 = vunpack.c.l.s4 1966171168
      %v7639 = vunpack.c.0.s8 %v7638
      %v7640 = vlaneseq
      %v7641 = vshrl.u32 %v7640, 7
      %v7642 = vsub.s32 %v7639, %v7641
      %v7643 = vrot.slane %v7633, %v7642
      %v7645 = vunpack.c.l.s4 1966171168
      %v7646 = vunpack.c.0.s8 %v7645
      %v7647 = vlaneseq
      %v7648 = vshrl.u32 %v7647, 7
      %v7649 = vsub.s32 %v7646, %v7648
      %v7650 = vrot.slane %v7634, %v7649
      %v7652 = vunpack.c.l.s4 1966171168
      %v7653 = vunpack.c.0.s8 %v7652
      %v7654 = vlaneseq
      %v7655 = vshrl.u32 %v7654, 7
      %v7656 = vsub.s32 %v7653, %v7655
      %v7657 = vrot.slane %v7635, %v7656
      %v7659 = vunpack.c.l.s4 1966171168
      %v7660 = vunpack.c.0.s8 %v7659
      %v7661 = vlaneseq
      %v7662 = vshrl.u32 %v7661, 7
      %v7663 = vsub.s32 %v7660, %v7662
      %v7664 = vrot.slane %v7636, %v7663
      %v7665 = vcombine.low %v7643, %v7650
      %v7666 = vcombine.low %v7657, %v7664
      %v7668 = vunpack.c.l.s4 1966171168
      %v7669 = vunpack.c.0.s8 %v7668
      %v7670 = vlaneseq
      %v7671 = vshrl.u32 %v7670, 7
      %v7672 = vsub.s32 %v7669, %v7671
      %v7673 = vrot.slane %v7665, %v7672
      %v7675 = vunpack.c.l.s4 1966171168
      %v7676 = vunpack.c.0.s8 %v7675
      %v7677 = vlaneseq
      %v7678 = vshrl.u32 %v7677, 7
      %v7679 = vsub.s32 %v7676, %v7678
      %v7680 = vrot.slane %v7666, %v7679
      %v7681 = vcombine.low %v7673, %v7680
      %v7682 = vcombine.low %v5874, %v5898
      %v7683 = vcombine.low %v5912, %v5920
      %v7684 = vcombine.low %v5922, %v5905
      %v7685 = vcombine.low %v5919, %v5921
      %v7687 = vunpack.c.l.s4 1966171168
      %v7688 = vunpack.c.0.s8 %v7687
      %v7689 = vlaneseq
      %v7690 = vshrl.u32 %v7689, 7
      %v7691 = vsub.s32 %v7688, %v7690
      %v7692 = vrot.slane %v7682, %v7691
      %v7694 = vunpack.c.l.s4 1966171168
      %v7695 = vunpack.c.0.s8 %v7694
      %v7696 = vlaneseq
      %v7697 = vshrl.u32 %v7696, 7
      %v7698 = vsub.s32 %v7695, %v7697
      %v7699 = vrot.slane %v7683, %v7698
      %v7701 = vunpack.c.l.s4 1966171168
      %v7702 = vunpack.c.0.s8 %v7701
      %v7703 = vlaneseq
      %v7704 = vshrl.u32 %v7703, 7
      %v7705 = vsub.s32 %v7702, %v7704
      %v7706 = vrot.slane %v7684, %v7705
      %v7708 = vunpack.c.l.s4 1966171168
      %v7709 = vunpack.c.0.s8 %v7708
      %v7710 = vlaneseq
      %v7711 = vshrl.u32 %v7710, 7
      %v7712 = vsub.s32 %v7709, %v7711
      %v7713 = vrot.slane %v7685, %v7712
      %v7714 = vcombine.low %v7692, %v7699
      %v7715 = vcombine.low %v7706, %v7713
      %v7717 = vunpack.c.l.s4 1966171168
      %v7718 = vunpack.c.0.s8 %v7717
      %v7719 = vlaneseq
      %v7720 = vshrl.u32 %v7719, 7
      %v7721 = vsub.s32 %v7718, %v7720
      %v7722 = vrot.slane %v7714, %v7721
      %v7724 = vunpack.c.l.s4 1966171168
      %v7725 = vunpack.c.0.s8 %v7724
      %v7726 = vlaneseq
      %v7727 = vshrl.u32 %v7726, 7
      %v7728 = vsub.s32 %v7725, %v7727
      %v7729 = vrot.slane %v7715, %v7728
      %v7730 = vcombine.low %v7722, %v7729
      %v7731 = vcombine.low %v5923, %v5937
      %v7732 = vcombine.low %v7388, %v5975
      %v7733 = vcombine.low %v5983, %v5985
      %v7734 = vcombine.low %v5968, %v5982
      %v7736 = vunpack.c.l.s4 1966171168
      %v7737 = vunpack.c.0.s8 %v7736
      %v7738 = vlaneseq
      %v7739 = vshrl.u32 %v7738, 7
      %v7740 = vsub.s32 %v7737, %v7739
      %v7741 = vrot.slane %v7731, %v7740
      %v7743 = vunpack.c.l.s4 1966171168
      %v7744 = vunpack.c.0.s8 %v7743
      %v7745 = vlaneseq
      %v7746 = vshrl.u32 %v7745, 7
      %v7747 = vsub.s32 %v7744, %v7746
      %v7748 = vrot.slane %v7732, %v7747
      %v7750 = vunpack.c.l.s4 1966171168
      %v7751 = vunpack.c.0.s8 %v7750
      %v7752 = vlaneseq
      %v7753 = vshrl.u32 %v7752, 7
      %v7754 = vsub.s32 %v7751, %v7753
      %v7755 = vrot.slane %v7733, %v7754
      %v7757 = vunpack.c.l.s4 1966171168
      %v7758 = vunpack.c.0.s8 %v7757
      %v7759 = vlaneseq
      %v7760 = vshrl.u32 %v7759, 7
      %v7761 = vsub.s32 %v7758, %v7760
      %v7762 = vrot.slane %v7734, %v7761
      %v7763 = vcombine.low %v7741, %v7748
      %v7764 = vcombine.low %v7755, %v7762
      %v7766 = vunpack.c.l.s4 1966171168
      %v7767 = vunpack.c.0.s8 %v7766
      %v7768 = vlaneseq
      %v7769 = vshrl.u32 %v7768, 7
      %v7770 = vsub.s32 %v7767, %v7769
      %v7771 = vrot.slane %v7763, %v7770
      %v7773 = vunpack.c.l.s4 1966171168
      %v7774 = vunpack.c.0.s8 %v7773
      %v7775 = vlaneseq
      %v7776 = vshrl.u32 %v7775, 7
      %v7777 = vsub.s32 %v7774, %v7776
      %v7778 = vrot.slane %v7764, %v7777
      %v7779 = vcombine.low %v7771, %v7778
      %v7780 = vcombine.low %v5984, %v5986
      %v7781 = vcombine.low %v6010, %v6024
      %v7782 = vcombine.low %v6032, %v6034
      %v7783 = vcombine.low %v6017, %v6031
      %v7785 = vunpack.c.l.s4 1966171168
      %v7786 = vunpack.c.0.s8 %v7785
      %v7787 = vlaneseq
      %v7788 = vshrl.u32 %v7787, 7
      %v7789 = vsub.s32 %v7786, %v7788
      %v7790 = vrot.slane %v7780, %v7789
      %v7792 = vunpack.c.l.s4 1966171168
      %v7793 = vunpack.c.0.s8 %v7792
      %v7794 = vlaneseq
      %v7795 = vshrl.u32 %v7794, 7
      %v7796 = vsub.s32 %v7793, %v7795
      %v7797 = vrot.slane %v7781, %v7796
      %v7799 = vunpack.c.l.s4 1966171168
      %v7800 = vunpack.c.0.s8 %v7799
      %v7801 = vlaneseq
      %v7802 = vshrl.u32 %v7801, 7
      %v7803 = vsub.s32 %v7800, %v7802
      %v7804 = vrot.slane %v7782, %v7803
      %v7806 = vunpack.c.l.s4 1966171168
      %v7807 = vunpack.c.0.s8 %v7806
      %v7808 = vlaneseq
      %v7809 = vshrl.u32 %v7808, 7
      %v7810 = vsub.s32 %v7807, %v7809
      %v7811 = vrot.slane %v7783, %v7810
      %v7812 = vcombine.low %v7790, %v7797
      %v7813 = vcombine.low %v7804, %v7811
      %v7815 = vunpack.c.l.s4 1966171168
      %v7816 = vunpack.c.0.s8 %v7815
      %v7817 = vlaneseq
      %v7818 = vshrl.u32 %v7817, 7
      %v7819 = vsub.s32 %v7816, %v7818
      %v7820 = vrot.slane %v7812, %v7819
      %v7822 = vunpack.c.l.s4 1966171168
      %v7823 = vunpack.c.0.s8 %v7822
      %v7824 = vlaneseq
      %v7825 = vshrl.u32 %v7824, 7
      %v7826 = vsub.s32 %v7823, %v7825
      %v7827 = vrot.slane %v7813, %v7826
      %v7828 = vcombine.low %v7820, %v7827
      %v7829 = vcombine.low %v6033, %v6035
      %v7830 = vcombine.low %v6049, %v7396
      %v7831 = vcombine.low %v6087, %v6095
      %v7832 = vcombine.low %v6097, %v6080
      %v7834 = vunpack.c.l.s4 1966171168
      %v7835 = vunpack.c.0.s8 %v7834
      %v7836 = vlaneseq
      %v7837 = vshrl.u32 %v7836, 7
      %v7838 = vsub.s32 %v7835, %v7837
      %v7839 = vrot.slane %v7829, %v7838
      %v7841 = vunpack.c.l.s4 1966171168
      %v7842 = vunpack.c.0.s8 %v7841
      %v7843 = vlaneseq
      %v7844 = vshrl.u32 %v7843, 7
      %v7845 = vsub.s32 %v7842, %v7844
      %v7846 = vrot.slane %v7830, %v7845
      %v7848 = vunpack.c.l.s4 1966171168
      %v7849 = vunpack.c.0.s8 %v7848
      %v7850 = vlaneseq
      %v7851 = vshrl.u32 %v7850, 7
      %v7852 = vsub.s32 %v7849, %v7851
      %v7853 = vrot.slane %v7831, %v7852
      %v7855 = vunpack.c.l.s4 1966171168
      %v7856 = vunpack.c.0.s8 %v7855
      %v7857 = vlaneseq
      %v7858 = vshrl.u32 %v7857, 7
      %v7859 = vsub.s32 %v7856, %v7858
      %v7860 = vrot.slane %v7832, %v7859
      %v7861 = vcombine.low %v7839, %v7846
      %v7862 = vcombine.low %v7853, %v7860
      %v7864 = vunpack.c.l.s4 1966171168
      %v7865 = vunpack.c.0.s8 %v7864
      %v7866 = vlaneseq
      %v7867 = vshrl.u32 %v7866, 7
      %v7868 = vsub.s32 %v7865, %v7867
      %v7869 = vrot.slane %v7861, %v7868
      %v7871 = vunpack.c.l.s4 1966171168
      %v7872 = vunpack.c.0.s8 %v7871
      %v7873 = vlaneseq
      %v7874 = vshrl.u32 %v7873, 7
      %v7875 = vsub.s32 %v7872, %v7874
      %v7876 = vrot.slane %v7862, %v7875
      %v7877 = vcombine.low %v7869, %v7876
      %v7878 = vcombine.low %v6094, %v6096
      %v7879 = vcombine.low %v6098, %v6122
      %v7880 = vcombine.low %v6136, %v6144
      %v7881 = vcombine.low %v6146, %v6129
      %v7883 = vunpack.c.l.s4 1966171168
      %v7884 = vunpack.c.0.s8 %v7883
      %v7885 = vlaneseq
      %v7886 = vshrl.u32 %v7885, 7
      %v7887 = vsub.s32 %v7884, %v7886
      %v7888 = vrot.slane %v7878, %v7887
      %v7890 = vunpack.c.l.s4 1966171168
      %v7891 = vunpack.c.0.s8 %v7890
      %v7892 = vlaneseq
      %v7893 = vshrl.u32 %v7892, 7
      %v7894 = vsub.s32 %v7891, %v7893
      %v7895 = vrot.slane %v7879, %v7894
      %v7897 = vunpack.c.l.s4 1966171168
      %v7898 = vunpack.c.0.s8 %v7897
      %v7899 = vlaneseq
      %v7900 = vshrl.u32 %v7899, 7
      %v7901 = vsub.s32 %v7898, %v7900
      %v7902 = vrot.slane %v7880, %v7901
      %v7904 = vunpack.c.l.s4 1966171168
      %v7905 = vunpack.c.0.s8 %v7904
      %v7906 = vlaneseq
      %v7907 = vshrl.u32 %v7906, 7
      %v7908 = vsub.s32 %v7905, %v7907
      %v7909 = vrot.slane %v7881, %v7908
      %v7910 = vcombine.low %v7888, %v7895
      %v7911 = vcombine.low %v7902, %v7909
      %v7913 = vunpack.c.l.s4 1966171168
      %v7914 = vunpack.c.0.s8 %v7913
      %v7915 = vlaneseq
      %v7916 = vshrl.u32 %v7915, 7
      %v7917 = vsub.s32 %v7914, %v7916
      %v7918 = vrot.slane %v7910, %v7917
      %v7920 = vunpack.c.l.s4 1966171168
      %v7921 = vunpack.c.0.s8 %v7920
      %v7922 = vlaneseq
      %v7923 = vshrl.u32 %v7922, 7
      %v7924 = vsub.s32 %v7921, %v7923
      %v7925 = vrot.slane %v7911, %v7924
      %v7926 = vcombine.low %v7918, %v7925
      %v7927 = vcombine.low %v6143, %v6145
      %v7928 = vcombine.low %v6147, %v6161
      %v7929 = vcombine.low %v7404, %v6199
      %v7930 = vcombine.low %v6207, %v6209
      %v7932 = vunpack.c.l.s4 1966171168
      %v7933 = vunpack.c.0.s8 %v7932
      %v7934 = vlaneseq
      %v7935 = vshrl.u32 %v7934, 7
      %v7936 = vsub.s32 %v7933, %v7935
      %v7937 = vrot.slane %v7927, %v7936
      %v7939 = vunpack.c.l.s4 1966171168
      %v7940 = vunpack.c.0.s8 %v7939
      %v7941 = vlaneseq
      %v7942 = vshrl.u32 %v7941, 7
      %v7943 = vsub.s32 %v7940, %v7942
      %v7944 = vrot.slane %v7928, %v7943
      %v7946 = vunpack.c.l.s4 1966171168
      %v7947 = vunpack.c.0.s8 %v7946
      %v7948 = vlaneseq
      %v7949 = vshrl.u32 %v7948, 7
      %v7950 = vsub.s32 %v7947, %v7949
      %v7951 = vrot.slane %v7929, %v7950
      %v7953 = vunpack.c.l.s4 1966171168
      %v7954 = vunpack.c.0.s8 %v7953
      %v7955 = vlaneseq
      %v7956 = vshrl.u32 %v7955, 7
      %v7957 = vsub.s32 %v7954, %v7956
      %v7958 = vrot.slane %v7930, %v7957
      %v7959 = vcombine.low %v7937, %v7944
      %v7960 = vcombine.low %v7951, %v7958
      %v7962 = vunpack.c.l.s4 1966171168
      %v7963 = vunpack.c.0.s8 %v7962
      %v7964 = vlaneseq
      %v7965 = vshrl.u32 %v7964, 7
      %v7966 = vsub.s32 %v7963, %v7965
      %v7967 = vrot.slane %v7959, %v7966
      %v7969 = vunpack.c.l.s4 1966171168
      %v7970 = vunpack.c.0.s8 %v7969
      %v7971 = vlaneseq
      %v7972 = vshrl.u32 %v7971, 7
      %v7973 = vsub.s32 %v7970, %v7972
      %v7974 = vrot.slane %v7960, %v7973
      %v7975 = vcombine.low %v7967, %v7974
      %v7976 = vcombine.low %v6192, %v6206
      %v7977 = vcombine.low %v6208, %v6210
      %v7978 = vcombine.low %v6234, %v6248
      %v7979 = vcombine.low %v6256, %v6258
      %v7981 = vunpack.c.l.s4 1966171168
      %v7982 = vunpack.c.0.s8 %v7981
      %v7983 = vlaneseq
      %v7984 = vshrl.u32 %v7983, 7
      %v7985 = vsub.s32 %v7982, %v7984
      %v7986 = vrot.slane %v7976, %v7985
      %v7988 = vunpack.c.l.s4 1966171168
      %v7989 = vunpack.c.0.s8 %v7988
      %v7990 = vlaneseq
      %v7991 = vshrl.u32 %v7990, 7
      %v7992 = vsub.s32 %v7989, %v7991
      %v7993 = vrot.slane %v7977, %v7992
      %v7995 = vunpack.c.l.s4 1966171168
      %v7996 = vunpack.c.0.s8 %v7995
      %v7997 = vlaneseq
      %v7998 = vshrl.u32 %v7997, 7
      %v7999 = vsub.s32 %v7996, %v7998
      %v8000 = vrot.slane %v7978, %v7999
      %v8002 = vunpack.c.l.s4 1966171168
      %v8003 = vunpack.c.0.s8 %v8002
      %v8004 = vlaneseq
      %v8005 = vshrl.u32 %v8004, 7
      %v8006 = vsub.s32 %v8003, %v8005
      %v8007 = vrot.slane %v7979, %v8006
      %v8008 = vcombine.low %v7986, %v7993
      %v8009 = vcombine.low %v8000, %v8007
      %v8011 = vunpack.c.l.s4 1966171168
      %v8012 = vunpack.c.0.s8 %v8011
      %v8013 = vlaneseq
      %v8014 = vshrl.u32 %v8013, 7
      %v8015 = vsub.s32 %v8012, %v8014
      %v8016 = vrot.slane %v8008, %v8015
      %v8018 = vunpack.c.l.s4 1966171168
      %v8019 = vunpack.c.0.s8 %v8018
      %v8020 = vlaneseq
      %v8021 = vshrl.u32 %v8020, 7
      %v8022 = vsub.s32 %v8019, %v8021
      %v8023 = vrot.slane %v8009, %v8022
      %v8024 = vcombine.low %v8016, %v8023
      %v8025 = vcombine.low %v6241, %v6255
      %v8026 = vcombine.low %v6257, %v6259
      %v8027 = vcombine.low %v6273, %v7412
      %v8028 = vcombine.low %v6311, %v6319
      %v8030 = vunpack.c.l.s4 1966171168
      %v8031 = vunpack.c.0.s8 %v8030
      %v8032 = vlaneseq
      %v8033 = vshrl.u32 %v8032, 7
      %v8034 = vsub.s32 %v8031, %v8033
      %v8035 = vrot.slane %v8025, %v8034
      %v8037 = vunpack.c.l.s4 1966171168
      %v8038 = vunpack.c.0.s8 %v8037
      %v8039 = vlaneseq
      %v8040 = vshrl.u32 %v8039, 7
      %v8041 = vsub.s32 %v8038, %v8040
      %v8042 = vrot.slane %v8026, %v8041
      %v8044 = vunpack.c.l.s4 1966171168
      %v8045 = vunpack.c.0.s8 %v8044
      %v8046 = vlaneseq
      %v8047 = vshrl.u32 %v8046, 7
      %v8048 = vsub.s32 %v8045, %v8047
      %v8049 = vrot.slane %v8027, %v8048
      %v8051 = vunpack.c.l.s4 1966171168
      %v8052 = vunpack.c.0.s8 %v8051
      %v8053 = vlaneseq
      %v8054 = vshrl.u32 %v8053, 7
      %v8055 = vsub.s32 %v8052, %v8054
      %v8056 = vrot.slane %v8028, %v8055
      %v8057 = vcombine.low %v8035, %v8042
      %v8058 = vcombine.low %v8049, %v8056
      %v8060 = vunpack.c.l.s4 1966171168
      %v8061 = vunpack.c.0.s8 %v8060
      %v8062 = vlaneseq
      %v8063 = vshrl.u32 %v8062, 7
      %v8064 = vsub.s32 %v8061, %v8063
      %v8065 = vrot.slane %v8057, %v8064
      %v8067 = vunpack.c.l.s4 1966171168
      %v8068 = vunpack.c.0.s8 %v8067
      %v8069 = vlaneseq
      %v8070 = vshrl.u32 %v8069, 7
      %v8071 = vsub.s32 %v8068, %v8070
      %v8072 = vrot.slane %v8058, %v8071
      %v8073 = vcombine.low %v8065, %v8072
      %v8074 = vcombine.low %v6321, %v6304
      %v8075 = vcombine.low %v6318, %v6320
      %v8076 = vcombine.low %v6322, %v6346
      %v8077 = vcombine.low %v6360, %v6368
      %v8079 = vunpack.c.l.s4 1966171168
      %v8080 = vunpack.c.0.s8 %v8079
      %v8081 = vlaneseq
      %v8082 = vshrl.u32 %v8081, 7
      %v8083 = vsub.s32 %v8080, %v8082
      %v8084 = vrot.slane %v8074, %v8083
      %v8086 = vunpack.c.l.s4 1966171168
      %v8087 = vunpack.c.0.s8 %v8086
      %v8088 = vlaneseq
      %v8089 = vshrl.u32 %v8088, 7
      %v8090 = vsub.s32 %v8087, %v8089
      %v8091 = vrot.slane %v8075, %v8090
      %v8093 = vunpack.c.l.s4 1966171168
      %v8094 = vunpack.c.0.s8 %v8093
      %v8095 = vlaneseq
      %v8096 = vshrl.u32 %v8095, 7
      %v8097 = vsub.s32 %v8094, %v8096
      %v8098 = vrot.slane %v8076, %v8097
      %v8100 = vunpack.c.l.s4 1966171168
      %v8101 = vunpack.c.0.s8 %v8100
      %v8102 = vlaneseq
      %v8103 = vshrl.u32 %v8102, 7
      %v8104 = vsub.s32 %v8101, %v8103
      %v8105 = vrot.slane %v8077, %v8104
      %v8106 = vcombine.low %v8084, %v8091
      %v8107 = vcombine.low %v8098, %v8105
      %v8109 = vunpack.c.l.s4 1966171168
      %v8110 = vunpack.c.0.s8 %v8109
      %v8111 = vlaneseq
      %v8112 = vshrl.u32 %v8111, 7
      %v8113 = vsub.s32 %v8110, %v8112
      %v8114 = vrot.slane %v8106, %v8113
      %v8116 = vunpack.c.l.s4 1966171168
      %v8117 = vunpack.c.0.s8 %v8116
      %v8118 = vlaneseq
      %v8119 = vshrl.u32 %v8118, 7
      %v8120 = vsub.s32 %v8117, %v8119
      %v8121 = vrot.slane %v8107, %v8120
      %v8122 = vcombine.low %v8114, %v8121
      %v8123 = vcombine.low %v6370, %v6353
      %v8124 = vcombine.low %v6367, %v6369
      %v8125 = vcombine.low %v6371, %v6385
      %v8126 = vcombine.low %v7420, %v6423
      %v8128 = vunpack.c.l.s4 1966171168
      %v8129 = vunpack.c.0.s8 %v8128
      %v8130 = vlaneseq
      %v8131 = vshrl.u32 %v8130, 7
      %v8132 = vsub.s32 %v8129, %v8131
      %v8133 = vrot.slane %v8123, %v8132
      %v8135 = vunpack.c.l.s4 1966171168
      %v8136 = vunpack.c.0.s8 %v8135
      %v8137 = vlaneseq
      %v8138 = vshrl.u32 %v8137, 7
      %v8139 = vsub.s32 %v8136, %v8138
      %v8140 = vrot.slane %v8124, %v8139
      %v8142 = vunpack.c.l.s4 1966171168
      %v8143 = vunpack.c.0.s8 %v8142
      %v8144 = vlaneseq
      %v8145 = vshrl.u32 %v8144, 7
      %v8146 = vsub.s32 %v8143, %v8145
      %v8147 = vrot.slane %v8125, %v8146
      %v8149 = vunpack.c.l.s4 1966171168
      %v8150 = vunpack.c.0.s8 %v8149
      %v8151 = vlaneseq
      %v8152 = vshrl.u32 %v8151, 7
      %v8153 = vsub.s32 %v8150, %v8152
      %v8154 = vrot.slane %v8126, %v8153
      %v8155 = vcombine.low %v8133, %v8140
      %v8156 = vcombine.low %v8147, %v8154
      %v8158 = vunpack.c.l.s4 1966171168
      %v8159 = vunpack.c.0.s8 %v8158
      %v8160 = vlaneseq
      %v8161 = vshrl.u32 %v8160, 7
      %v8162 = vsub.s32 %v8159, %v8161
      %v8163 = vrot.slane %v8155, %v8162
      %v8165 = vunpack.c.l.s4 1966171168
      %v8166 = vunpack.c.0.s8 %v8165
      %v8167 = vlaneseq
      %v8168 = vshrl.u32 %v8167, 7
      %v8169 = vsub.s32 %v8166, %v8168
      %v8170 = vrot.slane %v8156, %v8169
      %v8171 = vcombine.low %v8163, %v8170
      %v8172 = vcombine.low %v6431, %v6433
      %v8173 = vcombine.low %v6416, %v6430
      %v8174 = vcombine.low %v6432, %v6434
      %v8175 = vcombine.low %v6458, %v6472
      %v8177 = vunpack.c.l.s4 1966171168
      %v8178 = vunpack.c.0.s8 %v8177
      %v8179 = vlaneseq
      %v8180 = vshrl.u32 %v8179, 7
      %v8181 = vsub.s32 %v8178, %v8180
      %v8182 = vrot.slane %v8172, %v8181
      %v8184 = vunpack.c.l.s4 1966171168
      %v8185 = vunpack.c.0.s8 %v8184
      %v8186 = vlaneseq
      %v8187 = vshrl.u32 %v8186, 7
      %v8188 = vsub.s32 %v8185, %v8187
      %v8189 = vrot.slane %v8173, %v8188
      %v8191 = vunpack.c.l.s4 1966171168
      %v8192 = vunpack.c.0.s8 %v8191
      %v8193 = vlaneseq
      %v8194 = vshrl.u32 %v8193, 7
      %v8195 = vsub.s32 %v8192, %v8194
      %v8196 = vrot.slane %v8174, %v8195
      %v8198 = vunpack.c.l.s4 1966171168
      %v8199 = vunpack.c.0.s8 %v8198
      %v8200 = vlaneseq
      %v8201 = vshrl.u32 %v8200, 7
      %v8202 = vsub.s32 %v8199, %v8201
      %v8203 = vrot.slane %v8175, %v8202
      %v8204 = vcombine.low %v8182, %v8189
      %v8205 = vcombine.low %v8196, %v8203
      %v8207 = vunpack.c.l.s4 1966171168
      %v8208 = vunpack.c.0.s8 %v8207
      %v8209 = vlaneseq
      %v8210 = vshrl.u32 %v8209, 7
      %v8211 = vsub.s32 %v8208, %v8210
      %v8212 = vrot.slane %v8204, %v8211
      %v8214 = vunpack.c.l.s4 1966171168
      %v8215 = vunpack.c.0.s8 %v8214
      %v8216 = vlaneseq
      %v8217 = vshrl.u32 %v8216, 7
      %v8218 = vsub.s32 %v8215, %v8217
      %v8219 = vrot.slane %v8205, %v8218
      %v8220 = vcombine.low %v8212, %v8219
      %v8221 = vcombine.low %v6480, %v6482
      %v8222 = vcombine.low %v6465, %v6479
      %v8223 = vcombine.low %v6481, %v6483
      %v8224 = vcombine.low %v6497, %v7428
      %v8226 = vunpack.c.l.s4 1966171168
      %v8227 = vunpack.c.0.s8 %v8226
      %v8228 = vlaneseq
      %v8229 = vshrl.u32 %v8228, 7
      %v8230 = vsub.s32 %v8227, %v8229
      %v8231 = vrot.slane %v8221, %v8230
      %v8233 = vunpack.c.l.s4 1966171168
      %v8234 = vunpack.c.0.s8 %v8233
      %v8235 = vlaneseq
      %v8236 = vshrl.u32 %v8235, 7
      %v8237 = vsub.s32 %v8234, %v8236
      %v8238 = vrot.slane %v8222, %v8237
      %v8240 = vunpack.c.l.s4 1966171168
      %v8241 = vunpack.c.0.s8 %v8240
      %v8242 = vlaneseq
      %v8243 = vshrl.u32 %v8242, 7
      %v8244 = vsub.s32 %v8241, %v8243
      %v8245 = vrot.slane %v8223, %v8244
      %v8247 = vunpack.c.l.s4 1966171168
      %v8248 = vunpack.c.0.s8 %v8247
      %v8249 = vlaneseq
      %v8250 = vshrl.u32 %v8249, 7
      %v8251 = vsub.s32 %v8248, %v8250
      %v8252 = vrot.slane %v8224, %v8251
      %v8253 = vcombine.low %v8231, %v8238
      %v8254 = vcombine.low %v8245, %v8252
      %v8256 = vunpack.c.l.s4 1966171168
      %v8257 = vunpack.c.0.s8 %v8256
      %v8258 = vlaneseq
      %v8259 = vshrl.u32 %v8258, 7
      %v8260 = vsub.s32 %v8257, %v8259
      %v8261 = vrot.slane %v8253, %v8260
      %v8263 = vunpack.c.l.s4 1966171168
      %v8264 = vunpack.c.0.s8 %v8263
      %v8265 = vlaneseq
      %v8266 = vshrl.u32 %v8265, 7
      %v8267 = vsub.s32 %v8264, %v8266
      %v8268 = vrot.slane %v8254, %v8267
      %v8269 = vcombine.low %v8261, %v8268
      %v8287 = vpack.c.bf16 %v7534, %v7485
      %v8288 = vpack.c.bf16 %v7632, %v7583
      %v8289 = vpack.c.bf16 %v7730, %v7681
      %v8290 = vpack.c.bf16 %v7828, %v7779
      %v8291 = vpack.c.bf16 %v7926, %v7877
      %v8292 = vpack.c.bf16 %v8024, %v7975
      %v8293 = vpack.c.bf16 %v8122, %v8073
      %v8294 = vpack.c.bf16 %v8220, %v8171
      %v8295 = vpack.c.bf16 %v8269, %v8269
      %v8304 = vunpack.c.l.b16 %v7429
      %v8305 = vunpack.c.l.b16 %v7430
      %v8306 = vunpack.c.l.b16 %v7431
      %v8307 = vunpack.c.l.b16 %v7432
      %v8308 = vunpack.c.l.b16 %v7433
      %v8309 = vunpack.c.l.b16 %v7434
      %v8310 = vunpack.c.l.b16 %v7435
      %v8311 = vunpack.c.l.b16 %v7436
      %v8312 = vpack.c.b16 %v8305, %v8304
      %v8313 = vpack.c.b16 %v8307, %v8306
      %v8314 = vpack.c.b16 %v8309, %v8308
      %v8315 = vpack.c.b16 %v8311, %v8310
      %vm8320 = vcmask 523264
      %v8322 = vsel %vm8320, %v8287, 0
      %v8325 = vsel %vm8320, %v8288, 0
      %v8328 = vsel %vm8320, %v8289, 0
      %v8331 = vsel %vm8320, %v8290, 0
      %v8334 = vsel %vm8320, %v8291, 0
      %v8337 = vsel %vm8320, %v8292, 0
      %v8340 = vsel %vm8320, %v8293, 0
      %v8343 = vsel %vm8320, %v8294, 0
      %v8346 = vsel %vm8320, %v8295, 0
      %8348 = vmatprep.subr.bf16.mxu0 0
      %8349 = vmatpush1.bf16.msra.mxu0 0
      %8350 = vmatprep.subr.bf16.mxu0 0
      %8351 = vmatpush1.bf16.msra.mxu0 0
      %8352 = vmatprep.subr.bf16.mxu0 0
      %8353 = vmatpush1.bf16.msra.mxu0 0
      %8354 = vmatprep.subr.bf16.mxu0 0
      %8355 = vmatpush1.bf16.msra.mxu0 0
      %8356 = vmatprep.subr.bf16.mxu0 0
      %8357 = vmatpush1.bf16.msra.mxu0 %v8315
      %8358 = vmatprep.subr.bf16.mxu0 0
      %8359 = vmatpush1.bf16.msra.mxu0 %v8314
      %8360 = vmatprep.subr.bf16.mxu0 0
      %8361 = vmatpush1.bf16.msra.mxu0 %v8313
      %8362 = vmatprep.subr.bf16.mxu0 0
      %8363 = vmatpush1.bf16.msra.mxu0 %v8312
      %8364 = vmatprep.subr.bf16.mxu0 0
      %8365 = vmatpush2.bf16.msra.mxu0 0
      %8366 = vmatprep.subr.bf16.mxu0 0
      %8367 = vmatpush2.bf16.msra.mxu0 0
      %8368 = vmatprep.subr.bf16.mxu0 0
      %8369 = vmatpush2.bf16.msra.mxu0 0
      %8370 = vmatprep.subr.bf16.mxu0 0
      %8371 = vmatpush2.bf16.msra.mxu0 0
      %8372 = vmatprep.subr.bf16.mxu0 0
      %8373 = vmatpush2.bf16.msra.mxu0 0
      %8374 = vmatprep.subr.bf16.mxu0 0
      %8375 = vmatpush2.bf16.msra.mxu0 0
      %8376 = vmatprep.subr.bf16.mxu0 0
      %8377 = vmatpush2.bf16.msra.mxu0 0
      %8378 = vmatprep.subr.bf16.mxu0 0
      %8379 = vmatpush2.bf16.msra.mxu0 0
      %8380 = vmatprep.mubr.bf16.mxu0 0
      %8381 = vmatmul.mubr.bf16.gmra.mxu0 %v8322
      %v8382 = vpop.f32.mrf.mxu0
      %v8383 = vadd.f32 0.0, %v8382
      %v8384 = vpop.f32.mrf.mxu0
      %v8385 = vpop.f32.mrf.mxu0
      %v8386 = vadd.f32 0.0, %v8385
      %v8387 = vpop.f32.mrf.mxu0
      %8388 = vmatprep.mubr.bf16.mxu0 0
      %8389 = vmatmul.mubr.bf16.gmra.mxu0 %v8325
      %v8390 = vpop.f32.mrf.mxu0
      %v8391 = vadd.f32 0.0, %v8390
      %v8392 = vpop.f32.mrf.mxu0
      %v8393 = vpop.f32.mrf.mxu0
      %v8394 = vadd.f32 0.0, %v8393
      %v8395 = vpop.f32.mrf.mxu0
      %8396 = vmatprep.mubr.bf16.mxu0 0
      %8397 = vmatmul.mubr.bf16.gmra.mxu0 %v8328
      %v8398 = vpop.f32.mrf.mxu0
      %v8399 = vadd.f32 0.0, %v8398
      %v8400 = vpop.f32.mrf.mxu0
      %v8401 = vpop.f32.mrf.mxu0
      %v8402 = vadd.f32 0.0, %v8401
      %v8403 = vpop.f32.mrf.mxu0
      %8404 = vmatprep.mubr.bf16.mxu0 0
      %8405 = vmatmul.mubr.bf16.gmra.mxu0 %v8331
      %v8406 = vpop.f32.mrf.mxu0
      %v8407 = vadd.f32 0.0, %v8406
      %v8408 = vpop.f32.mrf.mxu0
      %v8409 = vpop.f32.mrf.mxu0
      %v8410 = vadd.f32 0.0, %v8409
      %v8411 = vpop.f32.mrf.mxu0
      %8412 = vmatprep.mubr.bf16.mxu0 0
      %8413 = vmatmul.mubr.bf16.gmra.mxu0 %v8334
      %v8414 = vpop.f32.mrf.mxu0
      %v8415 = vadd.f32 0.0, %v8414
      %v8416 = vpop.f32.mrf.mxu0
      %v8417 = vpop.f32.mrf.mxu0
      %v8418 = vadd.f32 0.0, %v8417
      %v8419 = vpop.f32.mrf.mxu0
      %8420 = vmatprep.mubr.bf16.mxu0 0
      %8421 = vmatmul.mubr.bf16.gmra.mxu0 %v8337
      %v8422 = vpop.f32.mrf.mxu0
      %v8423 = vadd.f32 0.0, %v8422
      %v8424 = vpop.f32.mrf.mxu0
      %v8425 = vpop.f32.mrf.mxu0
      %v8426 = vadd.f32 0.0, %v8425
      %v8427 = vpop.f32.mrf.mxu0
      %8428 = vmatprep.mubr.bf16.mxu0 0
      %8429 = vmatmul.mubr.bf16.gmra.mxu0 %v8340
      %v8430 = vpop.f32.mrf.mxu0
      %v8431 = vadd.f32 0.0, %v8430
      %v8432 = vpop.f32.mrf.mxu0
      %v8433 = vpop.f32.mrf.mxu0
      %v8434 = vadd.f32 0.0, %v8433
      %v8435 = vpop.f32.mrf.mxu0
      %8436 = vmatprep.mubr.bf16.mxu0 0
      %8437 = vmatmul.mubr.bf16.gmra.mxu0 %v8343
      %v8438 = vpop.f32.mrf.mxu0
      %v8439 = vadd.f32 0.0, %v8438
      %v8440 = vpop.f32.mrf.mxu0
      %v8441 = vpop.f32.mrf.mxu0
      %v8442 = vadd.f32 0.0, %v8441
      %v8443 = vpop.f32.mrf.mxu0
      %8444 = vmatprep.mubr.bf16.mxu0 0
      %8445 = vmatmul.mubr.bf16.gmra.mxu0 %v8346
      %v8446 = vpop.f32.mrf.mxu0
      %v8447 = vadd.f32 0.0, %v8446
      %v8448 = vpop.f32.mrf.mxu0
      %v8449 = vpop.f32.mrf.mxu0
      %v8450 = vpop.f32.mrf.mxu0
      %8451 = vdwg.mxu0
      %v8460 = vunpack.c.l.b16 %v6498
      %v8461 = vunpack.c.l.b16 %v6499
      %v8462 = vunpack.c.l.b16 %v6500
      %v8463 = vunpack.c.l.b16 %v6501
      %v8464 = vunpack.c.l.b16 %v6502
      %v8465 = vunpack.c.l.b16 %v6503
      %v8466 = vunpack.c.l.b16 %v6504
      %v8467 = vunpack.c.l.b16 %v6505
      %v8468 = vpack.c.b16 %v8461, %v8460
      %v8469 = vpack.c.b16 %v8463, %v8462
      %v8470 = vpack.c.b16 %v8465, %v8464
      %v8471 = vpack.c.b16 %v8467, %v8466
      %v8477 = vsel %vm8320, %v7356, 0
      %v8480 = vsel %vm8320, %v7357, 0
      %v8483 = vsel %vm8320, %v7358, 0
      %v8486 = vsel %vm8320, %v7359, 0
      %v8489 = vsel %vm8320, %v7360, 0
      %v8492 = vsel %vm8320, %v7361, 0
      %v8495 = vsel %vm8320, %v7362, 0
      %v8498 = vsel %vm8320, %v7363, 0
      %v8501 = vsel %vm8320, %v7364, 0
      %8503 = vmatprep.subr.bf16.mxu0 0
      %8504 = vmatpush1.bf16.msra.mxu0 0
      %8505 = vmatprep.subr.bf16.mxu0 0
      %8506 = vmatpush1.bf16.msra.mxu0 0
      %8507 = vmatprep.subr.bf16.mxu0 0
      %8508 = vmatpush1.bf16.msra.mxu0 0
      %8509 = vmatprep.subr.bf16.mxu0 0
      %8510 = vmatpush1.bf16.msra.mxu0 0
      %8511 = vmatprep.subr.bf16.mxu0 0
      %8512 = vmatpush1.bf16.msra.mxu0 %v8471
      %8513 = vmatprep.subr.bf16.mxu0 0
      %8514 = vmatpush1.bf16.msra.mxu0 %v8470
      %8515 = vmatprep.subr.bf16.mxu0 0
      %8516 = vmatpush1.bf16.msra.mxu0 %v8469
      %8517 = vmatprep.subr.bf16.mxu0 0
      %8518 = vmatpush1.bf16.msra.mxu0 %v8468
      %8519 = vmatprep.subr.bf16.mxu0 0
      %8520 = vmatpush2.bf16.msra.mxu0 0
      %8521 = vmatprep.subr.bf16.mxu0 0
      %8522 = vmatpush2.bf16.msra.mxu0 0
      %8523 = vmatprep.subr.bf16.mxu0 0
      %8524 = vmatpush2.bf16.msra.mxu0 0
      %8525 = vmatprep.subr.bf16.mxu0 0
      %8526 = vmatpush2.bf16.msra.mxu0 0
      %8527 = vmatprep.subr.bf16.mxu0 0
      %8528 = vmatpush2.bf16.msra.mxu0 0
      %8529 = vmatprep.subr.bf16.mxu0 0
      %8530 = vmatpush2.bf16.msra.mxu0 0
      %8531 = vmatprep.subr.bf16.mxu0 0
      %8532 = vmatpush2.bf16.msra.mxu0 0
      %8533 = vmatprep.subr.bf16.mxu0 0
      %8534 = vmatpush2.bf16.msra.mxu0 0
      %8535 = vmatprep.mubr.bf16.mxu0 0
      %8536 = vmatmul.mubr.bf16.gmra.mxu0 %v8477
      %v8537 = vpop.f32.mrf.mxu0
      %v8538 = vadd.f32 %v8383, %v8537
      %v8539 = vpop.f32.mrf.mxu0
      %v8540 = vpop.f32.mrf.mxu0
      %v8541 = vadd.f32 %v8386, %v8540
      %v8542 = vpop.f32.mrf.mxu0
      %8543 = vmatprep.mubr.bf16.mxu0 0
      %8544 = vmatmul.mubr.bf16.gmra.mxu0 %v8480
      %v8545 = vpop.f32.mrf.mxu0
      %v8546 = vadd.f32 %v8391, %v8545
      %v8547 = vpop.f32.mrf.mxu0
      %v8548 = vpop.f32.mrf.mxu0
      %v8549 = vadd.f32 %v8394, %v8548
      %v8550 = vpop.f32.mrf.mxu0
      %8551 = vmatprep.mubr.bf16.mxu0 0
      %8552 = vmatmul.mubr.bf16.gmra.mxu0 %v8483
      %v8553 = vpop.f32.mrf.mxu0
      %v8554 = vadd.f32 %v8399, %v8553
      %v8555 = vpop.f32.mrf.mxu0
      %v8556 = vpop.f32.mrf.mxu0
      %v8557 = vadd.f32 %v8402, %v8556
      %v8558 = vpop.f32.mrf.mxu0
      %8559 = vmatprep.mubr.bf16.mxu0 0
      %8560 = vmatmul.mubr.bf16.gmra.mxu0 %v8486
      %v8561 = vpop.f32.mrf.mxu0
      %v8562 = vadd.f32 %v8407, %v8561
      %v8563 = vpop.f32.mrf.mxu0
      %v8564 = vpop.f32.mrf.mxu0
      %v8565 = vadd.f32 %v8410, %v8564
      %v8566 = vpop.f32.mrf.mxu0
      %8567 = vmatprep.mubr.bf16.mxu0 0
      %8568 = vmatmul.mubr.bf16.gmra.mxu0 %v8489
      %v8569 = vpop.f32.mrf.mxu0
      %v8570 = vadd.f32 %v8415, %v8569
      %v8571 = vpop.f32.mrf.mxu0
      %v8572 = vpop.f32.mrf.mxu0
      %v8573 = vadd.f32 %v8418, %v8572
      %v8574 = vpop.f32.mrf.mxu0
      %8575 = vmatprep.mubr.bf16.mxu0 0
      %8576 = vmatmul.mubr.bf16.gmra.mxu0 %v8492
      %v8577 = vpop.f32.mrf.mxu0
      %v8578 = vadd.f32 %v8423, %v8577
      %v8579 = vpop.f32.mrf.mxu0
      %v8580 = vpop.f32.mrf.mxu0
      %v8581 = vadd.f32 %v8426, %v8580
      %v8582 = vpop.f32.mrf.mxu0
      %8583 = vmatprep.mubr.bf16.mxu0 0
      %8584 = vmatmul.mubr.bf16.gmra.mxu0 %v8495
      %v8585 = vpop.f32.mrf.mxu0
      %v8586 = vadd.f32 %v8431, %v8585
      %v8587 = vpop.f32.mrf.mxu0
      %v8588 = vpop.f32.mrf.mxu0
      %v8589 = vadd.f32 %v8434, %v8588
      %v8590 = vpop.f32.mrf.mxu0
      %8591 = vmatprep.mubr.bf16.mxu0 0
      %8592 = vmatmul.mubr.bf16.gmra.mxu0 %v8498
      %v8593 = vpop.f32.mrf.mxu0
      %v8594 = vadd.f32 %v8439, %v8593
      %v8595 = vpop.f32.mrf.mxu0
      %v8596 = vpop.f32.mrf.mxu0
      %v8597 = vadd.f32 %v8442, %v8596
      %v8598 = vpop.f32.mrf.mxu0
      %8599 = vmatprep.mubr.bf16.mxu0 0
      %8600 = vmatmul.mubr.bf16.gmra.mxu0 %v8501
      %v8601 = vpop.f32.mrf.mxu0
      %v8602 = vadd.f32 %v8447, %v8601
      %v8603 = vpop.f32.mrf.mxu0
      %v8604 = vpop.f32.mrf.mxu0
      %v8605 = vpop.f32.mrf.mxu0
      %8606 = vdwg.mxu0
      %v8607 = vcombine.high %v5713, %v5713
      %v8608 = vcombine.high %v5825, %v5825
      %v8609 = vcombine.high %v5937, %v5937
      %v8610 = vcombine.high %v6049, %v6049
      %v8611 = vcombine.high %v6161, %v6161
      %v8612 = vcombine.high %v6273, %v6273
      %v8613 = vcombine.high %v6385, %v6385
      %v8614 = vcombine.high %v6497, %v6497
      %v8615 = vld [vmem:[%s5 + $0x40] sm:$0xf]
      %v8616 = vld [vmem:[%s5 + $0x44] sm:$0xf]
      %v8617 = vld [vmem:[%s5 + $0x48] sm:$0xf]
      %v8618 = vld [vmem:[%s5 + $0x4c] sm:$0xf]
      %v8619 = vld [vmem:[%s5 + $0x50] sm:$0xf]
      %v8620 = vld [vmem:[%s5 + $0x54] sm:$0xf]
      %v8621 = vld [vmem:[%s5 + $0x58] sm:$0xf]
      %v8622 = vld [vmem:[%s5 + $0x5c] sm:$0xf]
      %v8623 = vcombine.low %v6523, %v6530
      %v8624 = vcombine.low %v6537, %v6565
      %v8626 = vunpack.c.l.s4 1966171168
      %v8627 = vunpack.c.0.s8 %v8626
      %v8628 = vlaneseq
      %v8629 = vshrl.u32 %v8628, 7
      %v8630 = vsub.s32 %v8627, %v8629
      %v8631 = vrot.slane %v8623, %v8630
      %v8633 = vunpack.c.l.s4 1966171168
      %v8634 = vunpack.c.0.s8 %v8633
      %v8635 = vlaneseq
      %v8636 = vshrl.u32 %v8635, 7
      %v8637 = vsub.s32 %v8634, %v8636
      %v8638 = vrot.slane %v8624, %v8637
      %v8639 = vcombine.low %v8631, %v8638
      %v8640 = vcombine.low %v5713, %v7372
      %v8642 = vunpack.c.l.s4 1966171168
      %v8643 = vunpack.c.0.s8 %v8642
      %v8644 = vlaneseq
      %v8645 = vshrl.u32 %v8644, 7
      %v8646 = vsub.s32 %v8643, %v8645
      %v8647 = vrot.slane %v8640, %v8646
      %v8648 = vcombine.low %v6572, %v6579
      %v8649 = vcombine.low %v6586, %v8647
      %v8651 = vunpack.c.l.s4 1966171168
      %v8652 = vunpack.c.0.s8 %v8651
      %v8653 = vlaneseq
      %v8654 = vshrl.u32 %v8653, 7
      %v8655 = vsub.s32 %v8652, %v8654
      %v8656 = vrot.slane %v8648, %v8655
      %v8658 = vunpack.c.l.s4 1966171168
      %v8659 = vunpack.c.0.s8 %v8658
      %v8660 = vlaneseq
      %v8661 = vshrl.u32 %v8660, 7
      %v8662 = vsub.s32 %v8659, %v8661
      %v8663 = vrot.slane %v8649, %v8662
      %v8664 = vcombine.low %v8656, %v8663
      %v8665 = vcombine.low %v8607, %v5759
      %v8667 = vunpack.c.l.s4 1966171168
      %v8668 = vunpack.c.0.s8 %v8667
      %v8669 = vlaneseq
      %v8670 = vshrl.u32 %v8669, 7
      %v8671 = vsub.s32 %v8668, %v8670
      %v8672 = vrot.slane %v8665, %v8671
      %v8673 = vcombine.low %v8672, %v6628
      %v8674 = vcombine.low %v6635, %v6663
      %v8676 = vunpack.c.l.s4 1966171168
      %v8677 = vunpack.c.0.s8 %v8676
      %v8678 = vlaneseq
      %v8679 = vshrl.u32 %v8678, 7
      %v8680 = vsub.s32 %v8677, %v8679
      %v8681 = vrot.slane %v8673, %v8680
      %v8683 = vunpack.c.l.s4 1966171168
      %v8684 = vunpack.c.0.s8 %v8683
      %v8685 = vlaneseq
      %v8686 = vshrl.u32 %v8685, 7
      %v8687 = vsub.s32 %v8684, %v8686
      %v8688 = vrot.slane %v8674, %v8687
      %v8689 = vcombine.low %v8681, %v8688
      %v8690 = vcombine.low %v6670, %v6677
      %v8691 = vcombine.low %v6684, %v6712
      %v8693 = vunpack.c.l.s4 1966171168
      %v8694 = vunpack.c.0.s8 %v8693
      %v8695 = vlaneseq
      %v8696 = vshrl.u32 %v8695, 7
      %v8697 = vsub.s32 %v8694, %v8696
      %v8698 = vrot.slane %v8690, %v8697
      %v8700 = vunpack.c.l.s4 1966171168
      %v8701 = vunpack.c.0.s8 %v8700
      %v8702 = vlaneseq
      %v8703 = vshrl.u32 %v8702, 7
      %v8704 = vsub.s32 %v8701, %v8703
      %v8705 = vrot.slane %v8691, %v8704
      %v8706 = vcombine.low %v8698, %v8705
      %v8707 = vcombine.low %v7380, %v8608
      %v8709 = vunpack.c.l.s4 1966171168
      %v8710 = vunpack.c.0.s8 %v8709
      %v8711 = vlaneseq
      %v8712 = vshrl.u32 %v8711, 7
      %v8713 = vsub.s32 %v8710, %v8712
      %v8714 = vrot.slane %v8707, %v8713
      %v8715 = vcombine.low %v8714, %v6726
      %v8716 = vcombine.low %v6733, %v6761
      %v8718 = vunpack.c.l.s4 1966171168
      %v8719 = vunpack.c.0.s8 %v8718
      %v8720 = vlaneseq
      %v8721 = vshrl.u32 %v8720, 7
      %v8722 = vsub.s32 %v8719, %v8721
      %v8723 = vrot.slane %v8715, %v8722
      %v8725 = vunpack.c.l.s4 1966171168
      %v8726 = vunpack.c.0.s8 %v8725
      %v8727 = vlaneseq
      %v8728 = vshrl.u32 %v8727, 7
      %v8729 = vsub.s32 %v8726, %v8728
      %v8730 = vrot.slane %v8716, %v8729
      %v8731 = vcombine.low %v8723, %v8730
      %v8732 = vcombine.low %v6768, %v6775
      %v8733 = vcombine.low %v6782, %v6810
      %v8735 = vunpack.c.l.s4 1966171168
      %v8736 = vunpack.c.0.s8 %v8735
      %v8737 = vlaneseq
      %v8738 = vshrl.u32 %v8737, 7
      %v8739 = vsub.s32 %v8736, %v8738
      %v8740 = vrot.slane %v8732, %v8739
      %v8742 = vunpack.c.l.s4 1966171168
      %v8743 = vunpack.c.0.s8 %v8742
      %v8744 = vlaneseq
      %v8745 = vshrl.u32 %v8744, 7
      %v8746 = vsub.s32 %v8743, %v8745
      %v8747 = vrot.slane %v8733, %v8746
      %v8748 = vcombine.low %v8740, %v8747
      %v8749 = vcombine.low %v5937, %v7388
      %v8750 = vcombine.low %v8609, %v5983
      %v8752 = vunpack.c.l.s4 1966171168
      %v8753 = vunpack.c.0.s8 %v8752
      %v8754 = vlaneseq
      %v8755 = vshrl.u32 %v8754, 7
      %v8756 = vsub.s32 %v8753, %v8755
      %v8757 = vrot.slane %v8749, %v8756
      %v8759 = vunpack.c.l.s4 1966171168
      %v8760 = vunpack.c.0.s8 %v8759
      %v8761 = vlaneseq
      %v8762 = vshrl.u32 %v8761, 7
      %v8763 = vsub.s32 %v8760, %v8762
      %v8764 = vrot.slane %v8750, %v8763
      %v8765 = vcombine.low %v8757, %v8764
      %v8766 = vcombine.low %v6831, %v6859
      %v8768 = vunpack.c.l.s4 1966171168
      %v8769 = vunpack.c.0.s8 %v8768
      %v8770 = vlaneseq
      %v8771 = vshrl.u32 %v8770, 7
      %v8772 = vsub.s32 %v8769, %v8771
      %v8773 = vrot.slane %v8765, %v8772
      %v8775 = vunpack.c.l.s4 1966171168
      %v8776 = vunpack.c.0.s8 %v8775
      %v8777 = vlaneseq
      %v8778 = vshrl.u32 %v8777, 7
      %v8779 = vsub.s32 %v8776, %v8778
      %v8780 = vrot.slane %v8766, %v8779
      %v8781 = vcombine.low %v8773, %v8780
      %v8782 = vcombine.low %v6866, %v6873
      %v8783 = vcombine.low %v6880, %v6908
      %v8785 = vunpack.c.l.s4 1966171168
      %v8786 = vunpack.c.0.s8 %v8785
      %v8787 = vlaneseq
      %v8788 = vshrl.u32 %v8787, 7
      %v8789 = vsub.s32 %v8786, %v8788
      %v8790 = vrot.slane %v8782, %v8789
      %v8792 = vunpack.c.l.s4 1966171168
      %v8793 = vunpack.c.0.s8 %v8792
      %v8794 = vlaneseq
      %v8795 = vshrl.u32 %v8794, 7
      %v8796 = vsub.s32 %v8793, %v8795
      %v8797 = vrot.slane %v8783, %v8796
      %v8798 = vcombine.low %v8790, %v8797
      %v8799 = vcombine.low %v7396, %v8610
      %v8801 = vunpack.c.l.s4 1966171168
      %v8802 = vunpack.c.0.s8 %v8801
      %v8803 = vlaneseq
      %v8804 = vshrl.u32 %v8803, 7
      %v8805 = vsub.s32 %v8802, %v8804
      %v8806 = vrot.slane %v8799, %v8805
      %v8807 = vcombine.low %v6915, %v8806
      %v8808 = vcombine.low %v6929, %v6957
      %v8810 = vunpack.c.l.s4 1966171168
      %v8811 = vunpack.c.0.s8 %v8810
      %v8812 = vlaneseq
      %v8813 = vshrl.u32 %v8812, 7
      %v8814 = vsub.s32 %v8811, %v8813
      %v8815 = vrot.slane %v8807, %v8814
      %v8817 = vunpack.c.l.s4 1966171168
      %v8818 = vunpack.c.0.s8 %v8817
      %v8819 = vlaneseq
      %v8820 = vshrl.u32 %v8819, 7
      %v8821 = vsub.s32 %v8818, %v8820
      %v8822 = vrot.slane %v8808, %v8821
      %v8823 = vcombine.low %v8815, %v8822
      %v8824 = vcombine.low %v6964, %v6971
      %v8825 = vcombine.low %v6978, %v7006
      %v8827 = vunpack.c.l.s4 1966171168
      %v8828 = vunpack.c.0.s8 %v8827
      %v8829 = vlaneseq
      %v8830 = vshrl.u32 %v8829, 7
      %v8831 = vsub.s32 %v8828, %v8830
      %v8832 = vrot.slane %v8824, %v8831
      %v8834 = vunpack.c.l.s4 1966171168
      %v8835 = vunpack.c.0.s8 %v8834
      %v8836 = vlaneseq
      %v8837 = vshrl.u32 %v8836, 7
      %v8838 = vsub.s32 %v8835, %v8837
      %v8839 = vrot.slane %v8825, %v8838
      %v8840 = vcombine.low %v8832, %v8839
      %v8841 = vcombine.low %v6161, %v7404
      %v8842 = vcombine.low %v8611, %v6207
      %v8844 = vunpack.c.l.s4 1966171168
      %v8845 = vunpack.c.0.s8 %v8844
      %v8846 = vlaneseq
      %v8847 = vshrl.u32 %v8846, 7
      %v8848 = vsub.s32 %v8845, %v8847
      %v8849 = vrot.slane %v8841, %v8848
      %v8851 = vunpack.c.l.s4 1966171168
      %v8852 = vunpack.c.0.s8 %v8851
      %v8853 = vlaneseq
      %v8854 = vshrl.u32 %v8853, 7
      %v8855 = vsub.s32 %v8852, %v8854
      %v8856 = vrot.slane %v8842, %v8855
      %v8857 = vcombine.low %v7013, %v8849
      %v8858 = vcombine.low %v8856, %v7055
      %v8860 = vunpack.c.l.s4 1966171168
      %v8861 = vunpack.c.0.s8 %v8860
      %v8862 = vlaneseq
      %v8863 = vshrl.u32 %v8862, 7
      %v8864 = vsub.s32 %v8861, %v8863
      %v8865 = vrot.slane %v8857, %v8864
      %v8867 = vunpack.c.l.s4 1966171168
      %v8868 = vunpack.c.0.s8 %v8867
      %v8869 = vlaneseq
      %v8870 = vshrl.u32 %v8869, 7
      %v8871 = vsub.s32 %v8868, %v8870
      %v8872 = vrot.slane %v8858, %v8871
      %v8873 = vcombine.low %v8865, %v8872
      %v8874 = vcombine.low %v7062, %v7069
      %v8875 = vcombine.low %v7076, %v7104
      %v8877 = vunpack.c.l.s4 1966171168
      %v8878 = vunpack.c.0.s8 %v8877
      %v8879 = vlaneseq
      %v8880 = vshrl.u32 %v8879, 7
      %v8881 = vsub.s32 %v8878, %v8880
      %v8882 = vrot.slane %v8874, %v8881
      %v8884 = vunpack.c.l.s4 1966171168
      %v8885 = vunpack.c.0.s8 %v8884
      %v8886 = vlaneseq
      %v8887 = vshrl.u32 %v8886, 7
      %v8888 = vsub.s32 %v8885, %v8887
      %v8889 = vrot.slane %v8875, %v8888
      %v8890 = vcombine.low %v8882, %v8889
      %v8891 = vcombine.low %v7412, %v8612
      %v8893 = vunpack.c.l.s4 1966171168
      %v8894 = vunpack.c.0.s8 %v8893
      %v8895 = vlaneseq
      %v8896 = vshrl.u32 %v8895, 7
      %v8897 = vsub.s32 %v8894, %v8896
      %v8898 = vrot.slane %v8891, %v8897
      %v8899 = vcombine.low %v7111, %v7118
      %v8900 = vcombine.low %v8898, %v7153
      %v8902 = vunpack.c.l.s4 1966171168
      %v8903 = vunpack.c.0.s8 %v8902
      %v8904 = vlaneseq
      %v8905 = vshrl.u32 %v8904, 7
      %v8906 = vsub.s32 %v8903, %v8905
      %v8907 = vrot.slane %v8899, %v8906
      %v8909 = vunpack.c.l.s4 1966171168
      %v8910 = vunpack.c.0.s8 %v8909
      %v8911 = vlaneseq
      %v8912 = vshrl.u32 %v8911, 7
      %v8913 = vsub.s32 %v8910, %v8912
      %v8914 = vrot.slane %v8900, %v8913
      %v8915 = vcombine.low %v8907, %v8914
      %v8916 = vcombine.low %v7160, %v7167
      %v8917 = vcombine.low %v7174, %v7202
      %v8919 = vunpack.c.l.s4 1966171168
      %v8920 = vunpack.c.0.s8 %v8919
      %v8921 = vlaneseq
      %v8922 = vshrl.u32 %v8921, 7
      %v8923 = vsub.s32 %v8920, %v8922
      %v8924 = vrot.slane %v8916, %v8923
      %v8926 = vunpack.c.l.s4 1966171168
      %v8927 = vunpack.c.0.s8 %v8926
      %v8928 = vlaneseq
      %v8929 = vshrl.u32 %v8928, 7
      %v8930 = vsub.s32 %v8927, %v8929
      %v8931 = vrot.slane %v8917, %v8930
      %v8932 = vcombine.low %v8924, %v8931
      %v8933 = vcombine.low %v6385, %v7420
      %v8934 = vcombine.low %v8613, %v6431
      %v8936 = vunpack.c.l.s4 1966171168
      %v8937 = vunpack.c.0.s8 %v8936
      %v8938 = vlaneseq
      %v8939 = vshrl.u32 %v8938, 7
      %v8940 = vsub.s32 %v8937, %v8939
      %v8941 = vrot.slane %v8933, %v8940
      %v8943 = vunpack.c.l.s4 1966171168
      %v8944 = vunpack.c.0.s8 %v8943
      %v8945 = vlaneseq
      %v8946 = vshrl.u32 %v8945, 7
      %v8947 = vsub.s32 %v8944, %v8946
      %v8948 = vrot.slane %v8934, %v8947
      %v8949 = vcombine.low %v7209, %v7216
      %v8950 = vcombine.low %v8941, %v8948
      %v8952 = vunpack.c.l.s4 1966171168
      %v8953 = vunpack.c.0.s8 %v8952
      %v8954 = vlaneseq
      %v8955 = vshrl.u32 %v8954, 7
      %v8956 = vsub.s32 %v8953, %v8955
      %v8957 = vrot.slane %v8949, %v8956
      %v8959 = vunpack.c.l.s4 1966171168
      %v8960 = vunpack.c.0.s8 %v8959
      %v8961 = vlaneseq
      %v8962 = vshrl.u32 %v8961, 7
      %v8963 = vsub.s32 %v8960, %v8962
      %v8964 = vrot.slane %v8950, %v8963
      %v8965 = vcombine.low %v8957, %v8964
      %v8966 = vcombine.low %v7258, %v7265
      %v8967 = vcombine.low %v7272, %v7300
      %v8969 = vunpack.c.l.s4 1966171168
      %v8970 = vunpack.c.0.s8 %v8969
      %v8971 = vlaneseq
      %v8972 = vshrl.u32 %v8971, 7
      %v8973 = vsub.s32 %v8970, %v8972
      %v8974 = vrot.slane %v8966, %v8973
      %v8976 = vunpack.c.l.s4 1966171168
      %v8977 = vunpack.c.0.s8 %v8976
      %v8978 = vlaneseq
      %v8979 = vshrl.u32 %v8978, 7
      %v8980 = vsub.s32 %v8977, %v8979
      %v8981 = vrot.slane %v8967, %v8980
      %v8982 = vcombine.low %v8974, %v8981
      %v8983 = vcombine.low %v7428, %v8614
      %v8985 = vunpack.c.l.s4 1966171168
      %v8986 = vunpack.c.0.s8 %v8985
      %v8987 = vlaneseq
      %v8988 = vshrl.u32 %v8987, 7
      %v8989 = vsub.s32 %v8986, %v8988
      %v8990 = vrot.slane %v8983, %v8989
      %v8991 = vcombine.low %v7307, %v7314
      %v8992 = vcombine.low %v7321, %v8990
      %v8994 = vunpack.c.l.s4 1966171168
      %v8995 = vunpack.c.0.s8 %v8994
      %v8996 = vlaneseq
      %v8997 = vshrl.u32 %v8996, 7
      %v8998 = vsub.s32 %v8995, %v8997
      %v8999 = vrot.slane %v8991, %v8998
      %v9001 = vunpack.c.l.s4 1966171168
      %v9002 = vunpack.c.0.s8 %v9001
      %v9003 = vlaneseq
      %v9004 = vshrl.u32 %v9003, 7
      %v9005 = vsub.s32 %v9002, %v9004
      %v9006 = vrot.slane %v8992, %v9005
      %v9007 = vcombine.low %v8999, %v9006
      %v9025 = vpack.c.bf16 %v8664, %v8639
      %v9026 = vpack.c.bf16 %v8706, %v8689
      %v9027 = vpack.c.bf16 %v8748, %v8731
      %v9028 = vpack.c.bf16 %v8798, %v8781
      %v9029 = vpack.c.bf16 %v8840, %v8823
      %v9030 = vpack.c.bf16 %v8890, %v8873
      %v9031 = vpack.c.bf16 %v8932, %v8915
      %v9032 = vpack.c.bf16 %v8982, %v8965
      %v9033 = vpack.c.bf16 %v9007, %v9007
      %v9042 = vunpack.c.l.b16 %v8615
      %v9043 = vunpack.c.l.b16 %v8616
      %v9044 = vunpack.c.l.b16 %v8617
      %v9045 = vunpack.c.l.b16 %v8618
      %v9046 = vunpack.c.l.b16 %v8619
      %v9047 = vunpack.c.l.b16 %v8620
      %v9048 = vunpack.c.l.b16 %v8621
      %v9049 = vunpack.c.l.b16 %v8622
      %v9050 = vpack.c.b16 %v9043, %v9042
      %v9051 = vpack.c.b16 %v9045, %v9044
      %v9052 = vpack.c.b16 %v9047, %v9046
      %v9053 = vpack.c.b16 %v9049, %v9048
      %v9059 = vsel %vm8320, %v9025, 0
      %v9062 = vsel %vm8320, %v9026, 0
      %v9065 = vsel %vm8320, %v9027, 0
      %v9068 = vsel %vm8320, %v9028, 0
      %v9071 = vsel %vm8320, %v9029, 0
      %v9074 = vsel %vm8320, %v9030, 0
      %v9077 = vsel %vm8320, %v9031, 0
      %v9080 = vsel %vm8320, %v9032, 0
      %v9083 = vsel %vm8320, %v9033, 0
      %9085 = vmatprep.subr.bf16.mxu0 0
      %9086 = vmatpush1.bf16.msra.mxu0 0
      %9087 = vmatprep.subr.bf16.mxu0 0
      %9088 = vmatpush1.bf16.msra.mxu0 0
      %9089 = vmatprep.subr.bf16.mxu0 0
      %9090 = vmatpush1.bf16.msra.mxu0 0
      %9091 = vmatprep.subr.bf16.mxu0 0
      %9092 = vmatpush1.bf16.msra.mxu0 0
      %9093 = vmatprep.subr.bf16.mxu0 0
      %9094 = vmatpush1.bf16.msra.mxu0 %v9053
      %9095 = vmatprep.subr.bf16.mxu0 0
      %9096 = vmatpush1.bf16.msra.mxu0 %v9052
      %9097 = vmatprep.subr.bf16.mxu0 0
      %9098 = vmatpush1.bf16.msra.mxu0 %v9051
      %9099 = vmatprep.subr.bf16.mxu0 0
      %9100 = vmatpush1.bf16.msra.mxu0 %v9050
      %9101 = vmatprep.subr.bf16.mxu0 0
      %9102 = vmatpush2.bf16.msra.mxu0 0
      %9103 = vmatprep.subr.bf16.mxu0 0
      %9104 = vmatpush2.bf16.msra.mxu0 0
      %9105 = vmatprep.subr.bf16.mxu0 0
      %9106 = vmatpush2.bf16.msra.mxu0 0
      %9107 = vmatprep.subr.bf16.mxu0 0
      %9108 = vmatpush2.bf16.msra.mxu0 0
      %9109 = vmatprep.subr.bf16.mxu0 0
      %9110 = vmatpush2.bf16.msra.mxu0 0
      %9111 = vmatprep.subr.bf16.mxu0 0
      %9112 = vmatpush2.bf16.msra.mxu0 0
      %9113 = vmatprep.subr.bf16.mxu0 0
      %9114 = vmatpush2.bf16.msra.mxu0 0
      %9115 = vmatprep.subr.bf16.mxu0 0
      %9116 = vmatpush2.bf16.msra.mxu0 0
      %9117 = vmatprep.mubr.bf16.mxu0 0
      %9118 = vmatmul.mubr.bf16.gmra.mxu0 %v9059
      %v9119 = vpop.f32.mrf.mxu0
      %v9120 = vadd.f32 0.0, %v9119
      %v9121 = vpop.f32.mrf.mxu0
      %v9122 = vpop.f32.mrf.mxu0
      %v9123 = vadd.f32 0.0, %v9122
      %v9124 = vpop.f32.mrf.mxu0
      %9125 = vmatprep.mubr.bf16.mxu0 0
      %9126 = vmatmul.mubr.bf16.gmra.mxu0 %v9062
      %v9127 = vpop.f32.mrf.mxu0
      %v9128 = vadd.f32 0.0, %v9127
      %v9129 = vpop.f32.mrf.mxu0
      %v9130 = vpop.f32.mrf.mxu0
      %v9131 = vadd.f32 0.0, %v9130
      %v9132 = vpop.f32.mrf.mxu0
      %9133 = vmatprep.mubr.bf16.mxu0 0
      %9134 = vmatmul.mubr.bf16.gmra.mxu0 %v9065
      %v9135 = vpop.f32.mrf.mxu0
      %v9136 = vadd.f32 0.0, %v9135
      %v9137 = vpop.f32.mrf.mxu0
      %v9138 = vpop.f32.mrf.mxu0
      %v9139 = vadd.f32 0.0, %v9138
      %v9140 = vpop.f32.mrf.mxu0
      %9141 = vmatprep.mubr.bf16.mxu0 0
      %9142 = vmatmul.mubr.bf16.gmra.mxu0 %v9068
      %v9143 = vpop.f32.mrf.mxu0
      %v9144 = vadd.f32 0.0, %v9143
      %v9145 = vpop.f32.mrf.mxu0
      %v9146 = vpop.f32.mrf.mxu0
      %v9147 = vadd.f32 0.0, %v9146
      %v9148 = vpop.f32.mrf.mxu0
      %9149 = vmatprep.mubr.bf16.mxu0 0
      %9150 = vmatmul.mubr.bf16.gmra.mxu0 %v9071
      %v9151 = vpop.f32.mrf.mxu0
      %v9152 = vadd.f32 0.0, %v9151
      %v9153 = vpop.f32.mrf.mxu0
      %v9154 = vpop.f32.mrf.mxu0
      %v9155 = vadd.f32 0.0, %v9154
      %v9156 = vpop.f32.mrf.mxu0
      %9157 = vmatprep.mubr.bf16.mxu0 0
      %9158 = vmatmul.mubr.bf16.gmra.mxu0 %v9074
      %v9159 = vpop.f32.mrf.mxu0
      %v9160 = vadd.f32 0.0, %v9159
      %v9161 = vpop.f32.mrf.mxu0
      %v9162 = vpop.f32.mrf.mxu0
      %v9163 = vadd.f32 0.0, %v9162
      %v9164 = vpop.f32.mrf.mxu0
      %9165 = vmatprep.mubr.bf16.mxu0 0
      %9166 = vmatmul.mubr.bf16.gmra.mxu0 %v9077
      %v9167 = vpop.f32.mrf.mxu0
      %v9168 = vadd.f32 0.0, %v9167
      %v9169 = vpop.f32.mrf.mxu0
      %v9170 = vpop.f32.mrf.mxu0
      %v9171 = vadd.f32 0.0, %v9170
      %v9172 = vpop.f32.mrf.mxu0
      %9173 = vmatprep.mubr.bf16.mxu0 0
      %9174 = vmatmul.mubr.bf16.gmra.mxu0 %v9080
      %v9175 = vpop.f32.mrf.mxu0
      %v9176 = vadd.f32 0.0, %v9175
      %v9177 = vpop.f32.mrf.mxu0
      %v9178 = vpop.f32.mrf.mxu0
      %v9179 = vadd.f32 0.0, %v9178
      %v9180 = vpop.f32.mrf.mxu0
      %9181 = vmatprep.mubr.bf16.mxu0 0
      %9182 = vmatmul.mubr.bf16.gmra.mxu0 %v9083
      %v9183 = vpop.f32.mrf.mxu0
      %v9184 = vadd.f32 0.0, %v9183
      %v9185 = vpop.f32.mrf.mxu0
      %v9186 = vpop.f32.mrf.mxu0
      %v9187 = vpop.f32.mrf.mxu0
      %9188 = vdwg.mxu0
      %v9189 = vadd.f32 %v8538, %v9120
      %v9190 = vadd.f32 %v8541, %v9123
      %v9191 = vadd.f32 %v8546, %v9128
      %v9192 = vadd.f32 %v8549, %v9131
      %v9193 = vadd.f32 %v8554, %v9136
      %v9194 = vadd.f32 %v8557, %v9139
      %v9195 = vadd.f32 %v8562, %v9144
      %v9196 = vadd.f32 %v8565, %v9147
      %v9197 = vadd.f32 %v8570, %v9152
      %v9198 = vadd.f32 %v8573, %v9155
      %v9199 = vadd.f32 %v8578, %v9160
      %v9200 = vadd.f32 %v8581, %v9163
      %v9201 = vadd.f32 %v8586, %v9168
      %v9202 = vadd.f32 %v8589, %v9171
      %v9203 = vadd.f32 %v8594, %v9176
      %v9204 = vadd.f32 %v8597, %v9179
      %v9205 = vadd.f32 %v8602, %v9184
      %v9206 = vld [vmem:[%s6] sm:$0x1]
      %v9208 = vlaneseq
      %v9209 = vshrl.u32 %v9208, 7
      %v9210 = vsub.s32 0, %v9209
      %v9211 = vrot.slane %v9206, %v9210
      %v9213 = vadd.f32 %v9189, %v9211
      %v9214 = vadd.f32 %v9190, %v9211
      %v9215 = vadd.f32 %v9191, %v9211
      %v9216 = vadd.f32 %v9192, %v9211
      %v9217 = vadd.f32 %v9193, %v9211
      %v9218 = vadd.f32 %v9194, %v9211
      %v9219 = vadd.f32 %v9195, %v9211
      %v9220 = vadd.f32 %v9196, %v9211
      %v9221 = vadd.f32 %v9197, %v9211
      %v9222 = vadd.f32 %v9198, %v9211
      %v9223 = vadd.f32 %v9199, %v9211
      %v9224 = vadd.f32 %v9200, %v9211
      %v9225 = vadd.f32 %v9201, %v9211
      %v9226 = vadd.f32 %v9202, %v9211
      %v9227 = vadd.f32 %v9203, %v9211
      %v9228 = vadd.f32 %v9204, %v9211
      %v9229 = vadd.f32 %v9205, %v9211
      %v9230 = vmax.f32 %v9213, 0.0
      %v9231 = vmax.f32 %v9214, 0.0
      %v9232 = vmax.f32 %v9215, 0.0
      %v9233 = vmax.f32 %v9216, 0.0
      %v9234 = vmax.f32 %v9217, 0.0
      %v9235 = vmax.f32 %v9218, 0.0
      %v9236 = vmax.f32 %v9219, 0.0
      %v9237 = vmax.f32 %v9220, 0.0
      %v9238 = vmax.f32 %v9221, 0.0
      %v9239 = vmax.f32 %v9222, 0.0
      %v9240 = vmax.f32 %v9223, 0.0
      %v9241 = vmax.f32 %v9224, 0.0
      %v9242 = vmax.f32 %v9225, 0.0
      %v9243 = vmax.f32 %v9226, 0.0
      %v9244 = vmax.f32 %v9227, 0.0
      %v9245 = vmax.f32 %v9228, 0.0
      %v9246 = vmax.f32 %v9229, 0.0
      %v9264 = vcombine.high %v9230, %v9230
      %v9266 = vunpack.c.l.s4 1966171168
      %v9267 = vunpack.c.0.s8 %v9266
      %v9268 = vlaneseq
      %v9269 = vshrl.u32 %v9268, 7
      %v9270 = vsub.s32 %v9267, %v9269
      %v9271 = vrot.slane %v9230, %v9270
      %v9273 = vunpack.c.l.s4 1966171168
      %v9274 = vunpack.c.0.s8 %v9273
      %v9275 = vlaneseq
      %v9276 = vshrl.u32 %v9275, 7
      %v9277 = vsub.s32 %v9274, %v9276
      %v9278 = vrot.slane %v9264, %v9277
      %v9279 = vcombine.high %v9271, %v9271
      %v9280 = vcombine.high %v9278, %v9278
      %v9282 = vunpack.c.l.s4 1966171168
      %v9283 = vunpack.c.0.s8 %v9282
      %v9284 = vlaneseq
      %v9285 = vshrl.u32 %v9284, 7
      %v9286 = vsub.s32 %v9283, %v9285
      %v9287 = vrot.slane %v9271, %v9286
      %v9289 = vunpack.c.l.s4 1966171168
      %v9290 = vunpack.c.0.s8 %v9289
      %v9291 = vlaneseq
      %v9292 = vshrl.u32 %v9291, 7
      %v9293 = vsub.s32 %v9290, %v9292
      %v9294 = vrot.slane %v9278, %v9293
      %v9296 = vunpack.c.l.s4 1966171168
      %v9297 = vunpack.c.0.s8 %v9296
      %v9298 = vlaneseq
      %v9299 = vshrl.u32 %v9298, 7
      %v9300 = vsub.s32 %v9297, %v9299
      %v9301 = vrot.slane %v9279, %v9300
      %v9303 = vunpack.c.l.s4 1966171168
      %v9304 = vunpack.c.0.s8 %v9303
      %v9305 = vlaneseq
      %v9306 = vshrl.u32 %v9305, 7
      %v9307 = vsub.s32 %v9304, %v9306
      %v9308 = vrot.slane %v9280, %v9307
      %v9309 = vcombine.high %v9287, %v9287
      %v9310 = vcombine.high %v9294, %v9294
      %v9311 = vcombine.high %v9301, %v9301
      %v9312 = vcombine.high %v9308, %v9308
      %v9313 = vcombine.high %v9231, %v9231
      %v9315 = vunpack.c.l.s4 1966171168
      %v9316 = vunpack.c.0.s8 %v9315
      %v9317 = vlaneseq
      %v9318 = vshrl.u32 %v9317, 7
      %v9319 = vsub.s32 %v9316, %v9318
      %v9320 = vrot.slane %v9231, %v9319
      %v9322 = vunpack.c.l.s4 1966171168
      %v9323 = vunpack.c.0.s8 %v9322
      %v9324 = vlaneseq
      %v9325 = vshrl.u32 %v9324, 7
      %v9326 = vsub.s32 %v9323, %v9325
      %v9327 = vrot.slane %v9313, %v9326
      %v9328 = vcombine.high %v9320, %v9320
      %v9329 = vcombine.high %v9327, %v9327
      %v9331 = vunpack.c.l.s4 1966171168
      %v9332 = vunpack.c.0.s8 %v9331
      %v9333 = vlaneseq
      %v9334 = vshrl.u32 %v9333, 7
      %v9335 = vsub.s32 %v9332, %v9334
      %v9336 = vrot.slane %v9320, %v9335
      %v9338 = vunpack.c.l.s4 1966171168
      %v9339 = vunpack.c.0.s8 %v9338
      %v9340 = vlaneseq
      %v9341 = vshrl.u32 %v9340, 7
      %v9342 = vsub.s32 %v9339, %v9341
      %v9343 = vrot.slane %v9327, %v9342
      %v9345 = vunpack.c.l.s4 1966171168
      %v9346 = vunpack.c.0.s8 %v9345
      %v9347 = vlaneseq
      %v9348 = vshrl.u32 %v9347, 7
      %v9349 = vsub.s32 %v9346, %v9348
      %v9350 = vrot.slane %v9328, %v9349
      %v9352 = vunpack.c.l.s4 1966171168
      %v9353 = vunpack.c.0.s8 %v9352
      %v9354 = vlaneseq
      %v9355 = vshrl.u32 %v9354, 7
      %v9356 = vsub.s32 %v9353, %v9355
      %v9357 = vrot.slane %v9329, %v9356
      %v9358 = vcombine.high %v9336, %v9336
      %v9359 = vcombine.high %v9343, %v9343
      %v9360 = vcombine.high %v9350, %v9350
      %v9361 = vcombine.high %v9357, %v9357
      %v9362 = vcombine.high %v9232, %v9232
      %v9364 = vunpack.c.l.s4 1966171168
      %v9365 = vunpack.c.0.s8 %v9364
      %v9366 = vlaneseq
      %v9367 = vshrl.u32 %v9366, 7
      %v9368 = vsub.s32 %v9365, %v9367
      %v9369 = vrot.slane %v9232, %v9368
      %v9371 = vunpack.c.l.s4 1966171168
      %v9372 = vunpack.c.0.s8 %v9371
      %v9373 = vlaneseq
      %v9374 = vshrl.u32 %v9373, 7
      %v9375 = vsub.s32 %v9372, %v9374
      %v9376 = vrot.slane %v9362, %v9375
      %v9377 = vcombine.high %v9369, %v9369
      %v9378 = vcombine.high %v9376, %v9376
      %v9380 = vunpack.c.l.s4 1966171168
      %v9381 = vunpack.c.0.s8 %v9380
      %v9382 = vlaneseq
      %v9383 = vshrl.u32 %v9382, 7
      %v9384 = vsub.s32 %v9381, %v9383
      %v9385 = vrot.slane %v9369, %v9384
      %v9387 = vunpack.c.l.s4 1966171168
      %v9388 = vunpack.c.0.s8 %v9387
      %v9389 = vlaneseq
      %v9390 = vshrl.u32 %v9389, 7
      %v9391 = vsub.s32 %v9388, %v9390
      %v9392 = vrot.slane %v9376, %v9391
      %v9394 = vunpack.c.l.s4 1966171168
      %v9395 = vunpack.c.0.s8 %v9394
      %v9396 = vlaneseq
      %v9397 = vshrl.u32 %v9396, 7
      %v9398 = vsub.s32 %v9395, %v9397
      %v9399 = vrot.slane %v9377, %v9398
      %v9401 = vunpack.c.l.s4 1966171168
      %v9402 = vunpack.c.0.s8 %v9401
      %v9403 = vlaneseq
      %v9404 = vshrl.u32 %v9403, 7
      %v9405 = vsub.s32 %v9402, %v9404
      %v9406 = vrot.slane %v9378, %v9405
      %v9407 = vcombine.high %v9385, %v9385
      %v9408 = vcombine.high %v9392, %v9392
      %v9409 = vcombine.high %v9399, %v9399
      %v9410 = vcombine.high %v9406, %v9406
      %v9411 = vcombine.high %v9233, %v9233
      %v9413 = vunpack.c.l.s4 1966171168
      %v9414 = vunpack.c.0.s8 %v9413
      %v9415 = vlaneseq
      %v9416 = vshrl.u32 %v9415, 7
      %v9417 = vsub.s32 %v9414, %v9416
      %v9418 = vrot.slane %v9233, %v9417
      %v9420 = vunpack.c.l.s4 1966171168
      %v9421 = vunpack.c.0.s8 %v9420
      %v9422 = vlaneseq
      %v9423 = vshrl.u32 %v9422, 7
      %v9424 = vsub.s32 %v9421, %v9423
      %v9425 = vrot.slane %v9411, %v9424
      %v9426 = vcombine.high %v9418, %v9418
      %v9427 = vcombine.high %v9425, %v9425
      %v9429 = vunpack.c.l.s4 1966171168
      %v9430 = vunpack.c.0.s8 %v9429
      %v9431 = vlaneseq
      %v9432 = vshrl.u32 %v9431, 7
      %v9433 = vsub.s32 %v9430, %v9432
      %v9434 = vrot.slane %v9418, %v9433
      %v9436 = vunpack.c.l.s4 1966171168
      %v9437 = vunpack.c.0.s8 %v9436
      %v9438 = vlaneseq
      %v9439 = vshrl.u32 %v9438, 7
      %v9440 = vsub.s32 %v9437, %v9439
      %v9441 = vrot.slane %v9425, %v9440
      %v9443 = vunpack.c.l.s4 1966171168
      %v9444 = vunpack.c.0.s8 %v9443
      %v9445 = vlaneseq
      %v9446 = vshrl.u32 %v9445, 7
      %v9447 = vsub.s32 %v9444, %v9446
      %v9448 = vrot.slane %v9426, %v9447
      %v9450 = vunpack.c.l.s4 1966171168
      %v9451 = vunpack.c.0.s8 %v9450
      %v9452 = vlaneseq
      %v9453 = vshrl.u32 %v9452, 7
      %v9454 = vsub.s32 %v9451, %v9453
      %v9455 = vrot.slane %v9427, %v9454
      %v9456 = vcombine.high %v9434, %v9434
      %v9457 = vcombine.high %v9441, %v9441
      %v9458 = vcombine.high %v9448, %v9448
      %v9459 = vcombine.high %v9455, %v9455
      %v9460 = vcombine.high %v9234, %v9234
      %v9462 = vunpack.c.l.s4 1966171168
      %v9463 = vunpack.c.0.s8 %v9462
      %v9464 = vlaneseq
      %v9465 = vshrl.u32 %v9464, 7
      %v9466 = vsub.s32 %v9463, %v9465
      %v9467 = vrot.slane %v9234, %v9466
      %v9469 = vunpack.c.l.s4 1966171168
      %v9470 = vunpack.c.0.s8 %v9469
      %v9471 = vlaneseq
      %v9472 = vshrl.u32 %v9471, 7
      %v9473 = vsub.s32 %v9470, %v9472
      %v9474 = vrot.slane %v9460, %v9473
      %v9475 = vcombine.high %v9467, %v9467
      %v9476 = vcombine.high %v9474, %v9474
      %v9478 = vunpack.c.l.s4 1966171168
      %v9479 = vunpack.c.0.s8 %v9478
      %v9480 = vlaneseq
      %v9481 = vshrl.u32 %v9480, 7
      %v9482 = vsub.s32 %v9479, %v9481
      %v9483 = vrot.slane %v9467, %v9482
      %v9485 = vunpack.c.l.s4 1966171168
      %v9486 = vunpack.c.0.s8 %v9485
      %v9487 = vlaneseq
      %v9488 = vshrl.u32 %v9487, 7
      %v9489 = vsub.s32 %v9486, %v9488
      %v9490 = vrot.slane %v9474, %v9489
      %v9492 = vunpack.c.l.s4 1966171168
      %v9493 = vunpack.c.0.s8 %v9492
      %v9494 = vlaneseq
      %v9495 = vshrl.u32 %v9494, 7
      %v9496 = vsub.s32 %v9493, %v9495
      %v9497 = vrot.slane %v9475, %v9496
      %v9499 = vunpack.c.l.s4 1966171168
      %v9500 = vunpack.c.0.s8 %v9499
      %v9501 = vlaneseq
      %v9502 = vshrl.u32 %v9501, 7
      %v9503 = vsub.s32 %v9500, %v9502
      %v9504 = vrot.slane %v9476, %v9503
      %v9505 = vcombine.high %v9483, %v9483
      %v9506 = vcombine.high %v9490, %v9490
      %v9507 = vcombine.high %v9497, %v9497
      %v9508 = vcombine.high %v9504, %v9504
      %v9509 = vcombine.high %v9235, %v9235
      %v9511 = vunpack.c.l.s4 1966171168
      %v9512 = vunpack.c.0.s8 %v9511
      %v9513 = vlaneseq
      %v9514 = vshrl.u32 %v9513, 7
      %v9515 = vsub.s32 %v9512, %v9514
      %v9516 = vrot.slane %v9235, %v9515
      %v9518 = vunpack.c.l.s4 1966171168
      %v9519 = vunpack.c.0.s8 %v9518
      %v9520 = vlaneseq
      %v9521 = vshrl.u32 %v9520, 7
      %v9522 = vsub.s32 %v9519, %v9521
      %v9523 = vrot.slane %v9509, %v9522
      %v9524 = vcombine.high %v9516, %v9516
      %v9525 = vcombine.high %v9523, %v9523
      %v9527 = vunpack.c.l.s4 1966171168
      %v9528 = vunpack.c.0.s8 %v9527
      %v9529 = vlaneseq
      %v9530 = vshrl.u32 %v9529, 7
      %v9531 = vsub.s32 %v9528, %v9530
      %v9532 = vrot.slane %v9516, %v9531
      %v9534 = vunpack.c.l.s4 1966171168
      %v9535 = vunpack.c.0.s8 %v9534
      %v9536 = vlaneseq
      %v9537 = vshrl.u32 %v9536, 7
      %v9538 = vsub.s32 %v9535, %v9537
      %v9539 = vrot.slane %v9523, %v9538
      %v9541 = vunpack.c.l.s4 1966171168
      %v9542 = vunpack.c.0.s8 %v9541
      %v9543 = vlaneseq
      %v9544 = vshrl.u32 %v9543, 7
      %v9545 = vsub.s32 %v9542, %v9544
      %v9546 = vrot.slane %v9524, %v9545
      %v9548 = vunpack.c.l.s4 1966171168
      %v9549 = vunpack.c.0.s8 %v9548
      %v9550 = vlaneseq
      %v9551 = vshrl.u32 %v9550, 7
      %v9552 = vsub.s32 %v9549, %v9551
      %v9553 = vrot.slane %v9525, %v9552
      %v9554 = vcombine.high %v9532, %v9532
      %v9555 = vcombine.high %v9539, %v9539
      %v9556 = vcombine.high %v9546, %v9546
      %v9557 = vcombine.high %v9553, %v9553
      %v9558 = vcombine.high %v9236, %v9236
      %v9560 = vunpack.c.l.s4 1966171168
      %v9561 = vunpack.c.0.s8 %v9560
      %v9562 = vlaneseq
      %v9563 = vshrl.u32 %v9562, 7
      %v9564 = vsub.s32 %v9561, %v9563
      %v9565 = vrot.slane %v9236, %v9564
      %v9567 = vunpack.c.l.s4 1966171168
      %v9568 = vunpack.c.0.s8 %v9567
      %v9569 = vlaneseq
      %v9570 = vshrl.u32 %v9569, 7
      %v9571 = vsub.s32 %v9568, %v9570
      %v9572 = vrot.slane %v9558, %v9571
      %v9573 = vcombine.high %v9565, %v9565
      %v9574 = vcombine.high %v9572, %v9572
      %v9576 = vunpack.c.l.s4 1966171168
      %v9577 = vunpack.c.0.s8 %v9576
      %v9578 = vlaneseq
      %v9579 = vshrl.u32 %v9578, 7
      %v9580 = vsub.s32 %v9577, %v9579
      %v9581 = vrot.slane %v9565, %v9580
      %v9583 = vunpack.c.l.s4 1966171168
      %v9584 = vunpack.c.0.s8 %v9583
      %v9585 = vlaneseq
      %v9586 = vshrl.u32 %v9585, 7
      %v9587 = vsub.s32 %v9584, %v9586
      %v9588 = vrot.slane %v9572, %v9587
      %v9590 = vunpack.c.l.s4 1966171168
      %v9591 = vunpack.c.0.s8 %v9590
      %v9592 = vlaneseq
      %v9593 = vshrl.u32 %v9592, 7
      %v9594 = vsub.s32 %v9591, %v9593
      %v9595 = vrot.slane %v9573, %v9594
      %v9597 = vunpack.c.l.s4 1966171168
      %v9598 = vunpack.c.0.s8 %v9597
      %v9599 = vlaneseq
      %v9600 = vshrl.u32 %v9599, 7
      %v9601 = vsub.s32 %v9598, %v9600
      %v9602 = vrot.slane %v9574, %v9601
      %v9603 = vcombine.high %v9581, %v9581
      %v9604 = vcombine.high %v9588, %v9588
      %v9605 = vcombine.high %v9595, %v9595
      %v9606 = vcombine.high %v9602, %v9602
      %v9607 = vcombine.high %v9237, %v9237
      %v9609 = vunpack.c.l.s4 1966171168
      %v9610 = vunpack.c.0.s8 %v9609
      %v9611 = vlaneseq
      %v9612 = vshrl.u32 %v9611, 7
      %v9613 = vsub.s32 %v9610, %v9612
      %v9614 = vrot.slane %v9237, %v9613
      %v9616 = vunpack.c.l.s4 1966171168
      %v9617 = vunpack.c.0.s8 %v9616
      %v9618 = vlaneseq
      %v9619 = vshrl.u32 %v9618, 7
      %v9620 = vsub.s32 %v9617, %v9619
      %v9621 = vrot.slane %v9607, %v9620
      %v9622 = vcombine.high %v9614, %v9614
      %v9623 = vcombine.high %v9621, %v9621
      %v9625 = vunpack.c.l.s4 1966171168
      %v9626 = vunpack.c.0.s8 %v9625
      %v9627 = vlaneseq
      %v9628 = vshrl.u32 %v9627, 7
      %v9629 = vsub.s32 %v9626, %v9628
      %v9630 = vrot.slane %v9614, %v9629
      %v9632 = vunpack.c.l.s4 1966171168
      %v9633 = vunpack.c.0.s8 %v9632
      %v9634 = vlaneseq
      %v9635 = vshrl.u32 %v9634, 7
      %v9636 = vsub.s32 %v9633, %v9635
      %v9637 = vrot.slane %v9621, %v9636
      %v9639 = vunpack.c.l.s4 1966171168
      %v9640 = vunpack.c.0.s8 %v9639
      %v9641 = vlaneseq
      %v9642 = vshrl.u32 %v9641, 7
      %v9643 = vsub.s32 %v9640, %v9642
      %v9644 = vrot.slane %v9622, %v9643
      %v9646 = vunpack.c.l.s4 1966171168
      %v9647 = vunpack.c.0.s8 %v9646
      %v9648 = vlaneseq
      %v9649 = vshrl.u32 %v9648, 7
      %v9650 = vsub.s32 %v9647, %v9649
      %v9651 = vrot.slane %v9623, %v9650
      %v9652 = vcombine.high %v9630, %v9630
      %v9653 = vcombine.high %v9637, %v9637
      %v9654 = vcombine.high %v9644, %v9644
      %v9655 = vcombine.high %v9651, %v9651
      %v9656 = vcombine.high %v9238, %v9238
      %v9658 = vunpack.c.l.s4 1966171168
      %v9659 = vunpack.c.0.s8 %v9658
      %v9660 = vlaneseq
      %v9661 = vshrl.u32 %v9660, 7
      %v9662 = vsub.s32 %v9659, %v9661
      %v9663 = vrot.slane %v9238, %v9662
      %v9665 = vunpack.c.l.s4 1966171168
      %v9666 = vunpack.c.0.s8 %v9665
      %v9667 = vlaneseq
      %v9668 = vshrl.u32 %v9667, 7
      %v9669 = vsub.s32 %v9666, %v9668
      %v9670 = vrot.slane %v9656, %v9669
      %v9671 = vcombine.high %v9663, %v9663
      %v9672 = vcombine.high %v9670, %v9670
      %v9674 = vunpack.c.l.s4 1966171168
      %v9675 = vunpack.c.0.s8 %v9674
      %v9676 = vlaneseq
      %v9677 = vshrl.u32 %v9676, 7
      %v9678 = vsub.s32 %v9675, %v9677
      %v9679 = vrot.slane %v9663, %v9678
      %v9681 = vunpack.c.l.s4 1966171168
      %v9682 = vunpack.c.0.s8 %v9681
      %v9683 = vlaneseq
      %v9684 = vshrl.u32 %v9683, 7
      %v9685 = vsub.s32 %v9682, %v9684
      %v9686 = vrot.slane %v9670, %v9685
      %v9688 = vunpack.c.l.s4 1966171168
      %v9689 = vunpack.c.0.s8 %v9688
      %v9690 = vlaneseq
      %v9691 = vshrl.u32 %v9690, 7
      %v9692 = vsub.s32 %v9689, %v9691
      %v9693 = vrot.slane %v9671, %v9692
      %v9695 = vunpack.c.l.s4 1966171168
      %v9696 = vunpack.c.0.s8 %v9695
      %v9697 = vlaneseq
      %v9698 = vshrl.u32 %v9697, 7
      %v9699 = vsub.s32 %v9696, %v9698
      %v9700 = vrot.slane %v9672, %v9699
      %v9701 = vcombine.high %v9679, %v9679
      %v9702 = vcombine.high %v9686, %v9686
      %v9703 = vcombine.high %v9693, %v9693
      %v9704 = vcombine.high %v9700, %v9700
      %v9705 = vcombine.high %v9239, %v9239
      %v9707 = vunpack.c.l.s4 1966171168
      %v9708 = vunpack.c.0.s8 %v9707
      %v9709 = vlaneseq
      %v9710 = vshrl.u32 %v9709, 7
      %v9711 = vsub.s32 %v9708, %v9710
      %v9712 = vrot.slane %v9239, %v9711
      %v9714 = vunpack.c.l.s4 1966171168
      %v9715 = vunpack.c.0.s8 %v9714
      %v9716 = vlaneseq
      %v9717 = vshrl.u32 %v9716, 7
      %v9718 = vsub.s32 %v9715, %v9717
      %v9719 = vrot.slane %v9705, %v9718
      %v9720 = vcombine.high %v9712, %v9712
      %v9721 = vcombine.high %v9719, %v9719
      %v9723 = vunpack.c.l.s4 1966171168
      %v9724 = vunpack.c.0.s8 %v9723
      %v9725 = vlaneseq
      %v9726 = vshrl.u32 %v9725, 7
      %v9727 = vsub.s32 %v9724, %v9726
      %v9728 = vrot.slane %v9712, %v9727
      %v9730 = vunpack.c.l.s4 1966171168
      %v9731 = vunpack.c.0.s8 %v9730
      %v9732 = vlaneseq
      %v9733 = vshrl.u32 %v9732, 7
      %v9734 = vsub.s32 %v9731, %v9733
      %v9735 = vrot.slane %v9719, %v9734
      %v9737 = vunpack.c.l.s4 1966171168
      %v9738 = vunpack.c.0.s8 %v9737
      %v9739 = vlaneseq
      %v9740 = vshrl.u32 %v9739, 7
      %v9741 = vsub.s32 %v9738, %v9740
      %v9742 = vrot.slane %v9720, %v9741
      %v9744 = vunpack.c.l.s4 1966171168
      %v9745 = vunpack.c.0.s8 %v9744
      %v9746 = vlaneseq
      %v9747 = vshrl.u32 %v9746, 7
      %v9748 = vsub.s32 %v9745, %v9747
      %v9749 = vrot.slane %v9721, %v9748
      %v9750 = vcombine.high %v9728, %v9728
      %v9751 = vcombine.high %v9735, %v9735
      %v9752 = vcombine.high %v9742, %v9742
      %v9753 = vcombine.high %v9749, %v9749
      %v9754 = vcombine.high %v9240, %v9240
      %v9756 = vunpack.c.l.s4 1966171168
      %v9757 = vunpack.c.0.s8 %v9756
      %v9758 = vlaneseq
      %v9759 = vshrl.u32 %v9758, 7
      %v9760 = vsub.s32 %v9757, %v9759
      %v9761 = vrot.slane %v9240, %v9760
      %v9763 = vunpack.c.l.s4 1966171168
      %v9764 = vunpack.c.0.s8 %v9763
      %v9765 = vlaneseq
      %v9766 = vshrl.u32 %v9765, 7
      %v9767 = vsub.s32 %v9764, %v9766
      %v9768 = vrot.slane %v9754, %v9767
      %v9769 = vcombine.high %v9761, %v9761
      %v9770 = vcombine.high %v9768, %v9768
      %v9772 = vunpack.c.l.s4 1966171168
      %v9773 = vunpack.c.0.s8 %v9772
      %v9774 = vlaneseq
      %v9775 = vshrl.u32 %v9774, 7
      %v9776 = vsub.s32 %v9773, %v9775
      %v9777 = vrot.slane %v9761, %v9776
      %v9779 = vunpack.c.l.s4 1966171168
      %v9780 = vunpack.c.0.s8 %v9779
      %v9781 = vlaneseq
      %v9782 = vshrl.u32 %v9781, 7
      %v9783 = vsub.s32 %v9780, %v9782
      %v9784 = vrot.slane %v9768, %v9783
      %v9786 = vunpack.c.l.s4 1966171168
      %v9787 = vunpack.c.0.s8 %v9786
      %v9788 = vlaneseq
      %v9789 = vshrl.u32 %v9788, 7
      %v9790 = vsub.s32 %v9787, %v9789
      %v9791 = vrot.slane %v9769, %v9790
      %v9793 = vunpack.c.l.s4 1966171168
      %v9794 = vunpack.c.0.s8 %v9793
      %v9795 = vlaneseq
      %v9796 = vshrl.u32 %v9795, 7
      %v9797 = vsub.s32 %v9794, %v9796
      %v9798 = vrot.slane %v9770, %v9797
      %v9799 = vcombine.high %v9777, %v9777
      %v9800 = vcombine.high %v9784, %v9784
      %v9801 = vcombine.high %v9791, %v9791
      %v9802 = vcombine.high %v9798, %v9798
      %v9803 = vcombine.high %v9241, %v9241
      %v9805 = vunpack.c.l.s4 1966171168
      %v9806 = vunpack.c.0.s8 %v9805
      %v9807 = vlaneseq
      %v9808 = vshrl.u32 %v9807, 7
      %v9809 = vsub.s32 %v9806, %v9808
      %v9810 = vrot.slane %v9241, %v9809
      %v9812 = vunpack.c.l.s4 1966171168
      %v9813 = vunpack.c.0.s8 %v9812
      %v9814 = vlaneseq
      %v9815 = vshrl.u32 %v9814, 7
      %v9816 = vsub.s32 %v9813, %v9815
      %v9817 = vrot.slane %v9803, %v9816
      %v9818 = vcombine.high %v9810, %v9810
      %v9819 = vcombine.high %v9817, %v9817
      %v9821 = vunpack.c.l.s4 1966171168
      %v9822 = vunpack.c.0.s8 %v9821
      %v9823 = vlaneseq
      %v9824 = vshrl.u32 %v9823, 7
      %v9825 = vsub.s32 %v9822, %v9824
      %v9826 = vrot.slane %v9810, %v9825
      %v9828 = vunpack.c.l.s4 1966171168
      %v9829 = vunpack.c.0.s8 %v9828
      %v9830 = vlaneseq
      %v9831 = vshrl.u32 %v9830, 7
      %v9832 = vsub.s32 %v9829, %v9831
      %v9833 = vrot.slane %v9817, %v9832
      %v9835 = vunpack.c.l.s4 1966171168
      %v9836 = vunpack.c.0.s8 %v9835
      %v9837 = vlaneseq
      %v9838 = vshrl.u32 %v9837, 7
      %v9839 = vsub.s32 %v9836, %v9838
      %v9840 = vrot.slane %v9818, %v9839
      %v9842 = vunpack.c.l.s4 1966171168
      %v9843 = vunpack.c.0.s8 %v9842
      %v9844 = vlaneseq
      %v9845 = vshrl.u32 %v9844, 7
      %v9846 = vsub.s32 %v9843, %v9845
      %v9847 = vrot.slane %v9819, %v9846
      %v9848 = vcombine.high %v9826, %v9826
      %v9849 = vcombine.high %v9833, %v9833
      %v9850 = vcombine.high %v9840, %v9840
      %v9851 = vcombine.high %v9847, %v9847
      %v9852 = vcombine.high %v9242, %v9242
      %v9854 = vunpack.c.l.s4 1966171168
      %v9855 = vunpack.c.0.s8 %v9854
      %v9856 = vlaneseq
      %v9857 = vshrl.u32 %v9856, 7
      %v9858 = vsub.s32 %v9855, %v9857
      %v9859 = vrot.slane %v9242, %v9858
      %v9861 = vunpack.c.l.s4 1966171168
      %v9862 = vunpack.c.0.s8 %v9861
      %v9863 = vlaneseq
      %v9864 = vshrl.u32 %v9863, 7
      %v9865 = vsub.s32 %v9862, %v9864
      %v9866 = vrot.slane %v9852, %v9865
      %v9867 = vcombine.high %v9859, %v9859
      %v9868 = vcombine.high %v9866, %v9866
      %v9870 = vunpack.c.l.s4 1966171168
      %v9871 = vunpack.c.0.s8 %v9870
      %v9872 = vlaneseq
      %v9873 = vshrl.u32 %v9872, 7
      %v9874 = vsub.s32 %v9871, %v9873
      %v9875 = vrot.slane %v9859, %v9874
      %v9877 = vunpack.c.l.s4 1966171168
      %v9878 = vunpack.c.0.s8 %v9877
      %v9879 = vlaneseq
      %v9880 = vshrl.u32 %v9879, 7
      %v9881 = vsub.s32 %v9878, %v9880
      %v9882 = vrot.slane %v9866, %v9881
      %v9884 = vunpack.c.l.s4 1966171168
      %v9885 = vunpack.c.0.s8 %v9884
      %v9886 = vlaneseq
      %v9887 = vshrl.u32 %v9886, 7
      %v9888 = vsub.s32 %v9885, %v9887
      %v9889 = vrot.slane %v9867, %v9888
      %v9891 = vunpack.c.l.s4 1966171168
      %v9892 = vunpack.c.0.s8 %v9891
      %v9893 = vlaneseq
      %v9894 = vshrl.u32 %v9893, 7
      %v9895 = vsub.s32 %v9892, %v9894
      %v9896 = vrot.slane %v9868, %v9895
      %v9897 = vcombine.high %v9875, %v9875
      %v9898 = vcombine.high %v9882, %v9882
      %v9899 = vcombine.high %v9889, %v9889
      %v9900 = vcombine.high %v9896, %v9896
      %v9901 = vcombine.high %v9243, %v9243
      %v9903 = vunpack.c.l.s4 1966171168
      %v9904 = vunpack.c.0.s8 %v9903
      %v9905 = vlaneseq
      %v9906 = vshrl.u32 %v9905, 7
      %v9907 = vsub.s32 %v9904, %v9906
      %v9908 = vrot.slane %v9243, %v9907
      %v9910 = vunpack.c.l.s4 1966171168
      %v9911 = vunpack.c.0.s8 %v9910
      %v9912 = vlaneseq
      %v9913 = vshrl.u32 %v9912, 7
      %v9914 = vsub.s32 %v9911, %v9913
      %v9915 = vrot.slane %v9901, %v9914
      %v9916 = vcombine.high %v9908, %v9908
      %v9917 = vcombine.high %v9915, %v9915
      %v9919 = vunpack.c.l.s4 1966171168
      %v9920 = vunpack.c.0.s8 %v9919
      %v9921 = vlaneseq
      %v9922 = vshrl.u32 %v9921, 7
      %v9923 = vsub.s32 %v9920, %v9922
      %v9924 = vrot.slane %v9908, %v9923
      %v9926 = vunpack.c.l.s4 1966171168
      %v9927 = vunpack.c.0.s8 %v9926
      %v9928 = vlaneseq
      %v9929 = vshrl.u32 %v9928, 7
      %v9930 = vsub.s32 %v9927, %v9929
      %v9931 = vrot.slane %v9915, %v9930
      %v9933 = vunpack.c.l.s4 1966171168
      %v9934 = vunpack.c.0.s8 %v9933
      %v9935 = vlaneseq
      %v9936 = vshrl.u32 %v9935, 7
      %v9937 = vsub.s32 %v9934, %v9936
      %v9938 = vrot.slane %v9916, %v9937
      %v9940 = vunpack.c.l.s4 1966171168
      %v9941 = vunpack.c.0.s8 %v9940
      %v9942 = vlaneseq
      %v9943 = vshrl.u32 %v9942, 7
      %v9944 = vsub.s32 %v9941, %v9943
      %v9945 = vrot.slane %v9917, %v9944
      %v9946 = vcombine.high %v9924, %v9924
      %v9947 = vcombine.high %v9931, %v9931
      %v9948 = vcombine.high %v9938, %v9938
      %v9949 = vcombine.high %v9945, %v9945
      %v9950 = vcombine.high %v9244, %v9244
      %v9952 = vunpack.c.l.s4 1966171168
      %v9953 = vunpack.c.0.s8 %v9952
      %v9954 = vlaneseq
      %v9955 = vshrl.u32 %v9954, 7
      %v9956 = vsub.s32 %v9953, %v9955
      %v9957 = vrot.slane %v9244, %v9956
      %v9959 = vunpack.c.l.s4 1966171168
      %v9960 = vunpack.c.0.s8 %v9959
      %v9961 = vlaneseq
      %v9962 = vshrl.u32 %v9961, 7
      %v9963 = vsub.s32 %v9960, %v9962
      %v9964 = vrot.slane %v9950, %v9963
      %v9965 = vcombine.high %v9957, %v9957
      %v9966 = vcombine.high %v9964, %v9964
      %v9968 = vunpack.c.l.s4 1966171168
      %v9969 = vunpack.c.0.s8 %v9968
      %v9970 = vlaneseq
      %v9971 = vshrl.u32 %v9970, 7
      %v9972 = vsub.s32 %v9969, %v9971
      %v9973 = vrot.slane %v9957, %v9972
      %v9975 = vunpack.c.l.s4 1966171168
      %v9976 = vunpack.c.0.s8 %v9975
      %v9977 = vlaneseq
      %v9978 = vshrl.u32 %v9977, 7
      %v9979 = vsub.s32 %v9976, %v9978
      %v9980 = vrot.slane %v9964, %v9979
      %v9982 = vunpack.c.l.s4 1966171168
      %v9983 = vunpack.c.0.s8 %v9982
      %v9984 = vlaneseq
      %v9985 = vshrl.u32 %v9984, 7
      %v9986 = vsub.s32 %v9983, %v9985
      %v9987 = vrot.slane %v9965, %v9986
      %v9989 = vunpack.c.l.s4 1966171168
      %v9990 = vunpack.c.0.s8 %v9989
      %v9991 = vlaneseq
      %v9992 = vshrl.u32 %v9991, 7
      %v9993 = vsub.s32 %v9990, %v9992
      %v9994 = vrot.slane %v9966, %v9993
      %v9995 = vcombine.high %v9973, %v9973
      %v9996 = vcombine.high %v9980, %v9980
      %v9997 = vcombine.high %v9987, %v9987
      %v9998 = vcombine.high %v9994, %v9994
      %v9999 = vcombine.high %v9245, %v9245
      %v10001 = vunpack.c.l.s4 1966171168
      %v10002 = vunpack.c.0.s8 %v10001
      %v10003 = vlaneseq
      %v10004 = vshrl.u32 %v10003, 7
      %v10005 = vsub.s32 %v10002, %v10004
      %v10006 = vrot.slane %v9245, %v10005
      %v10008 = vunpack.c.l.s4 1966171168
      %v10009 = vunpack.c.0.s8 %v10008
      %v10010 = vlaneseq
      %v10011 = vshrl.u32 %v10010, 7
      %v10012 = vsub.s32 %v10009, %v10011
      %v10013 = vrot.slane %v9999, %v10012
      %v10014 = vcombine.high %v10006, %v10006
      %v10015 = vcombine.high %v10013, %v10013
      %v10017 = vunpack.c.l.s4 1966171168
      %v10018 = vunpack.c.0.s8 %v10017
      %v10019 = vlaneseq
      %v10020 = vshrl.u32 %v10019, 7
      %v10021 = vsub.s32 %v10018, %v10020
      %v10022 = vrot.slane %v10006, %v10021
      %v10024 = vunpack.c.l.s4 1966171168
      %v10025 = vunpack.c.0.s8 %v10024
      %v10026 = vlaneseq
      %v10027 = vshrl.u32 %v10026, 7
      %v10028 = vsub.s32 %v10025, %v10027
      %v10029 = vrot.slane %v10013, %v10028
      %v10031 = vunpack.c.l.s4 1966171168
      %v10032 = vunpack.c.0.s8 %v10031
      %v10033 = vlaneseq
      %v10034 = vshrl.u32 %v10033, 7
      %v10035 = vsub.s32 %v10032, %v10034
      %v10036 = vrot.slane %v10014, %v10035
      %v10038 = vunpack.c.l.s4 1966171168
      %v10039 = vunpack.c.0.s8 %v10038
      %v10040 = vlaneseq
      %v10041 = vshrl.u32 %v10040, 7
      %v10042 = vsub.s32 %v10039, %v10041
      %v10043 = vrot.slane %v10015, %v10042
      %v10044 = vcombine.high %v10022, %v10022
      %v10045 = vcombine.high %v10029, %v10029
      %v10046 = vcombine.high %v10036, %v10036
      %v10047 = vcombine.high %v10043, %v10043
      %v10048 = vcombine.high %v9246, %v9246
      %v10050 = vunpack.c.l.s4 1966171168
      %v10051 = vunpack.c.0.s8 %v10050
      %v10052 = vlaneseq
      %v10053 = vshrl.u32 %v10052, 7
      %v10054 = vsub.s32 %v10051, %v10053
      %v10055 = vrot.slane %v9246, %v10054
      %v10057 = vunpack.c.l.s4 1966171168
      %v10058 = vunpack.c.0.s8 %v10057
      %v10059 = vlaneseq
      %v10060 = vshrl.u32 %v10059, 7
      %v10061 = vsub.s32 %v10058, %v10060
      %v10062 = vrot.slane %v10048, %v10061
      %v10063 = vcombine.high %v10055, %v10055
      %v10064 = vcombine.high %v10062, %v10062
      %v10066 = vunpack.c.l.s4 1966171168
      %v10067 = vunpack.c.0.s8 %v10066
      %v10068 = vlaneseq
      %v10069 = vshrl.u32 %v10068, 7
      %v10070 = vsub.s32 %v10067, %v10069
      %v10071 = vrot.slane %v10055, %v10070
      %v10073 = vunpack.c.l.s4 1966171168
      %v10074 = vunpack.c.0.s8 %v10073
      %v10075 = vlaneseq
      %v10076 = vshrl.u32 %v10075, 7
      %v10077 = vsub.s32 %v10074, %v10076
      %v10078 = vrot.slane %v10062, %v10077
      %v10080 = vunpack.c.l.s4 1966171168
      %v10081 = vunpack.c.0.s8 %v10080
      %v10082 = vlaneseq
      %v10083 = vshrl.u32 %v10082, 7
      %v10084 = vsub.s32 %v10081, %v10083
      %v10085 = vrot.slane %v10063, %v10084
      %v10087 = vunpack.c.l.s4 1966171168
      %v10088 = vunpack.c.0.s8 %v10087
      %v10089 = vlaneseq
      %v10090 = vshrl.u32 %v10089, 7
      %v10091 = vsub.s32 %v10088, %v10090
      %v10092 = vrot.slane %v10064, %v10091
      %v10093 = vcombine.high %v10071, %v10071
      %v10094 = vcombine.high %v10078, %v10078
      %v10095 = vcombine.high %v10085, %v10085
      %v10096 = vcombine.high %v10092, %v10092
      %v10097 = vcombine.low %v9287, %v9301
      %v10099 = vunpack.c.l.s4 1966171168
      %v10100 = vunpack.c.0.s8 %v10099
      %v10101 = vlaneseq
      %v10102 = vshrl.u32 %v10101, 7
      %v10103 = vsub.s32 %v10100, %v10102
      %v10104 = vrot.slane %v10097, %v10103
      %v10106 = vunpack.c.l.s4 1966171168
      %v10107 = vunpack.c.0.s8 %v10106
      %v10108 = vlaneseq
      %v10109 = vshrl.u32 %v10108, 7
      %v10110 = vsub.s32 %v10107, %v10109
      %v10111 = vrot.slane %v9309, %v10110
      %v10112 = vcombine.low %v10104, %v10111
      %v10114 = vunpack.c.l.s4 1966171168
      %v10115 = vunpack.c.0.s8 %v10114
      %v10116 = vlaneseq
      %v10117 = vshrl.u32 %v10116, 7
      %v10118 = vsub.s32 %v10115, %v10117
      %v10119 = vrot.slane %v10112, %v10118
      %v10120 = vcombine.low %v9311, %v9294
      %v10122 = vunpack.c.l.s4 1966171168
      %v10123 = vunpack.c.0.s8 %v10122
      %v10124 = vlaneseq
      %v10125 = vshrl.u32 %v10124, 7
      %v10126 = vsub.s32 %v10123, %v10125
      %v10127 = vrot.slane %v10120, %v10126
      %v10129 = vunpack.c.l.s4 1966171168
      %v10130 = vunpack.c.0.s8 %v10129
      %v10131 = vlaneseq
      %v10132 = vshrl.u32 %v10131, 7
      %v10133 = vsub.s32 %v10130, %v10132
      %v10134 = vrot.slane %v9308, %v10133
      %v10135 = vcombine.low %v10127, %v10134
      %v10137 = vunpack.c.l.s4 1966171168
      %v10138 = vunpack.c.0.s8 %v10137
      %v10139 = vlaneseq
      %v10140 = vshrl.u32 %v10139, 7
      %v10141 = vsub.s32 %v10138, %v10140
      %v10142 = vrot.slane %v10135, %v10141
      %v10143 = vcombine.low %v9310, %v9312
      %v10145 = vunpack.c.l.s4 1966171168
      %v10146 = vunpack.c.0.s8 %v10145
      %v10147 = vlaneseq
      %v10148 = vshrl.u32 %v10147, 7
      %v10149 = vsub.s32 %v10146, %v10148
      %v10150 = vrot.slane %v10143, %v10149
      %v10152 = vunpack.c.l.s4 1966171168
      %v10153 = vunpack.c.0.s8 %v10152
      %v10154 = vlaneseq
      %v10155 = vshrl.u32 %v10154, 7
      %v10156 = vsub.s32 %v10153, %v10155
      %v10157 = vrot.slane %v9336, %v10156
      %v10158 = vcombine.low %v10150, %v10157
      %v10160 = vunpack.c.l.s4 1966171168
      %v10161 = vunpack.c.0.s8 %v10160
      %v10162 = vlaneseq
      %v10163 = vshrl.u32 %v10162, 7
      %v10164 = vsub.s32 %v10161, %v10163
      %v10165 = vrot.slane %v10158, %v10164
      %v10166 = vcombine.low %v9350, %v9358
      %v10168 = vunpack.c.l.s4 1966171168
      %v10169 = vunpack.c.0.s8 %v10168
      %v10170 = vlaneseq
      %v10171 = vshrl.u32 %v10170, 7
      %v10172 = vsub.s32 %v10169, %v10171
      %v10173 = vrot.slane %v10166, %v10172
      %v10175 = vunpack.c.l.s4 1966171168
      %v10176 = vunpack.c.0.s8 %v10175
      %v10177 = vlaneseq
      %v10178 = vshrl.u32 %v10177, 7
      %v10179 = vsub.s32 %v10176, %v10178
      %v10180 = vrot.slane %v9360, %v10179
      %v10181 = vcombine.low %v10173, %v10180
      %v10183 = vunpack.c.l.s4 1966171168
      %v10184 = vunpack.c.0.s8 %v10183
      %v10185 = vlaneseq
      %v10186 = vshrl.u32 %v10185, 7
      %v10187 = vsub.s32 %v10184, %v10186
      %v10188 = vrot.slane %v10181, %v10187
      %v10189 = vcombine.low %v9343, %v9357
      %v10191 = vunpack.c.l.s4 1966171168
      %v10192 = vunpack.c.0.s8 %v10191
      %v10193 = vlaneseq
      %v10194 = vshrl.u32 %v10193, 7
      %v10195 = vsub.s32 %v10192, %v10194
      %v10196 = vrot.slane %v10189, %v10195
      %v10198 = vunpack.c.l.s4 1966171168
      %v10199 = vunpack.c.0.s8 %v10198
      %v10200 = vlaneseq
      %v10201 = vshrl.u32 %v10200, 7
      %v10202 = vsub.s32 %v10199, %v10201
      %v10203 = vrot.slane %v9359, %v10202
      %v10204 = vcombine.low %v10196, %v10203
      %v10206 = vunpack.c.l.s4 1966171168
      %v10207 = vunpack.c.0.s8 %v10206
      %v10208 = vlaneseq
      %v10209 = vshrl.u32 %v10208, 7
      %v10210 = vsub.s32 %v10207, %v10209
      %v10211 = vrot.slane %v10204, %v10210
      %v10212 = vcombine.low %v9399, %v9407
      %v10214 = vunpack.c.l.s4 1966171168
      %v10215 = vunpack.c.0.s8 %v10214
      %v10216 = vlaneseq
      %v10217 = vshrl.u32 %v10216, 7
      %v10218 = vsub.s32 %v10215, %v10217
      %v10219 = vrot.slane %v10212, %v10218
      %v10221 = vunpack.c.l.s4 1966171168
      %v10222 = vunpack.c.0.s8 %v10221
      %v10223 = vlaneseq
      %v10224 = vshrl.u32 %v10223, 7
      %v10225 = vsub.s32 %v10222, %v10224
      %v10226 = vrot.slane %v9409, %v10225
      %v10227 = vcombine.low %v10219, %v10226
      %v10229 = vunpack.c.l.s4 1966171168
      %v10230 = vunpack.c.0.s8 %v10229
      %v10231 = vlaneseq
      %v10232 = vshrl.u32 %v10231, 7
      %v10233 = vsub.s32 %v10230, %v10232
      %v10234 = vrot.slane %v10227, %v10233
      %v10235 = vcombine.low %v9392, %v9406
      %v10237 = vunpack.c.l.s4 1966171168
      %v10238 = vunpack.c.0.s8 %v10237
      %v10239 = vlaneseq
      %v10240 = vshrl.u32 %v10239, 7
      %v10241 = vsub.s32 %v10238, %v10240
      %v10242 = vrot.slane %v10235, %v10241
      %v10244 = vunpack.c.l.s4 1966171168
      %v10245 = vunpack.c.0.s8 %v10244
      %v10246 = vlaneseq
      %v10247 = vshrl.u32 %v10246, 7
      %v10248 = vsub.s32 %v10245, %v10247
      %v10249 = vrot.slane %v9408, %v10248
      %v10250 = vcombine.low %v10242, %v10249
      %v10252 = vunpack.c.l.s4 1966171168
      %v10253 = vunpack.c.0.s8 %v10252
      %v10254 = vlaneseq
      %v10255 = vshrl.u32 %v10254, 7
      %v10256 = vsub.s32 %v10253, %v10255
      %v10257 = vrot.slane %v10250, %v10256
      %v10258 = vcombine.low %v9410, %v9434
      %v10260 = vunpack.c.l.s4 1966171168
      %v10261 = vunpack.c.0.s8 %v10260
      %v10262 = vlaneseq
      %v10263 = vshrl.u32 %v10262, 7
      %v10264 = vsub.s32 %v10261, %v10263
      %v10265 = vrot.slane %v10258, %v10264
      %v10267 = vunpack.c.l.s4 1966171168
      %v10268 = vunpack.c.0.s8 %v10267
      %v10269 = vlaneseq
      %v10270 = vshrl.u32 %v10269, 7
      %v10271 = vsub.s32 %v10268, %v10270
      %v10272 = vrot.slane %v9448, %v10271
      %v10273 = vcombine.low %v10265, %v10272
      %v10275 = vunpack.c.l.s4 1966171168
      %v10276 = vunpack.c.0.s8 %v10275
      %v10277 = vlaneseq
      %v10278 = vshrl.u32 %v10277, 7
      %v10279 = vsub.s32 %v10276, %v10278
      %v10280 = vrot.slane %v10273, %v10279
      %v10281 = vcombine.low %v9456, %v9458
      %v10283 = vunpack.c.l.s4 1966171168
      %v10284 = vunpack.c.0.s8 %v10283
      %v10285 = vlaneseq
      %v10286 = vshrl.u32 %v10285, 7
      %v10287 = vsub.s32 %v10284, %v10286
      %v10288 = vrot.slane %v10281, %v10287
      %v10290 = vunpack.c.l.s4 1966171168
      %v10291 = vunpack.c.0.s8 %v10290
      %v10292 = vlaneseq
      %v10293 = vshrl.u32 %v10292, 7
      %v10294 = vsub.s32 %v10291, %v10293
      %v10295 = vrot.slane %v9441, %v10294
      %v10296 = vcombine.low %v10288, %v10295
      %v10298 = vunpack.c.l.s4 1966171168
      %v10299 = vunpack.c.0.s8 %v10298
      %v10300 = vlaneseq
      %v10301 = vshrl.u32 %v10300, 7
      %v10302 = vsub.s32 %v10299, %v10301
      %v10303 = vrot.slane %v10296, %v10302
      %v10304 = vcombine.low %v9455, %v9457
      %v10306 = vunpack.c.l.s4 1966171168
      %v10307 = vunpack.c.0.s8 %v10306
      %v10308 = vlaneseq
      %v10309 = vshrl.u32 %v10308, 7
      %v10310 = vsub.s32 %v10307, %v10309
      %v10311 = vrot.slane %v10304, %v10310
      %v10313 = vunpack.c.l.s4 1966171168
      %v10314 = vunpack.c.0.s8 %v10313
      %v10315 = vlaneseq
      %v10316 = vshrl.u32 %v10315, 7
      %v10317 = vsub.s32 %v10314, %v10316
      %v10318 = vrot.slane %v9459, %v10317
      %v10319 = vcombine.low %v10311, %v10318
      %v10321 = vunpack.c.l.s4 1966171168
      %v10322 = vunpack.c.0.s8 %v10321
      %v10323 = vlaneseq
      %v10324 = vshrl.u32 %v10323, 7
      %v10325 = vsub.s32 %v10322, %v10324
      %v10326 = vrot.slane %v10319, %v10325
      %v10327 = vcombine.low %v9505, %v9507
      %v10329 = vunpack.c.l.s4 1966171168
      %v10330 = vunpack.c.0.s8 %v10329
      %v10331 = vlaneseq
      %v10332 = vshrl.u32 %v10331, 7
      %v10333 = vsub.s32 %v10330, %v10332
      %v10334 = vrot.slane %v10327, %v10333
      %v10336 = vunpack.c.l.s4 1966171168
      %v10337 = vunpack.c.0.s8 %v10336
      %v10338 = vlaneseq
      %v10339 = vshrl.u32 %v10338, 7
      %v10340 = vsub.s32 %v10337, %v10339
      %v10341 = vrot.slane %v9490, %v10340
      %v10342 = vcombine.low %v10334, %v10341
      %v10344 = vunpack.c.l.s4 1966171168
      %v10345 = vunpack.c.0.s8 %v10344
      %v10346 = vlaneseq
      %v10347 = vshrl.u32 %v10346, 7
      %v10348 = vsub.s32 %v10345, %v10347
      %v10349 = vrot.slane %v10342, %v10348
      %v10350 = vcombine.low %v9504, %v9506
      %v10352 = vunpack.c.l.s4 1966171168
      %v10353 = vunpack.c.0.s8 %v10352
      %v10354 = vlaneseq
      %v10355 = vshrl.u32 %v10354, 7
      %v10356 = vsub.s32 %v10353, %v10355
      %v10357 = vrot.slane %v10350, %v10356
      %v10359 = vunpack.c.l.s4 1966171168
      %v10360 = vunpack.c.0.s8 %v10359
      %v10361 = vlaneseq
      %v10362 = vshrl.u32 %v10361, 7
      %v10363 = vsub.s32 %v10360, %v10362
      %v10364 = vrot.slane %v9508, %v10363
      %v10365 = vcombine.low %v10357, %v10364
      %v10367 = vunpack.c.l.s4 1966171168
      %v10368 = vunpack.c.0.s8 %v10367
      %v10369 = vlaneseq
      %v10370 = vshrl.u32 %v10369, 7
      %v10371 = vsub.s32 %v10368, %v10370
      %v10372 = vrot.slane %v10365, %v10371
      %v10373 = vcombine.low %v9532, %v9546
      %v10375 = vunpack.c.l.s4 1966171168
      %v10376 = vunpack.c.0.s8 %v10375
      %v10377 = vlaneseq
      %v10378 = vshrl.u32 %v10377, 7
      %v10379 = vsub.s32 %v10376, %v10378
      %v10380 = vrot.slane %v10373, %v10379
      %v10382 = vunpack.c.l.s4 1966171168
      %v10383 = vunpack.c.0.s8 %v10382
      %v10384 = vlaneseq
      %v10385 = vshrl.u32 %v10384, 7
      %v10386 = vsub.s32 %v10383, %v10385
      %v10387 = vrot.slane %v9554, %v10386
      %v10388 = vcombine.low %v10380, %v10387
      %v10390 = vunpack.c.l.s4 1966171168
      %v10391 = vunpack.c.0.s8 %v10390
      %v10392 = vlaneseq
      %v10393 = vshrl.u32 %v10392, 7
      %v10394 = vsub.s32 %v10391, %v10393
      %v10395 = vrot.slane %v10388, %v10394
      %v10396 = vcombine.low %v9556, %v9539
      %v10398 = vunpack.c.l.s4 1966171168
      %v10399 = vunpack.c.0.s8 %v10398
      %v10400 = vlaneseq
      %v10401 = vshrl.u32 %v10400, 7
      %v10402 = vsub.s32 %v10399, %v10401
      %v10403 = vrot.slane %v10396, %v10402
      %v10405 = vunpack.c.l.s4 1966171168
      %v10406 = vunpack.c.0.s8 %v10405
      %v10407 = vlaneseq
      %v10408 = vshrl.u32 %v10407, 7
      %v10409 = vsub.s32 %v10406, %v10408
      %v10410 = vrot.slane %v9553, %v10409
      %v10411 = vcombine.low %v10403, %v10410
      %v10413 = vunpack.c.l.s4 1966171168
      %v10414 = vunpack.c.0.s8 %v10413
      %v10415 = vlaneseq
      %v10416 = vshrl.u32 %v10415, 7
      %v10417 = vsub.s32 %v10414, %v10416
      %v10418 = vrot.slane %v10411, %v10417
      %v10419 = vcombine.low %v9555, %v9557
      %v10421 = vunpack.c.l.s4 1966171168
      %v10422 = vunpack.c.0.s8 %v10421
      %v10423 = vlaneseq
      %v10424 = vshrl.u32 %v10423, 7
      %v10425 = vsub.s32 %v10422, %v10424
      %v10426 = vrot.slane %v10419, %v10425
      %v10428 = vunpack.c.l.s4 1966171168
      %v10429 = vunpack.c.0.s8 %v10428
      %v10430 = vlaneseq
      %v10431 = vshrl.u32 %v10430, 7
      %v10432 = vsub.s32 %v10429, %v10431
      %v10433 = vrot.slane %v9581, %v10432
      %v10434 = vcombine.low %v10426, %v10433
      %v10436 = vunpack.c.l.s4 1966171168
      %v10437 = vunpack.c.0.s8 %v10436
      %v10438 = vlaneseq
      %v10439 = vshrl.u32 %v10438, 7
      %v10440 = vsub.s32 %v10437, %v10439
      %v10441 = vrot.slane %v10434, %v10440
      %v10442 = vcombine.low %v9605, %v9588
      %v10444 = vunpack.c.l.s4 1966171168
      %v10445 = vunpack.c.0.s8 %v10444
      %v10446 = vlaneseq
      %v10447 = vshrl.u32 %v10446, 7
      %v10448 = vsub.s32 %v10445, %v10447
      %v10449 = vrot.slane %v10442, %v10448
      %v10451 = vunpack.c.l.s4 1966171168
      %v10452 = vunpack.c.0.s8 %v10451
      %v10453 = vlaneseq
      %v10454 = vshrl.u32 %v10453, 7
      %v10455 = vsub.s32 %v10452, %v10454
      %v10456 = vrot.slane %v9602, %v10455
      %v10457 = vcombine.low %v10449, %v10456
      %v10459 = vunpack.c.l.s4 1966171168
      %v10460 = vunpack.c.0.s8 %v10459
      %v10461 = vlaneseq
      %v10462 = vshrl.u32 %v10461, 7
      %v10463 = vsub.s32 %v10460, %v10462
      %v10464 = vrot.slane %v10457, %v10463
      %v10465 = vcombine.low %v9604, %v9606
      %v10467 = vunpack.c.l.s4 1966171168
      %v10468 = vunpack.c.0.s8 %v10467
      %v10469 = vlaneseq
      %v10470 = vshrl.u32 %v10469, 7
      %v10471 = vsub.s32 %v10468, %v10470
      %v10472 = vrot.slane %v10465, %v10471
      %v10474 = vunpack.c.l.s4 1966171168
      %v10475 = vunpack.c.0.s8 %v10474
      %v10476 = vlaneseq
      %v10477 = vshrl.u32 %v10476, 7
      %v10478 = vsub.s32 %v10475, %v10477
      %v10479 = vrot.slane %v9630, %v10478
      %v10480 = vcombine.low %v10472, %v10479
      %v10482 = vunpack.c.l.s4 1966171168
      %v10483 = vunpack.c.0.s8 %v10482
      %v10484 = vlaneseq
      %v10485 = vshrl.u32 %v10484, 7
      %v10486 = vsub.s32 %v10483, %v10485
      %v10487 = vrot.slane %v10480, %v10486
      %v10488 = vcombine.low %v9644, %v9652
      %v10490 = vunpack.c.l.s4 1966171168
      %v10491 = vunpack.c.0.s8 %v10490
      %v10492 = vlaneseq
      %v10493 = vshrl.u32 %v10492, 7
      %v10494 = vsub.s32 %v10491, %v10493
      %v10495 = vrot.slane %v10488, %v10494
      %v10497 = vunpack.c.l.s4 1966171168
      %v10498 = vunpack.c.0.s8 %v10497
      %v10499 = vlaneseq
      %v10500 = vshrl.u32 %v10499, 7
      %v10501 = vsub.s32 %v10498, %v10500
      %v10502 = vrot.slane %v9654, %v10501
      %v10503 = vcombine.low %v10495, %v10502
      %v10505 = vunpack.c.l.s4 1966171168
      %v10506 = vunpack.c.0.s8 %v10505
      %v10507 = vlaneseq
      %v10508 = vshrl.u32 %v10507, 7
      %v10509 = vsub.s32 %v10506, %v10508
      %v10510 = vrot.slane %v10503, %v10509
      %v10511 = vcombine.low %v9637, %v9651
      %v10513 = vunpack.c.l.s4 1966171168
      %v10514 = vunpack.c.0.s8 %v10513
      %v10515 = vlaneseq
      %v10516 = vshrl.u32 %v10515, 7
      %v10517 = vsub.s32 %v10514, %v10516
      %v10518 = vrot.slane %v10511, %v10517
      %v10520 = vunpack.c.l.s4 1966171168
      %v10521 = vunpack.c.0.s8 %v10520
      %v10522 = vlaneseq
      %v10523 = vshrl.u32 %v10522, 7
      %v10524 = vsub.s32 %v10521, %v10523
      %v10525 = vrot.slane %v9653, %v10524
      %v10526 = vcombine.low %v10518, %v10525
      %v10528 = vunpack.c.l.s4 1966171168
      %v10529 = vunpack.c.0.s8 %v10528
      %v10530 = vlaneseq
      %v10531 = vshrl.u32 %v10530, 7
      %v10532 = vsub.s32 %v10529, %v10531
      %v10533 = vrot.slane %v10526, %v10532
      %v10534 = vcombine.low %v9655, %v9679
      %v10536 = vunpack.c.l.s4 1966171168
      %v10537 = vunpack.c.0.s8 %v10536
      %v10538 = vlaneseq
      %v10539 = vshrl.u32 %v10538, 7
      %v10540 = vsub.s32 %v10537, %v10539
      %v10541 = vrot.slane %v10534, %v10540
      %v10543 = vunpack.c.l.s4 1966171168
      %v10544 = vunpack.c.0.s8 %v10543
      %v10545 = vlaneseq
      %v10546 = vshrl.u32 %v10545, 7
      %v10547 = vsub.s32 %v10544, %v10546
      %v10548 = vrot.slane %v9693, %v10547
      %v10549 = vcombine.low %v10541, %v10548
      %v10551 = vunpack.c.l.s4 1966171168
      %v10552 = vunpack.c.0.s8 %v10551
      %v10553 = vlaneseq
      %v10554 = vshrl.u32 %v10553, 7
      %v10555 = vsub.s32 %v10552, %v10554
      %v10556 = vrot.slane %v10549, %v10555
      %v10557 = vcombine.low %v9686, %v9700
      %v10559 = vunpack.c.l.s4 1966171168
      %v10560 = vunpack.c.0.s8 %v10559
      %v10561 = vlaneseq
      %v10562 = vshrl.u32 %v10561, 7
      %v10563 = vsub.s32 %v10560, %v10562
      %v10564 = vrot.slane %v10557, %v10563
      %v10566 = vunpack.c.l.s4 1966171168
      %v10567 = vunpack.c.0.s8 %v10566
      %v10568 = vlaneseq
      %v10569 = vshrl.u32 %v10568, 7
      %v10570 = vsub.s32 %v10567, %v10569
      %v10571 = vrot.slane %v9702, %v10570
      %v10572 = vcombine.low %v10564, %v10571
      %v10574 = vunpack.c.l.s4 1966171168
      %v10575 = vunpack.c.0.s8 %v10574
      %v10576 = vlaneseq
      %v10577 = vshrl.u32 %v10576, 7
      %v10578 = vsub.s32 %v10575, %v10577
      %v10579 = vrot.slane %v10572, %v10578
      %v10580 = vcombine.low %v9704, %v9728
      %v10582 = vunpack.c.l.s4 1966171168
      %v10583 = vunpack.c.0.s8 %v10582
      %v10584 = vlaneseq
      %v10585 = vshrl.u32 %v10584, 7
      %v10586 = vsub.s32 %v10583, %v10585
      %v10587 = vrot.slane %v10580, %v10586
      %v10589 = vunpack.c.l.s4 1966171168
      %v10590 = vunpack.c.0.s8 %v10589
      %v10591 = vlaneseq
      %v10592 = vshrl.u32 %v10591, 7
      %v10593 = vsub.s32 %v10590, %v10592
      %v10594 = vrot.slane %v9742, %v10593
      %v10595 = vcombine.low %v10587, %v10594
      %v10597 = vunpack.c.l.s4 1966171168
      %v10598 = vunpack.c.0.s8 %v10597
      %v10599 = vlaneseq
      %v10600 = vshrl.u32 %v10599, 7
      %v10601 = vsub.s32 %v10598, %v10600
      %v10602 = vrot.slane %v10595, %v10601
      %v10603 = vcombine.low %v9750, %v9752
      %v10605 = vunpack.c.l.s4 1966171168
      %v10606 = vunpack.c.0.s8 %v10605
      %v10607 = vlaneseq
      %v10608 = vshrl.u32 %v10607, 7
      %v10609 = vsub.s32 %v10606, %v10608
      %v10610 = vrot.slane %v10603, %v10609
      %v10612 = vunpack.c.l.s4 1966171168
      %v10613 = vunpack.c.0.s8 %v10612
      %v10614 = vlaneseq
      %v10615 = vshrl.u32 %v10614, 7
      %v10616 = vsub.s32 %v10613, %v10615
      %v10617 = vrot.slane %v9735, %v10616
      %v10618 = vcombine.low %v10610, %v10617
      %v10620 = vunpack.c.l.s4 1966171168
      %v10621 = vunpack.c.0.s8 %v10620
      %v10622 = vlaneseq
      %v10623 = vshrl.u32 %v10622, 7
      %v10624 = vsub.s32 %v10621, %v10623
      %v10625 = vrot.slane %v10618, %v10624
      %v10626 = vcombine.low %v9749, %v9751
      %v10628 = vunpack.c.l.s4 1966171168
      %v10629 = vunpack.c.0.s8 %v10628
      %v10630 = vlaneseq
      %v10631 = vshrl.u32 %v10630, 7
      %v10632 = vsub.s32 %v10629, %v10631
      %v10633 = vrot.slane %v10626, %v10632
      %v10635 = vunpack.c.l.s4 1966171168
      %v10636 = vunpack.c.0.s8 %v10635
      %v10637 = vlaneseq
      %v10638 = vshrl.u32 %v10637, 7
      %v10639 = vsub.s32 %v10636, %v10638
      %v10640 = vrot.slane %v9753, %v10639
      %v10641 = vcombine.low %v10633, %v10640
      %v10643 = vunpack.c.l.s4 1966171168
      %v10644 = vunpack.c.0.s8 %v10643
      %v10645 = vlaneseq
      %v10646 = vshrl.u32 %v10645, 7
      %v10647 = vsub.s32 %v10644, %v10646
      %v10648 = vrot.slane %v10641, %v10647
      %v10649 = vcombine.low %v9777, %v9791
      %v10651 = vunpack.c.l.s4 1966171168
      %v10652 = vunpack.c.0.s8 %v10651
      %v10653 = vlaneseq
      %v10654 = vshrl.u32 %v10653, 7
      %v10655 = vsub.s32 %v10652, %v10654
      %v10656 = vrot.slane %v10649, %v10655
      %v10658 = vunpack.c.l.s4 1966171168
      %v10659 = vunpack.c.0.s8 %v10658
      %v10660 = vlaneseq
      %v10661 = vshrl.u32 %v10660, 7
      %v10662 = vsub.s32 %v10659, %v10661
      %v10663 = vrot.slane %v9799, %v10662
      %v10664 = vcombine.low %v10656, %v10663
      %v10666 = vunpack.c.l.s4 1966171168
      %v10667 = vunpack.c.0.s8 %v10666
      %v10668 = vlaneseq
      %v10669 = vshrl.u32 %v10668, 7
      %v10670 = vsub.s32 %v10667, %v10669
      %v10671 = vrot.slane %v10664, %v10670
      %v10672 = vcombine.low %v9798, %v9800
      %v10674 = vunpack.c.l.s4 1966171168
      %v10675 = vunpack.c.0.s8 %v10674
      %v10676 = vlaneseq
      %v10677 = vshrl.u32 %v10676, 7
      %v10678 = vsub.s32 %v10675, %v10677
      %v10679 = vrot.slane %v10672, %v10678
      %v10681 = vunpack.c.l.s4 1966171168
      %v10682 = vunpack.c.0.s8 %v10681
      %v10683 = vlaneseq
      %v10684 = vshrl.u32 %v10683, 7
      %v10685 = vsub.s32 %v10682, %v10684
      %v10686 = vrot.slane %v9802, %v10685
      %v10687 = vcombine.low %v10679, %v10686
      %v10689 = vunpack.c.l.s4 1966171168
      %v10690 = vunpack.c.0.s8 %v10689
      %v10691 = vlaneseq
      %v10692 = vshrl.u32 %v10691, 7
      %v10693 = vsub.s32 %v10690, %v10692
      %v10694 = vrot.slane %v10687, %v10693
      %v10695 = vcombine.low %v9826, %v9840
      %v10697 = vunpack.c.l.s4 1966171168
      %v10698 = vunpack.c.0.s8 %v10697
      %v10699 = vlaneseq
      %v10700 = vshrl.u32 %v10699, 7
      %v10701 = vsub.s32 %v10698, %v10700
      %v10702 = vrot.slane %v10695, %v10701
      %v10704 = vunpack.c.l.s4 1966171168
      %v10705 = vunpack.c.0.s8 %v10704
      %v10706 = vlaneseq
      %v10707 = vshrl.u32 %v10706, 7
      %v10708 = vsub.s32 %v10705, %v10707
      %v10709 = vrot.slane %v9848, %v10708
      %v10710 = vcombine.low %v10702, %v10709
      %v10712 = vunpack.c.l.s4 1966171168
      %v10713 = vunpack.c.0.s8 %v10712
      %v10714 = vlaneseq
      %v10715 = vshrl.u32 %v10714, 7
      %v10716 = vsub.s32 %v10713, %v10715
      %v10717 = vrot.slane %v10710, %v10716
      %v10718 = vcombine.low %v9850, %v9833
      %v10720 = vunpack.c.l.s4 1966171168
      %v10721 = vunpack.c.0.s8 %v10720
      %v10722 = vlaneseq
      %v10723 = vshrl.u32 %v10722, 7
      %v10724 = vsub.s32 %v10721, %v10723
      %v10725 = vrot.slane %v10718, %v10724
      %v10727 = vunpack.c.l.s4 1966171168
      %v10728 = vunpack.c.0.s8 %v10727
      %v10729 = vlaneseq
      %v10730 = vshrl.u32 %v10729, 7
      %v10731 = vsub.s32 %v10728, %v10730
      %v10732 = vrot.slane %v9847, %v10731
      %v10733 = vcombine.low %v10725, %v10732
      %v10735 = vunpack.c.l.s4 1966171168
      %v10736 = vunpack.c.0.s8 %v10735
      %v10737 = vlaneseq
      %v10738 = vshrl.u32 %v10737, 7
      %v10739 = vsub.s32 %v10736, %v10738
      %v10740 = vrot.slane %v10733, %v10739
      %v10741 = vcombine.low %v9849, %v9851
      %v10743 = vunpack.c.l.s4 1966171168
      %v10744 = vunpack.c.0.s8 %v10743
      %v10745 = vlaneseq
      %v10746 = vshrl.u32 %v10745, 7
      %v10747 = vsub.s32 %v10744, %v10746
      %v10748 = vrot.slane %v10741, %v10747
      %v10750 = vunpack.c.l.s4 1966171168
      %v10751 = vunpack.c.0.s8 %v10750
      %v10752 = vlaneseq
      %v10753 = vshrl.u32 %v10752, 7
      %v10754 = vsub.s32 %v10751, %v10753
      %v10755 = vrot.slane %v9875, %v10754
      %v10756 = vcombine.low %v10748, %v10755
      %v10758 = vunpack.c.l.s4 1966171168
      %v10759 = vunpack.c.0.s8 %v10758
      %v10760 = vlaneseq
      %v10761 = vshrl.u32 %v10760, 7
      %v10762 = vsub.s32 %v10759, %v10761
      %v10763 = vrot.slane %v10756, %v10762
      %v10764 = vcombine.low %v9889, %v9897
      %v10766 = vunpack.c.l.s4 1966171168
      %v10767 = vunpack.c.0.s8 %v10766
      %v10768 = vlaneseq
      %v10769 = vshrl.u32 %v10768, 7
      %v10770 = vsub.s32 %v10767, %v10769
      %v10771 = vrot.slane %v10764, %v10770
      %v10773 = vunpack.c.l.s4 1966171168
      %v10774 = vunpack.c.0.s8 %v10773
      %v10775 = vlaneseq
      %v10776 = vshrl.u32 %v10775, 7
      %v10777 = vsub.s32 %v10774, %v10776
      %v10778 = vrot.slane %v9899, %v10777
      %v10779 = vcombine.low %v10771, %v10778
      %v10781 = vunpack.c.l.s4 1966171168
      %v10782 = vunpack.c.0.s8 %v10781
      %v10783 = vlaneseq
      %v10784 = vshrl.u32 %v10783, 7
      %v10785 = vsub.s32 %v10782, %v10784
      %v10786 = vrot.slane %v10779, %v10785
      %v10787 = vcombine.low %v9898, %v9900
      %v10789 = vunpack.c.l.s4 1966171168
      %v10790 = vunpack.c.0.s8 %v10789
      %v10791 = vlaneseq
      %v10792 = vshrl.u32 %v10791, 7
      %v10793 = vsub.s32 %v10790, %v10792
      %v10794 = vrot.slane %v10787, %v10793
      %v10796 = vunpack.c.l.s4 1966171168
      %v10797 = vunpack.c.0.s8 %v10796
      %v10798 = vlaneseq
      %v10799 = vshrl.u32 %v10798, 7
      %v10800 = vsub.s32 %v10797, %v10799
      %v10801 = vrot.slane %v9924, %v10800
      %v10802 = vcombine.low %v10794, %v10801
      %v10804 = vunpack.c.l.s4 1966171168
      %v10805 = vunpack.c.0.s8 %v10804
      %v10806 = vlaneseq
      %v10807 = vshrl.u32 %v10806, 7
      %v10808 = vsub.s32 %v10805, %v10807
      %v10809 = vrot.slane %v10802, %v10808
      %v10810 = vcombine.low %v9938, %v9946
      %v10812 = vunpack.c.l.s4 1966171168
      %v10813 = vunpack.c.0.s8 %v10812
      %v10814 = vlaneseq
      %v10815 = vshrl.u32 %v10814, 7
      %v10816 = vsub.s32 %v10813, %v10815
      %v10817 = vrot.slane %v10810, %v10816
      %v10819 = vunpack.c.l.s4 1966171168
      %v10820 = vunpack.c.0.s8 %v10819
      %v10821 = vlaneseq
      %v10822 = vshrl.u32 %v10821, 7
      %v10823 = vsub.s32 %v10820, %v10822
      %v10824 = vrot.slane %v9948, %v10823
      %v10825 = vcombine.low %v10817, %v10824
      %v10827 = vunpack.c.l.s4 1966171168
      %v10828 = vunpack.c.0.s8 %v10827
      %v10829 = vlaneseq
      %v10830 = vshrl.u32 %v10829, 7
      %v10831 = vsub.s32 %v10828, %v10830
      %v10832 = vrot.slane %v10825, %v10831
      %v10833 = vcombine.low %v9931, %v9945
      %v10835 = vunpack.c.l.s4 1966171168
      %v10836 = vunpack.c.0.s8 %v10835
      %v10837 = vlaneseq
      %v10838 = vshrl.u32 %v10837, 7
      %v10839 = vsub.s32 %v10836, %v10838
      %v10840 = vrot.slane %v10833, %v10839
      %v10842 = vunpack.c.l.s4 1966171168
      %v10843 = vunpack.c.0.s8 %v10842
      %v10844 = vlaneseq
      %v10845 = vshrl.u32 %v10844, 7
      %v10846 = vsub.s32 %v10843, %v10845
      %v10847 = vrot.slane %v9947, %v10846
      %v10848 = vcombine.low %v10840, %v10847
      %v10850 = vunpack.c.l.s4 1966171168
      %v10851 = vunpack.c.0.s8 %v10850
      %v10852 = vlaneseq
      %v10853 = vshrl.u32 %v10852, 7
      %v10854 = vsub.s32 %v10851, %v10853
      %v10855 = vrot.slane %v10848, %v10854
      %v10856 = vcombine.low %v9949, %v9973
      %v10858 = vunpack.c.l.s4 1966171168
      %v10859 = vunpack.c.0.s8 %v10858
      %v10860 = vlaneseq
      %v10861 = vshrl.u32 %v10860, 7
      %v10862 = vsub.s32 %v10859, %v10861
      %v10863 = vrot.slane %v10856, %v10862
      %v10865 = vunpack.c.l.s4 1966171168
      %v10866 = vunpack.c.0.s8 %v10865
      %v10867 = vlaneseq
      %v10868 = vshrl.u32 %v10867, 7
      %v10869 = vsub.s32 %v10866, %v10868
      %v10870 = vrot.slane %v9987, %v10869
      %v10871 = vcombine.low %v10863, %v10870
      %v10873 = vunpack.c.l.s4 1966171168
      %v10874 = vunpack.c.0.s8 %v10873
      %v10875 = vlaneseq
      %v10876 = vshrl.u32 %v10875, 7
      %v10877 = vsub.s32 %v10874, %v10876
      %v10878 = vrot.slane %v10871, %v10877
      %v10879 = vcombine.low %v9995, %v9997
      %v10881 = vunpack.c.l.s4 1966171168
      %v10882 = vunpack.c.0.s8 %v10881
      %v10883 = vlaneseq
      %v10884 = vshrl.u32 %v10883, 7
      %v10885 = vsub.s32 %v10882, %v10884
      %v10886 = vrot.slane %v10879, %v10885
      %v10888 = vunpack.c.l.s4 1966171168
      %v10889 = vunpack.c.0.s8 %v10888
      %v10890 = vlaneseq
      %v10891 = vshrl.u32 %v10890, 7
      %v10892 = vsub.s32 %v10889, %v10891
      %v10893 = vrot.slane %v9980, %v10892
      %v10894 = vcombine.low %v10886, %v10893
      %v10896 = vunpack.c.l.s4 1966171168
      %v10897 = vunpack.c.0.s8 %v10896
      %v10898 = vlaneseq
      %v10899 = vshrl.u32 %v10898, 7
      %v10900 = vsub.s32 %v10897, %v10899
      %v10901 = vrot.slane %v10894, %v10900
      %v10902 = vcombine.low %v9998, %v10022
      %v10904 = vunpack.c.l.s4 1966171168
      %v10905 = vunpack.c.0.s8 %v10904
      %v10906 = vlaneseq
      %v10907 = vshrl.u32 %v10906, 7
      %v10908 = vsub.s32 %v10905, %v10907
      %v10909 = vrot.slane %v10902, %v10908
      %v10911 = vunpack.c.l.s4 1966171168
      %v10912 = vunpack.c.0.s8 %v10911
      %v10913 = vlaneseq
      %v10914 = vshrl.u32 %v10913, 7
      %v10915 = vsub.s32 %v10912, %v10914
      %v10916 = vrot.slane %v10036, %v10915
      %v10917 = vcombine.low %v10909, %v10916
      %v10919 = vunpack.c.l.s4 1966171168
      %v10920 = vunpack.c.0.s8 %v10919
      %v10921 = vlaneseq
      %v10922 = vshrl.u32 %v10921, 7
      %v10923 = vsub.s32 %v10920, %v10922
      %v10924 = vrot.slane %v10917, %v10923
      %v10925 = vcombine.low %v10044, %v10046
      %v10927 = vunpack.c.l.s4 1966171168
      %v10928 = vunpack.c.0.s8 %v10927
      %v10929 = vlaneseq
      %v10930 = vshrl.u32 %v10929, 7
      %v10931 = vsub.s32 %v10928, %v10930
      %v10932 = vrot.slane %v10925, %v10931
      %v10934 = vunpack.c.l.s4 1966171168
      %v10935 = vunpack.c.0.s8 %v10934
      %v10936 = vlaneseq
      %v10937 = vshrl.u32 %v10936, 7
      %v10938 = vsub.s32 %v10935, %v10937
      %v10939 = vrot.slane %v10029, %v10938
      %v10940 = vcombine.low %v10932, %v10939
      %v10942 = vunpack.c.l.s4 1966171168
      %v10943 = vunpack.c.0.s8 %v10942
      %v10944 = vlaneseq
      %v10945 = vshrl.u32 %v10944, 7
      %v10946 = vsub.s32 %v10943, %v10945
      %v10947 = vrot.slane %v10940, %v10946
      %v10948 = vcombine.low %v10043, %v10045
      %v10950 = vunpack.c.l.s4 1966171168
      %v10951 = vunpack.c.0.s8 %v10950
      %v10952 = vlaneseq
      %v10953 = vshrl.u32 %v10952, 7
      %v10954 = vsub.s32 %v10951, %v10953
      %v10955 = vrot.slane %v10948, %v10954
      %v10957 = vunpack.c.l.s4 1966171168
      %v10958 = vunpack.c.0.s8 %v10957
      %v10959 = vlaneseq
      %v10960 = vshrl.u32 %v10959, 7
      %v10961 = vsub.s32 %v10958, %v10960
      %v10962 = vrot.slane %v10047, %v10961
      %v10963 = vcombine.low %v10955, %v10962
      %v10965 = vunpack.c.l.s4 1966171168
      %v10966 = vunpack.c.0.s8 %v10965
      %v10967 = vlaneseq
      %v10968 = vshrl.u32 %v10967, 7
      %v10969 = vsub.s32 %v10966, %v10968
      %v10970 = vrot.slane %v10963, %v10969
      %v10971 = vcombine.low %v10071, %v10085
      %v10973 = vunpack.c.l.s4 1966171168
      %v10974 = vunpack.c.0.s8 %v10973
      %v10975 = vlaneseq
      %v10976 = vshrl.u32 %v10975, 7
      %v10977 = vsub.s32 %v10974, %v10976
      %v10978 = vrot.slane %v10971, %v10977
      %v10980 = vunpack.c.l.s4 1966171168
      %v10981 = vunpack.c.0.s8 %v10980
      %v10982 = vlaneseq
      %v10983 = vshrl.u32 %v10982, 7
      %v10984 = vsub.s32 %v10981, %v10983
      %v10985 = vrot.slane %v10093, %v10984
      %v10986 = vcombine.low %v10978, %v10985
      %v10988 = vunpack.c.l.s4 1966171168
      %v10989 = vunpack.c.0.s8 %v10988
      %v10990 = vlaneseq
      %v10991 = vshrl.u32 %v10990, 7
      %v10992 = vsub.s32 %v10989, %v10991
      %v10993 = vrot.slane %v10986, %v10992
      %v10994 = vcombine.low %v10095, %v10078
      %v10996 = vunpack.c.l.s4 1966171168
      %v10997 = vunpack.c.0.s8 %v10996
      %v10998 = vlaneseq
      %v10999 = vshrl.u32 %v10998, 7
      %v11000 = vsub.s32 %v10997, %v10999
      %v11001 = vrot.slane %v10994, %v11000
      %v11003 = vunpack.c.l.s4 1966171168
      %v11004 = vunpack.c.0.s8 %v11003
      %v11005 = vlaneseq
      %v11006 = vshrl.u32 %v11005, 7
      %v11007 = vsub.s32 %v11004, %v11006
      %v11008 = vrot.slane %v10092, %v11007
      %v11009 = vcombine.low %v11001, %v11008
      %v11011 = vunpack.c.l.s4 1966171168
      %v11012 = vunpack.c.0.s8 %v11011
      %v11013 = vlaneseq
      %v11014 = vshrl.u32 %v11013, 7
      %v11015 = vsub.s32 %v11012, %v11014
      %v11016 = vrot.slane %v11009, %v11015
      %v11057 = vsel %vm5365, %v10119, -inf
      %v11058 = vrot.slane %v11057, 4
      %v11059 = vmax.f32 %v11057, %v11058
      %v11060 = vrot.slane %v11059, 2
      %v11061 = vmax.f32 %v11059, %v11060
      %v11062 = vrot.slane %v11061, 1
      %v11063 = vmax.f32 %v11061, %v11062
      %v11064 = vsel %vm5365, %v10142, -inf
      %v11065 = vrot.slane %v11064, 4
      %v11066 = vmax.f32 %v11064, %v11065
      %v11067 = vrot.slane %v11066, 2
      %v11068 = vmax.f32 %v11066, %v11067
      %v11069 = vrot.slane %v11068, 1
      %v11070 = vmax.f32 %v11068, %v11069
      %v11071 = vsel %vm5365, %v10165, -inf
      %v11072 = vrot.slane %v11071, 4
      %v11073 = vmax.f32 %v11071, %v11072
      %v11074 = vrot.slane %v11073, 2
      %v11075 = vmax.f32 %v11073, %v11074
      %v11076 = vrot.slane %v11075, 1
      %v11077 = vmax.f32 %v11075, %v11076
      %v11078 = vsel %vm5365, %v10188, -inf
      %v11079 = vrot.slane %v11078, 4
      %v11080 = vmax.f32 %v11078, %v11079
      %v11081 = vrot.slane %v11080, 2
      %v11082 = vmax.f32 %v11080, %v11081
      %v11083 = vrot.slane %v11082, 1
      %v11084 = vmax.f32 %v11082, %v11083
      %v11085 = vsel %vm5365, %v10211, -inf
      %v11086 = vrot.slane %v11085, 4
      %v11087 = vmax.f32 %v11085, %v11086
      %v11088 = vrot.slane %v11087, 2
      %v11089 = vmax.f32 %v11087, %v11088
      %v11090 = vrot.slane %v11089, 1
      %v11091 = vmax.f32 %v11089, %v11090
      %v11092 = vsel %vm5365, %v10234, -inf
      %v11093 = vrot.slane %v11092, 4
      %v11094 = vmax.f32 %v11092, %v11093
      %v11095 = vrot.slane %v11094, 2
      %v11096 = vmax.f32 %v11094, %v11095
      %v11097 = vrot.slane %v11096, 1
      %v11098 = vmax.f32 %v11096, %v11097
      %v11099 = vsel %vm5365, %v10257, -inf
      %v11100 = vrot.slane %v11099, 4
      %v11101 = vmax.f32 %v11099, %v11100
      %v11102 = vrot.slane %v11101, 2
      %v11103 = vmax.f32 %v11101, %v11102
      %v11104 = vrot.slane %v11103, 1
      %v11105 = vmax.f32 %v11103, %v11104
      %v11106 = vsel %vm5365, %v10280, -inf
      %v11107 = vrot.slane %v11106, 4
      %v11108 = vmax.f32 %v11106, %v11107
      %v11109 = vrot.slane %v11108, 2
      %v11110 = vmax.f32 %v11108, %v11109
      %v11111 = vrot.slane %v11110, 1
      %v11112 = vmax.f32 %v11110, %v11111
      %v11113 = vsel %vm5365, %v10303, -inf
      %v11114 = vrot.slane %v11113, 4
      %v11115 = vmax.f32 %v11113, %v11114
      %v11116 = vrot.slane %v11115, 2
      %v11117 = vmax.f32 %v11115, %v11116
      %v11118 = vrot.slane %v11117, 1
      %v11119 = vmax.f32 %v11117, %v11118
      %v11120 = vsel %vm5365, %v10326, -inf
      %v11121 = vrot.slane %v11120, 4
      %v11122 = vmax.f32 %v11120, %v11121
      %v11123 = vrot.slane %v11122, 2
      %v11124 = vmax.f32 %v11122, %v11123
      %v11125 = vrot.slane %v11124, 1
      %v11126 = vmax.f32 %v11124, %v11125
      %v11127 = vsel %vm5365, %v10349, -inf
      %v11128 = vrot.slane %v11127, 4
      %v11129 = vmax.f32 %v11127, %v11128
      %v11130 = vrot.slane %v11129, 2
      %v11131 = vmax.f32 %v11129, %v11130
      %v11132 = vrot.slane %v11131, 1
      %v11133 = vmax.f32 %v11131, %v11132
      %v11134 = vsel %vm5365, %v10372, -inf
      %v11135 = vrot.slane %v11134, 4
      %v11136 = vmax.f32 %v11134, %v11135
      %v11137 = vrot.slane %v11136, 2
      %v11138 = vmax.f32 %v11136, %v11137
      %v11139 = vrot.slane %v11138, 1
      %v11140 = vmax.f32 %v11138, %v11139
      %v11141 = vsel %vm5365, %v10395, -inf
      %v11142 = vrot.slane %v11141, 4
      %v11143 = vmax.f32 %v11141, %v11142
      %v11144 = vrot.slane %v11143, 2
      %v11145 = vmax.f32 %v11143, %v11144
      %v11146 = vrot.slane %v11145, 1
      %v11147 = vmax.f32 %v11145, %v11146
      %v11148 = vsel %vm5365, %v10418, -inf
      %v11149 = vrot.slane %v11148, 4
      %v11150 = vmax.f32 %v11148, %v11149
      %v11151 = vrot.slane %v11150, 2
      %v11152 = vmax.f32 %v11150, %v11151
      %v11153 = vrot.slane %v11152, 1
      %v11154 = vmax.f32 %v11152, %v11153
      %v11155 = vsel %vm5365, %v10441, -inf
      %v11156 = vrot.slane %v11155, 4
      %v11157 = vmax.f32 %v11155, %v11156
      %v11158 = vrot.slane %v11157, 2
      %v11159 = vmax.f32 %v11157, %v11158
      %v11160 = vrot.slane %v11159, 1
      %v11161 = vmax.f32 %v11159, %v11160
      %v11162 = vsel %vm5365, %v10464, -inf
      %v11163 = vrot.slane %v11162, 4
      %v11164 = vmax.f32 %v11162, %v11163
      %v11165 = vrot.slane %v11164, 2
      %v11166 = vmax.f32 %v11164, %v11165
      %v11167 = vrot.slane %v11166, 1
      %v11168 = vmax.f32 %v11166, %v11167
      %v11169 = vsel %vm5365, %v10487, -inf
      %v11170 = vrot.slane %v11169, 4
      %v11171 = vmax.f32 %v11169, %v11170
      %v11172 = vrot.slane %v11171, 2
      %v11173 = vmax.f32 %v11171, %v11172
      %v11174 = vrot.slane %v11173, 1
      %v11175 = vmax.f32 %v11173, %v11174
      %v11176 = vsel %vm5365, %v10510, -inf
      %v11177 = vrot.slane %v11176, 4
      %v11178 = vmax.f32 %v11176, %v11177
      %v11179 = vrot.slane %v11178, 2
      %v11180 = vmax.f32 %v11178, %v11179
      %v11181 = vrot.slane %v11180, 1
      %v11182 = vmax.f32 %v11180, %v11181
      %v11183 = vsel %vm5365, %v10533, -inf
      %v11184 = vrot.slane %v11183, 4
      %v11185 = vmax.f32 %v11183, %v11184
      %v11186 = vrot.slane %v11185, 2
      %v11187 = vmax.f32 %v11185, %v11186
      %v11188 = vrot.slane %v11187, 1
      %v11189 = vmax.f32 %v11187, %v11188
      %v11190 = vsel %vm5365, %v10556, -inf
      %v11191 = vrot.slane %v11190, 4
      %v11192 = vmax.f32 %v11190, %v11191
      %v11193 = vrot.slane %v11192, 2
      %v11194 = vmax.f32 %v11192, %v11193
      %v11195 = vrot.slane %v11194, 1
      %v11196 = vmax.f32 %v11194, %v11195
      %v11197 = vsel %vm5365, %v10579, -inf
      %v11198 = vrot.slane %v11197, 4
      %v11199 = vmax.f32 %v11197, %v11198
      %v11200 = vrot.slane %v11199, 2
      %v11201 = vmax.f32 %v11199, %v11200
      %v11202 = vrot.slane %v11201, 1
      %v11203 = vmax.f32 %v11201, %v11202
      %v11204 = vsel %vm5365, %v10602, -inf
      %v11205 = vrot.slane %v11204, 4
      %v11206 = vmax.f32 %v11204, %v11205
      %v11207 = vrot.slane %v11206, 2
      %v11208 = vmax.f32 %v11206, %v11207
      %v11209 = vrot.slane %v11208, 1
      %v11210 = vmax.f32 %v11208, %v11209
      %v11211 = vsel %vm5365, %v10625, -inf
      %v11212 = vrot.slane %v11211, 4
      %v11213 = vmax.f32 %v11211, %v11212
      %v11214 = vrot.slane %v11213, 2
      %v11215 = vmax.f32 %v11213, %v11214
      %v11216 = vrot.slane %v11215, 1
      %v11217 = vmax.f32 %v11215, %v11216
      %v11218 = vsel %vm5365, %v10648, -inf
      %v11219 = vrot.slane %v11218, 4
      %v11220 = vmax.f32 %v11218, %v11219
      %v11221 = vrot.slane %v11220, 2
      %v11222 = vmax.f32 %v11220, %v11221
      %v11223 = vrot.slane %v11222, 1
      %v11224 = vmax.f32 %v11222, %v11223
      %v11225 = vsel %vm5365, %v10671, -inf
      %v11226 = vrot.slane %v11225, 4
      %v11227 = vmax.f32 %v11225, %v11226
      %v11228 = vrot.slane %v11227, 2
      %v11229 = vmax.f32 %v11227, %v11228
      %v11230 = vrot.slane %v11229, 1
      %v11231 = vmax.f32 %v11229, %v11230
      %v11232 = vsel %vm5365, %v10694, -inf
      %v11233 = vrot.slane %v11232, 4
      %v11234 = vmax.f32 %v11232, %v11233
      %v11235 = vrot.slane %v11234, 2
      %v11236 = vmax.f32 %v11234, %v11235
      %v11237 = vrot.slane %v11236, 1
      %v11238 = vmax.f32 %v11236, %v11237
      %v11239 = vsel %vm5365, %v10717, -inf
      %v11240 = vrot.slane %v11239, 4
      %v11241 = vmax.f32 %v11239, %v11240
      %v11242 = vrot.slane %v11241, 2
      %v11243 = vmax.f32 %v11241, %v11242
      %v11244 = vrot.slane %v11243, 1
      %v11245 = vmax.f32 %v11243, %v11244
      %v11246 = vsel %vm5365, %v10740, -inf
      %v11247 = vrot.slane %v11246, 4
      %v11248 = vmax.f32 %v11246, %v11247
      %v11249 = vrot.slane %v11248, 2
      %v11250 = vmax.f32 %v11248, %v11249
      %v11251 = vrot.slane %v11250, 1
      %v11252 = vmax.f32 %v11250, %v11251
      %v11253 = vsel %vm5365, %v10763, -inf
      %v11254 = vrot.slane %v11253, 4
      %v11255 = vmax.f32 %v11253, %v11254
      %v11256 = vrot.slane %v11255, 2
      %v11257 = vmax.f32 %v11255, %v11256
      %v11258 = vrot.slane %v11257, 1
      %v11259 = vmax.f32 %v11257, %v11258
      %v11260 = vsel %vm5365, %v10786, -inf
      %v11261 = vrot.slane %v11260, 4
      %v11262 = vmax.f32 %v11260, %v11261
      %v11263 = vrot.slane %v11262, 2
      %v11264 = vmax.f32 %v11262, %v11263
      %v11265 = vrot.slane %v11264, 1
      %v11266 = vmax.f32 %v11264, %v11265
      %v11267 = vsel %vm5365, %v10809, -inf
      %v11268 = vrot.slane %v11267, 4
      %v11269 = vmax.f32 %v11267, %v11268
      %v11270 = vrot.slane %v11269, 2
      %v11271 = vmax.f32 %v11269, %v11270
      %v11272 = vrot.slane %v11271, 1
      %v11273 = vmax.f32 %v11271, %v11272
      %v11274 = vsel %vm5365, %v10832, -inf
      %v11275 = vrot.slane %v11274, 4
      %v11276 = vmax.f32 %v11274, %v11275
      %v11277 = vrot.slane %v11276, 2
      %v11278 = vmax.f32 %v11276, %v11277
      %v11279 = vrot.slane %v11278, 1
      %v11280 = vmax.f32 %v11278, %v11279
      %v11281 = vsel %vm5365, %v10855, -inf
      %v11282 = vrot.slane %v11281, 4
      %v11283 = vmax.f32 %v11281, %v11282
      %v11284 = vrot.slane %v11283, 2
      %v11285 = vmax.f32 %v11283, %v11284
      %v11286 = vrot.slane %v11285, 1
      %v11287 = vmax.f32 %v11285, %v11286
      %v11288 = vsel %vm5365, %v10878, -inf
      %v11289 = vrot.slane %v11288, 4
      %v11290 = vmax.f32 %v11288, %v11289
      %v11291 = vrot.slane %v11290, 2
      %v11292 = vmax.f32 %v11290, %v11291
      %v11293 = vrot.slane %v11292, 1
      %v11294 = vmax.f32 %v11292, %v11293
      %v11295 = vsel %vm5365, %v10901, -inf
      %v11296 = vrot.slane %v11295, 4
      %v11297 = vmax.f32 %v11295, %v11296
      %v11298 = vrot.slane %v11297, 2
      %v11299 = vmax.f32 %v11297, %v11298
      %v11300 = vrot.slane %v11299, 1
      %v11301 = vmax.f32 %v11299, %v11300
      %v11302 = vsel %vm5365, %v10924, -inf
      %v11303 = vrot.slane %v11302, 4
      %v11304 = vmax.f32 %v11302, %v11303
      %v11305 = vrot.slane %v11304, 2
      %v11306 = vmax.f32 %v11304, %v11305
      %v11307 = vrot.slane %v11306, 1
      %v11308 = vmax.f32 %v11306, %v11307
      %v11309 = vsel %vm5365, %v10947, -inf
      %v11310 = vrot.slane %v11309, 4
      %v11311 = vmax.f32 %v11309, %v11310
      %v11312 = vrot.slane %v11311, 2
      %v11313 = vmax.f32 %v11311, %v11312
      %v11314 = vrot.slane %v11313, 1
      %v11315 = vmax.f32 %v11313, %v11314
      %v11316 = vsel %vm5365, %v10970, -inf
      %v11317 = vrot.slane %v11316, 4
      %v11318 = vmax.f32 %v11316, %v11317
      %v11319 = vrot.slane %v11318, 2
      %v11320 = vmax.f32 %v11318, %v11319
      %v11321 = vrot.slane %v11320, 1
      %v11322 = vmax.f32 %v11320, %v11321
      %v11323 = vsel %vm5365, %v10993, -inf
      %v11324 = vrot.slane %v11323, 4
      %v11325 = vmax.f32 %v11323, %v11324
      %v11326 = vrot.slane %v11325, 2
      %v11327 = vmax.f32 %v11325, %v11326
      %v11328 = vrot.slane %v11327, 1
      %v11329 = vmax.f32 %v11327, %v11328
      %v11330 = vsel %vm5365, %v11016, -inf
      %v11331 = vrot.slane %v11330, 4
      %v11332 = vmax.f32 %v11330, %v11331
      %v11333 = vrot.slane %v11332, 2
      %v11334 = vmax.f32 %v11332, %v11333
      %v11335 = vrot.slane %v11334, 1
      %v11336 = vmax.f32 %v11334, %v11335
      %v11337 = vcombine.low %v9361, %v9385
      %v11339 = vunpack.c.l.s4 1966171168
      %v11340 = vunpack.c.0.s8 %v11339
      %v11341 = vlaneseq
      %v11342 = vshrl.u32 %v11341, 7
      %v11343 = vsub.s32 %v11340, %v11342
      %v11344 = vrot.slane %v11337, %v11343
      %v11346 = vunpack.c.l.s4 1966171168
      %v11347 = vunpack.c.0.s8 %v11346
      %v11348 = vlaneseq
      %v11349 = vshrl.u32 %v11348, 7
      %v11350 = vsub.s32 %v11347, %v11349
      %v11351 = vrot.slane %v11344, %v11350
      %v11352 = vcombine.low %v9483, %v9497
      %v11354 = vunpack.c.l.s4 1966171168
      %v11355 = vunpack.c.0.s8 %v11354
      %v11356 = vlaneseq
      %v11357 = vshrl.u32 %v11356, 7
      %v11358 = vsub.s32 %v11355, %v11357
      %v11359 = vrot.slane %v11352, %v11358
      %v11361 = vunpack.c.l.s4 1966171168
      %v11362 = vunpack.c.0.s8 %v11361
      %v11363 = vlaneseq
      %v11364 = vshrl.u32 %v11363, 7
      %v11365 = vsub.s32 %v11362, %v11364
      %v11366 = vrot.slane %v11359, %v11365
      %v11367 = vcombine.low %v9595, %v9603
      %v11369 = vunpack.c.l.s4 1966171168
      %v11370 = vunpack.c.0.s8 %v11369
      %v11371 = vlaneseq
      %v11372 = vshrl.u32 %v11371, 7
      %v11373 = vsub.s32 %v11370, %v11372
      %v11374 = vrot.slane %v11367, %v11373
      %v11376 = vunpack.c.l.s4 1966171168
      %v11377 = vunpack.c.0.s8 %v11376
      %v11378 = vlaneseq
      %v11379 = vshrl.u32 %v11378, 7
      %v11380 = vsub.s32 %v11377, %v11379
      %v11381 = vrot.slane %v11374, %v11380
      %v11382 = vcombine.low %v9701, %v9703
      %v11384 = vunpack.c.l.s4 1966171168
      %v11385 = vunpack.c.0.s8 %v11384
      %v11386 = vlaneseq
      %v11387 = vshrl.u32 %v11386, 7
      %v11388 = vsub.s32 %v11385, %v11387
      %v11389 = vrot.slane %v11382, %v11388
      %v11391 = vunpack.c.l.s4 1966171168
      %v11392 = vunpack.c.0.s8 %v11391
      %v11393 = vlaneseq
      %v11394 = vshrl.u32 %v11393, 7
      %v11395 = vsub.s32 %v11392, %v11394
      %v11396 = vrot.slane %v11389, %v11395
      %v11397 = vcombine.low %v9801, %v9784
      %v11399 = vunpack.c.l.s4 1966171168
      %v11400 = vunpack.c.0.s8 %v11399
      %v11401 = vlaneseq
      %v11402 = vshrl.u32 %v11401, 7
      %v11403 = vsub.s32 %v11400, %v11402
      %v11404 = vrot.slane %v11397, %v11403
      %v11406 = vunpack.c.l.s4 1966171168
      %v11407 = vunpack.c.0.s8 %v11406
      %v11408 = vlaneseq
      %v11409 = vshrl.u32 %v11408, 7
      %v11410 = vsub.s32 %v11407, %v11409
      %v11411 = vrot.slane %v11404, %v11410
      %v11412 = vcombine.low %v9882, %v9896
      %v11414 = vunpack.c.l.s4 1966171168
      %v11415 = vunpack.c.0.s8 %v11414
      %v11416 = vlaneseq
      %v11417 = vshrl.u32 %v11416, 7
      %v11418 = vsub.s32 %v11415, %v11417
      %v11419 = vrot.slane %v11412, %v11418
      %v11421 = vunpack.c.l.s4 1966171168
      %v11422 = vunpack.c.0.s8 %v11421
      %v11423 = vlaneseq
      %v11424 = vshrl.u32 %v11423, 7
      %v11425 = vsub.s32 %v11422, %v11424
      %v11426 = vrot.slane %v11419, %v11425
      %v11427 = vcombine.low %v9994, %v9996
      %v11429 = vunpack.c.l.s4 1966171168
      %v11430 = vunpack.c.0.s8 %v11429
      %v11431 = vlaneseq
      %v11432 = vshrl.u32 %v11431, 7
      %v11433 = vsub.s32 %v11430, %v11432
      %v11434 = vrot.slane %v11427, %v11433
      %v11436 = vunpack.c.l.s4 1966171168
      %v11437 = vunpack.c.0.s8 %v11436
      %v11438 = vlaneseq
      %v11439 = vshrl.u32 %v11438, 7
      %v11440 = vsub.s32 %v11437, %v11439
      %v11441 = vrot.slane %v11434, %v11440
      %v11442 = vcombine.low %v10094, %v10096
      %v11444 = vunpack.c.l.s4 1966171168
      %v11445 = vunpack.c.0.s8 %v11444
      %v11446 = vlaneseq
      %v11447 = vshrl.u32 %v11446, 7
      %v11448 = vsub.s32 %v11445, %v11447
      %v11449 = vrot.slane %v11442, %v11448
      %v11451 = vunpack.c.l.s4 1966171168
      %v11452 = vunpack.c.0.s8 %v11451
      %v11453 = vlaneseq
      %v11454 = vshrl.u32 %v11453, 7
      %v11455 = vsub.s32 %v11452, %v11454
      %v11456 = vrot.slane %v11449, %v11455
      %v11465 = vsel %vm5356, %v11351, -inf
      %v11466 = vrot.slane %v11465, 4
      %v11467 = vmax.f32 %v11465, %v11466
      %v11468 = vrot.slane %v11467, 2
      %v11469 = vmax.f32 %v11467, %v11468
      %v11470 = vrot.slane %v11469, 1
      %v11471 = vmax.f32 %v11469, %v11470
      %v11472 = vsel %vm5356, %v11366, -inf
      %v11473 = vrot.slane %v11472, 4
      %v11474 = vmax.f32 %v11472, %v11473
      %v11475 = vrot.slane %v11474, 2
      %v11476 = vmax.f32 %v11474, %v11475
      %v11477 = vrot.slane %v11476, 1
      %v11478 = vmax.f32 %v11476, %v11477
      %v11479 = vsel %vm5356, %v11381, -inf
      %v11480 = vrot.slane %v11479, 4
      %v11481 = vmax.f32 %v11479, %v11480
      %v11482 = vrot.slane %v11481, 2
      %v11483 = vmax.f32 %v11481, %v11482
      %v11484 = vrot.slane %v11483, 1
      %v11485 = vmax.f32 %v11483, %v11484
      %v11486 = vsel %vm5356, %v11396, -inf
      %v11487 = vrot.slane %v11486, 4
      %v11488 = vmax.f32 %v11486, %v11487
      %v11489 = vrot.slane %v11488, 2
      %v11490 = vmax.f32 %v11488, %v11489
      %v11491 = vrot.slane %v11490, 1
      %v11492 = vmax.f32 %v11490, %v11491
      %v11493 = vsel %vm5356, %v11411, -inf
      %v11494 = vrot.slane %v11493, 4
      %v11495 = vmax.f32 %v11493, %v11494
      %v11496 = vrot.slane %v11495, 2
      %v11497 = vmax.f32 %v11495, %v11496
      %v11498 = vrot.slane %v11497, 1
      %v11499 = vmax.f32 %v11497, %v11498
      %v11500 = vsel %vm5356, %v11426, -inf
      %v11501 = vrot.slane %v11500, 4
      %v11502 = vmax.f32 %v11500, %v11501
      %v11503 = vrot.slane %v11502, 2
      %v11504 = vmax.f32 %v11502, %v11503
      %v11505 = vrot.slane %v11504, 1
      %v11506 = vmax.f32 %v11504, %v11505
      %v11507 = vsel %vm5356, %v11441, -inf
      %v11508 = vrot.slane %v11507, 4
      %v11509 = vmax.f32 %v11507, %v11508
      %v11510 = vrot.slane %v11509, 2
      %v11511 = vmax.f32 %v11509, %v11510
      %v11512 = vrot.slane %v11511, 1
      %v11513 = vmax.f32 %v11511, %v11512
      %v11514 = vsel %vm5356, %v11456, -inf
      %v11515 = vrot.slane %v11514, 4
      %v11516 = vmax.f32 %v11514, %v11515
      %v11517 = vrot.slane %v11516, 2
      %v11518 = vmax.f32 %v11516, %v11517
      %v11519 = vrot.slane %v11518, 1
      %v11520 = vmax.f32 %v11518, %v11519
      %vm11561 = vcmask 1041409
      %v11562 = vsel %vm11561, %v11070, %v11063
      %vm11563 = vcmask 1042434
      %v11564 = vsel %vm11563, %v11077, %v11562
      %vm11565 = vcmask 1043459
      %v11566 = vsel %vm11565, %v11084, %v11564
      %vm11567 = vcmask 1044484
      %v11568 = vsel %vm11567, %v11091, %v11566
      %v11569 = vsel %vm11561, %v11105, %v11098
      %v11570 = vsel %vm11563, %v11112, %v11569
      %v11571 = vsel %vm11565, %v11119, %v11570
      %v11572 = vsel %vm11567, %v11126, %v11571
      %v11573 = vsel %vm11561, %v11140, %v11133
      %v11574 = vsel %vm11563, %v11147, %v11573
      %v11575 = vsel %vm11565, %v11154, %v11574
      %v11576 = vsel %vm11567, %v11161, %v11575
      %v11577 = vsel %vm11561, %v11175, %v11168
      %v11578 = vsel %vm11563, %v11182, %v11577
      %v11579 = vsel %vm11565, %v11189, %v11578
      %v11580 = vsel %vm11567, %v11196, %v11579
      %v11581 = vsel %vm11561, %v11210, %v11203
      %v11582 = vsel %vm11563, %v11217, %v11581
      %v11583 = vsel %vm11565, %v11224, %v11582
      %v11584 = vsel %vm11567, %v11231, %v11583
      %v11585 = vsel %vm11561, %v11245, %v11238
      %v11586 = vsel %vm11563, %v11252, %v11585
      %v11587 = vsel %vm11565, %v11259, %v11586
      %v11588 = vsel %vm11567, %v11266, %v11587
      %v11589 = vsel %vm11561, %v11280, %v11273
      %v11590 = vsel %vm11563, %v11287, %v11589
      %v11591 = vsel %vm11565, %v11294, %v11590
      %v11592 = vsel %vm11567, %v11301, %v11591
      %v11593 = vsel %vm11561, %v11315, %v11308
      %v11594 = vsel %vm11563, %v11322, %v11593
      %v11595 = vsel %vm11565, %v11329, %v11594
      %v11596 = vsel %vm11567, %v11336, %v11595
      %v11605 = vsel %vm5383, %v11568, %v11471
      %v11606 = vsel %vm5383, %v11572, %v11478
      %v11607 = vsel %vm5383, %v11576, %v11485
      %v11608 = vsel %vm5383, %v11580, %v11492
      %v11609 = vsel %vm5383, %v11584, %v11499
      %v11610 = vsel %vm5383, %v11588, %v11506
      %v11611 = vsel %vm5383, %v11592, %v11513
      %v11612 = vsel %vm5383, %v11596, %v11520
      %v11613 = vld [vmem:[%s7] sm:$0x1]
      %v11615 = vlaneseq
      %v11616 = vshrl.u32 %v11615, 7
      %v11617 = vsub.s32 0, %v11616
      %v11618 = vrot.slane %v11613, %v11617
      %v11620 = vmul.f32 %v11605, %v11618
      %v11621 = vmul.f32 %v11606, %v11618
      %v11622 = vmul.f32 %v11607, %v11618
      %v11623 = vmul.f32 %v11608, %v11618
      %v11624 = vmul.f32 %v11609, %v11618
      %v11625 = vmul.f32 %v11610, %v11618
      %v11626 = vmul.f32 %v11611, %v11618
      %v11627 = vmul.f32 %v11612, %v11618
      %v11628 = vld [vmem:[%s8] sm:$0x1]
      %v11630 = vlaneseq
      %v11631 = vshrl.u32 %v11630, 7
      %v11632 = vsub.s32 0, %v11631
      %v11633 = vrot.slane %v11628, %v11632
      %v11635 = vadd.f32 %v11620, %v11633
      %v11636 = vadd.f32 %v11621, %v11633
      %v11637 = vadd.f32 %v11622, %v11633
      %v11638 = vadd.f32 %v11623, %v11633
      %v11639 = vadd.f32 %v11624, %v11633
      %v11640 = vadd.f32 %v11625, %v11633
      %v11641 = vadd.f32 %v11626, %v11633
      %v11642 = vadd.f32 %v11627, %v11633
      %v11643 = vld [vmem:[%s9] sm:$0xff]
      %v11644 = vld [vmem:[%s9 + $0x8] sm:$0xff]
      %v11645 = vld [vmem:[%s9 + $0x10] sm:$0xff]
      %v11646 = vld [vmem:[%s9 + $0x18] sm:$0xff]
      %v11647 = vld [vmem:[%s9 + $0x20] sm:$0xff]
      %v11648 = vld [vmem:[%s9 + $0x28] sm:$0xff]
      %v11649 = vld [vmem:[%s9 + $0x30] sm:$0xff]
      %v11650 = vld [vmem:[%s9 + $0x38] sm:$0xff]
      %v11651 = vld [vmem:[%s9 + $0x40] sm:$0xff]
      %v11652 = vld [vmem:[%s9 + $0x48] sm:$0xff]
      %v11653 = vld [vmem:[%s9 + $0x50] sm:$0xff]
      %v11654 = vld [vmem:[%s9 + $0x58] sm:$0xff]
      %v11655 = vld [vmem:[%s9 + $0x60] sm:$0xff]
      %v11656 = vld [vmem:[%s9 + $0x68] sm:$0xff]
      %v11657 = vld [vmem:[%s9 + $0x70] sm:$0xff]
      %v11658 = vld [vmem:[%s9 + $0x78] sm:$0xff]
      %v11667 = vcombine.low %v11635, %v11636
      %v11668 = vcombine.low %v11637, %v11638
      %v11669 = vcombine.low %v11639, %v11640
      %v11670 = vcombine.low %v11641, %v11642
      %v11675 = vpack.c.bf16 %v11668, %v11667
      %v11676 = vpack.c.bf16 %v11670, %v11669
      %v11677 = vcombine.high %v11635, %v11635
      %v11678 = vcombine.high %v11636, %v11636
      %v11679 = vcombine.high %v11637, %v11637
      %v11680 = vcombine.high %v11638, %v11638
      %v11681 = vcombine.high %v11639, %v11639
      %v11682 = vcombine.high %v11640, %v11640
      %v11683 = vcombine.high %v11641, %v11641
      %v11684 = vcombine.high %v11642, %v11642
      %vm11685 = vcmask 1046532
      %vm11686 = vmor %vm5365, %vm11685
      %v11687 = vrot.slane %v11635, 5
      %v11688 = vrot.slane %v11687, 4
      %v11689 = vrot.slane %v11677, 5
      %v11690 = vsel %vm11686, %v11688, %v11689
      %v11691 = vrot.slane %v11636, 5
      %v11692 = vrot.slane %v11691, 4
      %v11693 = vrot.slane %v11678, 5
      %v11694 = vsel %vm11686, %v11692, %v11693
      %v11695 = vrot.slane %v11637, 5
      %v11696 = vrot.slane %v11695, 4
      %v11697 = vrot.slane %v11679, 5
      %v11698 = vsel %vm11686, %v11696, %v11697
      %v11699 = vrot.slane %v11638, 5
      %v11700 = vrot.slane %v11699, 4
      %v11701 = vrot.slane %v11680, 5
      %v11702 = vsel %vm11686, %v11700, %v11701
      %v11703 = vrot.slane %v11639, 5
      %v11704 = vrot.slane %v11703, 4
      %v11705 = vrot.slane %v11681, 5
      %v11706 = vsel %vm11686, %v11704, %v11705
      %v11707 = vrot.slane %v11640, 5
      %v11708 = vrot.slane %v11707, 4
      %v11709 = vrot.slane %v11682, 5
      %v11710 = vsel %vm11686, %v11708, %v11709
      %v11711 = vrot.slane %v11641, 5
      %v11712 = vrot.slane %v11711, 4
      %v11713 = vrot.slane %v11683, 5
      %v11714 = vsel %vm11686, %v11712, %v11713
      %v11715 = vrot.slane %v11642, 5
      %v11716 = vrot.slane %v11715, 4
      %v11717 = vrot.slane %v11684, 5
      %v11718 = vsel %vm11686, %v11716, %v11717
      %v11719 = vld [vmem:[%s9 + $0x80] sm:$0xff]
      %v11720 = vld [vmem:[%s9 + $0x88] sm:$0xff]
      %v11721 = vld [vmem:[%s9 + $0x90] sm:$0xff]
      %v11722 = vld [vmem:[%s9 + $0x98] sm:$0xff]
      %v11723 = vld [vmem:[%s9 + $0xa0] sm:$0xff]
      %v11724 = vld [vmem:[%s9 + $0xa8] sm:$0xff]
      %v11725 = vld [vmem:[%s9 + $0xb0] sm:$0xff]
      %v11726 = vld [vmem:[%s9 + $0xb8] sm:$0xff]
      %v11727 = vld [vmem:[%s9 + $0xc0] sm:$0xff]
      %v11728 = vld [vmem:[%s9 + $0xc8] sm:$0xff]
      %v11729 = vld [vmem:[%s9 + $0xd0] sm:$0xff]
      %v11730 = vld [vmem:[%s9 + $0xd8] sm:$0xff]
      %v11731 = vld [vmem:[%s9 + $0xe0] sm:$0xff]
      %v11732 = vld [vmem:[%s9 + $0xe8] sm:$0xff]
      %v11733 = vld [vmem:[%s9 + $0xf0] sm:$0xff]
      %v11734 = vld [vmem:[%s9 + $0xf8] sm:$0xff]
      %v11735 = vcombine.low %v11690, %v11694
      %v11736 = vcombine.low %v11698, %v11702
      %v11737 = vcombine.low %v11706, %v11710
      %v11738 = vcombine.low %v11714, %v11718
      %v11743 = vpack.c.bf16 %v11736, %v11735
      %v11744 = vpack.c.bf16 %v11738, %v11737
      %v11761 = vunpack.c.l.b16 %v11719
      %v11762 = vunpack.c.h.b16 %v11719
      %v11763 = vunpack.c.l.b16 %v11720
      %v11764 = vunpack.c.h.b16 %v11720
      %v11765 = vunpack.c.l.b16 %v11721
      %v11766 = vunpack.c.h.b16 %v11721
      %v11767 = vunpack.c.l.b16 %v11722
      %v11768 = vunpack.c.h.b16 %v11722
      %v11769 = vunpack.c.l.b16 %v11723
      %v11770 = vunpack.c.h.b16 %v11723
      %v11771 = vunpack.c.l.b16 %v11724
      %v11772 = vunpack.c.h.b16 %v11724
      %v11773 = vunpack.c.l.b16 %v11725
      %v11774 = vunpack.c.h.b16 %v11725
      %v11775 = vunpack.c.l.b16 %v11726
      %v11776 = vunpack.c.h.b16 %v11726
      %v11777 = vunpack.c.l.b16 %v11727
      %v11778 = vunpack.c.h.b16 %v11727
      %v11779 = vunpack.c.l.b16 %v11728
      %v11780 = vunpack.c.h.b16 %v11728
      %v11781 = vunpack.c.l.b16 %v11729
      %v11782 = vunpack.c.h.b16 %v11729
      %v11783 = vunpack.c.l.b16 %v11730
      %v11784 = vunpack.c.h.b16 %v11730
      %v11785 = vunpack.c.l.b16 %v11731
      %v11786 = vunpack.c.h.b16 %v11731
      %v11787 = vunpack.c.l.b16 %v11732
      %v11788 = vunpack.c.h.b16 %v11732
      %v11789 = vunpack.c.l.b16 %v11733
      %v11790 = vunpack.c.h.b16 %v11733
      %v11791 = vunpack.c.l.b16 %v11734
      %v11792 = vunpack.c.h.b16 %v11734
      %v11793 = vpack.c.b16 %v11763, %v11761
      %v11794 = vpack.c.b16 %v11764, %v11762
      %v11795 = vpack.c.b16 %v11767, %v11765
      %v11796 = vpack.c.b16 %v11768, %v11766
      %v11797 = vpack.c.b16 %v11771, %v11769
      %v11798 = vpack.c.b16 %v11772, %v11770
      %v11799 = vpack.c.b16 %v11775, %v11773
      %v11800 = vpack.c.b16 %v11776, %v11774
      %v11801 = vpack.c.b16 %v11779, %v11777
      %v11802 = vpack.c.b16 %v11780, %v11778
      %v11803 = vpack.c.b16 %v11783, %v11781
      %v11804 = vpack.c.b16 %v11784, %v11782
      %v11805 = vpack.c.b16 %v11787, %v11785
      %v11806 = vpack.c.b16 %v11788, %v11786
      %v11807 = vpack.c.b16 %v11791, %v11789
      %v11808 = vpack.c.b16 %v11792, %v11790
      %11825 = vmatprep.subr.bf16.mxu0 %v11808
      %11826 = vmatpush1.bf16.msra.mxu0 %v11807
      %11827 = vmatprep.subr.bf16.mxu0 %v11806
      %11828 = vmatpush1.bf16.msra.mxu0 %v11805
      %11829 = vmatprep.subr.bf16.mxu0 %v11804
      %11830 = vmatpush1.bf16.msra.mxu0 %v11803
      %11831 = vmatprep.subr.bf16.mxu0 %v11802
      %11832 = vmatpush1.bf16.msra.mxu0 %v11801
      %11833 = vmatprep.subr.bf16.mxu0 %v11800
      %11834 = vmatpush1.bf16.msra.mxu0 %v11799
      %11835 = vmatprep.subr.bf16.mxu0 %v11798
      %11836 = vmatpush1.bf16.msra.mxu0 %v11797
      %11837 = vmatprep.subr.bf16.mxu0 %v11796
      %11838 = vmatpush1.bf16.msra.mxu0 %v11795
      %11839 = vmatprep.subr.bf16.mxu0 %v11794
      %11840 = vmatpush1.bf16.msra.mxu0 %v11793
      %11841 = vmatprep.subr.bf16.mxu0 0
      %11842 = vmatpush2.bf16.msra.mxu0 0
      %11843 = vmatprep.subr.bf16.mxu0 0
      %11844 = vmatpush2.bf16.msra.mxu0 0
      %11845 = vmatprep.subr.bf16.mxu0 0
      %11846 = vmatpush2.bf16.msra.mxu0 0
      %11847 = vmatprep.subr.bf16.mxu0 0
      %11848 = vmatpush2.bf16.msra.mxu0 0
      %11849 = vmatprep.subr.bf16.mxu0 0
      %11850 = vmatpush2.bf16.msra.mxu0 0
      %11851 = vmatprep.subr.bf16.mxu0 0
      %11852 = vmatpush2.bf16.msra.mxu0 0
      %11853 = vmatprep.subr.bf16.mxu0 0
      %11854 = vmatpush2.bf16.msra.mxu0 0
      %11855 = vmatprep.subr.bf16.mxu0 0
      %11856 = vmatpush2.bf16.msra.mxu0 0
      %11857 = vmatprep.mubr.bf16.mxu0 0
      %11858 = vmatmul.mubr.bf16.gmra.mxu0 %v11743
      %v11859 = vpop.f32.mrf.mxu0
      %v11860 = vadd.f32 0.0, %v11859
      %v11861 = vpop.f32.mrf.mxu0
      %v11862 = vadd.f32 0.0, %v11861
      %v11863 = vpop.f32.mrf.mxu0
      %v11864 = vadd.f32 0.0, %v11863
      %v11865 = vpop.f32.mrf.mxu0
      %v11866 = vadd.f32 0.0, %v11865
      %11867 = vmatprep.mubr.bf16.mxu0 0
      %11868 = vmatmul.mubr.bf16.gmra.mxu0 %v11744
      %v11869 = vpop.f32.mrf.mxu0
      %v11870 = vadd.f32 0.0, %v11869
      %v11871 = vpop.f32.mrf.mxu0
      %v11872 = vadd.f32 0.0, %v11871
      %v11873 = vpop.f32.mrf.mxu0
      %v11874 = vadd.f32 0.0, %v11873
      %v11875 = vpop.f32.mrf.mxu0
      %v11876 = vadd.f32 0.0, %v11875
      %11877 = vdwg.mxu0
      %v11894 = vunpack.c.l.b16 %v11643
      %v11895 = vunpack.c.h.b16 %v11643
      %v11896 = vunpack.c.l.b16 %v11644
      %v11897 = vunpack.c.h.b16 %v11644
      %v11898 = vunpack.c.l.b16 %v11645
      %v11899 = vunpack.c.h.b16 %v11645
      %v11900 = vunpack.c.l.b16 %v11646
      %v11901 = vunpack.c.h.b16 %v11646
      %v11902 = vunpack.c.l.b16 %v11647
      %v11903 = vunpack.c.h.b16 %v11647
      %v11904 = vunpack.c.l.b16 %v11648
      %v11905 = vunpack.c.h.b16 %v11648
      %v11906 = vunpack.c.l.b16 %v11649
      %v11907 = vunpack.c.h.b16 %v11649
      %v11908 = vunpack.c.l.b16 %v11650
      %v11909 = vunpack.c.h.b16 %v11650
      %v11910 = vunpack.c.l.b16 %v11651
      %v11911 = vunpack.c.h.b16 %v11651
      %v11912 = vunpack.c.l.b16 %v11652
      %v11913 = vunpack.c.h.b16 %v11652
      %v11914 = vunpack.c.l.b16 %v11653
      %v11915 = vunpack.c.h.b16 %v11653
      %v11916 = vunpack.c.l.b16 %v11654
      %v11917 = vunpack.c.h.b16 %v11654
      %v11918 = vunpack.c.l.b16 %v11655
      %v11919 = vunpack.c.h.b16 %v11655
      %v11920 = vunpack.c.l.b16 %v11656
      %v11921 = vunpack.c.h.b16 %v11656
      %v11922 = vunpack.c.l.b16 %v11657
      %v11923 = vunpack.c.h.b16 %v11657
      %v11924 = vunpack.c.l.b16 %v11658
      %v11925 = vunpack.c.h.b16 %v11658
      %v11926 = vpack.c.b16 %v11896, %v11894
      %v11927 = vpack.c.b16 %v11897, %v11895
      %v11928 = vpack.c.b16 %v11900, %v11898
      %v11929 = vpack.c.b16 %v11901, %v11899
      %v11930 = vpack.c.b16 %v11904, %v11902
      %v11931 = vpack.c.b16 %v11905, %v11903
      %v11932 = vpack.c.b16 %v11908, %v11906
      %v11933 = vpack.c.b16 %v11909, %v11907
      %v11934 = vpack.c.b16 %v11912, %v11910
      %v11935 = vpack.c.b16 %v11913, %v11911
      %v11936 = vpack.c.b16 %v11916, %v11914
      %v11937 = vpack.c.b16 %v11917, %v11915
      %v11938 = vpack.c.b16 %v11920, %v11918
      %v11939 = vpack.c.b16 %v11921, %v11919
      %v11940 = vpack.c.b16 %v11924, %v11922
      %v11941 = vpack.c.b16 %v11925, %v11923
      %11958 = vmatprep.subr.bf16.mxu0 %v11941
      %11959 = vmatpush1.bf16.msra.mxu0 %v11940
      %11960 = vmatprep.subr.bf16.mxu0 %v11939
      %11961 = vmatpush1.bf16.msra.mxu0 %v11938
      %11962 = vmatprep.subr.bf16.mxu0 %v11937
      %11963 = vmatpush1.bf16.msra.mxu0 %v11936
      %11964 = vmatprep.subr.bf16.mxu0 %v11935
      %11965 = vmatpush1.bf16.msra.mxu0 %v11934
      %11966 = vmatprep.subr.bf16.mxu0 %v11933
      %11967 = vmatpush1.bf16.msra.mxu0 %v11932
      %11968 = vmatprep.subr.bf16.mxu0 %v11931
      %11969 = vmatpush1.bf16.msra.mxu0 %v11930
      %11970 = vmatprep.subr.bf16.mxu0 %v11929
      %11971 = vmatpush1.bf16.msra.mxu0 %v11928
      %11972 = vmatprep.subr.bf16.mxu0 %v11927
      %11973 = vmatpush1.bf16.msra.mxu0 %v11926
      %11974 = vmatprep.subr.bf16.mxu0 0
      %11975 = vmatpush2.bf16.msra.mxu0 0
      %11976 = vmatprep.subr.bf16.mxu0 0
      %11977 = vmatpush2.bf16.msra.mxu0 0
      %11978 = vmatprep.subr.bf16.mxu0 0
      %11979 = vmatpush2.bf16.msra.mxu0 0
      %11980 = vmatprep.subr.bf16.mxu0 0
      %11981 = vmatpush2.bf16.msra.mxu0 0
      %11982 = vmatprep.subr.bf16.mxu0 0
      %11983 = vmatpush2.bf16.msra.mxu0 0
      %11984 = vmatprep.subr.bf16.mxu0 0
      %11985 = vmatpush2.bf16.msra.mxu0 0
      %11986 = vmatprep.subr.bf16.mxu0 0
      %11987 = vmatpush2.bf16.msra.mxu0 0
      %11988 = vmatprep.subr.bf16.mxu0 0
      %11989 = vmatpush2.bf16.msra.mxu0 0
      %11990 = vmatprep.mubr.bf16.mxu0 0
      %11991 = vmatmul.mubr.bf16.gmra.mxu0 %v11675
      %v11992 = vpop.f32.mrf.mxu0
      %v11993 = vadd.f32 %v11860, %v11992
      %v11994 = vpop.f32.mrf.mxu0
      %v11995 = vadd.f32 %v11862, %v11994
      %v11996 = vpop.f32.mrf.mxu0
      %v11997 = vadd.f32 %v11864, %v11996
      %v11998 = vpop.f32.mrf.mxu0
      %v11999 = vadd.f32 %v11866, %v11998
      %12000 = vmatprep.mubr.bf16.mxu0 0
      %12001 = vmatmul.mubr.bf16.gmra.mxu0 %v11676
      %v12002 = vpop.f32.mrf.mxu0
      %v12003 = vadd.f32 %v11870, %v12002
      %v12004 = vpop.f32.mrf.mxu0
      %v12005 = vadd.f32 %v11872, %v12004
      %v12006 = vpop.f32.mrf.mxu0
      %v12007 = vadd.f32 %v11874, %v12006
      %v12008 = vpop.f32.mrf.mxu0
      %v12009 = vadd.f32 %v11876, %v12008
      %12010 = vdwg.mxu0
      %vm12011 = vcmask 1045508
      %vm12012 = vmor %vm5356, %vm12011
      %v12013 = vrot.slane %v11635, 6
      %v12014 = vrot.slane %v12013, 4
      %v12015 = vrot.slane %v11677, 6
      %v12016 = vsel %vm12012, %v12014, %v12015
      %v12017 = vrot.slane %v11636, 6
      %v12018 = vrot.slane %v12017, 4
      %v12019 = vrot.slane %v11678, 6
      %v12020 = vsel %vm12012, %v12018, %v12019
      %v12021 = vrot.slane %v11637, 6
      %v12022 = vrot.slane %v12021, 4
      %v12023 = vrot.slane %v11679, 6
      %v12024 = vsel %vm12012, %v12022, %v12023
      %v12025 = vrot.slane %v11638, 6
      %v12026 = vrot.slane %v12025, 4
      %v12027 = vrot.slane %v11680, 6
      %v12028 = vsel %vm12012, %v12026, %v12027
      %v12029 = vrot.slane %v11639, 6
      %v12030 = vrot.slane %v12029, 4
      %v12031 = vrot.slane %v11681, 6
      %v12032 = vsel %vm12012, %v12030, %v12031
      %v12033 = vrot.slane %v11640, 6
      %v12034 = vrot.slane %v12033, 4
      %v12035 = vrot.slane %v11682, 6
      %v12036 = vsel %vm12012, %v12034, %v12035
      %v12037 = vrot.slane %v11641, 6
      %v12038 = vrot.slane %v12037, 4
      %v12039 = vrot.slane %v11683, 6
      %v12040 = vsel %vm12012, %v12038, %v12039
      %v12041 = vrot.slane %v11642, 6
      %v12042 = vrot.slane %v12041, 4
      %v12043 = vrot.slane %v11684, 6
      %v12044 = vsel %vm12012, %v12042, %v12043
      %v12045 = vld [vmem:[%s9 + $0x100] sm:$0xff]
      %v12046 = vld [vmem:[%s9 + $0x108] sm:$0xff]
      %v12047 = vld [vmem:[%s9 + $0x110] sm:$0xff]
      %v12048 = vld [vmem:[%s9 + $0x118] sm:$0xff]
      %v12049 = vld [vmem:[%s9 + $0x120] sm:$0xff]
      %v12050 = vld [vmem:[%s9 + $0x128] sm:$0xff]
      %v12051 = vld [vmem:[%s9 + $0x130] sm:$0xff]
      %v12052 = vld [vmem:[%s9 + $0x138] sm:$0xff]
      %v12053 = vld [vmem:[%s9 + $0x140] sm:$0xff]
      %v12054 = vld [vmem:[%s9 + $0x148] sm:$0xff]
      %v12055 = vld [vmem:[%s9 + $0x150] sm:$0xff]
      %v12056 = vld [vmem:[%s9 + $0x158] sm:$0xff]
      %v12057 = vld [vmem:[%s9 + $0x160] sm:$0xff]
      %v12058 = vld [vmem:[%s9 + $0x168] sm:$0xff]
      %v12059 = vld [vmem:[%s9 + $0x170] sm:$0xff]
      %v12060 = vld [vmem:[%s9 + $0x178] sm:$0xff]
      %v12061 = vcombine.low %v12016, %v12020
      %v12062 = vcombine.low %v12024, %v12028
      %v12063 = vcombine.low %v12032, %v12036
      %v12064 = vcombine.low %v12040, %v12044
      %v12069 = vpack.c.bf16 %v12062, %v12061
      %v12070 = vpack.c.bf16 %v12064, %v12063
      %v12087 = vunpack.c.l.b16 %v12045
      %v12088 = vunpack.c.h.b16 %v12045
      %v12089 = vunpack.c.l.b16 %v12046
      %v12090 = vunpack.c.h.b16 %v12046
      %v12091 = vunpack.c.l.b16 %v12047
      %v12092 = vunpack.c.h.b16 %v12047
      %v12093 = vunpack.c.l.b16 %v12048
      %v12094 = vunpack.c.h.b16 %v12048
      %v12095 = vunpack.c.l.b16 %v12049
      %v12096 = vunpack.c.h.b16 %v12049
      %v12097 = vunpack.c.l.b16 %v12050
      %v12098 = vunpack.c.h.b16 %v12050
      %v12099 = vunpack.c.l.b16 %v12051
      %v12100 = vunpack.c.h.b16 %v12051
      %v12101 = vunpack.c.l.b16 %v12052
      %v12102 = vunpack.c.h.b16 %v12052
      %v12103 = vunpack.c.l.b16 %v12053
      %v12104 = vunpack.c.h.b16 %v12053
      %v12105 = vunpack.c.l.b16 %v12054
      %v12106 = vunpack.c.h.b16 %v12054
      %v12107 = vunpack.c.l.b16 %v12055
      %v12108 = vunpack.c.h.b16 %v12055
      %v12109 = vunpack.c.l.b16 %v12056
      %v12110 = vunpack.c.h.b16 %v12056
      %v12111 = vunpack.c.l.b16 %v12057
      %v12112 = vunpack.c.h.b16 %v12057
      %v12113 = vunpack.c.l.b16 %v12058
      %v12114 = vunpack.c.h.b16 %v12058
      %v12115 = vunpack.c.l.b16 %v12059
      %v12116 = vunpack.c.h.b16 %v12059
      %v12117 = vunpack.c.l.b16 %v12060
      %v12118 = vunpack.c.h.b16 %v12060
      %v12119 = vpack.c.b16 %v12089, %v12087
      %v12120 = vpack.c.b16 %v12090, %v12088
      %v12121 = vpack.c.b16 %v12093, %v12091
      %v12122 = vpack.c.b16 %v12094, %v12092
      %v12123 = vpack.c.b16 %v12097, %v12095
      %v12124 = vpack.c.b16 %v12098, %v12096
      %v12125 = vpack.c.b16 %v12101, %v12099
      %v12126 = vpack.c.b16 %v12102, %v12100
      %v12127 = vpack.c.b16 %v12105, %v12103
      %v12128 = vpack.c.b16 %v12106, %v12104
      %v12129 = vpack.c.b16 %v12109, %v12107
      %v12130 = vpack.c.b16 %v12110, %v12108
      %v12131 = vpack.c.b16 %v12113, %v12111
      %v12132 = vpack.c.b16 %v12114, %v12112
      %v12133 = vpack.c.b16 %v12117, %v12115
      %v12134 = vpack.c.b16 %v12118, %v12116
      %12151 = vmatprep.subr.bf16.mxu0 %v12134
      %12152 = vmatpush1.bf16.msra.mxu0 %v12133
      %12153 = vmatprep.subr.bf16.mxu0 %v12132
      %12154 = vmatpush1.bf16.msra.mxu0 %v12131
      %12155 = vmatprep.subr.bf16.mxu0 %v12130
      %12156 = vmatpush1.bf16.msra.mxu0 %v12129
      %12157 = vmatprep.subr.bf16.mxu0 %v12128
      %12158 = vmatpush1.bf16.msra.mxu0 %v12127
      %12159 = vmatprep.subr.bf16.mxu0 %v12126
      %12160 = vmatpush1.bf16.msra.mxu0 %v12125
      %12161 = vmatprep.subr.bf16.mxu0 %v12124
      %12162 = vmatpush1.bf16.msra.mxu0 %v12123
      %12163 = vmatprep.subr.bf16.mxu0 %v12122
      %12164 = vmatpush1.bf16.msra.mxu0 %v12121
      %12165 = vmatprep.subr.bf16.mxu0 %v12120
      %12166 = vmatpush1.bf16.msra.mxu0 %v12119
      %12167 = vmatprep.subr.bf16.mxu0 0
      %12168 = vmatpush2.bf16.msra.mxu0 0
      %12169 = vmatprep.subr.bf16.mxu0 0
      %12170 = vmatpush2.bf16.msra.mxu0 0
      %12171 = vmatprep.subr.bf16.mxu0 0
      %12172 = vmatpush2.bf16.msra.mxu0 0
      %12173 = vmatprep.subr.bf16.mxu0 0
      %12174 = vmatpush2.bf16.msra.mxu0 0
      %12175 = vmatprep.subr.bf16.mxu0 0
      %12176 = vmatpush2.bf16.msra.mxu0 0
      %12177 = vmatprep.subr.bf16.mxu0 0
      %12178 = vmatpush2.bf16.msra.mxu0 0
      %12179 = vmatprep.subr.bf16.mxu0 0
      %12180 = vmatpush2.bf16.msra.mxu0 0
      %12181 = vmatprep.subr.bf16.mxu0 0
      %12182 = vmatpush2.bf16.msra.mxu0 0
      %12183 = vmatprep.mubr.bf16.mxu0 0
      %12184 = vmatmul.mubr.bf16.gmra.mxu0 %v12069
      %v12185 = vpop.f32.mrf.mxu0
      %v12186 = vadd.f32 0.0, %v12185
      %v12187 = vpop.f32.mrf.mxu0
      %v12188 = vadd.f32 0.0, %v12187
      %v12189 = vpop.f32.mrf.mxu0
      %v12190 = vadd.f32 0.0, %v12189
      %v12191 = vpop.f32.mrf.mxu0
      %v12192 = vadd.f32 0.0, %v12191
      %12193 = vmatprep.mubr.bf16.mxu0 0
      %12194 = vmatmul.mubr.bf16.gmra.mxu0 %v12070
      %v12195 = vpop.f32.mrf.mxu0
      %v12196 = vadd.f32 0.0, %v12195
      %v12197 = vpop.f32.mrf.mxu0
      %v12198 = vadd.f32 0.0, %v12197
      %v12199 = vpop.f32.mrf.mxu0
      %v12200 = vadd.f32 0.0, %v12199
      %v12201 = vpop.f32.mrf.mxu0
      %v12202 = vadd.f32 0.0, %v12201
      %12203 = vdwg.mxu0
      %v12204 = vadd.f32 %v11993, %v12186
      %v12205 = vadd.f32 %v11995, %v12188
      %v12206 = vadd.f32 %v11997, %v12190
      %v12207 = vadd.f32 %v11999, %v12192
      %v12208 = vadd.f32 %v12003, %v12196
      %v12209 = vadd.f32 %v12005, %v12198
      %v12210 = vadd.f32 %v12007, %v12200
      %v12211 = vadd.f32 %v12009, %v12202
      %v12212 = vld [vmem:[%s10] sm:$0x3]
      %v12214 = vlaneseq
      %v12215 = vshrl.u32 %v12214, 7
      %v12216 = vsub.s32 0, %v12215
      %v12217 = vrot.slane %v12212, %v12216
      %v12218 = vlaneseq
      %v12219 = vshrl.u32 %v12218, 7
      %v12220 = vsub.s32 1, %v12219
      %v12221 = vrot.slane %v12212, %v12220
      %v12224 = vadd.f32 %v12204, %v12217
      %v12225 = vadd.f32 %v12205, %v12221
      %v12226 = vadd.f32 %v12206, %v12217
      %v12227 = vadd.f32 %v12207, %v12221
      %v12228 = vadd.f32 %v12208, %v12217
      %v12229 = vadd.f32 %v12209, %v12221
      %v12230 = vadd.f32 %v12210, %v12217
      %v12231 = vadd.f32 %v12211, %v12221
      %v12232 = vmax.f32 %v12224, 0.0
      %v12233 = vmax.f32 %v12225, 0.0
      %v12234 = vmax.f32 %v12226, 0.0
      %v12235 = vmax.f32 %v12227, 0.0
      %v12236 = vmax.f32 %v12228, 0.0
      %v12237 = vmax.f32 %v12229, 0.0
      %v12238 = vmax.f32 %v12230, 0.0
      %v12239 = vmax.f32 %v12231, 0.0
      %v12240 = vld [vmem:[%s11] sm:$0x3]
      %v12242 = vlaneseq
      %v12243 = vshrl.u32 %v12242, 7
      %v12244 = vsub.s32 0, %v12243
      %v12245 = vrot.slane %v12240, %v12244
      %v12246 = vlaneseq
      %v12247 = vshrl.u32 %v12246, 7
      %v12248 = vsub.s32 1, %v12247
      %v12249 = vrot.slane %v12240, %v12248
      %v12252 = vmul.f32 %v12232, %v12245
      %v12253 = vmul.f32 %v12233, %v12249
      %v12254 = vmul.f32 %v12234, %v12245
      %v12255 = vmul.f32 %v12235, %v12249
      %v12256 = vmul.f32 %v12236, %v12245
      %v12257 = vmul.f32 %v12237, %v12249
      %v12258 = vmul.f32 %v12238, %v12245
      %v12259 = vmul.f32 %v12239, %v12249
      %v12260 = vld [vmem:[%s12] sm:$0x3]
      %v12262 = vlaneseq
      %v12263 = vshrl.u32 %v12262, 7
      %v12264 = vsub.s32 0, %v12263
      %v12265 = vrot.slane %v12260, %v12264
      %v12266 = vlaneseq
      %v12267 = vshrl.u32 %v12266, 7
      %v12268 = vsub.s32 1, %v12267
      %v12269 = vrot.slane %v12260, %v12268
      %v12272 = vadd.f32 %v12252, %v12265
      %v12273 = vadd.f32 %v12253, %v12269
      %v12274 = vadd.f32 %v12254, %v12265
      %v12275 = vadd.f32 %v12255, %v12269
      %v12276 = vadd.f32 %v12256, %v12265
      %v12277 = vadd.f32 %v12257, %v12269
      %v12278 = vadd.f32 %v12258, %v12265
      %v12279 = vadd.f32 %v12259, %v12269
      %v12288 = vcombine.low %v12272, %v12273
      %v12289 = vcombine.high %v12272, %v12273
      %v12290 = vcombine.low %v12274, %v12275
      %v12291 = vcombine.high %v12274, %v12275
      %v12292 = vcombine.low %v12276, %v12277
      %v12293 = vcombine.high %v12276, %v12277
      %v12294 = vcombine.low %v12278, %v12279
      %v12295 = vcombine.high %v12278, %v12279
      %v12304 = vcombine.high %v12288, %v12288
      %v12305 = vcombine.high %v12289, %v12289
      %v12306 = vcombine.high %v12290, %v12290
      %v12307 = vcombine.high %v12291, %v12291
      %v12308 = vcombine.high %v12292, %v12292
      %v12309 = vcombine.high %v12293, %v12293
      %v12310 = vcombine.high %v12294, %v12294
      %v12311 = vcombine.high %v12295, %v12295
      %v12320 = vsel %vm5374, %v12288, 0.0
      %v12321 = vrot.slane %v12320, 4
      %v12322 = vadd.f32 %v12320, %v12321
      %v12323 = vrot.slane %v12322, 2
      %v12324 = vadd.f32 %v12322, %v12323
      %v12325 = vrot.slane %v12324, 1
      %v12326 = vadd.f32 %v12324, %v12325
      %v12327 = vsel %vm5374, %v12304, 0.0
      %v12328 = vrot.slane %v12327, 4
      %v12329 = vadd.f32 %v12327, %v12328
      %v12330 = vrot.slane %v12329, 2
      %v12331 = vadd.f32 %v12329, %v12330
      %v12332 = vrot.slane %v12331, 1
      %v12333 = vadd.f32 %v12331, %v12332
      %v12334 = vsel %vm5374, %v12289, 0.0
      %v12335 = vrot.slane %v12334, 4
      %v12336 = vadd.f32 %v12334, %v12335
      %v12337 = vrot.slane %v12336, 2
      %v12338 = vadd.f32 %v12336, %v12337
      %v12339 = vrot.slane %v12338, 1
      %v12340 = vadd.f32 %v12338, %v12339
      %v12341 = vsel %vm5374, %v12305, 0.0
      %v12342 = vrot.slane %v12341, 4
      %v12343 = vadd.f32 %v12341, %v12342
      %v12344 = vrot.slane %v12343, 2
      %v12345 = vadd.f32 %v12343, %v12344
      %v12346 = vrot.slane %v12345, 1
      %v12347 = vadd.f32 %v12345, %v12346
      %v12348 = vsel %vm5374, %v12290, 0.0
      %v12349 = vrot.slane %v12348, 4
      %v12350 = vadd.f32 %v12348, %v12349
      %v12351 = vrot.slane %v12350, 2
      %v12352 = vadd.f32 %v12350, %v12351
      %v12353 = vrot.slane %v12352, 1
      %v12354 = vadd.f32 %v12352, %v12353
      %v12355 = vsel %vm5374, %v12306, 0.0
      %v12356 = vrot.slane %v12355, 4
      %v12357 = vadd.f32 %v12355, %v12356
      %v12358 = vrot.slane %v12357, 2
      %v12359 = vadd.f32 %v12357, %v12358
      %v12360 = vrot.slane %v12359, 1
      %v12361 = vadd.f32 %v12359, %v12360
      %v12362 = vsel %vm5374, %v12291, 0.0
      %v12363 = vrot.slane %v12362, 4
      %v12364 = vadd.f32 %v12362, %v12363
      %v12365 = vrot.slane %v12364, 2
      %v12366 = vadd.f32 %v12364, %v12365
      %v12367 = vrot.slane %v12366, 1
      %v12368 = vadd.f32 %v12366, %v12367
      %v12369 = vsel %vm5374, %v12307, 0.0
      %v12370 = vrot.slane %v12369, 4
      %v12371 = vadd.f32 %v12369, %v12370
      %v12372 = vrot.slane %v12371, 2
      %v12373 = vadd.f32 %v12371, %v12372
      %v12374 = vrot.slane %v12373, 1
      %v12375 = vadd.f32 %v12373, %v12374
      %v12376 = vsel %vm5374, %v12292, 0.0
      %v12377 = vrot.slane %v12376, 4
      %v12378 = vadd.f32 %v12376, %v12377
      %v12379 = vrot.slane %v12378, 2
      %v12380 = vadd.f32 %v12378, %v12379
      %v12381 = vrot.slane %v12380, 1
      %v12382 = vadd.f32 %v12380, %v12381
      %v12383 = vsel %vm5374, %v12308, 0.0
      %v12384 = vrot.slane %v12383, 4
      %v12385 = vadd.f32 %v12383, %v12384
      %v12386 = vrot.slane %v12385, 2
      %v12387 = vadd.f32 %v12385, %v12386
      %v12388 = vrot.slane %v12387, 1
      %v12389 = vadd.f32 %v12387, %v12388
      %v12390 = vsel %vm5374, %v12293, 0.0
      %v12391 = vrot.slane %v12390, 4
      %v12392 = vadd.f32 %v12390, %v12391
      %v12393 = vrot.slane %v12392, 2
      %v12394 = vadd.f32 %v12392, %v12393
      %v12395 = vrot.slane %v12394, 1
      %v12396 = vadd.f32 %v12394, %v12395
      %v12397 = vsel %vm5374, %v12309, 0.0
      %v12398 = vrot.slane %v12397, 4
      %v12399 = vadd.f32 %v12397, %v12398
      %v12400 = vrot.slane %v12399, 2
      %v12401 = vadd.f32 %v12399, %v12400
      %v12402 = vrot.slane %v12401, 1
      %v12403 = vadd.f32 %v12401, %v12402
      %v12404 = vsel %vm5374, %v12294, 0.0
      %v12405 = vrot.slane %v12404, 4
      %v12406 = vadd.f32 %v12404, %v12405
      %v12407 = vrot.slane %v12406, 2
      %v12408 = vadd.f32 %v12406, %v12407
      %v12409 = vrot.slane %v12408, 1
      %v12410 = vadd.f32 %v12408, %v12409
      %v12411 = vsel %vm5374, %v12310, 0.0
      %v12412 = vrot.slane %v12411, 4
      %v12413 = vadd.f32 %v12411, %v12412
      %v12414 = vrot.slane %v12413, 2
      %v12415 = vadd.f32 %v12413, %v12414
      %v12416 = vrot.slane %v12415, 1
      %v12417 = vadd.f32 %v12415, %v12416
      %v12418 = vsel %vm5374, %v12295, 0.0
      %v12419 = vrot.slane %v12418, 4
      %v12420 = vadd.f32 %v12418, %v12419
      %v12421 = vrot.slane %v12420, 2
      %v12422 = vadd.f32 %v12420, %v12421
      %v12423 = vrot.slane %v12422, 1
      %v12424 = vadd.f32 %v12422, %v12423
      %v12425 = vsel %vm5374, %v12311, 0.0
      %v12426 = vrot.slane %v12425, 4
      %v12427 = vadd.f32 %v12425, %v12426
      %v12428 = vrot.slane %v12427, 2
      %v12429 = vadd.f32 %v12427, %v12428
      %v12430 = vrot.slane %v12429, 1
      %v12431 = vadd.f32 %v12429, %v12430
      %v12432 = vrcp.pop 4.0
      %v12433 = vmul.f32 %v12326, %v12432
      %v12434 = vmul.f32 %v12333, %v12432
      %v12435 = vmul.f32 %v12340, %v12432
      %v12436 = vmul.f32 %v12347, %v12432
      %v12437 = vmul.f32 %v12354, %v12432
      %v12438 = vmul.f32 %v12361, %v12432
      %v12439 = vmul.f32 %v12368, %v12432
      %v12440 = vmul.f32 %v12375, %v12432
      %v12441 = vmul.f32 %v12382, %v12432
      %v12442 = vmul.f32 %v12389, %v12432
      %v12443 = vmul.f32 %v12396, %v12432
      %v12444 = vmul.f32 %v12403, %v12432
      %v12445 = vmul.f32 %v12410, %v12432
      %v12446 = vmul.f32 %v12417, %v12432
      %v12447 = vmul.f32 %v12424, %v12432
      %v12448 = vmul.f32 %v12431, %v12432
      %v12449 = vld [vmem:[%s13] sm:$0xf]
      %v12450 = vld [vmem:[%s13 + $0x4] sm:$0xf]
      %v12451 = vld [vmem:[%s13 + $0x8] sm:$0xf]
      %v12452 = vld [vmem:[%s13 + $0xc] sm:$0xf]
      %v12453 = vld [vmem:[%s13 + $0x10] sm:$0xf]
      %v12454 = vld [vmem:[%s13 + $0x14] sm:$0xf]
      %v12455 = vld [vmem:[%s13 + $0x18] sm:$0xf]
      %v12456 = vld [vmem:[%s13 + $0x1c] sm:$0xf]
      %v12457 = vld [vmem:[%s13 + $0x20] sm:$0xf]
      %v12458 = vld [vmem:[%s13 + $0x24] sm:$0xf]
      %v12459 = vld [vmem:[%s13 + $0x28] sm:$0xf]
      %v12460 = vld [vmem:[%s13 + $0x2c] sm:$0xf]
      %v12461 = vld [vmem:[%s13 + $0x30] sm:$0xf]
      %v12462 = vld [vmem:[%s13 + $0x34] sm:$0xf]
      %v12463 = vld [vmem:[%s13 + $0x38] sm:$0xf]
      %v12464 = vld [vmem:[%s13 + $0x3c] sm:$0xf]
      %v12465 = vld [vmem:[%s13 + $0x40] sm:$0xf]
      %v12466 = vld [vmem:[%s13 + $0x44] sm:$0xf]
      %v12467 = vld [vmem:[%s13 + $0x48] sm:$0xf]
      %v12468 = vld [vmem:[%s13 + $0x4c] sm:$0xf]
      %v12469 = vld [vmem:[%s13 + $0x50] sm:$0xf]
      %v12470 = vld [vmem:[%s13 + $0x54] sm:$0xf]
      %v12471 = vld [vmem:[%s13 + $0x58] sm:$0xf]
      %v12472 = vld [vmem:[%s13 + $0x5c] sm:$0xf]
      %v12473 = vld [vmem:[%s13 + $0x60] sm:$0xf]
      %v12474 = vld [vmem:[%s13 + $0x64] sm:$0xf]
      %v12475 = vld [vmem:[%s13 + $0x68] sm:$0xf]
      %v12476 = vld [vmem:[%s13 + $0x6c] sm:$0xf]
      %v12477 = vld [vmem:[%s13 + $0x70] sm:$0xf]
      %v12478 = vld [vmem:[%s13 + $0x74] sm:$0xf]
      %v12479 = vld [vmem:[%s13 + $0x78] sm:$0xf]
      %v12480 = vld [vmem:[%s13 + $0x7c] sm:$0xf]
      %v12481 = vpack.c.bf16 %v12433, %v12433
      %v12482 = vpack.c.bf16 %v12434, %v12434
      %v12483 = vpack.c.bf16 %v12435, %v12435
      %v12484 = vpack.c.bf16 %v12436, %v12436
      %v12485 = vpack.c.bf16 %v12437, %v12437
      %v12486 = vpack.c.bf16 %v12438, %v12438
      %v12487 = vpack.c.bf16 %v12439, %v12439
      %v12488 = vpack.c.bf16 %v12440, %v12440
      %v12489 = vpack.c.bf16 %v12441, %v12441
      %v12490 = vpack.c.bf16 %v12442, %v12442
      %v12491 = vpack.c.bf16 %v12443, %v12443
      %v12492 = vpack.c.bf16 %v12444, %v12444
      %v12493 = vpack.c.bf16 %v12445, %v12445
      %v12494 = vpack.c.bf16 %v12446, %v12446
      %v12495 = vpack.c.bf16 %v12447, %v12447
      %v12496 = vpack.c.bf16 %v12448, %v12448
      %v12497 = vld [vmem:[%s14] sm:$0x1]
      %v12499 = vlaneseq
      %v12500 = vshrl.u32 %v12499, 7
      %v12501 = vsub.s32 0, %v12500
      %v12502 = vrot.slane %v12497, %v12501
      %v12520 = vunpack.c.l.b16 %v12481
      %v12521 = vunpack.c.l.b16 %v12482
      %v12522 = vunpack.c.l.b16 %v12483
      %v12523 = vunpack.c.l.b16 %v12484
      %v12524 = vunpack.c.l.b16 %v12485
      %v12525 = vunpack.c.l.b16 %v12486
      %v12526 = vunpack.c.l.b16 %v12487
      %v12527 = vunpack.c.l.b16 %v12488
      %v12528 = vunpack.c.l.b16 %v12489
      %v12529 = vunpack.c.l.b16 %v12490
      %v12530 = vunpack.c.l.b16 %v12491
      %v12531 = vunpack.c.l.b16 %v12492
      %v12532 = vunpack.c.l.b16 %v12493
      %v12533 = vunpack.c.l.b16 %v12494
      %v12534 = vunpack.c.l.b16 %v12495
      %v12535 = vunpack.c.l.b16 %v12496
      %v12536 = vsel %vm11561, %v12522, %v12520
      %v12537 = vsel %vm11563, %v12524, %v12536
      %v12538 = vsel %vm11565, %v12526, %v12537
      %v12539 = vsel %vm11567, %v12528, %v12538
      %vm12540 = vcmask 1045509
      %v12541 = vsel %vm12540, %v12530, %v12539
      %vm12542 = vcmask 1046534
      %v12543 = vsel %vm12542, %v12532, %v12541
      %vm12544 = vcmask 1047559
      %v12545 = vsel %vm12544, %v12534, %v12543
      %v12546 = vsel %vm11561, %v12523, %v12521
      %v12547 = vsel %vm11563, %v12525, %v12546
      %v12548 = vsel %vm11565, %v12527, %v12547
      %v12549 = vsel %vm11567, %v12529, %v12548
      %v12550 = vsel %vm12540, %v12531, %v12549
      %v12551 = vsel %vm12542, %v12533, %v12550
      %v12552 = vsel %vm12544, %v12535, %v12551
      %v12553 = vpack.c.b16 %v12545, %v12545
      %v12554 = vpack.c.b16 %v12552, %v12552
      %v12589 = vunpack.c.l.b16 %v12449
      %v12590 = vunpack.c.l.b16 %v12450
      %v12591 = vunpack.c.l.b16 %v12451
      %v12592 = vunpack.c.l.b16 %v12452
      %v12593 = vunpack.c.l.b16 %v12453
      %v12594 = vunpack.c.l.b16 %v12454
      %v12595 = vunpack.c.l.b16 %v12455
      %v12596 = vunpack.c.l.b16 %v12456
      %v12597 = vunpack.c.l.b16 %v12457
      %v12598 = vunpack.c.l.b16 %v12458
      %v12599 = vunpack.c.l.b16 %v12459
      %v12600 = vunpack.c.l.b16 %v12460
      %v12601 = vunpack.c.l.b16 %v12461
      %v12602 = vunpack.c.l.b16 %v12462
      %v12603 = vunpack.c.l.b16 %v12463
      %v12604 = vunpack.c.l.b16 %v12464
      %v12605 = vunpack.c.l.b16 %v12465
      %v12606 = vunpack.c.l.b16 %v12466
      %v12607 = vunpack.c.l.b16 %v12467
      %v12608 = vunpack.c.l.b16 %v12468
      %v12609 = vunpack.c.l.b16 %v12469
      %v12610 = vunpack.c.l.b16 %v12470
      %v12611 = vunpack.c.l.b16 %v12471
      %v12612 = vunpack.c.l.b16 %v12472
      %v12613 = vunpack.c.l.b16 %v12473
      %v12614 = vunpack.c.l.b16 %v12474
      %v12615 = vunpack.c.l.b16 %v12475
      %v12616 = vunpack.c.l.b16 %v12476
      %v12617 = vunpack.c.l.b16 %v12477
      %v12618 = vunpack.c.l.b16 %v12478
      %v12619 = vunpack.c.l.b16 %v12479
      %v12620 = vunpack.c.l.b16 %v12480
      %v12621 = vpack.c.b16 %v12590, %v12589
      %v12622 = vpack.c.b16 %v12592, %v12591
      %v12623 = vpack.c.b16 %v12594, %v12593
      %v12624 = vpack.c.b16 %v12596, %v12595
      %v12625 = vpack.c.b16 %v12598, %v12597
      %v12626 = vpack.c.b16 %v12600, %v12599
      %v12627 = vpack.c.b16 %v12602, %v12601
      %v12628 = vpack.c.b16 %v12604, %v12603
      %v12629 = vpack.c.b16 %v12606, %v12605
      %v12630 = vpack.c.b16 %v12608, %v12607
      %v12631 = vpack.c.b16 %v12610, %v12609
      %v12632 = vpack.c.b16 %v12612, %v12611
      %v12633 = vpack.c.b16 %v12614, %v12613
      %v12634 = vpack.c.b16 %v12616, %v12615
      %v12635 = vpack.c.b16 %v12618, %v12617
      %v12636 = vpack.c.b16 %v12620, %v12619
      %12653 = vmatprep.subr.bf16.mxu0 0
      %12654 = vmatpush1.bf16.msra.mxu0 %v12628
      %12655 = vmatprep.subr.bf16.mxu0 0
      %12656 = vmatpush1.bf16.msra.mxu0 %v12627
      %12657 = vmatprep.subr.bf16.mxu0 0
      %12658 = vmatpush1.bf16.msra.mxu0 %v12626
      %12659 = vmatprep.subr.bf16.mxu0 0
      %12660 = vmatpush1.bf16.msra.mxu0 %v12625
      %12661 = vmatprep.subr.bf16.mxu0 0
      %12662 = vmatpush1.bf16.msra.mxu0 %v12624
      %12663 = vmatprep.subr.bf16.mxu0 0
      %12664 = vmatpush1.bf16.msra.mxu0 %v12623
      %12665 = vmatprep.subr.bf16.mxu0 0
      %12666 = vmatpush1.bf16.msra.mxu0 %v12622
      %12667 = vmatprep.subr.bf16.mxu0 0
      %12668 = vmatpush1.bf16.msra.mxu0 %v12621
      %12669 = vmatprep.subr.bf16.mxu0 0
      %12670 = vmatpush2.bf16.msra.mxu0 %v12636
      %12671 = vmatprep.subr.bf16.mxu0 0
      %12672 = vmatpush2.bf16.msra.mxu0 %v12635
      %12673 = vmatprep.subr.bf16.mxu0 0
      %12674 = vmatpush2.bf16.msra.mxu0 %v12634
      %12675 = vmatprep.subr.bf16.mxu0 0
      %12676 = vmatpush2.bf16.msra.mxu0 %v12633
      %12677 = vmatprep.subr.bf16.mxu0 0
      %12678 = vmatpush2.bf16.msra.mxu0 %v12632
      %12679 = vmatprep.subr.bf16.mxu0 0
      %12680 = vmatpush2.bf16.msra.mxu0 %v12631
      %12681 = vmatprep.subr.bf16.mxu0 0
      %12682 = vmatpush2.bf16.msra.mxu0 %v12630
      %12683 = vmatprep.subr.bf16.mxu0 0
      %12684 = vmatpush2.bf16.msra.mxu0 %v12629
      %12685 = vmatprep.mubr.bf16.mxu0 %v12554
      %12686 = vmatmul.mubr.bf16.gmra.mxu0 %v12553
      %v12687 = vpop.f32.mrf.mxu0
      %v12688 = vadd.f32 %v12502, %v12687
      %v12689 = vpop.f32.mrf.mxu0
      %v12690 = vpop.f32.mrf.mxu0
      %v12691 = vpop.f32.mrf.mxu0
      %12692 = vdwg.mxu0
      %v12693 = vmax.f32 %v12688, 0.0
      %v12694 = vld [vmem:[%s15] sm:$0xf]
      %v12695 = vld [vmem:[%s15 + $0x4] sm:$0xf]
      %v12696 = vld [vmem:[%s15 + $0x8] sm:$0xf]
      %v12697 = vld [vmem:[%s15 + $0xc] sm:$0xf]
      %v12698 = vld [vmem:[%s15 + $0x10] sm:$0xf]
      %v12699 = vld [vmem:[%s15 + $0x14] sm:$0xf]
      %v12700 = vld [vmem:[%s15 + $0x18] sm:$0xf]
      %v12701 = vld [vmem:[%s15 + $0x1c] sm:$0xf]
      %v12702 = vld [vmem:[%s15 + $0x20] sm:$0xf]
      %v12703 = vld [vmem:[%s15 + $0x24] sm:$0xf]
      %v12704 = vld [vmem:[%s15 + $0x28] sm:$0xf]
      %v12705 = vld [vmem:[%s15 + $0x2c] sm:$0xf]
      %v12706 = vld [vmem:[%s15 + $0x30] sm:$0xf]
      %v12707 = vld [vmem:[%s15 + $0x34] sm:$0xf]
      %v12708 = vld [vmem:[%s15 + $0x38] sm:$0xf]
      %v12709 = vld [vmem:[%s15 + $0x3c] sm:$0xf]
      %v12710 = vpack.c.bf16 %v12693, %v12693
      %v12711 = vld [vmem:[%s16] sm:$0x1]
      %v12713 = vlaneseq
      %v12714 = vshrl.u32 %v12713, 7
      %v12715 = vsub.s32 0, %v12714
      %v12716 = vrot.slane %v12711, %v12715
      %v12734 = vunpack.c.l.b16 %v12694
      %v12735 = vunpack.c.l.b16 %v12695
      %v12736 = vunpack.c.l.b16 %v12696
      %v12737 = vunpack.c.l.b16 %v12697
      %v12738 = vunpack.c.l.b16 %v12698
      %v12739 = vunpack.c.l.b16 %v12699
      %v12740 = vunpack.c.l.b16 %v12700
      %v12741 = vunpack.c.l.b16 %v12701
      %v12742 = vunpack.c.l.b16 %v12702
      %v12743 = vunpack.c.l.b16 %v12703
      %v12744 = vunpack.c.l.b16 %v12704
      %v12745 = vunpack.c.l.b16 %v12705
      %v12746 = vunpack.c.l.b16 %v12706
      %v12747 = vunpack.c.l.b16 %v12707
      %v12748 = vunpack.c.l.b16 %v12708
      %v12749 = vunpack.c.l.b16 %v12709
      %v12750 = vpack.c.b16 %v12735, %v12734
      %v12751 = vpack.c.b16 %v12737, %v12736
      %v12752 = vpack.c.b16 %v12739, %v12738
      %v12753 = vpack.c.b16 %v12741, %v12740
      %v12754 = vpack.c.b16 %v12743, %v12742
      %v12755 = vpack.c.b16 %v12745, %v12744
      %v12756 = vpack.c.b16 %v12747, %v12746
      %v12757 = vpack.c.b16 %v12749, %v12748
      %12766 = vmatprep.subr.bf16.mxu0 0
      %12767 = vmatpush1.bf16.msra.mxu0 %v12757
      %12768 = vmatprep.subr.bf16.mxu0 0
      %12769 = vmatpush1.bf16.msra.mxu0 %v12756
      %12770 = vmatprep.subr.bf16.mxu0 0
      %12771 = vmatpush1.bf16.msra.mxu0 %v12755
      %12772 = vmatprep.subr.bf16.mxu0 0
      %12773 = vmatpush1.bf16.msra.mxu0 %v12754
      %12774 = vmatprep.subr.bf16.mxu0 0
      %12775 = vmatpush1.bf16.msra.mxu0 %v12753
      %12776 = vmatprep.subr.bf16.mxu0 0
      %12777 = vmatpush1.bf16.msra.mxu0 %v12752
      %12778 = vmatprep.subr.bf16.mxu0 0
      %12779 = vmatpush1.bf16.msra.mxu0 %v12751
      %12780 = vmatprep.subr.bf16.mxu0 0
      %12781 = vmatpush1.bf16.msra.mxu0 %v12750
      %12782 = vmatprep.subr.bf16.mxu0 0
      %12783 = vmatpush2.bf16.msra.mxu0 0
      %12784 = vmatprep.subr.bf16.mxu0 0
      %12785 = vmatpush2.bf16.msra.mxu0 0
      %12786 = vmatprep.subr.bf16.mxu0 0
      %12787 = vmatpush2.bf16.msra.mxu0 0
      %12788 = vmatprep.subr.bf16.mxu0 0
      %12789 = vmatpush2.bf16.msra.mxu0 0
      %12790 = vmatprep.subr.bf16.mxu0 0
      %12791 = vmatpush2.bf16.msra.mxu0 0
      %12792 = vmatprep.subr.bf16.mxu0 0
      %12793 = vmatpush2.bf16.msra.mxu0 0
      %12794 = vmatprep.subr.bf16.mxu0 0
      %12795 = vmatpush2.bf16.msra.mxu0 0
      %12796 = vmatprep.subr.bf16.mxu0 0
      %12797 = vmatpush2.bf16.msra.mxu0 0
      %12798 = vmatprep.mubr.bf16.mxu0 0
      %12799 = vmatmul.mubr.bf16.gmra.mxu0 %v12710
      %v12800 = vpop.f32.mrf.mxu0
      %v12801 = vadd.f32 %v12716, %v12800
      %v12802 = vpop.f32.mrf.mxu0
      %v12803 = vpop.f32.mrf.mxu0
      %v12804 = vpop.f32.mrf.mxu0
      %12805 = vdwg.mxu0
      %v12806 = vmax.f32 %v12801, 0.0
      %v12807 = vld [vmem:[%s17] sm:$0xf]
      %v12808 = vld [vmem:[%s17 + $0x4] sm:$0xf]
      %v12809 = vld [vmem:[%s17 + $0x8] sm:$0xf]
      %v12810 = vld [vmem:[%s17 + $0xc] sm:$0xf]
      %v12811 = vld [vmem:[%s17 + $0x10] sm:$0xf]
      %v12812 = vld [vmem:[%s17 + $0x14] sm:$0xf]
      %v12813 = vld [vmem:[%s17 + $0x18] sm:$0xf]
      %v12814 = vld [vmem:[%s17 + $0x1c] sm:$0xf]
      %v12815 = vpack.c.bf16 %v12806, %v12806
      %v12816 = vld [vmem:[%s18] sm:$0x1]
      %v12818 = vlaneseq
      %v12819 = vshrl.u32 %v12818, 7
      %v12820 = vsub.s32 0, %v12819
      %v12821 = vrot.slane %v12816, %v12820
      %v12831 = vunpack.c.l.b16 %v12807
      %v12832 = vunpack.c.l.b16 %v12808
      %v12833 = vunpack.c.l.b16 %v12809
      %v12834 = vunpack.c.l.b16 %v12810
      %v12835 = vunpack.c.l.b16 %v12811
      %v12836 = vunpack.c.l.b16 %v12812
      %v12837 = vunpack.c.l.b16 %v12813
      %v12838 = vunpack.c.l.b16 %v12814
      %v12839 = vpack.c.b16 %v12832, %v12831
      %v12840 = vpack.c.b16 %v12834, %v12833
      %v12841 = vpack.c.b16 %v12836, %v12835
      %v12842 = vpack.c.b16 %v12838, %v12837
      %v12848 = vsel %vm8320, %v12815, 0
      %12850 = vmatprep.subr.bf16.mxu0 0
      %12851 = vmatpush1.bf16.msra.mxu0 0
      %12852 = vmatprep.subr.bf16.mxu0 0
      %12853 = vmatpush1.bf16.msra.mxu0 0
      %12854 = vmatprep.subr.bf16.mxu0 0
      %12855 = vmatpush1.bf16.msra.mxu0 0
      %12856 = vmatprep.subr.bf16.mxu0 0
      %12857 = vmatpush1.bf16.msra.mxu0 0
      %12858 = vmatprep.subr.bf16.mxu0 0
      %12859 = vmatpush1.bf16.msra.mxu0 %v12842
      %12860 = vmatprep.subr.bf16.mxu0 0
      %12861 = vmatpush1.bf16.msra.mxu0 %v12841
      %12862 = vmatprep.subr.bf16.mxu0 0
      %12863 = vmatpush1.bf16.msra.mxu0 %v12840
      %12864 = vmatprep.subr.bf16.mxu0 0
      %12865 = vmatpush1.bf16.msra.mxu0 %v12839
      %12866 = vmatprep.subr.bf16.mxu0 0
      %12867 = vmatpush2.bf16.msra.mxu0 0
      %12868 = vmatprep.subr.bf16.mxu0 0
      %12869 = vmatpush2.bf16.msra.mxu0 0
      %12870 = vmatprep.subr.bf16.mxu0 0
      %12871 = vmatpush2.bf16.msra.mxu0 0
      %12872 = vmatprep.subr.bf16.mxu0 0
      %12873 = vmatpush2.bf16.msra.mxu0 0
      %12874 = vmatprep.subr.bf16.mxu0 0
      %12875 = vmatpush2.bf16.msra.mxu0 0
      %12876 = vmatprep.subr.bf16.mxu0 0
      %12877 = vmatpush2.bf16.msra.mxu0 0
      %12878 = vmatprep.subr.bf16.mxu0 0
      %12879 = vmatpush2.bf16.msra.mxu0 0
      %12880 = vmatprep.subr.bf16.mxu0 0
      %12881 = vmatpush2.bf16.msra.mxu0 0
      %12882 = vmatprep.mubr.bf16.mxu0 0
      %12883 = vmatmul.mubr.bf16.gmra.mxu0 %v12848
      %v12884 = vpop.f32.mrf.mxu0
      %v12885 = vadd.f32 %v12821, %v12884
      %v12886 = vpop.f32.mrf.mxu0
      %v12887 = vpop.f32.mrf.mxu0
      %v12888 = vpop.f32.mrf.mxu0
      %12889 = vdwg.mxu0
      %12890 = vst [vmem:[%s600] sm:$0xff] %v12885
      %p12891 = scmp.lt.s32.totalorder %s30, 1
      %s12892 = scalar_select %p12891, %s30, 1
      %s12893 = smul.addr %s12892, 8
      %s12894 = scalar_lea.vmem %s19, %s12893
      // Predicated region
      $region97: #{cnn_v2_forward.1} parent=95 // pred_check
        %p12895 = pneg %p452
      $region98: #{cnn_v2_forward.1} parent=95 // pred_check_branch
        %12897 = sbr.rel (%p12895) target = $region100
      $region99: #{cnn_v2_forward.1} parent=95 // pred_region
        _
      $region100: #{cnn_v2_forward.1} parent=95 // pred_fallthru
        _
    $region96: #{cnn_v2_forward.1} parent=5 // pred_fallthru
      _
    %p12898 = scmp.le.s32.totalorder 2, %s25
    // Predicated region
    $region101: #{cnn_v2_forward.1} parent=5 // pred_check
      %p12899 = pneg %p12898
    $region102: #{cnn_v2_forward.1} parent=5 // pred_check_branch
      %12901 = sbr.rel (%p12899) target = $region104
    $region103: #{cnn_v2_forward.1} parent=5 // pred_region
      %s12902 = ssub.s32 %s25, 2
      // Predicated region
      $region105: #{cnn_v2_forward.1} parent=103 // pred_check
        %p12903 = pneg %p458
      $region106: #{cnn_v2_forward.1} parent=103 // pred_check_branch
        %12905 = sbr.rel (%p12903) target = $region108
      $region107: #{cnn_v2_forward.1} parent=103 // pred_region
        %p12906 = scmp.lt.s32.totalorder %s31, 1
        %s12907 = scalar_select %p12906, %s31, 1
        %s12908 = smul.addr %s12907, 8
        %s12909 = scalar_lea.vmem %s19, %s12908
      $region108: #{cnn_v2_forward.1} parent=103 // pred_fallthru
        _
    $region104: #{cnn_v2_forward.1} parent=5 // pred_fallthru
      _
  $region6: #{cnn_v2_forward.1} parent=0 // loop_footer
    %s29 = sadd.s32 1, %s25
  $region7: #{cnn_v2_forward.1} parent=0 // loop_footer_branch
    %24 = sbr.rel target = $region3
  $region8: #{cnn_v2_forward.1} parent=0 // loop_exit
    _

</llo_original>
